<compile_context>
chip_gen: v5e
topology: v5e:2x2
jax: 0.10.0
libtpu: 0.0.40
codegen_flags: <defaults>
</compile_context>

<pallas_src>
import functools

import jax
import jax.numpy as jnp
import numpy as np
from jax import lax
from jax.experimental import pallas as pl
from jax.experimental.pallas import tpu as pltpu

CHANNELS = (32, 64, 128, 256)     # Conv3d output channels from the PyTorch spec


def _round_up(x, m):
    return ((x + m - 1) // m) * m


def _pick_tile_m(m):
    for cand in (512, 256, 128, 64, 32, 16, 8):
        if m % cand == 0:
            return cand
    return m          # tiny M: single full-extent block (allowed by BlockSpec)


# ---------------------------------------------------------------------------
# Generic conv layer kernel: sum over taps of (tm, K) @ (K, Cout) + bias + ReLU
# ---------------------------------------------------------------------------
def _tap_matmul_kernel(x_ref, w_ref, b_ref, o_ref, *, taps):
    """x_ref: (taps, tm, K) bf16, w_ref: (taps, K, Cout) bf16 (VMEM-resident),
    b_ref: (1, Cout) f32, o_ref: (tm, Cout) bf16."""
    acc = jnp.dot(x_ref[0], w_ref[0], preferred_element_type=jnp.float32)
    for t in range(1, taps):
        acc = acc + jnp.dot(x_ref[t], w_ref[t], preferred_element_type=jnp.float32)
    o_ref[...] = jnp.maximum(acc + b_ref[...], 0.0).astype(o_ref.dtype)


def conv_taps_matmul(x_taps, w_taps, b):
    """x_taps: (T, M, K) bf16, w_taps: (T, K, Cout) bf16, b: (1, Cout) f32.
    Returns ReLU(conv) as (M, Cout) bf16, rows in the caller's M ordering."""
    taps, m, k = x_taps.shape
    cout = w_taps.shape[-1]
    tm = _pick_tile_m(m)
    grid = (m // tm,)
    bytes_acc = (taps * m * k + taps * k * cout + m * cout) * 2 + cout * 4
    vmem = min(max(2 * taps * tm * k * 2 + taps * k * cout * 2
                   + 2 * tm * cout * 2 + (4 << 20), 16 << 20), 48 << 20)
    return pl.pallas_call(
        functools.partial(_tap_matmul_kernel, taps=taps),
        out_shape=jax.ShapeDtypeStruct((m, cout), jnp.bfloat16),
        grid_spec=pltpu.PrefetchScalarGridSpec(
            num_scalar_prefetch=0,
            grid=grid,
            in_specs=[
                pl.BlockSpec((taps, tm, k), lambda i: (0, i, 0)),
                # constant index_map -> weight slab DMA'd once (VMEM-resident)
                pl.BlockSpec((taps, k, cout), lambda i: (0, 0, 0)),
                pl.BlockSpec((1, cout), lambda i: (0, 0)),
            ],
            out_specs=pl.BlockSpec((tm, cout), lambda i: (i, 0)),
        ),
        compiler_params=pltpu.CompilerParams(
            dimension_semantics=("parallel",),
            vmem_limit_bytes=int(vmem),
        ),
        cost_estimate=pl.CostEstimate(flops=2 * taps * m * k * cout,
                                      transcendentals=0,
                                      bytes_accessed=int(bytes_acc)),
    )(x_taps, w_taps, b)


# ---------------------------------------------------------------------------
# Fused tail (voxel_size == 16): conv3 + conv4 + fc + sigmoid in ONE call
# ---------------------------------------------------------------------------
def _tail_kernel(x3_ref, w3_ref, b3_ref, w4_ref, b4_ref, fcw_ref, fcb_ref,
                 o_ref, *, n_batch, n_pad):
    # Layer 3: 8-tap matmul reduction; rows ordered (d, h, w, n_pad).
    acc3 = jnp.dot(x3_ref[0], w3_ref[0], preferred_element_type=jnp.float32)
    for t in range(1, 8):
        acc3 = acc3 + jnp.dot(x3_ref[t], w3_ref[t],
                              preferred_element_type=jnp.float32)
    act3 = jnp.maximum(acc3 + b3_ref[...], 0.0).astype(jnp.bfloat16)

    # Layer 4 at final_dim == 1: only the central 2x2x2 kernel taps see data,
    # so it is 8 small matmuls over the 8 spatial positions of act3.
    cout4 = w4_ref.shape[-1]
    acc4 = jnp.zeros((n_pad, cout4), jnp.float32)
    for mpos in range(8):
        acc4 = acc4 + jnp.dot(act3[mpos * n_pad:(mpos + 1) * n_pad, :],
                              w4_ref[mpos], preferred_element_type=jnp.float32)
    act4 = jnp.maximum(acc4 + b4_ref[...], 0.0)

    # fc (out_features = 1): VPU multiply + lane reduce, EUP sigmoid.
    logits = jnp.sum(act4 * fcw_ref[...], axis=-1, keepdims=True) + fcb_ref[...]
    o_ref[...] = jax.nn.sigmoid(logits[:n_batch])


def tail_fused_pallas(x3_taps, w3, b3, w4eff, b4, fcw, fcb, n_batch, n_pad):
    return pl.pallas_call(
        functools.partial(_tail_kernel, n_batch=n_batch, n_pad=n_pad),
        out_shape=jax.ShapeDtypeStruct((n_batch, 1), jnp.float32),
        in_specs=[pl.BlockSpec(memory_space=pltpu.MemorySpace.VMEM)] * 7,
        out_specs=pl.BlockSpec(memory_space=pltpu.MemorySpace.VMEM),
        compiler_params=pltpu.CompilerParams(vmem_limit_bytes=32 * 1024 * 1024),
    )(x3_taps, w3, b3, w4eff, b4, fcw, fcb)


# ---------------------------------------------------------------------------
# Generic final Linear(1) + Sigmoid (only used when voxel_size > 16)
# ---------------------------------------------------------------------------
def _fc_sigmoid_kernel(x_ref, w_ref, b_ref, o_ref):
    x = x_ref[...].astype(jnp.float32)
    z = jnp.sum(x * w_ref[...], axis=-1, keepdims=True) + b_ref[...]
    o_ref[...] = jax.nn.sigmoid(z)


def fc_sigmoid_pallas(x, w_row, b):
    # fc_in is small (256 * final_dim^3); a single VMEM block suffices.
    # TODO(synk): grid the K axis with an accumulator for very large voxel sizes.
    bsz = x.shape[0]
    return pl.pallas_call(
        _fc_sigmoid_kernel,
        out_shape=jax.ShapeDtypeStruct((bsz, 1), jnp.float32),
        in_specs=[pl.BlockSpec(memory_space=pltpu.MemorySpace.VMEM)] * 3,
        out_specs=pl.BlockSpec(memory_space=pltpu.MemorySpace.VMEM),
        compiler_params=pltpu.CompilerParams(vmem_limit_bytes=32 * 1024 * 1024),
    )(x, w_row, b)


# ---------------------------------------------------------------------------
# XLA-side layout glue (cheap at these shapes)
# ---------------------------------------------------------------------------
def _im2col_layer1(x):
    """x: (N, D, H, W) f32 -> (1, N*Do*Ho*Wo, 64) bf16.  Full 4^3 kernel folded
    into the contraction (Cin == 1); rows ordered (n, do, ho, wo)."""
    n, d, h, w = x.shape
    do, ho, wo = d // 2, h // 2, w // 2
    xp = jnp.pad(x, ((0, 0), (1, 1), (1, 1), (1, 1))).astype(jnp.bfloat16)
    cols = []
    for kd in range(4):
        for kh in range(4):
            for kw in range(4):
                cols.append(xp[:, kd:kd + 2 * do:2,
                               kh:kh + 2 * ho:2, kw:kw + 2 * wo:2])
    xc = jnp.stack(cols, axis=-1)                       # (N, Do, Ho, Wo, 64)
    return xc.reshape(1, n * do * ho * wo, 64)


def _space_to_depth_pad(x):
    """(N, D, H, W, C) -> (N, D/2+1, H/2+1, W/2+1, 8C), conv pad=1 folded in.
    Channel packing: ((sd*2+sh)*2+sw)*C + c."""
    n, d, h, w, c = x.shape
    xp = jnp.pad(x, ((0, 0), (1, 1), (1, 1), (1, 1), (0, 0)))
    dp, hp, wp = (d + 2) // 2, (h + 2) // 2, (w + 2) // 2
    xs = xp.reshape(n, dp, 2, hp, 2, wp, 2, c)
    xs = jnp.transpose(xs, (0, 1, 3, 5, 2, 4, 6, 7)).reshape(n, dp, hp, wp, 8 * c)
    return xs


def _s2d_taps(act):
    """(N, D, H, W, C) -> (8, N*Do*Ho*Wo, 8C): one flattened (M, K) slab per
    (kd2, kh2, kw2) tap; rows ordered (n, do, ho, wo)."""
    n, d, h, w, c = act.shape
    do, ho, wo = d // 2, h // 2, w // 2
    xs = _space_to_depth_pad(act)
    taps = []
    for kd2 in range(2):
        for kh2 in range(2):
            for kw2 in range(2):
                t = xs[:, kd2:kd2 + do, kh2:kh2 + ho, kw2:kw2 + wo, :]
                taps.append(t.reshape(n * do * ho * wo, 8 * c))
    return jnp.stack(taps, axis=0)


def _s2d_taps_tail(act, n_pad):
    """Layer-3 input slabs for the fused tail (final_dim == 1): rows ordered
    (do, ho, wo, n) with the batch zero-padded to n_pad so all in-kernel row
    slices land on aligned sublane offsets."""
    n, d, h, w, c = act.shape            # d == h == w == 4 here
    xs = _space_to_depth_pad(act)        # (N, 3, 3, 3, 8C)
    taps = []
    for kd2 in range(2):
        for kh2 in range(2):
            for kw2 in range(2):
                t = xs[:, kd2:kd2 + 2, kh2:kh2 + 2, kw2:kw2 + 2, :]   # (N,2,2,2,8C)
                t = jnp.transpose(t, (1, 2, 3, 0, 4))                 # (2,2,2,N,8C)
                t = jnp.pad(t, ((0, 0),) * 3 + ((0, n_pad - n), (0, 0)))
                taps.append(t.reshape(8 * n_pad, 8 * c))
    return jnp.stack(taps, axis=0)       # (8, 8*n_pad, 8C)


# ---------------------------------------------------------------------------
# Forward pass
# ---------------------------------------------------------------------------
def discriminator_forward(kp, x_ncdhw):
    n = x_ncdhw.shape[0]
    voxel = x_ncdhw.shape[2]
    assert voxel % 16 == 0
    final_dim = voxel // 16

    # conv1 (Cin=1, K=64, single tap) + ReLU
    a = conv_taps_matmul(_im2col_layer1(x_ncdhw[:, 0]), kp["w1"], kp["b1"])
    d = voxel // 2
    a = a.reshape(n, d, d, d, CHANNELS[0])

    # conv2 + ReLU
    a = conv_taps_matmul(_s2d_taps(a), kp["w2"], kp["b2"])
    d = voxel // 4
    a = a.reshape(n, d, d, d, CHANNELS[1])

    if final_dim == 1:
        # Fused conv3 + conv4 + fc + sigmoid (single pallas_call).
        n_pad = _round_up(n, 16)
        x3 = _s2d_taps_tail(a, n_pad)
        return tail_fused_pallas(x3, kp["w3"], kp["b3"], kp["w4eff"], kp["b4"],
                                 kp["fc_w"], kp["fc_b"], n, n_pad)

    # Generic tail for voxel_size > 16.
    a = conv_taps_matmul(_s2d_taps(a), kp["w3"], kp["b3"])
    d = voxel // 8
    a = a.reshape(n, d, d, d, CHANNELS[2])
    a = conv_taps_matmul(_s2d_taps(a), kp["w4"], kp["b4"])
    a = a.reshape(n, -1)   # channels-last flatten; fc_w pre-permuted to match
    return fc_sigmoid_pallas(a, kp["fc_w"], kp["fc_b"])


# ---------------------------------------------------------------------------
# One-time parameter preparation (tap layout, bf16 cast, fused-tail weights)
# ---------------------------------------------------------------------------
def prepare_params(params, voxel_size):
    kp = {}
    # Layer 1: fold the full 4x4x4 kernel into K = 64 (Cin == 1).
    w1 = params["w1"].reshape(CHANNELS[0], 64).T               # (64, 32)
    kp["w1"] = w1[None].astype(jnp.bfloat16)                   # (1, 64, 32)
    kp["b1"] = params["b1"].reshape(1, CHANNELS[0]).astype(jnp.float32)

    for i, (cin, cout) in zip((2, 3, 4), ((32, 64), (64, 128), (128, 256))):
        w = params[f"w{i}"]                                    # (Cout, Cin, 4,4,4)
        w = w.reshape(cout, cin, 2, 2, 2, 2, 2, 2)             # kd=2*kd2+sd etc.
        w = jnp.transpose(w, (2, 4, 6, 3, 5, 7, 1, 0))         # (kd2,kh2,kw2,sd,sh,sw,ci,co)
        w = w.reshape(8, 8 * cin, cout)                        # tap-major, s2d channel order
        kp[f"w{i}"] = w.astype(jnp.bfloat16)
        kp[f"b{i}"] = params[f"b{i}"].reshape(1, cout).astype(jnp.float32)

    f = voxel_size // 16
    # torch flattens NCDHW (c,d,h,w); permute fc_w columns to (d,h,w,c) so the
    # activation can be flattened channels-last without a transpose. (Identity at f==1.)
    fc_w = params["fc_w"].reshape(1, 256, f, f, f)
    fc_w = jnp.transpose(fc_w, (0, 2, 3, 4, 1)).reshape(1, -1)
    kp["fc_w"] = fc_w.astype(jnp.float32)
    kp["fc_b"] = params["fc_b"].reshape(1, 1).astype(jnp.float32)

    if f == 1:
        # At final_dim == 1 only the central 2x2x2 of conv4's kernel sees data.
        w4 = params["w4"][:, :, 1:3, 1:3, 1:3]                 # (256,128,2,2,2)
        w4 = jnp.transpose(w4, (2, 3, 4, 1, 0)).reshape(8, 128, 256)
        kp["w4eff"] = w4.astype(jnp.bfloat16)
    return kp


# ---------------------------------------------------------------------------
# Pure-JAX f32 reference (XLA conv) for correctness checking
# ---------------------------------------------------------------------------
def reference_forward(params, x_ncdhw):
    x = jnp.transpose(x_ncdhw, (0, 2, 3, 4, 1))
    for i in range(1, 5):
        w = jnp.transpose(params[f"w{i}"], (2, 3, 4, 1, 0))    # DHWIO
        x = lax.conv_general_dilated(
            x, w, (2, 2, 2), ((1, 1), (1, 1), (1, 1)),
            dimension_numbers=("NDHWC", "DHWIO", "NDHWC"))
        x = jnp.maximum(x + params[f"b{i}"], 0.0)
    n = x.shape[0]
    x = jnp.transpose(x, (0, 4, 1, 2, 3)).reshape(n, -1)       # torch NCDHW flatten
    logits = x @ params["fc_w"].T + params["fc_b"]
    return 1.0 / (1.0 + jnp.exp(-logits))


# ---------------------------------------------------------------------------
# Deterministic parameter init (PyTorch-default-style uniform), torch layouts
# ---------------------------------------------------------------------------
def init_params(key, voxel_size):
    keys = jax.random.split(key, 10)
    chans = [(1, 32), (32, 64), (64, 128), (128, 256)]
    params = {}
    for i, (cin, cout) in enumerate(chans, start=1):
        fan_in = cin * 4 * 4 * 4
        bound = 1.0 / np.sqrt(fan_in)
        params[f"w{i}"] = jax.random.uniform(
            keys[2 * (i - 1)], (cout, cin, 4, 4, 4), jnp.float32, -bound, bound)
        params[f"b{i}"] = jax.random.uniform(
            keys[2 * (i - 1) + 1], (cout,), jnp.float32, -bound, bound)
    final_dim = voxel_size // 16
    fc_in = 256 * final_dim * final_dim * final_dim
    bound = 1.0 / np.sqrt(fc_in)
    params["fc_w"] = jax.random.uniform(keys[8], (1, fc_in), jnp.float32, -bound, bound)
    params["fc_b"] = jax.random.uniform(keys[9], (1,), jnp.float32, -bound, bound)
    return params


if __name__ == "__main__":
    voxel_size = 16          # smallest size consistent with the module (//16)
    batch = 2
    key = jax.random.PRNGKey(0)
    pkey, xkey = jax.random.split(key)

    params = init_params(pkey, voxel_size)
    kparams = prepare_params(params, voxel_size)        # one-time weight prep
    x = jax.random.normal(xkey, (batch, 1, voxel_size, voxel_size, voxel_size),
                          dtype=jnp.float32)

    fwd = jax.jit(discriminator_forward)
    out = jax.block_until_ready(fwd(kparams, x))
    assert out.shape == (batch, 1), out.shape

    ref = jax.block_until_ready(reference_forward(params, x))
    # bf16 MXU inputs + bf16 inter-layer activations vs an f32 reference.
    np.testing.assert_allclose(np.asarray(out), np.asarray(ref),
                               rtol=2e-2, atol=2e-2)

    print("KERNEL_OK")
</pallas_src>

<mosaic_0001>
module attributes {stable_mosaic.version = 11 : i64} {
  func.func @_tap_matmul_kernel(%arg0: i32, %arg1: memref<1x512x64xbf16, #tpu.memory_space<vmem>>, %arg2: memref<1x64x32xbf16, #tpu.memory_space<vmem>>, %arg3: memref<1x32xf32, #tpu.memory_space<vmem>>, %arg4: memref<512x32xbf16, #tpu.memory_space<vmem>>) attributes {dimension_semantics = [#tpu.dimension_semantics<parallel>], iteration_bounds = array<i64: 2>, scalar_prefetch = 0 : i64, scratch_operands = 0 : i64, tpu.core_type = #tpu.core_type<tc>, window_params = [{transform_indices = @transform_0, window_bounds = array<i64: 1, 512, 64>}, {pipeline_mode = #tpu.pipeline_mode<synchronous>, transform_indices = @transform_1, window_bounds = array<i64: 1, 64, 32>}, {pipeline_mode = #tpu.pipeline_mode<synchronous>, transform_indices = @transform_2, window_bounds = array<i64: 1, 32>}, {transform_indices = @transform_3, window_bounds = array<i64: 512, 32>}]} {
    %c0 = arith.constant 0 : index
    %c0_0 = arith.constant 0 : index
    %c0_1 = arith.constant 0 : index
    %0 = vector.load %arg1[%c0, %c0_0, %c0_1] : memref<1x512x64xbf16, #tpu.memory_space<vmem>>, vector<1x512x64xbf16>
    %1 = vector.shape_cast %0 : vector<1x512x64xbf16> to vector<512x64xbf16>
    %c0_2 = arith.constant 0 : index
    %c0_3 = arith.constant 0 : index
    %c0_4 = arith.constant 0 : index
    %2 = vector.load %arg2[%c0_2, %c0_3, %c0_4] : memref<1x64x32xbf16, #tpu.memory_space<vmem>>, vector<1x64x32xbf16>
    %3 = vector.shape_cast %2 : vector<1x64x32xbf16> to vector<64x32xbf16>
    %cst = arith.constant dense<0.000000e+00> : vector<512x32xf32>
    %4 = tpu.matmul %1, %3, %cst {dimension_numbers = #tpu.dot_dimension_numbers<[1], [0], [0], [1], [0, 0, 1, 1], [], []>} : vector<512x64xbf16>, vector<64x32xbf16>, vector<512x32xf32> -> vector<512x32xf32>
    %c0_5 = arith.constant 0 : index
    %c0_6 = arith.constant 0 : index
    %5 = vector.load %arg3[%c0_5, %c0_6] : memref<1x32xf32, #tpu.memory_space<vmem>>, vector<1x32xf32>
    %6 = vector.broadcast %5 : vector<1x32xf32> to vector<512x32xf32>
    %7 = arith.addf %4, %6 : vector<512x32xf32>
    %cst_7 = arith.constant 0.000000e+00 : f32
    %8 = vector.broadcast %cst_7 : f32 to vector<512x32xf32>
    %9 = arith.maximumf %7, %8 : vector<512x32xf32>
    %10 = arith.truncf %9 : vector<512x32xf32> to vector<512x32xbf16>
    %c0_8 = arith.constant 0 : index
    %c0_9 = arith.constant 0 : index
    %11 = vector.load %arg4[%c0_8, %c0_9] : memref<512x32xbf16, #tpu.memory_space<vmem>>, vector<512x32xbf16>
    tpu.vector_store %arg4[%c0_8, %c0_9], %10 {strides = array<i32>} : memref<512x32xbf16, #tpu.memory_space<vmem>>, vector<512x32xbf16>,
    return
  }
  func.func @transform_0(%arg0: i32) -> (i32, i32, i32) {
    %c0_i32 = arith.constant 0 : i32
    %c0_i32_0 = arith.constant 0 : i32
    %c0_i32_1 = arith.constant 0 : i32
    return %c0_i32, %arg0, %c0_i32_0 : i32, i32, i32
  }
  func.func @transform_1(%arg0: i32) -> (i32, i32, i32) {
    %c0_i32 = arith.constant 0 : i32
    %c0_i32_0 = arith.constant 0 : i32
    %c0_i32_1 = arith.constant 0 : i32
    %c0_i32_2 = arith.constant 0 : i32
    return %c0_i32, %c0_i32_0, %c0_i32_1 : i32, i32, i32
  }
  func.func @transform_2(%arg0: i32) -> (i32, i32) {
    %c0_i32 = arith.constant 0 : i32
    %c0_i32_0 = arith.constant 0 : i32
    %c0_i32_1 = arith.constant 0 : i32
    return %c0_i32, %c0_i32_0 : i32, i32
  }
  func.func @transform_3(%arg0: i32) -> (i32, i32) {
    %c0_i32 = arith.constant 0 : i32
    %c0_i32_0 = arith.constant 0 : i32
    return %arg0, %c0_i32 : i32, i32
  }
}

module attributes {stable_mosaic.version = 11 : i64} {
  func.func @_tap_matmul_kernel(%arg0: i32, %arg1: memref<8x128x256xbf16, #tpu.memory_space<vmem>>, %arg2: memref<8x256x64xbf16, #tpu.memory_space<vmem>>, %arg3: memref<1x64xf32, #tpu.memory_space<vmem>>, %arg4: memref<128x64xbf16, #tpu.memory_space<vmem>>) attributes {dimension_semantics = [#tpu.dimension_semantics<parallel>], iteration_bounds = array<i64: 1>, scalar_prefetch = 0 : i64, scratch_operands = 0 : i64, tpu.core_type = #tpu.core_type<tc>, window_params = [{transform_indices = @transform_0, window_bounds = array<i64: 8, 128, 256>}, {pipeline_mode = #tpu.pipeline_mode<synchronous>, transform_indices = @transform_1, window_bounds = array<i64: 8, 256, 64>}, {pipeline_mode = #tpu.pipeline_mode<synchronous>, transform_indices = @transform_2, window_bounds = array<i64: 1, 64>}, {transform_indices = @transform_3, window_bounds = array<i64: 128, 64>}]} {
    %c0 = arith.constant 0 : index
    %c0_0 = arith.constant 0 : index
    %c0_1 = arith.constant 0 : index
    %0 = vector.load %arg1[%c0, %c0_0, %c0_1] : memref<8x128x256xbf16, #tpu.memory_space<vmem>>, vector<1x128x256xbf16>
    %1 = vector.shape_cast %0 : vector<1x128x256xbf16> to vector<128x256xbf16>
    %c0_2 = arith.constant 0 : index
    %c0_3 = arith.constant 0 : index
    %c0_4 = arith.constant 0 : index
    %2 = vector.load %arg2[%c0_2, %c0_3, %c0_4] : memref<8x256x64xbf16, #tpu.memory_space<vmem>>, vector<1x256x64xbf16>
    %3 = vector.shape_cast %2 : vector<1x256x64xbf16> to vector<256x64xbf16>
    %cst = arith.constant dense<0.000000e+00> : vector<128x64xf32>
    %4 = tpu.matmul %1, %3, %cst {dimension_numbers = #tpu.dot_dimension_numbers<[1], [0], [0], [1], [0, 0, 1, 1], [], []>} : vector<128x256xbf16>, vector<256x64xbf16>, vector<128x64xf32> -> vector<128x64xf32>
    %c1 = arith.constant 1 : index
    %c0_5 = arith.constant 0 : index
    %c0_6 = arith.constant 0 : index
    %5 = vector.load %arg1[%c1, %c0_5, %c0_6] : memref<8x128x256xbf16, #tpu.memory_space<vmem>>, vector<1x128x256xbf16>
    %6 = vector.shape_cast %5 : vector<1x128x256xbf16> to vector<128x256xbf16>
    %c1_7 = arith.constant 1 : index
    %c0_8 = arith.constant 0 : index
    %c0_9 = arith.constant 0 : index
    %7 = vector.load %arg2[%c1_7, %c0_8, %c0_9] : memref<8x256x64xbf16, #tpu.memory_space<vmem>>, vector<1x256x64xbf16>
    %8 = vector.shape_cast %7 : vector<1x256x64xbf16> to vector<256x64xbf16>
    %cst_10 = arith.constant dense<0.000000e+00> : vector<128x64xf32>
    %9 = tpu.matmul %6, %8, %cst_10 {dimension_numbers = #tpu.dot_dimension_numbers<[1], [0], [0], [1], [0, 0, 1, 1], [], []>} : vector<128x256xbf16>, vector<256x64xbf16>, vector<128x64xf32> -> vector<128x64xf32>
    %10 = arith.addf %4, %9 : vector<128x64xf32>
    %c2 = arith.constant 2 : index
    %c0_11 = arith.constant 0 : index
    %c0_12 = arith.constant 0 : index
    %11 = vector.load %arg1[%c2, %c0_11, %c0_12] : memref<8x128x256xbf16, #tpu.memory_space<vmem>>, vector<1x128x256xbf16>
    %12 = vector.shape_cast %11 : vector<1x128x256xbf16> to vector<128x256xbf16>
    %c2_13 = arith.constant 2 : index
    %c0_14 = arith.constant 0 : index
    %c0_15 = arith.constant 0 : index
    %13 = vector.load %arg2[%c2_13, %c0_14, %c0_15] : memref<8x256x64xbf16, #tpu.memory_space<vmem>>, vector<1x256x64xbf16>
    %14 = vector.shape_cast %13 : vector<1x256x64xbf16> to vector<256x64xbf16>
    %cst_16 = arith.constant dense<0.000000e+00> : vector<128x64xf32>
    %15 = tpu.matmul %12, %14, %cst_16 {dimension_numbers = #tpu.dot_dimension_numbers<[1], [0], [0], [1], [0, 0, 1, 1], [], []>} : vector<128x256xbf16>, vector<256x64xbf16>, vector<128x64xf32> -> vector<128x64xf32>
    %16 = arith.addf %10, %15 : vector<128x64xf32>
    %c3 = arith.constant 3 : index
    %c0_17 = arith.constant 0 : index
    %c0_18 = arith.constant 0 : index
    %17 = vector.load %arg1[%c3, %c0_17, %c0_18] : memref<8x128x256xbf16, #tpu.memory_space<vmem>>, vector<1x128x256xbf16>
    %18 = vector.shape_cast %17 : vector<1x128x256xbf16> to vector<128x256xbf16>
    %c3_19 = arith.constant 3 : index
    %c0_20 = arith.constant 0 : index
    %c0_21 = arith.constant 0 : index
    %19 = vector.load %arg2[%c3_19, %c0_20, %c0_21] : memref<8x256x64xbf16, #tpu.memory_space<vmem>>, vector<1x256x64xbf16>
    %20 = vector.shape_cast %19 : vector<1x256x64xbf16> to vector<256x64xbf16>
    %cst_22 = arith.constant dense<0.000000e+00> : vector<128x64xf32>
    %21 = tpu.matmul %18, %20, %cst_22 {dimension_numbers = #tpu.dot_dimension_numbers<[1], [0], [0], [1], [0, 0, 1, 1], [], []>} : vector<128x256xbf16>, vector<256x64xbf16>, vector<128x64xf32> -> vector<128x64xf32>
    %22 = arith.addf %16, %21 : vector<128x64xf32>
    %c4 = arith.constant 4 : index
    %c0_23 = arith.constant 0 : index
    %c0_24 = arith.constant 0 : index
    %23 = vector.load %arg1[%c4, %c0_23, %c0_24] : memref<8x128x256xbf16, #tpu.memory_space<vmem>>, vector<1x128x256xbf16>
    %24 = vector.shape_cast %23 : vector<1x128x256xbf16> to vector<128x256xbf16>
    %c4_25 = arith.constant 4 : index
    %c0_26 = arith.constant 0 : index
    %c0_27 = arith.constant 0 : index
    %25 = vector.load %arg2[%c4_25, %c0_26, %c0_27] : memref<8x256x64xbf16, #tpu.memory_space<vmem>>, vector<1x256x64xbf16>
    %26 = vector.shape_cast %25 : vector<1x256x64xbf16> to vector<256x64xbf16>
    %cst_28 = arith.constant dense<0.000000e+00> : vector<128x64xf32>
    %27 = tpu.matmul %24, %26, %cst_28 {dimension_numbers = #tpu.dot_dimension_numbers<[1], [0], [0], [1], [0, 0, 1, 1], [], []>} : vector<128x256xbf16>, vector<256x64xbf16>, vector<128x64xf32> -> vector<128x64xf32>
    %28 = arith.addf %22, %27 : vector<128x64xf32>
    %c5 = arith.constant 5 : index
    %c0_29 = arith.constant 0 : index
    %c0_30 = arith.constant 0 : index
    %29 = vector.load %arg1[%c5, %c0_29, %c0_30] : memref<8x128x256xbf16, #tpu.memory_space<vmem>>, vector<1x128x256xbf16>
    %30 = vector.shape_cast %29 : vector<1x128x256xbf16> to vector<128x256xbf16>
    %c5_31 = arith.constant 5 : index
    %c0_32 = arith.constant 0 : index
    %c0_33 = arith.constant 0 : index
    %31 = vector.load %arg2[%c5_31, %c0_32, %c0_33] : memref<8x256x64xbf16, #tpu.memory_space<vmem>>, vector<1x256x64xbf16>
    %32 = vector.shape_cast %31 : vector<1x256x64xbf16> to vector<256x64xbf16>
    %cst_34 = arith.constant dense<0.000000e+00> : vector<128x64xf32>
    %33 = tpu.matmul %30, %32, %cst_34 {dimension_numbers = #tpu.dot_dimension_numbers<[1], [0], [0], [1], [0, 0, 1, 1], [], []>} : vector<128x256xbf16>, vector<256x64xbf16>, vector<128x64xf32> -> vector<128x64xf32>
    %34 = arith.addf %28, %33 : vector<128x64xf32>
    %c6 = arith.constant 6 : index
    %c0_35 = arith.constant 0 : index
    %c0_36 = arith.constant 0 : index
    %35 = vector.load %arg1[%c6, %c0_35, %c0_36] : memref<8x128x256xbf16, #tpu.memory_space<vmem>>, vector<1x128x256xbf16>
    %36 = vector.shape_cast %35 : vector<1x128x256xbf16> to vector<128x256xbf16>
    %c6_37 = arith.constant 6 : index
    %c0_38 = arith.constant 0 : index
    %c0_39 = arith.constant 0 : index
    %37 = vector.load %arg2[%c6_37, %c0_38, %c0_39] : memref<8x256x64xbf16, #tpu.memory_space<vmem>>, vector<1x256x64xbf16>
    %38 = vector.shape_cast %37 : vector<1x256x64xbf16> to vector<256x64xbf16>
    %cst_40 = arith.constant dense<0.000000e+00> : vector<128x64xf32>
    %39 = tpu.matmul %36, %38, %cst_40 {dimension_numbers = #tpu.dot_dimension_numbers<[1], [0], [0], [1], [0, 0, 1, 1], [], []>} : vector<128x256xbf16>, vector<256x64xbf16>, vector<128x64xf32> -> vector<128x64xf32>
    %40 = arith.addf %34, %39 : vector<128x64xf32>
    %c7 = arith.constant 7 : index
    %c0_41 = arith.constant 0 : index
    %c0_42 = arith.constant 0 : index
    %41 = vector.load %arg1[%c7, %c0_41, %c0_42] : memref<8x128x256xbf16, #tpu.memory_space<vmem>>, vector<1x128x256xbf16>
    %42 = vector.shape_cast %41 : vector<1x128x256xbf16> to vector<128x256xbf16>
    %c7_43 = arith.constant 7 : index
    %c0_44 = arith.constant 0 : index
    %c0_45 = arith.constant 0 : index
    %43 = vector.load %arg2[%c7_43, %c0_44, %c0_45] : memref<8x256x64xbf16, #tpu.memory_space<vmem>>, vector<1x256x64xbf16>
    %44 = vector.shape_cast %43 : vector<1x256x64xbf16> to vector<256x64xbf16>
    %cst_46 = arith.constant dense<0.000000e+00> : vector<128x64xf32>
    %45 = tpu.matmul %42, %44, %cst_46 {dimension_numbers = #tpu.dot_dimension_numbers<[1], [0], [0], [1], [0, 0, 1, 1], [], []>} : vector<128x256xbf16>, vector<256x64xbf16>, vector<128x64xf32> -> vector<128x64xf32>
    %46 = arith.addf %40, %45 : vector<128x64xf32>
    %c0_47 = arith.constant 0 : index
    %c0_48 = arith.constant 0 : index
    %47 = vector.load %arg3[%c0_47, %c0_48] : memref<1x64xf32, #tpu.memory_space<vmem>>, vector<1x64xf32>
    %48 = vector.broadcast %47 : vector<1x64xf32> to vector<128x64xf32>
    %49 = arith.addf %46, %48 : vector<128x64xf32>
    %cst_49 = arith.constant 0.000000e+00 : f32
    %50 = vector.broadcast %cst_49 : f32 to vector<128x64xf32>
    %51 = arith.maximumf %49, %50 : vector<128x64xf32>
    %52 = arith.truncf %51 : vector<128x64xf32> to vector<128x64xbf16>
    %c0_50 = arith.constant 0 : index
    %c0_51 = arith.constant 0 : index
    %53 = vector.load %arg4[%c0_50, %c0_51] : memref<128x64xbf16, #tpu.memory_space<vmem>>, vector<128x64xbf16>
    tpu.vector_store %arg4[%c0_50, %c0_51], %52 {strides = array<i32>} : memref<128x64xbf16, #tpu.memory_space<vmem>>, vector<128x64xbf16>,
    return
  }
  func.func @transform_0(%arg0: i32) -> (i32, i32, i32) {
    %c0_i32 = arith.constant 0 : i32
    %c0_i32_0 = arith.constant 0 : i32
    %c0_i32_1 = arith.constant 0 : i32
    return %c0_i32, %arg0, %c0_i32_0 : i32, i32, i32
  }
  func.func @transform_1(%arg0: i32) -> (i32, i32, i32) {
    %c0_i32 = arith.constant 0 : i32
    %c0_i32_0 = arith.constant 0 : i32
    %c0_i32_1 = arith.constant 0 : i32
    %c0_i32_2 = arith.constant 0 : i32
    return %c0_i32, %c0_i32_0, %c0_i32_1 : i32, i32, i32
  }
  func.func @transform_2(%arg0: i32) -> (i32, i32) {
    %c0_i32 = arith.constant 0 : i32
    %c0_i32_0 = arith.constant 0 : i32
    %c0_i32_1 = arith.constant 0 : i32
    return %c0_i32, %c0_i32_0 : i32, i32
  }
  func.func @transform_3(%arg0: i32) -> (i32, i32) {
    %c0_i32 = arith.constant 0 : i32
    %c0_i32_0 = arith.constant 0 : i32
    return %arg0, %c0_i32 : i32, i32
  }
}

module attributes {stable_mosaic.version = 11 : i64} {
  func.func @_tail_kernel(%arg0: memref<8x128x512xbf16, #tpu.memory_space<vmem>>, %arg1: memref<8x512x128xbf16, #tpu.memory_space<vmem>>, %arg2: memref<1x128xf32, #tpu.memory_space<vmem>>, %arg3: memref<8x128x256xbf16, #tpu.memory_space<vmem>>, %arg4: memref<1x256xf32, #tpu.memory_space<vmem>>, %arg5: memref<1x256xf32, #tpu.memory_space<vmem>>, %arg6: memref<1x1xf32, #tpu.memory_space<vmem>>, %arg7: memref<2x1xf32, #tpu.memory_space<vmem>>) attributes {dimension_semantics = [], scalar_prefetch = 0 : i64, scratch_operands = 0 : i64, tpu.core_type = #tpu.core_type<tc>} {
    %c0 = arith.constant 0 : index
    %c0_0 = arith.constant 0 : index
    %c0_1 = arith.constant 0 : index
    %0 = vector.load %arg0[%c0, %c0_0, %c0_1] : memref<8x128x512xbf16, #tpu.memory_space<vmem>>, vector<1x128x512xbf16>
    %1 = vector.shape_cast %0 : vector<1x128x512xbf16> to vector<128x512xbf16>
    %c0_2 = arith.constant 0 : index
    %c0_3 = arith.constant 0 : index
    %c0_4 = arith.constant 0 : index
    %2 = vector.load %arg1[%c0_2, %c0_3, %c0_4] : memref<8x512x128xbf16, #tpu.memory_space<vmem>>, vector<1x512x128xbf16>
    %3 = vector.shape_cast %2 : vector<1x512x128xbf16> to vector<512x128xbf16>
    %cst = arith.constant dense<0.000000e+00> : vector<128x128xf32>
    %4 = tpu.matmul %1, %3, %cst {dimension_numbers = #tpu.dot_dimension_numbers<[1], [0], [0], [1], [0, 0, 1, 1], [], []>} : vector<128x512xbf16>, vector<512x128xbf16>, vector<128x128xf32> -> vector<128x128xf32>
    %c1 = arith.constant 1 : index
    %c0_5 = arith.constant 0 : index
    %c0_6 = arith.constant 0 : index
    %5 = vector.load %arg0[%c1, %c0_5, %c0_6] : memref<8x128x512xbf16, #tpu.memory_space<vmem>>, vector<1x128x512xbf16>
    %6 = vector.shape_cast %5 : vector<1x128x512xbf16> to vector<128x512xbf16>
    %c1_7 = arith.constant 1 : index
    %c0_8 = arith.constant 0 : index
    %c0_9 = arith.constant 0 : index
    %7 = vector.load %arg1[%c1_7, %c0_8, %c0_9] : memref<8x512x128xbf16, #tpu.memory_space<vmem>>, vector<1x512x128xbf16>
    %8 = vector.shape_cast %7 : vector<1x512x128xbf16> to vector<512x128xbf16>
    %cst_10 = arith.constant dense<0.000000e+00> : vector<128x128xf32>
    %9 = tpu.matmul %6, %8, %cst_10 {dimension_numbers = #tpu.dot_dimension_numbers<[1], [0], [0], [1], [0, 0, 1, 1], [], []>} : vector<128x512xbf16>, vector<512x128xbf16>, vector<128x128xf32> -> vector<128x128xf32>
    %10 = arith.addf %4, %9 : vector<128x128xf32>
    %c2 = arith.constant 2 : index
    %c0_11 = arith.constant 0 : index
    %c0_12 = arith.constant 0 : index
    %11 = vector.load %arg0[%c2, %c0_11, %c0_12] : memref<8x128x512xbf16, #tpu.memory_space<vmem>>, vector<1x128x512xbf16>
    %12 = vector.shape_cast %11 : vector<1x128x512xbf16> to vector<128x512xbf16>
    %c2_13 = arith.constant 2 : index
    %c0_14 = arith.constant 0 : index
    %c0_15 = arith.constant 0 : index
    %13 = vector.load %arg1[%c2_13, %c0_14, %c0_15] : memref<8x512x128xbf16, #tpu.memory_space<vmem>>, vector<1x512x128xbf16>
    %14 = vector.shape_cast %13 : vector<1x512x128xbf16> to vector<512x128xbf16>
    %cst_16 = arith.constant dense<0.000000e+00> : vector<128x128xf32>
    %15 = tpu.matmul %12, %14, %cst_16 {dimension_numbers = #tpu.dot_dimension_numbers<[1], [0], [0], [1], [0, 0, 1, 1], [], []>} : vector<128x512xbf16>, vector<512x128xbf16>, vector<128x128xf32> -> vector<128x128xf32>
    %16 = arith.addf %10, %15 : vector<128x128xf32>
    %c3 = arith.constant 3 : index
    %c0_17 = arith.constant 0 : index
    %c0_18 = arith.constant 0 : index
    %17 = vector.load %arg0[%c3, %c0_17, %c0_18] : memref<8x128x512xbf16, #tpu.memory_space<vmem>>, vector<1x128x512xbf16>
    %18 = vector.shape_cast %17 : vector<1x128x512xbf16> to vector<128x512xbf16>
    %c3_19 = arith.constant 3 : index
    %c0_20 = arith.constant 0 : index
    %c0_21 = arith.constant 0 : index
    %19 = vector.load %arg1[%c3_19, %c0_20, %c0_21] : memref<8x512x128xbf16, #tpu.memory_space<vmem>>, vector<1x512x128xbf16>
    %20 = vector.shape_cast %19 : vector<1x512x128xbf16> to vector<512x128xbf16>
    %cst_22 = arith.constant dense<0.000000e+00> : vector<128x128xf32>
    %21 = tpu.matmul %18, %20, %cst_22 {dimension_numbers = #tpu.dot_dimension_numbers<[1], [0], [0], [1], [0, 0, 1, 1], [], []>} : vector<128x512xbf16>, vector<512x128xbf16>, vector<128x128xf32> -> vector<128x128xf32>
    %22 = arith.addf %16, %21 : vector<128x128xf32>
    %c4 = arith.constant 4 : index
    %c0_23 = arith.constant 0 : index
    %c0_24 = arith.constant 0 : index
    %23 = vector.load %arg0[%c4, %c0_23, %c0_24] : memref<8x128x512xbf16, #tpu.memory_space<vmem>>, vector<1x128x512xbf16>
    %24 = vector.shape_cast %23 : vector<1x128x512xbf16> to vector<128x512xbf16>
    %c4_25 = arith.constant 4 : index
    %c0_26 = arith.constant 0 : index
    %c0_27 = arith.constant 0 : index
    %25 = vector.load %arg1[%c4_25, %c0_26, %c0_27] : memref<8x512x128xbf16, #tpu.memory_space<vmem>>, vector<1x512x128xbf16>
    %26 = vector.shape_cast %25 : vector<1x512x128xbf16> to vector<512x128xbf16>
    %cst_28 = arith.constant dense<0.000000e+00> : vector<128x128xf32>
    %27 = tpu.matmul %24, %26, %cst_28 {dimension_numbers = #tpu.dot_dimension_numbers<[1], [0], [0], [1], [0, 0, 1, 1], [], []>} : vector<128x512xbf16>, vector<512x128xbf16>, vector<128x128xf32> -> vector<128x128xf32>
    %28 = arith.addf %22, %27 : vector<128x128xf32>
    %c5 = arith.constant 5 : index
    %c0_29 = arith.constant 0 : index
    %c0_30 = arith.constant 0 : index
    %29 = vector.load %arg0[%c5, %c0_29, %c0_30] : memref<8x128x512xbf16, #tpu.memory_space<vmem>>, vector<1x128x512xbf16>
    %30 = vector.shape_cast %29 : vector<1x128x512xbf16> to vector<128x512xbf16>
    %c5_31 = arith.constant 5 : index
    %c0_32 = arith.constant 0 : index
    %c0_33 = arith.constant 0 : index
    %31 = vector.load %arg1[%c5_31, %c0_32, %c0_33] : memref<8x512x128xbf16, #tpu.memory_space<vmem>>, vector<1x512x128xbf16>
    %32 = vector.shape_cast %31 : vector<1x512x128xbf16> to vector<512x128xbf16>
    %cst_34 = arith.constant dense<0.000000e+00> : vector<128x128xf32>
    %33 = tpu.matmul %30, %32, %cst_34 {dimension_numbers = #tpu.dot_dimension_numbers<[1], [0], [0], [1], [0, 0, 1, 1], [], []>} : vector<128x512xbf16>, vector<512x128xbf16>, vector<128x128xf32> -> vector<128x128xf32>
    %34 = arith.addf %28, %33 : vector<128x128xf32>
    %c6 = arith.constant 6 : index
    %c0_35 = arith.constant 0 : index
    %c0_36 = arith.constant 0 : index
    %35 = vector.load %arg0[%c6, %c0_35, %c0_36] : memref<8x128x512xbf16, #tpu.memory_space<vmem>>, vector<1x128x512xbf16>
    %36 = vector.shape_cast %35 : vector<1x128x512xbf16> to vector<128x512xbf16>
    %c6_37 = arith.constant 6 : index
    %c0_38 = arith.constant 0 : index
    %c0_39 = arith.constant 0 : index
    %37 = vector.load %arg1[%c6_37, %c0_38, %c0_39] : memref<8x512x128xbf16, #tpu.memory_space<vmem>>, vector<1x512x128xbf16>
    %38 = vector.shape_cast %37 : vector<1x512x128xbf16> to vector<512x128xbf16>
    %cst_40 = arith.constant dense<0.000000e+00> : vector<128x128xf32>
    %39 = tpu.matmul %36, %38, %cst_40 {dimension_numbers = #tpu.dot_dimension_numbers<[1], [0], [0], [1], [0, 0, 1, 1], [], []>} : vector<128x512xbf16>, vector<512x128xbf16>, vector<128x128xf32> -> vector<128x128xf32>
    %40 = arith.addf %34, %39 : vector<128x128xf32>
    %c7 = arith.constant 7 : index
    %c0_41 = arith.constant 0 : index
    %c0_42 = arith.constant 0 : index
    %41 = vector.load %arg0[%c7, %c0_41, %c0_42] : memref<8x128x512xbf16, #tpu.memory_space<vmem>>, vector<1x128x512xbf16>
    %42 = vector.shape_cast %41 : vector<1x128x512xbf16> to vector<128x512xbf16>
    %c7_43 = arith.constant 7 : index
    %c0_44 = arith.constant 0 : index
    %c0_45 = arith.constant 0 : index
    %43 = vector.load %arg1[%c7_43, %c0_44, %c0_45] : memref<8x512x128xbf16, #tpu.memory_space<vmem>>, vector<1x512x128xbf16>
    %44 = vector.shape_cast %43 : vector<1x512x128xbf16> to vector<512x128xbf16>
    %cst_46 = arith.constant dense<0.000000e+00> : vector<128x128xf32>
    %45 = tpu.matmul %42, %44, %cst_46 {dimension_numbers = #tpu.dot_dimension_numbers<[1], [0], [0], [1], [0, 0, 1, 1], [], []>} : vector<128x512xbf16>, vector<512x128xbf16>, vector<128x128xf32> -> vector<128x128xf32>
    %46 = arith.addf %40, %45 : vector<128x128xf32>
    %c0_47 = arith.constant 0 : index
    %c0_48 = arith.constant 0 : index
    %47 = vector.load %arg2[%c0_47, %c0_48] : memref<1x128xf32, #tpu.memory_space<vmem>>, vector<1x128xf32>
    %48 = vector.broadcast %47 : vector<1x128xf32> to vector<128x128xf32>
    %49 = arith.addf %46, %48 : vector<128x128xf32>
    %cst_49 = arith.constant 0.000000e+00 : f32
    %50 = vector.broadcast %cst_49 : f32 to vector<128x128xf32>
    %51 = arith.maximumf %49, %50 : vector<128x128xf32>
    %52 = arith.truncf %51 : vector<128x128xf32> to vector<128x128xbf16>
    %cst_50 = arith.constant 0.000000e+00 : f32
    %53 = vector.broadcast %cst_50 : f32 to vector<16x256xf32>
    %54 = vector.extract_strided_slice %52 {offsets = [0, 0], sizes = [16, 128], strides = [1, 1]} : vector<128x128xbf16> to vector<16x128xbf16>
    %c0_51 = arith.constant 0 : index
    %c0_52 = arith.constant 0 : index
    %c0_53 = arith.constant 0 : index
    %55 = vector.load %arg3[%c0_51, %c0_52, %c0_53] : memref<8x128x256xbf16, #tpu.memory_space<vmem>>, vector<1x128x256xbf16>
    %56 = vector.shape_cast %55 : vector<1x128x256xbf16> to vector<128x256xbf16>
    %cst_54 = arith.constant dense<0.000000e+00> : vector<16x256xf32>
    %57 = tpu.matmul %54, %56, %cst_54 {dimension_numbers = #tpu.dot_dimension_numbers<[1], [0], [0], [1], [0, 0, 1, 1], [], []>} : vector<16x128xbf16>, vector<128x256xbf16>, vector<16x256xf32> -> vector<16x256xf32>
    %58 = arith.addf %53, %57 : vector<16x256xf32>
    %59 = vector.extract_strided_slice %52 {offsets = [16, 0], sizes = [16, 128], strides = [1, 1]} : vector<128x128xbf16> to vector<16x128xbf16>
    %c1_55 = arith.constant 1 : index
    %c0_56 = arith.constant 0 : index
    %c0_57 = arith.constant 0 : index
    %60 = vector.load %arg3[%c1_55, %c0_56, %c0_57] : memref<8x128x256xbf16, #tpu.memory_space<vmem>>, vector<1x128x256xbf16>
    %61 = vector.shape_cast %60 : vector<1x128x256xbf16> to vector<128x256xbf16>
    %cst_58 = arith.constant dense<0.000000e+00> : vector<16x256xf32>
    %62 = tpu.matmul %59, %61, %cst_58 {dimension_numbers = #tpu.dot_dimension_numbers<[1], [0], [0], [1], [0, 0, 1, 1], [], []>} : vector<16x128xbf16>, vector<128x256xbf16>, vector<16x256xf32> -> vector<16x256xf32>
    %63 = arith.addf %58, %62 : vector<16x256xf32>
    %64 = vector.extract_strided_slice %52 {offsets = [32, 0], sizes = [16, 128], strides = [1, 1]} : vector<128x128xbf16> to vector<16x128xbf16>
    %c2_59 = arith.constant 2 : index
    %c0_60 = arith.constant 0 : index
    %c0_61 = arith.constant 0 : index
    %65 = vector.load %arg3[%c2_59, %c0_60, %c0_61] : memref<8x128x256xbf16, #tpu.memory_space<vmem>>, vector<1x128x256xbf16>
    %66 = vector.shape_cast %65 : vector<1x128x256xbf16> to vector<128x256xbf16>
    %cst_62 = arith.constant dense<0.000000e+00> : vector<16x256xf32>
    %67 = tpu.matmul %64, %66, %cst_62 {dimension_numbers = #tpu.dot_dimension_numbers<[1], [0], [0], [1], [0, 0, 1, 1], [], []>} : vector<16x128xbf16>, vector<128x256xbf16>, vector<16x256xf32> -> vector<16x256xf32>
    %68 = arith.addf %63, %67 : vector<16x256xf32>
    %69 = vector.extract_strided_slice %52 {offsets = [48, 0], sizes = [16, 128], strides = [1, 1]} : vector<128x128xbf16> to vector<16x128xbf16>
    %c3_63 = arith.constant 3 : index
    %c0_64 = arith.constant 0 : index
    %c0_65 = arith.constant 0 : index
    %70 = vector.load %arg3[%c3_63, %c0_64, %c0_65] : memref<8x128x256xbf16, #tpu.memory_space<vmem>>, vector<1x128x256xbf16>
    %71 = vector.shape_cast %70 : vector<1x128x256xbf16> to vector<128x256xbf16>
    %cst_66 = arith.constant dense<0.000000e+00> : vector<16x256xf32>
    %72 = tpu.matmul %69, %71, %cst_66 {dimension_numbers = #tpu.dot_dimension_numbers<[1], [0], [0], [1], [0, 0, 1, 1], [], []>} : vector<16x128xbf16>, vector<128x256xbf16>, vector<16x256xf32> -> vector<16x256xf32>
    %73 = arith.addf %68, %72 : vector<16x256xf32>
    %74 = vector.extract_strided_slice %52 {offsets = [64, 0], sizes = [16, 128], strides = [1, 1]} : vector<128x128xbf16> to vector<16x128xbf16>
    %c4_67 = arith.constant 4 : index
    %c0_68 = arith.constant 0 : index
    %c0_69 = arith.constant 0 : index
    %75 = vector.load %arg3[%c4_67, %c0_68, %c0_69] : memref<8x128x256xbf16, #tpu.memory_space<vmem>>, vector<1x128x256xbf16>
    %76 = vector.shape_cast %75 : vector<1x128x256xbf16> to vector<128x256xbf16>
    %cst_70 = arith.constant dense<0.000000e+00> : vector<16x256xf32>
    %77 = tpu.matmul %74, %76, %cst_70 {dimension_numbers = #tpu.dot_dimension_numbers<[1], [0], [0], [1], [0, 0, 1, 1], [], []>} : vector<16x128xbf16>, vector<128x256xbf16>, vector<16x256xf32> -> vector<16x256xf32>
    %78 = arith.addf %73, %77 : vector<16x256xf32>
    %79 = vector.extract_strided_slice %52 {offsets = [80, 0], sizes = [16, 128], strides = [1, 1]} : vector<128x128xbf16> to vector<16x128xbf16>
    %c5_71 = arith.constant 5 : index
    %c0_72 = arith.constant 0 : index
    %c0_73 = arith.constant 0 : index
    %80 = vector.load %arg3[%c5_71, %c0_72, %c0_73] : memref<8x128x256xbf16, #tpu.memory_space<vmem>>, vector<1x128x256xbf16>
    %81 = vector.shape_cast %80 : vector<1x128x256xbf16> to vector<128x256xbf16>
    %cst_74 = arith.constant dense<0.000000e+00> : vector<16x256xf32>
    %82 = tpu.matmul %79, %81, %cst_74 {dimension_numbers = #tpu.dot_dimension_numbers<[1], [0], [0], [1], [0, 0, 1, 1], [], []>} : vector<16x128xbf16>, vector<128x256xbf16>, vector<16x256xf32> -> vector<16x256xf32>
    %83 = arith.addf %78, %82 : vector<16x256xf32>
    %84 = vector.extract_strided_slice %52 {offsets = [96, 0], sizes = [16, 128], strides = [1, 1]} : vector<128x128xbf16> to vector<16x128xbf16>
    %c6_75 = arith.constant 6 : index
    %c0_76 = arith.constant 0 : index
    %c0_77 = arith.constant 0 : index
    %85 = vector.load %arg3[%c6_75, %c0_76, %c0_77] : memref<8x128x256xbf16, #tpu.memory_space<vmem>>, vector<1x128x256xbf16>
    %86 = vector.shape_cast %85 : vector<1x128x256xbf16> to vector<128x256xbf16>
    %cst_78 = arith.constant dense<0.000000e+00> : vector<16x256xf32>
    %87 = tpu.matmul %84, %86, %cst_78 {dimension_numbers = #tpu.dot_dimension_numbers<[1], [0], [0], [1], [0, 0, 1, 1], [], []>} : vector<16x128xbf16>, vector<128x256xbf16>, vector<16x256xf32> -> vector<16x256xf32>
    %88 = arith.addf %83, %87 : vector<16x256xf32>
    %89 = vector.extract_strided_slice %52 {offsets = [112, 0], sizes = [16, 128], strides = [1, 1]} : vector<128x128xbf16> to vector<16x128xbf16>
    %c7_79 = arith.constant 7 : index
    %c0_80 = arith.constant 0 : index
    %c0_81 = arith.constant 0 : index
    %90 = vector.load %arg3[%c7_79, %c0_80, %c0_81] : memref<8x128x256xbf16, #tpu.memory_space<vmem>>, vector<1x128x256xbf16>
    %91 = vector.shape_cast %90 : vector<1x128x256xbf16> to vector<128x256xbf16>
    %cst_82 = arith.constant dense<0.000000e+00> : vector<16x256xf32>
    %92 = tpu.matmul %89, %91, %cst_82 {dimension_numbers = #tpu.dot_dimension_numbers<[1], [0], [0], [1], [0, 0, 1, 1], [], []>} : vector<16x128xbf16>, vector<128x256xbf16>, vector<16x256xf32> -> vector<16x256xf32>
    %93 = arith.addf %88, %92 : vector<16x256xf32>
    %c0_83 = arith.constant 0 : index
    %c0_84 = arith.constant 0 : index
    %94 = vector.load %arg4[%c0_83, %c0_84] : memref<1x256xf32, #tpu.memory_space<vmem>>, vector<1x256xf32>
    %95 = vector.broadcast %94 : vector<1x256xf32> to vector<16x256xf32>
    %96 = arith.addf %93, %95 : vector<16x256xf32>
    %cst_85 = arith.constant 0.000000e+00 : f32
    %97 = vector.broadcast %cst_85 : f32 to vector<16x256xf32>
    %98 = arith.maximumf %96, %97 : vector<16x256xf32>
    %c0_86 = arith.constant 0 : index
    %c0_87 = arith.constant 0 : index
    %99 = vector.load %arg5[%c0_86, %c0_87] : memref<1x256xf32, #tpu.memory_space<vmem>>, vector<1x256xf32>
    %100 = vector.broadcast %99 : vector<1x256xf32> to vector<16x256xf32>
    %101 = arith.mulf %98, %100 : vector<16x256xf32>
    %cst_88 = arith.constant dense<0.000000e+00> : vector<16xf32>
    %102 = vector.multi_reduction <add>, %101, %cst_88 [1] : vector<16x256xf32> to vector<16xf32>
    %103 = vector.shape_cast %102 : vector<16xf32> to vector<16x1xf32>
    %c0_89 = arith.constant 0 : index
    %c0_90 = arith.constant 0 : index
    %104 = vector.load %arg6[%c0_89, %c0_90] : memref<1x1xf32, #tpu.memory_space<vmem>>, vector<1x1xf32>
    %105 = vector.broadcast %104 : vector<1x1xf32> to vector<16x1xf32>
    %106 = arith.addf %103, %105 : vector<16x1xf32>
    %107 = vector.extract_strided_slice %106 {offsets = [0, 0], sizes = [2, 1], strides = [1, 1]} : vector<16x1xf32> to vector<2x1xf32>
    %108 = arith.negf %107 : vector<2x1xf32>
    %109 = math.exp %108 : vector<2x1xf32>
    %cst_91 = arith.constant 1.000000e+00 : f32
    %110 = vector.broadcast %cst_91 : f32 to vector<2x1xf32>
    %111 = arith.addf %110, %109 : vector<2x1xf32>
    %112 = arith.divf %110, %111 : vector<2x1xf32>
    %c0_92 = arith.constant 0 : index
    %c0_93 = arith.constant 0 : index
    %113 = vector.load %arg7[%c0_92, %c0_93] : memref<2x1xf32, #tpu.memory_space<vmem>>, vector<2x1xf32>
    tpu.vector_store %arg7[%c0_92, %c0_93], %112 {strides = array<i32>} : memref<2x1xf32, #tpu.memory_space<vmem>>, vector<2x1xf32>,
    return
  }
}

</mosaic_0001>

<llo_original>
// kernel: discriminator_forward.3
$region0: #{discriminator_forward.3}
  #allocation0 [shape = 'u32[]', space=smem, size = 0x4, offset = 0x4, fixed_abs, tag = 'smem constant byte address 0x4 - core index']
  #allocation1 [shape = 'u32[72,128]{1,0:T(1,128)}', space=vmem, size = 0x9000, scoped, tag = 'internal scratch']
  %s0 = inlined_call_operand.vmem [shape: bf16[1,1024,64], index: 0, kind: input, shape index: {}]
  %s1 = inlined_call_operand.vmem [shape: bf16[1,64,32], index: 1, kind: input, shape index: {}]
  %s2 = inlined_call_operand.vmem [shape: f32[1,32], index: 2, kind: input, shape index: {}]
  %s3 = inlined_call_operand.vmem [shape: bf16[1024,32], index: 3, kind: output, shape index: {}]
  %s4 = sld [smem:[#allocation0]]
  $region45: #{discriminator_forward.3} parent=0
    _
  %s6 = ssub.s32 1, %s4
  %s7 = scalar_select 0, %s6, %s4
  loop: start=0, step=1, limit=4
  $region2: #{discriminator_forward.3} parent=0 // loop_pre_header
    _
  $region3: #{discriminator_forward.3} parent=0 // loop_header
    %s9 = sphi 0, %s13
    %p10 = scmp.ge.s32.totalorder %s9, 4
    %s19 = sphi 0, %s21
    %s22 = sphi 0, %s19
    %s23 = sphi 0, %s22
    %s39 = sphi 0, %s23
    %s43 = sphi 0, %s43
    %s45 = sphi 0, %s43
    %s46 = sphi 0, %s45
    %s60 = sphi 0, %s46
    %s64 = sphi 0, %s64
    %s66 = sphi 0, %s64
    %s67 = sphi 0, %s66
    %s81 = sphi 0, %s67
    %s87 = sphi 0, %s89
    %s90 = sphi 0, %s87
    %s91 = sphi 0, %s90
    %s107 = sphi 0, %s91
  $region4: #{discriminator_forward.3} parent=0 // loop_header_branch
    %12 = sbr.rel (%p10) target = $region8
  $region5: #{discriminator_forward.3} parent=0 // loop_body
    %s14 = ssub.s32 %s9, 1
    %s15 = ssub.s32 %s9, 2
    %s16 = sadd.s32 %s9, 1
    %s17 = ssub.s32 %s9, %s16
    %p18 = scmp.eq.s32.totalorder %s17, 0
    %s20 = sadd.s32 %s19, 1
    %s21 = scalar_select %p18, %s19, %s20
    %p24 = pneg %p18
    %p25 = scmp.eq.s32.totalorder %s9, 1
    %p26 = por %p24, %p25
    %p27 = scmp.ne.s32.totalorder %s19, %s22
    %p28 = scmp.eq.s32.totalorder %s9, 0
    %p29 = por %p27, %p28
    %p30 = scmp.ne.s32.totalorder %s19, %s22
    %p31 = scmp.eq.s32.totalorder %s14, 1
    %p32 = por %p30, %p31
    %p33 = scmp.ne.s32.totalorder %s22, %s23
    %p34 = scmp.eq.s32.totalorder %s14, 0
    %p35 = por %p33, %p34
    %p36 = scmp.ne.s32.totalorder %s22, %s23
    %p37 = scmp.eq.s32.totalorder %s15, 1
    %p38 = por %p36, %p37
    %p40 = scmp.ne.s32.totalorder %s23, %s39
    %p41 = scmp.eq.s32.totalorder %s15, 0
    %p42 = por %p40, %p41
    %s44 = sadd.s32 %s43, 1
    %p47 = scmp.eq.s32.totalorder %s9, 1
    %p48 = scmp.ne.s32.totalorder %s43, %s45
    %p49 = scmp.eq.s32.totalorder %s9, 0
    %p50 = por %p48, %p49
    %p51 = scmp.ne.s32.totalorder %s43, %s45
    %p52 = scmp.eq.s32.totalorder %s14, 1
    %p53 = por %p51, %p52
    %p54 = scmp.ne.s32.totalorder %s45, %s46
    %p55 = scmp.eq.s32.totalorder %s14, 0
    %p56 = por %p54, %p55
    %p57 = scmp.ne.s32.totalorder %s45, %s46
    %p58 = scmp.eq.s32.totalorder %s15, 1
    %p59 = por %p57, %p58
    %p61 = scmp.ne.s32.totalorder %s46, %s60
    %p62 = scmp.eq.s32.totalorder %s15, 0
    %p63 = por %p61, %p62
    %s65 = sadd.s32 %s64, 1
    %p68 = scmp.eq.s32.totalorder %s9, 1
    %p69 = scmp.ne.s32.totalorder %s64, %s66
    %p70 = scmp.eq.s32.totalorder %s9, 0
    %p71 = por %p69, %p70
    %p72 = scmp.ne.s32.totalorder %s64, %s66
    %p73 = scmp.eq.s32.totalorder %s14, 1
    %p74 = por %p72, %p73
    %p75 = scmp.ne.s32.totalorder %s66, %s67
    %p76 = scmp.eq.s32.totalorder %s14, 0
    %p77 = por %p75, %p76
    %p78 = scmp.ne.s32.totalorder %s66, %s67
    %p79 = scmp.eq.s32.totalorder %s15, 1
    %p80 = por %p78, %p79
    %p82 = scmp.ne.s32.totalorder %s67, %s81
    %p83 = scmp.eq.s32.totalorder %s15, 0
    %p84 = por %p82, %p83
    %s85 = ssub.s32 %s9, %s16
    %p86 = scmp.eq.s32.totalorder %s85, 0
    %s88 = sadd.s32 %s87, 1
    %s89 = scalar_select %p86, %s87, %s88
    %p92 = pneg %p86
    %p93 = scmp.eq.s32.totalorder %s9, 1
    %p94 = por %p92, %p93
    %p95 = scmp.ne.s32.totalorder %s87, %s90
    %p96 = scmp.eq.s32.totalorder %s9, 0
    %p97 = por %p95, %p96
    %p98 = scmp.ne.s32.totalorder %s87, %s90
    %p99 = scmp.eq.s32.totalorder %s14, 1
    %p100 = por %p98, %p99
    %p101 = scmp.ne.s32.totalorder %s90, %s91
    %p102 = scmp.eq.s32.totalorder %s14, 0
    %p103 = por %p101, %p102
    %p104 = scmp.ne.s32.totalorder %s90, %s91
    %p105 = scmp.eq.s32.totalorder %s15, 1
    %p106 = por %p104, %p105
    %p108 = scmp.ne.s32.totalorder %s91, %s107
    %p109 = scmp.eq.s32.totalorder %s15, 0
    %p110 = por %p108, %p109
    %p111 = scmp.le.s32.totalorder 1, %s9
    %p112 = scmp.lt.s32.totalorder %s9, 3
    %p113 = pnand %p111, %p112
    %p114 = pneg %p113
    // Predicated region
    $region9: #{discriminator_forward.3} parent=5 // pred_check
      _
    $region10: #{discriminator_forward.3} parent=5 // pred_check_branch
      %116 = sbr.rel (%p113) target = $region12
    $region11: #{discriminator_forward.3} parent=5 // pred_region
      %s117 = ssub.s32 %s9, 1
      // Predicated region
      $region13: #{discriminator_forward.3} parent=11 // pred_check
        %p118 = pneg %p56
      $region14: #{discriminator_forward.3} parent=11 // pred_check_branch
        %120 = sbr.rel (%p118) target = $region16
      $region15: #{discriminator_forward.3} parent=11 // pred_region
        _
      $region16: #{discriminator_forward.3} parent=11 // pred_fallthru
        _
      // Predicated region
      $region17: #{discriminator_forward.3} parent=11 // pred_check
        %p121 = pneg %p77
      $region18: #{discriminator_forward.3} parent=11 // pred_check_branch
        %123 = sbr.rel (%p121) target = $region20
      $region19: #{discriminator_forward.3} parent=11 // pred_region
        _
      $region20: #{discriminator_forward.3} parent=11 // pred_fallthru
        _
    $region12: #{discriminator_forward.3} parent=5 // pred_fallthru
      _
    %p124 = scmp.lt.s32.totalorder %s9, 2
    // Predicated region
    $region21: #{discriminator_forward.3} parent=5 // pred_check
      %p125 = pneg %p124
    $region22: #{discriminator_forward.3} parent=5 // pred_check_branch
      %127 = sbr.rel (%p125) target = $region24
    $region23: #{discriminator_forward.3} parent=5 // pred_region
      // Predicated region
      $region25: #{discriminator_forward.3} parent=23 // pred_check
        %p128 = pneg %p29
      $region26: #{discriminator_forward.3} parent=23 // pred_check_branch
        %130 = sbr.rel (%p128) target = $region28
      $region27: #{discriminator_forward.3} parent=23 // pred_region
        %s131 = smul.u32 64, %s9
        %p132 = scmp.lt.s32.totalorder %s131, 127
        %s133 = scalar_select %p132, %s131, 127
        %s134 = smul.addr %s133, 4
        %s135 = scalar_lea.vmem %s0, %s134
        %s136 = smul.u32 64, %s9
      $region28: #{discriminator_forward.3} parent=23 // pred_fallthru
        _
    $region24: #{discriminator_forward.3} parent=5 // pred_fallthru
      _
    %p137 = scmp.le.s32.totalorder 1, %s9
    %p138 = scmp.lt.s32.totalorder %s9, 3
    %p139 = pnand %p137, %p138
    %p140 = pneg %p139
    // Predicated region
    $region29: #{discriminator_forward.3} parent=5 // pred_check
      _
    $region30: #{discriminator_forward.3} parent=5 // pred_check_branch
      %142 = sbr.rel (%p139) target = $region32
    $region31: #{discriminator_forward.3} parent=5 // pred_region
      %s143 = ssub.s32 %s9, 1
      %s144 = smul.u32 64, %s14
      %p145 = scmp.lt.s32.totalorder %s144, 127
      %s146 = scalar_select %p145, %s144, 127
      %s147 = smul.addr %s146, 4
      %s148 = scalar_lea.vmem %s0, %s147
      %p149 = pneg %p35
      %p150 = pneg %p32
      %p151 = pneg %p56
      %p152 = pneg %p53
      %p153 = pneg %p77
      %p154 = pneg %p74
      %p155 = pneg %p103
      %p156 = pneg %p100
      %s157 = smul.u32 64, %s14
      %p158 = scmp.lt.s32.totalorder %s157, 127
      %s159 = scalar_select %p158, %s157, 127
      %s160 = smul.addr %s159, 4
      %s161 = scalar_lea.vmem %s3, %s160
      %s162 = smul.u32 64, %s14
      %p163 = scmp.lt.s32.totalorder %s162, 127
      %s164 = scalar_select %p163, %s162, 127
      %s165 = smul.addr %s164, 4
      %s166 = scalar_lea.vmem %s0, %s165
      %s167 = smul.u32 64, %s14
      %s168 = smul.u32 64, %s14
      %p169 = scmp.lt.s32.totalorder %s168, 127
      %s170 = scalar_select %p169, %s168, 127
      %s171 = smul.addr %s170, 4
      %s172 = scalar_lea.vmem %s3, %s171
      %s173 = smul.u32 64, %s14
      %v175 = vld [vmem:[%s166] sm:$0xf]
      %v176 = vld [vmem:[%s166 + $0x4] sm:$0xf]
      %v177 = vld [vmem:[%s166 + $0x8] sm:$0xf]
      %v178 = vld [vmem:[%s166 + $0xc] sm:$0xf]
      %v179 = vld [vmem:[%s166 + $0x10] sm:$0xf]
      %v180 = vld [vmem:[%s166 + $0x14] sm:$0xf]
      %v181 = vld [vmem:[%s166 + $0x18] sm:$0xf]
      %v182 = vld [vmem:[%s166 + $0x1c] sm:$0xf]
      %v183 = vld [vmem:[%s166 + $0x20] sm:$0xf]
      %v184 = vld [vmem:[%s166 + $0x24] sm:$0xf]
      %v185 = vld [vmem:[%s166 + $0x28] sm:$0xf]
      %v186 = vld [vmem:[%s166 + $0x2c] sm:$0xf]
      %v187 = vld [vmem:[%s166 + $0x30] sm:$0xf]
      %v188 = vld [vmem:[%s166 + $0x34] sm:$0xf]
      %v189 = vld [vmem:[%s166 + $0x38] sm:$0xf]
      %v190 = vld [vmem:[%s166 + $0x3c] sm:$0xf]
      %v191 = vld [vmem:[%s166 + $0x40] sm:$0xf]
      %v192 = vld [vmem:[%s166 + $0x44] sm:$0xf]
      %v193 = vld [vmem:[%s166 + $0x48] sm:$0xf]
      %v194 = vld [vmem:[%s166 + $0x4c] sm:$0xf]
      %v195 = vld [vmem:[%s166 + $0x50] sm:$0xf]
      %v196 = vld [vmem:[%s166 + $0x54] sm:$0xf]
      %v197 = vld [vmem:[%s166 + $0x58] sm:$0xf]
      %v198 = vld [vmem:[%s166 + $0x5c] sm:$0xf]
      %v199 = vld [vmem:[%s166 + $0x60] sm:$0xf]
      %v200 = vld [vmem:[%s166 + $0x64] sm:$0xf]
      %v201 = vld [vmem:[%s166 + $0x68] sm:$0xf]
      %v202 = vld [vmem:[%s166 + $0x6c] sm:$0xf]
      %v203 = vld [vmem:[%s166 + $0x70] sm:$0xf]
      %v204 = vld [vmem:[%s166 + $0x74] sm:$0xf]
      %v205 = vld [vmem:[%s166 + $0x78] sm:$0xf]
      %v206 = vld [vmem:[%s166 + $0x7c] sm:$0xf]
      %v207 = vld [vmem:[%s166 + $0x80] sm:$0xf]
      %v208 = vld [vmem:[%s166 + $0x84] sm:$0xf]
      %v209 = vld [vmem:[%s166 + $0x88] sm:$0xf]
      %v210 = vld [vmem:[%s166 + $0x8c] sm:$0xf]
      %v211 = vld [vmem:[%s166 + $0x90] sm:$0xf]
      %v212 = vld [vmem:[%s166 + $0x94] sm:$0xf]
      %v213 = vld [vmem:[%s166 + $0x98] sm:$0xf]
      %v214 = vld [vmem:[%s166 + $0x9c] sm:$0xf]
      %v215 = vld [vmem:[%s166 + $0xa0] sm:$0xf]
      %v216 = vld [vmem:[%s166 + $0xa4] sm:$0xf]
      %v217 = vld [vmem:[%s166 + $0xa8] sm:$0xf]
      %v218 = vld [vmem:[%s166 + $0xac] sm:$0xf]
      %v219 = vld [vmem:[%s166 + $0xb0] sm:$0xf]
      %v220 = vld [vmem:[%s166 + $0xb4] sm:$0xf]
      %v221 = vld [vmem:[%s166 + $0xb8] sm:$0xf]
      %v222 = vld [vmem:[%s166 + $0xbc] sm:$0xf]
      %v223 = vld [vmem:[%s166 + $0xc0] sm:$0xf]
      %v224 = vld [vmem:[%s166 + $0xc4] sm:$0xf]
      %v225 = vld [vmem:[%s166 + $0xc8] sm:$0xf]
      %v226 = vld [vmem:[%s166 + $0xcc] sm:$0xf]
      %v227 = vld [vmem:[%s166 + $0xd0] sm:$0xf]
      %v228 = vld [vmem:[%s166 + $0xd4] sm:$0xf]
      %v229 = vld [vmem:[%s166 + $0xd8] sm:$0xf]
      %v230 = vld [vmem:[%s166 + $0xdc] sm:$0xf]
      %v231 = vld [vmem:[%s166 + $0xe0] sm:$0xf]
      %v232 = vld [vmem:[%s166 + $0xe4] sm:$0xf]
      %v233 = vld [vmem:[%s166 + $0xe8] sm:$0xf]
      %v234 = vld [vmem:[%s166 + $0xec] sm:$0xf]
      %v235 = vld [vmem:[%s166 + $0xf0] sm:$0xf]
      %v236 = vld [vmem:[%s166 + $0xf4] sm:$0xf]
      %v237 = vld [vmem:[%s166 + $0xf8] sm:$0xf]
      %v238 = vld [vmem:[%s166 + $0xfc] sm:$0xf]
      %v239 = vld [vmem:[%s1] sm:$0xf]
      %v240 = vld [vmem:[%s1 + $0x4] sm:$0xf]
      %v241 = vld [vmem:[%s1 + $0x8] sm:$0xf]
      %v242 = vld [vmem:[%s1 + $0xc] sm:$0xf]
      %v243 = vld [vmem:[%s1 + $0x10] sm:$0xf]
      %v244 = vld [vmem:[%s1 + $0x14] sm:$0xf]
      %v245 = vld [vmem:[%s1 + $0x18] sm:$0xf]
      %v246 = vld [vmem:[%s1 + $0x1c] sm:$0xf]
      %v247 = vld [vmem:[%s2] sm:$0x1]
      %v249 = vperm.slane %v247, 0
      %v315 = vunpack.c.l.b16 %v175
      %v316 = vunpack.c.l.b16 %v176
      %v317 = vunpack.c.l.b16 %v177
      %v318 = vunpack.c.l.b16 %v178
      %v319 = vunpack.c.l.b16 %v179
      %v320 = vunpack.c.l.b16 %v180
      %v321 = vunpack.c.l.b16 %v181
      %v322 = vunpack.c.l.b16 %v182
      %v323 = vunpack.c.l.b16 %v183
      %v324 = vunpack.c.l.b16 %v184
      %v325 = vunpack.c.l.b16 %v185
      %v326 = vunpack.c.l.b16 %v186
      %v327 = vunpack.c.l.b16 %v187
      %v328 = vunpack.c.l.b16 %v188
      %v329 = vunpack.c.l.b16 %v189
      %v330 = vunpack.c.l.b16 %v190
      %v331 = vunpack.c.l.b16 %v191
      %v332 = vunpack.c.l.b16 %v192
      %v333 = vunpack.c.l.b16 %v193
      %v334 = vunpack.c.l.b16 %v194
      %v335 = vunpack.c.l.b16 %v195
      %v336 = vunpack.c.l.b16 %v196
      %v337 = vunpack.c.l.b16 %v197
      %v338 = vunpack.c.l.b16 %v198
      %v339 = vunpack.c.l.b16 %v199
      %v340 = vunpack.c.l.b16 %v200
      %v341 = vunpack.c.l.b16 %v201
      %v342 = vunpack.c.l.b16 %v202
      %v343 = vunpack.c.l.b16 %v203
      %v344 = vunpack.c.l.b16 %v204
      %v345 = vunpack.c.l.b16 %v205
      %v346 = vunpack.c.l.b16 %v206
      %v347 = vunpack.c.l.b16 %v207
      %v348 = vunpack.c.l.b16 %v208
      %v349 = vunpack.c.l.b16 %v209
      %v350 = vunpack.c.l.b16 %v210
      %v351 = vunpack.c.l.b16 %v211
      %v352 = vunpack.c.l.b16 %v212
      %v353 = vunpack.c.l.b16 %v213
      %v354 = vunpack.c.l.b16 %v214
      %v355 = vunpack.c.l.b16 %v215
      %v356 = vunpack.c.l.b16 %v216
      %v357 = vunpack.c.l.b16 %v217
      %v358 = vunpack.c.l.b16 %v218
      %v359 = vunpack.c.l.b16 %v219
      %v360 = vunpack.c.l.b16 %v220
      %v361 = vunpack.c.l.b16 %v221
      %v362 = vunpack.c.l.b16 %v222
      %v363 = vunpack.c.l.b16 %v223
      %v364 = vunpack.c.l.b16 %v224
      %v365 = vunpack.c.l.b16 %v225
      %v366 = vunpack.c.l.b16 %v226
      %v367 = vunpack.c.l.b16 %v227
      %v368 = vunpack.c.l.b16 %v228
      %v369 = vunpack.c.l.b16 %v229
      %v370 = vunpack.c.l.b16 %v230
      %v371 = vunpack.c.l.b16 %v231
      %v372 = vunpack.c.l.b16 %v232
      %v373 = vunpack.c.l.b16 %v233
      %v374 = vunpack.c.l.b16 %v234
      %v375 = vunpack.c.l.b16 %v235
      %v376 = vunpack.c.l.b16 %v236
      %v377 = vunpack.c.l.b16 %v237
      %v378 = vunpack.c.l.b16 %v238
      %v379 = vpack.c.b16 %v316, %v315
      %v380 = vpack.c.b16 %v318, %v317
      %v381 = vpack.c.b16 %v320, %v319
      %v382 = vpack.c.b16 %v322, %v321
      %v383 = vpack.c.b16 %v324, %v323
      %v384 = vpack.c.b16 %v326, %v325
      %v385 = vpack.c.b16 %v328, %v327
      %v386 = vpack.c.b16 %v330, %v329
      %v387 = vpack.c.b16 %v332, %v331
      %v388 = vpack.c.b16 %v334, %v333
      %v389 = vpack.c.b16 %v336, %v335
      %v390 = vpack.c.b16 %v338, %v337
      %v391 = vpack.c.b16 %v340, %v339
      %v392 = vpack.c.b16 %v342, %v341
      %v393 = vpack.c.b16 %v344, %v343
      %v394 = vpack.c.b16 %v346, %v345
      %v395 = vpack.c.b16 %v348, %v347
      %v396 = vpack.c.b16 %v350, %v349
      %v397 = vpack.c.b16 %v352, %v351
      %v398 = vpack.c.b16 %v354, %v353
      %v399 = vpack.c.b16 %v356, %v355
      %v400 = vpack.c.b16 %v358, %v357
      %v401 = vpack.c.b16 %v360, %v359
      %v402 = vpack.c.b16 %v362, %v361
      %v403 = vpack.c.b16 %v364, %v363
      %v404 = vpack.c.b16 %v366, %v365
      %v405 = vpack.c.b16 %v368, %v367
      %v406 = vpack.c.b16 %v370, %v369
      %v407 = vpack.c.b16 %v372, %v371
      %v408 = vpack.c.b16 %v374, %v373
      %v409 = vpack.c.b16 %v376, %v375
      %v410 = vpack.c.b16 %v378, %v377
      %v419 = vunpack.c.l.b16 %v239
      %v420 = vunpack.c.l.b16 %v240
      %v421 = vunpack.c.l.b16 %v241
      %v422 = vunpack.c.l.b16 %v242
      %v423 = vunpack.c.l.b16 %v243
      %v424 = vunpack.c.l.b16 %v244
      %v425 = vunpack.c.l.b16 %v245
      %v426 = vunpack.c.l.b16 %v246
      %v427 = vpack.c.b16 %v420, %v419
      %v428 = vpack.c.b16 %v422, %v421
      %v429 = vpack.c.b16 %v424, %v423
      %v430 = vpack.c.b16 %v426, %v425
      %vm435 = vcmask 523264
      %v437 = vsel %vm435, %v379, 0
      %v440 = vsel %vm435, %v380, 0
      %v443 = vsel %vm435, %v381, 0
      %v446 = vsel %vm435, %v382, 0
      %v449 = vsel %vm435, %v383, 0
      %v452 = vsel %vm435, %v384, 0
      %v455 = vsel %vm435, %v385, 0
      %v458 = vsel %vm435, %v386, 0
      %v461 = vsel %vm435, %v387, 0
      %v464 = vsel %vm435, %v388, 0
      %v467 = vsel %vm435, %v389, 0
      %v470 = vsel %vm435, %v390, 0
      %v473 = vsel %vm435, %v391, 0
      %v476 = vsel %vm435, %v392, 0
      %v479 = vsel %vm435, %v393, 0
      %v482 = vsel %vm435, %v394, 0
      %v485 = vsel %vm435, %v395, 0
      %v488 = vsel %vm435, %v396, 0
      %v491 = vsel %vm435, %v397, 0
      %v494 = vsel %vm435, %v398, 0
      %v497 = vsel %vm435, %v399, 0
      %v500 = vsel %vm435, %v400, 0
      %v503 = vsel %vm435, %v401, 0
      %v506 = vsel %vm435, %v402, 0
      %v509 = vsel %vm435, %v403, 0
      %v512 = vsel %vm435, %v404, 0
      %v515 = vsel %vm435, %v405, 0
      %v518 = vsel %vm435, %v406, 0
      %v521 = vsel %vm435, %v407, 0
      %v524 = vsel %vm435, %v408, 0
      %v527 = vsel %vm435, %v409, 0
      %v530 = vsel %vm435, %v410, 0
      %532 = vmatpush.bf16.msra.mxu0 0
      %533 = vmatpush.bf16.msra.mxu0 0
      %534 = vmatpush.bf16.msra.mxu0 0
      %535 = vmatpush.bf16.msra.mxu0 0
      %536 = vmatpush.bf16.msra.mxu0 %v430
      %537 = vmatpush.bf16.msra.mxu0 %v429
      %538 = vmatpush.bf16.msra.mxu0 %v428
      %539 = vmatpush.bf16.msra.mxu0 %v427
      %540 = vmatmul.bf16.gmra.mxu0 %v437
      %v541 = vpop.f32.mrf.mxu0
      %v542 = vadd.f32 %v249, %v541
      %v543 = vpop.f32.mrf.mxu0
      %v544 = vadd.f32 %v249, %v543
      %545 = vmatmul.bf16.gmra.mxu0 %v440
      %v546 = vpop.f32.mrf.mxu0
      %v547 = vadd.f32 %v249, %v546
      %v548 = vpop.f32.mrf.mxu0
      %v549 = vadd.f32 %v249, %v548
      %550 = vmatmul.bf16.gmra.mxu0 %v443
      %v551 = vpop.f32.mrf.mxu0
      %v552 = vadd.f32 %v249, %v551
      %v553 = vpop.f32.mrf.mxu0
      %v554 = vadd.f32 %v249, %v553
      %555 = vmatmul.bf16.gmra.mxu0 %v446
      %v556 = vpop.f32.mrf.mxu0
      %v557 = vadd.f32 %v249, %v556
      %v558 = vpop.f32.mrf.mxu0
      %v559 = vadd.f32 %v249, %v558
      %560 = vmatmul.bf16.gmra.mxu0 %v449
      %v561 = vpop.f32.mrf.mxu0
      %v562 = vadd.f32 %v249, %v561
      %v563 = vpop.f32.mrf.mxu0
      %v564 = vadd.f32 %v249, %v563
      %565 = vmatmul.bf16.gmra.mxu0 %v452
      %v566 = vpop.f32.mrf.mxu0
      %v567 = vadd.f32 %v249, %v566
      %v568 = vpop.f32.mrf.mxu0
      %v569 = vadd.f32 %v249, %v568
      %570 = vmatmul.bf16.gmra.mxu0 %v455
      %v571 = vpop.f32.mrf.mxu0
      %v572 = vadd.f32 %v249, %v571
      %v573 = vpop.f32.mrf.mxu0
      %v574 = vadd.f32 %v249, %v573
      %575 = vmatmul.bf16.gmra.mxu0 %v458
      %v576 = vpop.f32.mrf.mxu0
      %v577 = vadd.f32 %v249, %v576
      %v578 = vpop.f32.mrf.mxu0
      %v579 = vadd.f32 %v249, %v578
      %580 = vmatmul.bf16.gmra.mxu0 %v461
      %v581 = vpop.f32.mrf.mxu0
      %v582 = vadd.f32 %v249, %v581
      %v583 = vpop.f32.mrf.mxu0
      %v584 = vadd.f32 %v249, %v583
      %585 = vmatmul.bf16.gmra.mxu0 %v464
      %v586 = vpop.f32.mrf.mxu0
      %v587 = vadd.f32 %v249, %v586
      %v588 = vpop.f32.mrf.mxu0
      %v589 = vadd.f32 %v249, %v588
      %590 = vmatmul.bf16.gmra.mxu0 %v467
      %v591 = vpop.f32.mrf.mxu0
      %v592 = vadd.f32 %v249, %v591
      %v593 = vpop.f32.mrf.mxu0
      %v594 = vadd.f32 %v249, %v593
      %595 = vmatmul.bf16.gmra.mxu0 %v470
      %v596 = vpop.f32.mrf.mxu0
      %v597 = vadd.f32 %v249, %v596
      %v598 = vpop.f32.mrf.mxu0
      %v599 = vadd.f32 %v249, %v598
      %600 = vmatmul.bf16.gmra.mxu0 %v473
      %v601 = vpop.f32.mrf.mxu0
      %v602 = vadd.f32 %v249, %v601
      %v603 = vpop.f32.mrf.mxu0
      %v604 = vadd.f32 %v249, %v603
      %605 = vmatmul.bf16.gmra.mxu0 %v476
      %v606 = vpop.f32.mrf.mxu0
      %v607 = vadd.f32 %v249, %v606
      %v608 = vpop.f32.mrf.mxu0
      %v609 = vadd.f32 %v249, %v608
      %610 = vmatmul.bf16.gmra.mxu0 %v479
      %v611 = vpop.f32.mrf.mxu0
      %v612 = vadd.f32 %v249, %v611
      %v613 = vpop.f32.mrf.mxu0
      %v614 = vadd.f32 %v249, %v613
      %615 = vmatmul.bf16.gmra.mxu0 %v482
      %v616 = vpop.f32.mrf.mxu0
      %v617 = vadd.f32 %v249, %v616
      %v618 = vpop.f32.mrf.mxu0
      %v619 = vadd.f32 %v249, %v618
      %620 = vmatmul.bf16.gmra.mxu0 %v485
      %v621 = vpop.f32.mrf.mxu0
      %v622 = vadd.f32 %v249, %v621
      %v623 = vpop.f32.mrf.mxu0
      %v624 = vadd.f32 %v249, %v623
      %625 = vmatmul.bf16.gmra.mxu0 %v488
      %v626 = vpop.f32.mrf.mxu0
      %v627 = vadd.f32 %v249, %v626
      %v628 = vpop.f32.mrf.mxu0
      %v629 = vadd.f32 %v249, %v628
      %630 = vmatmul.bf16.gmra.mxu0 %v491
      %v631 = vpop.f32.mrf.mxu0
      %v632 = vadd.f32 %v249, %v631
      %v633 = vpop.f32.mrf.mxu0
      %v634 = vadd.f32 %v249, %v633
      %635 = vmatmul.bf16.gmra.mxu0 %v494
      %v636 = vpop.f32.mrf.mxu0
      %v637 = vadd.f32 %v249, %v636
      %v638 = vpop.f32.mrf.mxu0
      %v639 = vadd.f32 %v249, %v638
      %640 = vmatmul.bf16.gmra.mxu0 %v497
      %v641 = vpop.f32.mrf.mxu0
      %v642 = vadd.f32 %v249, %v641
      %v643 = vpop.f32.mrf.mxu0
      %v644 = vadd.f32 %v249, %v643
      %645 = vmatmul.bf16.gmra.mxu0 %v500
      %v646 = vpop.f32.mrf.mxu0
      %v647 = vadd.f32 %v249, %v646
      %v648 = vpop.f32.mrf.mxu0
      %v649 = vadd.f32 %v249, %v648
      %650 = vmatmul.bf16.gmra.mxu0 %v503
      %v651 = vpop.f32.mrf.mxu0
      %v652 = vadd.f32 %v249, %v651
      %v653 = vpop.f32.mrf.mxu0
      %v654 = vadd.f32 %v249, %v653
      %655 = vmatmul.bf16.gmra.mxu0 %v506
      %v656 = vpop.f32.mrf.mxu0
      %v657 = vadd.f32 %v249, %v656
      %v658 = vpop.f32.mrf.mxu0
      %v659 = vadd.f32 %v249, %v658
      %660 = vmatmul.bf16.gmra.mxu0 %v509
      %v661 = vpop.f32.mrf.mxu0
      %v662 = vadd.f32 %v249, %v661
      %v663 = vpop.f32.mrf.mxu0
      %v664 = vadd.f32 %v249, %v663
      %665 = vmatmul.bf16.gmra.mxu0 %v512
      %v666 = vpop.f32.mrf.mxu0
      %v667 = vadd.f32 %v249, %v666
      %v668 = vpop.f32.mrf.mxu0
      %v669 = vadd.f32 %v249, %v668
      %670 = vmatmul.bf16.gmra.mxu0 %v515
      %v671 = vpop.f32.mrf.mxu0
      %v672 = vadd.f32 %v249, %v671
      %v673 = vpop.f32.mrf.mxu0
      %v674 = vadd.f32 %v249, %v673
      %675 = vmatmul.bf16.gmra.mxu0 %v518
      %v676 = vpop.f32.mrf.mxu0
      %v677 = vadd.f32 %v249, %v676
      %v678 = vpop.f32.mrf.mxu0
      %v679 = vadd.f32 %v249, %v678
      %680 = vmatmul.bf16.gmra.mxu0 %v521
      %v681 = vpop.f32.mrf.mxu0
      %v682 = vadd.f32 %v249, %v681
      %v683 = vpop.f32.mrf.mxu0
      %v684 = vadd.f32 %v249, %v683
      %685 = vmatmul.bf16.gmra.mxu0 %v524
      %v686 = vpop.f32.mrf.mxu0
      %v687 = vadd.f32 %v249, %v686
      %v688 = vpop.f32.mrf.mxu0
      %v689 = vadd.f32 %v249, %v688
      %690 = vmatmul.bf16.gmra.mxu0 %v527
      %v691 = vpop.f32.mrf.mxu0
      %v692 = vadd.f32 %v249, %v691
      %v693 = vpop.f32.mrf.mxu0
      %v694 = vadd.f32 %v249, %v693
      %695 = vmatmul.bf16.gmra.mxu0 %v530
      %v696 = vpop.f32.mrf.mxu0
      %v697 = vadd.f32 %v249, %v696
      %v698 = vpop.f32.mrf.mxu0
      %v699 = vadd.f32 %v249, %v698
      %700 = vdwg.mxu0
      %v701 = vmax.f32 %v542, 0.0
      %v702 = vmax.f32 %v544, 0.0
      %v703 = vmax.f32 %v547, 0.0
      %v704 = vmax.f32 %v549, 0.0
      %v705 = vmax.f32 %v552, 0.0
      %v706 = vmax.f32 %v554, 0.0
      %v707 = vmax.f32 %v557, 0.0
      %v708 = vmax.f32 %v559, 0.0
      %v709 = vmax.f32 %v562, 0.0
      %v710 = vmax.f32 %v564, 0.0
      %v711 = vmax.f32 %v567, 0.0
      %v712 = vmax.f32 %v569, 0.0
      %v713 = vmax.f32 %v572, 0.0
      %v714 = vmax.f32 %v574, 0.0
      %v715 = vmax.f32 %v577, 0.0
      %v716 = vmax.f32 %v579, 0.0
      %v717 = vmax.f32 %v582, 0.0
      %v718 = vmax.f32 %v584, 0.0
      %v719 = vmax.f32 %v587, 0.0
      %v720 = vmax.f32 %v589, 0.0
      %v721 = vmax.f32 %v592, 0.0
      %v722 = vmax.f32 %v594, 0.0
      %v723 = vmax.f32 %v597, 0.0
      %v724 = vmax.f32 %v599, 0.0
      %v725 = vmax.f32 %v602, 0.0
      %v726 = vmax.f32 %v604, 0.0
      %v727 = vmax.f32 %v607, 0.0
      %v728 = vmax.f32 %v609, 0.0
      %v729 = vmax.f32 %v612, 0.0
      %v730 = vmax.f32 %v614, 0.0
      %v731 = vmax.f32 %v617, 0.0
      %v732 = vmax.f32 %v619, 0.0
      %v733 = vmax.f32 %v622, 0.0
      %v734 = vmax.f32 %v624, 0.0
      %v735 = vmax.f32 %v627, 0.0
      %v736 = vmax.f32 %v629, 0.0
      %v737 = vmax.f32 %v632, 0.0
      %v738 = vmax.f32 %v634, 0.0
      %v739 = vmax.f32 %v637, 0.0
      %v740 = vmax.f32 %v639, 0.0
      %v741 = vmax.f32 %v642, 0.0
      %v742 = vmax.f32 %v644, 0.0
      %v743 = vmax.f32 %v647, 0.0
      %v744 = vmax.f32 %v649, 0.0
      %v745 = vmax.f32 %v652, 0.0
      %v746 = vmax.f32 %v654, 0.0
      %v747 = vmax.f32 %v657, 0.0
      %v748 = vmax.f32 %v659, 0.0
      %v749 = vmax.f32 %v662, 0.0
      %v750 = vmax.f32 %v664, 0.0
      %v751 = vmax.f32 %v667, 0.0
      %v752 = vmax.f32 %v669, 0.0
      %v753 = vmax.f32 %v672, 0.0
      %v754 = vmax.f32 %v674, 0.0
      %v755 = vmax.f32 %v677, 0.0
      %v756 = vmax.f32 %v679, 0.0
      %v757 = vmax.f32 %v682, 0.0
      %v758 = vmax.f32 %v684, 0.0
      %v759 = vmax.f32 %v687, 0.0
      %v760 = vmax.f32 %v689, 0.0
      %v761 = vmax.f32 %v692, 0.0
      %v762 = vmax.f32 %v694, 0.0
      %v763 = vmax.f32 %v697, 0.0
      %v764 = vmax.f32 %v699, 0.0
      %v765 = vpack.c.bf16 %v701, %v701
      %v766 = vpack.c.bf16 %v702, %v702
      %v767 = vpack.c.bf16 %v703, %v703
      %v768 = vpack.c.bf16 %v704, %v704
      %v769 = vpack.c.bf16 %v705, %v705
      %v770 = vpack.c.bf16 %v706, %v706
      %v771 = vpack.c.bf16 %v707, %v707
      %v772 = vpack.c.bf16 %v708, %v708
      %v773 = vpack.c.bf16 %v709, %v709
      %v774 = vpack.c.bf16 %v710, %v710
      %v775 = vpack.c.bf16 %v711, %v711
      %v776 = vpack.c.bf16 %v712, %v712
      %v777 = vpack.c.bf16 %v713, %v713
      %v778 = vpack.c.bf16 %v714, %v714
      %v779 = vpack.c.bf16 %v715, %v715
      %v780 = vpack.c.bf16 %v716, %v716
      %v781 = vpack.c.bf16 %v717, %v717
      %v782 = vpack.c.bf16 %v718, %v718
      %v783 = vpack.c.bf16 %v719, %v719
      %v784 = vpack.c.bf16 %v720, %v720
      %v785 = vpack.c.bf16 %v721, %v721
      %v786 = vpack.c.bf16 %v722, %v722
      %v787 = vpack.c.bf16 %v723, %v723
      %v788 = vpack.c.bf16 %v724, %v724
      %v789 = vpack.c.bf16 %v725, %v725
      %v790 = vpack.c.bf16 %v726, %v726
      %v791 = vpack.c.bf16 %v727, %v727
      %v792 = vpack.c.bf16 %v728, %v728
      %v793 = vpack.c.bf16 %v729, %v729
      %v794 = vpack.c.bf16 %v730, %v730
      %v795 = vpack.c.bf16 %v731, %v731
      %v796 = vpack.c.bf16 %v732, %v732
      %v797 = vpack.c.bf16 %v733, %v733
      %v798 = vpack.c.bf16 %v734, %v734
      %v799 = vpack.c.bf16 %v735, %v735
      %v800 = vpack.c.bf16 %v736, %v736
      %v801 = vpack.c.bf16 %v737, %v737
      %v802 = vpack.c.bf16 %v738, %v738
      %v803 = vpack.c.bf16 %v739, %v739
      %v804 = vpack.c.bf16 %v740, %v740
      %v805 = vpack.c.bf16 %v741, %v741
      %v806 = vpack.c.bf16 %v742, %v742
      %v807 = vpack.c.bf16 %v743, %v743
      %v808 = vpack.c.bf16 %v744, %v744
      %v809 = vpack.c.bf16 %v745, %v745
      %v810 = vpack.c.bf16 %v746, %v746
      %v811 = vpack.c.bf16 %v747, %v747
      %v812 = vpack.c.bf16 %v748, %v748
      %v813 = vpack.c.bf16 %v749, %v749
      %v814 = vpack.c.bf16 %v750, %v750
      %v815 = vpack.c.bf16 %v751, %v751
      %v816 = vpack.c.bf16 %v752, %v752
      %v817 = vpack.c.bf16 %v753, %v753
      %v818 = vpack.c.bf16 %v754, %v754
      %v819 = vpack.c.bf16 %v755, %v755
      %v820 = vpack.c.bf16 %v756, %v756
      %v821 = vpack.c.bf16 %v757, %v757
      %v822 = vpack.c.bf16 %v758, %v758
      %v823 = vpack.c.bf16 %v759, %v759
      %v824 = vpack.c.bf16 %v760, %v760
      %v825 = vpack.c.bf16 %v761, %v761
      %v826 = vpack.c.bf16 %v762, %v762
      %v827 = vpack.c.bf16 %v763, %v763
      %v828 = vpack.c.bf16 %v764, %v764
      %vm829 = vcmask 257024
      %830 = vst.msk [vmem:[%s172] sm:$0xf] %vm829, %v765
      %831 = vst.msk [vmem:[%s172 + $0x4] sm:$0xf] %vm829, %v766
      %832 = vst.msk [vmem:[%s172 + $0x8] sm:$0xf] %vm829, %v767
      %833 = vst.msk [vmem:[%s172 + $0xc] sm:$0xf] %vm829, %v768
      %834 = vst.msk [vmem:[%s172 + $0x10] sm:$0xf] %vm829, %v769
      %835 = vst.msk [vmem:[%s172 + $0x14] sm:$0xf] %vm829, %v770
      %836 = vst.msk [vmem:[%s172 + $0x18] sm:$0xf] %vm829, %v771
      %837 = vst.msk [vmem:[%s172 + $0x1c] sm:$0xf] %vm829, %v772
      %838 = vst.msk [vmem:[%s172 + $0x20] sm:$0xf] %vm829, %v773
      %839 = vst.msk [vmem:[%s172 + $0x24] sm:$0xf] %vm829, %v774
      %840 = vst.msk [vmem:[%s172 + $0x28] sm:$0xf] %vm829, %v775
      %841 = vst.msk [vmem:[%s172 + $0x2c] sm:$0xf] %vm829, %v776
      %842 = vst.msk [vmem:[%s172 + $0x30] sm:$0xf] %vm829, %v777
      %843 = vst.msk [vmem:[%s172 + $0x34] sm:$0xf] %vm829, %v778
      %844 = vst.msk [vmem:[%s172 + $0x38] sm:$0xf] %vm829, %v779
      %845 = vst.msk [vmem:[%s172 + $0x3c] sm:$0xf] %vm829, %v780
      %846 = vst.msk [vmem:[%s172 + $0x40] sm:$0xf] %vm829, %v781
      %847 = vst.msk [vmem:[%s172 + $0x44] sm:$0xf] %vm829, %v782
      %848 = vst.msk [vmem:[%s172 + $0x48] sm:$0xf] %vm829, %v783
      %849 = vst.msk [vmem:[%s172 + $0x4c] sm:$0xf] %vm829, %v784
      %850 = vst.msk [vmem:[%s172 + $0x50] sm:$0xf] %vm829, %v785
      %851 = vst.msk [vmem:[%s172 + $0x54] sm:$0xf] %vm829, %v786
      %852 = vst.msk [vmem:[%s172 + $0x58] sm:$0xf] %vm829, %v787
      %853 = vst.msk [vmem:[%s172 + $0x5c] sm:$0xf] %vm829, %v788
      %854 = vst.msk [vmem:[%s172 + $0x60] sm:$0xf] %vm829, %v789
      %855 = vst.msk [vmem:[%s172 + $0x64] sm:$0xf] %vm829, %v790
      %856 = vst.msk [vmem:[%s172 + $0x68] sm:$0xf] %vm829, %v791
      %857 = vst.msk [vmem:[%s172 + $0x6c] sm:$0xf] %vm829, %v792
      %858 = vst.msk [vmem:[%s172 + $0x70] sm:$0xf] %vm829, %v793
      %859 = vst.msk [vmem:[%s172 + $0x74] sm:$0xf] %vm829, %v794
      %860 = vst.msk [vmem:[%s172 + $0x78] sm:$0xf] %vm829, %v795
      %861 = vst.msk [vmem:[%s172 + $0x7c] sm:$0xf] %vm829, %v796
      %862 = vst.msk [vmem:[%s172 + $0x80] sm:$0xf] %vm829, %v797
      %863 = vst.msk [vmem:[%s172 + $0x84] sm:$0xf] %vm829, %v798
      %864 = vst.msk [vmem:[%s172 + $0x88] sm:$0xf] %vm829, %v799
      %865 = vst.msk [vmem:[%s172 + $0x8c] sm:$0xf] %vm829, %v800
      %866 = vst.msk [vmem:[%s172 + $0x90] sm:$0xf] %vm829, %v801
      %867 = vst.msk [vmem:[%s172 + $0x94] sm:$0xf] %vm829, %v802
      %868 = vst.msk [vmem:[%s172 + $0x98] sm:$0xf] %vm829, %v803
      %869 = vst.msk [vmem:[%s172 + $0x9c] sm:$0xf] %vm829, %v804
      %870 = vst.msk [vmem:[%s172 + $0xa0] sm:$0xf] %vm829, %v805
      %871 = vst.msk [vmem:[%s172 + $0xa4] sm:$0xf] %vm829, %v806
      %872 = vst.msk [vmem:[%s172 + $0xa8] sm:$0xf] %vm829, %v807
      %873 = vst.msk [vmem:[%s172 + $0xac] sm:$0xf] %vm829, %v808
      %874 = vst.msk [vmem:[%s172 + $0xb0] sm:$0xf] %vm829, %v809
      %875 = vst.msk [vmem:[%s172 + $0xb4] sm:$0xf] %vm829, %v810
      %876 = vst.msk [vmem:[%s172 + $0xb8] sm:$0xf] %vm829, %v811
      %877 = vst.msk [vmem:[%s172 + $0xbc] sm:$0xf] %vm829, %v812
      %878 = vst.msk [vmem:[%s172 + $0xc0] sm:$0xf] %vm829, %v813
      %879 = vst.msk [vmem:[%s172 + $0xc4] sm:$0xf] %vm829, %v814
      %880 = vst.msk [vmem:[%s172 + $0xc8] sm:$0xf] %vm829, %v815
      %881 = vst.msk [vmem:[%s172 + $0xcc] sm:$0xf] %vm829, %v816
      %882 = vst.msk [vmem:[%s172 + $0xd0] sm:$0xf] %vm829, %v817
      %883 = vst.msk [vmem:[%s172 + $0xd4] sm:$0xf] %vm829, %v818
      %884 = vst.msk [vmem:[%s172 + $0xd8] sm:$0xf] %vm829, %v819
      %885 = vst.msk [vmem:[%s172 + $0xdc] sm:$0xf] %vm829, %v820
      %886 = vst.msk [vmem:[%s172 + $0xe0] sm:$0xf] %vm829, %v821
      %887 = vst.msk [vmem:[%s172 + $0xe4] sm:$0xf] %vm829, %v822
      %888 = vst.msk [vmem:[%s172 + $0xe8] sm:$0xf] %vm829, %v823
      %889 = vst.msk [vmem:[%s172 + $0xec] sm:$0xf] %vm829, %v824
      %890 = vst.msk [vmem:[%s172 + $0xf0] sm:$0xf] %vm829, %v825
      %891 = vst.msk [vmem:[%s172 + $0xf4] sm:$0xf] %vm829, %v826
      %892 = vst.msk [vmem:[%s172 + $0xf8] sm:$0xf] %vm829, %v827
      %893 = vst.msk [vmem:[%s172 + $0xfc] sm:$0xf] %vm829, %v828
      %s894 = smul.u32 64, %s14
      %p895 = scmp.lt.s32.totalorder %s894, 127
      %s896 = scalar_select %p895, %s894, 127
      %s897 = smul.addr %s896, 4
      %s898 = scalar_lea.vmem %s3, %s897
      // Predicated region
      $region33: #{discriminator_forward.3} parent=31 // pred_check
        %p899 = pneg %p100
      $region34: #{discriminator_forward.3} parent=31 // pred_check_branch
        %901 = sbr.rel (%p899) target = $region36
      $region35: #{discriminator_forward.3} parent=31 // pred_region
        %s902 = smul.u32 64, %s14
      $region36: #{discriminator_forward.3} parent=31 // pred_fallthru
        _
    $region32: #{discriminator_forward.3} parent=5 // pred_fallthru
      _
    %p903 = scmp.le.s32.totalorder 2, %s9
    // Predicated region
    $region37: #{discriminator_forward.3} parent=5 // pred_check
      %p904 = pneg %p903
    $region38: #{discriminator_forward.3} parent=5 // pred_check_branch
      %906 = sbr.rel (%p904) target = $region40
    $region39: #{discriminator_forward.3} parent=5 // pred_region
      %s907 = ssub.s32 %s9, 2
      // Predicated region
      $region41: #{discriminator_forward.3} parent=39 // pred_check
        %p908 = pneg %p106
      $region42: #{discriminator_forward.3} parent=39 // pred_check_branch
        %910 = sbr.rel (%p908) target = $region44
      $region43: #{discriminator_forward.3} parent=39 // pred_region
        %s911 = smul.u32 64, %s15
        %p912 = scmp.lt.s32.totalorder %s911, 127
        %s913 = scalar_select %p912, %s911, 127
        %s914 = smul.addr %s913, 4
        %s915 = scalar_lea.vmem %s3, %s914
      $region44: #{discriminator_forward.3} parent=39 // pred_fallthru
        _
    $region40: #{discriminator_forward.3} parent=5 // pred_fallthru
      _
  $region6: #{discriminator_forward.3} parent=0 // loop_footer
    %s13 = sadd.s32 1, %s9
  $region7: #{discriminator_forward.3} parent=0 // loop_footer_branch
    %8 = sbr.rel target = $region3
  $region8: #{discriminator_forward.3} parent=0 // loop_exit
    _

// kernel: discriminator_forward.4
$region0: #{discriminator_forward.4}
  #allocation0 [shape = 'u32[]', space=smem, size = 0x4, offset = 0x4, fixed_abs, tag = 'smem constant byte address 0x4 - core index']
  #allocation1 [shape = 'u32[72,128]{1,0:T(1,128)}', space=vmem, size = 0x9000, scoped, tag = 'internal scratch']
  %s0 = inlined_call_operand.vmem [shape: bf16[8,128,256], index: 0, kind: input, shape index: {}]
  %s1 = inlined_call_operand.vmem [shape: bf16[8,256,64], index: 1, kind: input, shape index: {}]
  %s2 = inlined_call_operand.vmem [shape: f32[1,64], index: 2, kind: input, shape index: {}]
  %s3 = inlined_call_operand.vmem [shape: bf16[128,64], index: 3, kind: output, shape index: {}]
  %s4 = sld [smem:[#allocation0]]
  $region22: #{discriminator_forward.4} parent=0
    _
  %s6 = ssub.s32 1, %s4
  %s7 = scalar_select 0, %s6, %s4
  // Predicated region
  $region2: #{discriminator_forward.4} parent=0 // pred_check
    _
  $region3: #{discriminator_forward.4} parent=0 // pred_check_branch
    %9 = sbr.rel (0) target = $region5
  $region4: #{discriminator_forward.4} parent=0 // pred_region
    _
  $region5: #{discriminator_forward.4} parent=0 // pred_fallthru
    _
  // Predicated region
  $region6: #{discriminator_forward.4} parent=0 // pred_check
    _
  $region7: #{discriminator_forward.4} parent=0 // pred_check_branch
    %11 = sbr.rel (0) target = $region9
  $region8: #{discriminator_forward.4} parent=0 // pred_region
    _
  $region9: #{discriminator_forward.4} parent=0 // pred_fallthru
    _
  // Predicated region
  $region10: #{discriminator_forward.4} parent=0 // pred_check
    _
  $region11: #{discriminator_forward.4} parent=0 // pred_check_branch
    %13 = sbr.rel (0) target = $region13
  $region12: #{discriminator_forward.4} parent=0 // pred_region
    _
  $region13: #{discriminator_forward.4} parent=0 // pred_fallthru
    _
  %v14 = vld [vmem:[%s0] sm:$0xff]
  %v15 = vld [vmem:[%s0 + $0x8] sm:$0xff]
  %v16 = vld [vmem:[%s0 + $0x10] sm:$0xff]
  %v17 = vld [vmem:[%s0 + $0x18] sm:$0xff]
  %v18 = vld [vmem:[%s0 + $0x20] sm:$0xff]
  %v19 = vld [vmem:[%s0 + $0x28] sm:$0xff]
  %v20 = vld [vmem:[%s0 + $0x30] sm:$0xff]
  %v21 = vld [vmem:[%s0 + $0x38] sm:$0xff]
  %v22 = vld [vmem:[%s0 + $0x40] sm:$0xff]
  %v23 = vld [vmem:[%s0 + $0x48] sm:$0xff]
  %v24 = vld [vmem:[%s0 + $0x50] sm:$0xff]
  %v25 = vld [vmem:[%s0 + $0x58] sm:$0xff]
  %v26 = vld [vmem:[%s0 + $0x60] sm:$0xff]
  %v27 = vld [vmem:[%s0 + $0x68] sm:$0xff]
  %v28 = vld [vmem:[%s0 + $0x70] sm:$0xff]
  %v29 = vld [vmem:[%s0 + $0x78] sm:$0xff]
  %v30 = vld [vmem:[%s1] sm:$0xf]
  %v31 = vld [vmem:[%s1 + $0x4] sm:$0xf]
  %v32 = vld [vmem:[%s1 + $0x8] sm:$0xf]
  %v33 = vld [vmem:[%s1 + $0xc] sm:$0xf]
  %v34 = vld [vmem:[%s1 + $0x10] sm:$0xf]
  %v35 = vld [vmem:[%s1 + $0x14] sm:$0xf]
  %v36 = vld [vmem:[%s1 + $0x18] sm:$0xf]
  %v37 = vld [vmem:[%s1 + $0x1c] sm:$0xf]
  %v38 = vld [vmem:[%s1 + $0x20] sm:$0xf]
  %v39 = vld [vmem:[%s1 + $0x24] sm:$0xf]
  %v40 = vld [vmem:[%s1 + $0x28] sm:$0xf]
  %v41 = vld [vmem:[%s1 + $0x2c] sm:$0xf]
  %v42 = vld [vmem:[%s1 + $0x30] sm:$0xf]
  %v43 = vld [vmem:[%s1 + $0x34] sm:$0xf]
  %v44 = vld [vmem:[%s1 + $0x38] sm:$0xf]
  %v45 = vld [vmem:[%s1 + $0x3c] sm:$0xf]
  %v46 = vld [vmem:[%s1 + $0x40] sm:$0xf]
  %v47 = vld [vmem:[%s1 + $0x44] sm:$0xf]
  %v48 = vld [vmem:[%s1 + $0x48] sm:$0xf]
  %v49 = vld [vmem:[%s1 + $0x4c] sm:$0xf]
  %v50 = vld [vmem:[%s1 + $0x50] sm:$0xf]
  %v51 = vld [vmem:[%s1 + $0x54] sm:$0xf]
  %v52 = vld [vmem:[%s1 + $0x58] sm:$0xf]
  %v53 = vld [vmem:[%s1 + $0x5c] sm:$0xf]
  %v54 = vld [vmem:[%s1 + $0x60] sm:$0xf]
  %v55 = vld [vmem:[%s1 + $0x64] sm:$0xf]
  %v56 = vld [vmem:[%s1 + $0x68] sm:$0xf]
  %v57 = vld [vmem:[%s1 + $0x6c] sm:$0xf]
  %v58 = vld [vmem:[%s1 + $0x70] sm:$0xf]
  %v59 = vld [vmem:[%s1 + $0x74] sm:$0xf]
  %v60 = vld [vmem:[%s1 + $0x78] sm:$0xf]
  %v61 = vld [vmem:[%s1 + $0x7c] sm:$0xf]
  %s62 = scalar_lea.vmem %s0, 128
  %v63 = vld [vmem:[%s62] sm:$0xff]
  %v64 = vld [vmem:[%s62 + $0x8] sm:$0xff]
  %v65 = vld [vmem:[%s62 + $0x10] sm:$0xff]
  %v66 = vld [vmem:[%s62 + $0x18] sm:$0xff]
  %v67 = vld [vmem:[%s62 + $0x20] sm:$0xff]
  %v68 = vld [vmem:[%s62 + $0x28] sm:$0xff]
  %v69 = vld [vmem:[%s62 + $0x30] sm:$0xff]
  %v70 = vld [vmem:[%s62 + $0x38] sm:$0xff]
  %v71 = vld [vmem:[%s62 + $0x40] sm:$0xff]
  %v72 = vld [vmem:[%s62 + $0x48] sm:$0xff]
  %v73 = vld [vmem:[%s62 + $0x50] sm:$0xff]
  %v74 = vld [vmem:[%s62 + $0x58] sm:$0xff]
  %v75 = vld [vmem:[%s62 + $0x60] sm:$0xff]
  %v76 = vld [vmem:[%s62 + $0x68] sm:$0xff]
  %v77 = vld [vmem:[%s62 + $0x70] sm:$0xff]
  %v78 = vld [vmem:[%s62 + $0x78] sm:$0xff]
  %s79 = scalar_lea.vmem %s1, 128
  %v80 = vld [vmem:[%s79] sm:$0xf]
  %v81 = vld [vmem:[%s79 + $0x4] sm:$0xf]
  %v82 = vld [vmem:[%s79 + $0x8] sm:$0xf]
  %v83 = vld [vmem:[%s79 + $0xc] sm:$0xf]
  %v84 = vld [vmem:[%s79 + $0x10] sm:$0xf]
  %v85 = vld [vmem:[%s79 + $0x14] sm:$0xf]
  %v86 = vld [vmem:[%s79 + $0x18] sm:$0xf]
  %v87 = vld [vmem:[%s79 + $0x1c] sm:$0xf]
  %v88 = vld [vmem:[%s79 + $0x20] sm:$0xf]
  %v89 = vld [vmem:[%s79 + $0x24] sm:$0xf]
  %v90 = vld [vmem:[%s79 + $0x28] sm:$0xf]
  %v91 = vld [vmem:[%s79 + $0x2c] sm:$0xf]
  %v92 = vld [vmem:[%s79 + $0x30] sm:$0xf]
  %v93 = vld [vmem:[%s79 + $0x34] sm:$0xf]
  %v94 = vld [vmem:[%s79 + $0x38] sm:$0xf]
  %v95 = vld [vmem:[%s79 + $0x3c] sm:$0xf]
  %v96 = vld [vmem:[%s79 + $0x40] sm:$0xf]
  %v97 = vld [vmem:[%s79 + $0x44] sm:$0xf]
  %v98 = vld [vmem:[%s79 + $0x48] sm:$0xf]
  %v99 = vld [vmem:[%s79 + $0x4c] sm:$0xf]
  %v100 = vld [vmem:[%s79 + $0x50] sm:$0xf]
  %v101 = vld [vmem:[%s79 + $0x54] sm:$0xf]
  %v102 = vld [vmem:[%s79 + $0x58] sm:$0xf]
  %v103 = vld [vmem:[%s79 + $0x5c] sm:$0xf]
  %v104 = vld [vmem:[%s79 + $0x60] sm:$0xf]
  %v105 = vld [vmem:[%s79 + $0x64] sm:$0xf]
  %v106 = vld [vmem:[%s79 + $0x68] sm:$0xf]
  %v107 = vld [vmem:[%s79 + $0x6c] sm:$0xf]
  %v108 = vld [vmem:[%s79 + $0x70] sm:$0xf]
  %v109 = vld [vmem:[%s79 + $0x74] sm:$0xf]
  %v110 = vld [vmem:[%s79 + $0x78] sm:$0xf]
  %v111 = vld [vmem:[%s79 + $0x7c] sm:$0xf]
  %v128 = vunpack.c.l.b16 %v63
  %v129 = vunpack.c.h.b16 %v63
  %v130 = vunpack.c.l.b16 %v64
  %v131 = vunpack.c.h.b16 %v64
  %v132 = vunpack.c.l.b16 %v65
  %v133 = vunpack.c.h.b16 %v65
  %v134 = vunpack.c.l.b16 %v66
  %v135 = vunpack.c.h.b16 %v66
  %v136 = vunpack.c.l.b16 %v67
  %v137 = vunpack.c.h.b16 %v67
  %v138 = vunpack.c.l.b16 %v68
  %v139 = vunpack.c.h.b16 %v68
  %v140 = vunpack.c.l.b16 %v69
  %v141 = vunpack.c.h.b16 %v69
  %v142 = vunpack.c.l.b16 %v70
  %v143 = vunpack.c.h.b16 %v70
  %v144 = vunpack.c.l.b16 %v71
  %v145 = vunpack.c.h.b16 %v71
  %v146 = vunpack.c.l.b16 %v72
  %v147 = vunpack.c.h.b16 %v72
  %v148 = vunpack.c.l.b16 %v73
  %v149 = vunpack.c.h.b16 %v73
  %v150 = vunpack.c.l.b16 %v74
  %v151 = vunpack.c.h.b16 %v74
  %v152 = vunpack.c.l.b16 %v75
  %v153 = vunpack.c.h.b16 %v75
  %v154 = vunpack.c.l.b16 %v76
  %v155 = vunpack.c.h.b16 %v76
  %v156 = vunpack.c.l.b16 %v77
  %v157 = vunpack.c.h.b16 %v77
  %v158 = vunpack.c.l.b16 %v78
  %v159 = vunpack.c.h.b16 %v78
  %v160 = vpack.c.b16 %v130, %v128
  %v161 = vpack.c.b16 %v131, %v129
  %v162 = vpack.c.b16 %v134, %v132
  %v163 = vpack.c.b16 %v135, %v133
  %v164 = vpack.c.b16 %v138, %v136
  %v165 = vpack.c.b16 %v139, %v137
  %v166 = vpack.c.b16 %v142, %v140
  %v167 = vpack.c.b16 %v143, %v141
  %v168 = vpack.c.b16 %v146, %v144
  %v169 = vpack.c.b16 %v147, %v145
  %v170 = vpack.c.b16 %v150, %v148
  %v171 = vpack.c.b16 %v151, %v149
  %v172 = vpack.c.b16 %v154, %v152
  %v173 = vpack.c.b16 %v155, %v153
  %v174 = vpack.c.b16 %v158, %v156
  %v175 = vpack.c.b16 %v159, %v157
  %v224 = vunpack.c.l.b16 %v80
  %v225 = vunpack.c.l.b16 %v81
  %v226 = vunpack.c.l.b16 %v82
  %v227 = vunpack.c.l.b16 %v83
  %v228 = vunpack.c.l.b16 %v84
  %v229 = vunpack.c.l.b16 %v85
  %v230 = vunpack.c.l.b16 %v86
  %v231 = vunpack.c.l.b16 %v87
  %v232 = vunpack.c.l.b16 %v88
  %v233 = vunpack.c.l.b16 %v89
  %v234 = vunpack.c.l.b16 %v90
  %v235 = vunpack.c.l.b16 %v91
  %v236 = vunpack.c.l.b16 %v92
  %v237 = vunpack.c.l.b16 %v93
  %v238 = vunpack.c.l.b16 %v94
  %v239 = vunpack.c.l.b16 %v95
  %v240 = vunpack.c.l.b16 %v96
  %v241 = vunpack.c.l.b16 %v97
  %v242 = vunpack.c.l.b16 %v98
  %v243 = vunpack.c.l.b16 %v99
  %v244 = vunpack.c.l.b16 %v100
  %v245 = vunpack.c.l.b16 %v101
  %v246 = vunpack.c.l.b16 %v102
  %v247 = vunpack.c.l.b16 %v103
  %v248 = vunpack.c.l.b16 %v104
  %v249 = vunpack.c.l.b16 %v105
  %v250 = vunpack.c.l.b16 %v106
  %v251 = vunpack.c.l.b16 %v107
  %v252 = vunpack.c.l.b16 %v108
  %v253 = vunpack.c.l.b16 %v109
  %v254 = vunpack.c.l.b16 %v110
  %v255 = vunpack.c.l.b16 %v111
  %v256 = vpack.c.b16 %v225, %v224
  %v257 = vpack.c.b16 %v227, %v226
  %v258 = vpack.c.b16 %v229, %v228
  %v259 = vpack.c.b16 %v231, %v230
  %v260 = vpack.c.b16 %v233, %v232
  %v261 = vpack.c.b16 %v235, %v234
  %v262 = vpack.c.b16 %v237, %v236
  %v263 = vpack.c.b16 %v239, %v238
  %v264 = vpack.c.b16 %v241, %v240
  %v265 = vpack.c.b16 %v243, %v242
  %v266 = vpack.c.b16 %v245, %v244
  %v267 = vpack.c.b16 %v247, %v246
  %v268 = vpack.c.b16 %v249, %v248
  %v269 = vpack.c.b16 %v251, %v250
  %v270 = vpack.c.b16 %v253, %v252
  %v271 = vpack.c.b16 %v255, %v254
  %288 = vmatpush.bf16.msra.mxu0 %v263
  %289 = vmatpush.bf16.msra.mxu0 %v262
  %290 = vmatpush.bf16.msra.mxu0 %v261
  %291 = vmatpush.bf16.msra.mxu0 %v260
  %292 = vmatpush.bf16.msra.mxu0 %v259
  %293 = vmatpush.bf16.msra.mxu0 %v258
  %294 = vmatpush.bf16.msra.mxu0 %v257
  %295 = vmatpush.bf16.msra.mxu0 %v256
  %296 = vmatmul.bf16.gmra.mxu0 %v160
  %v297 = vpop.f32.mrf.mxu0
  %v298 = vadd.f32 0.0, %v297
  %v299 = vpop.f32.mrf.mxu0
  %v300 = vadd.f32 0.0, %v299
  %301 = vmatmul.bf16.gmra.mxu0 %v162
  %v302 = vpop.f32.mrf.mxu0
  %v303 = vadd.f32 0.0, %v302
  %v304 = vpop.f32.mrf.mxu0
  %v305 = vadd.f32 0.0, %v304
  %306 = vmatmul.bf16.gmra.mxu0 %v164
  %v307 = vpop.f32.mrf.mxu0
  %v308 = vadd.f32 0.0, %v307
  %v309 = vpop.f32.mrf.mxu0
  %v310 = vadd.f32 0.0, %v309
  %311 = vmatmul.bf16.gmra.mxu0 %v166
  %v312 = vpop.f32.mrf.mxu0
  %v313 = vadd.f32 0.0, %v312
  %v314 = vpop.f32.mrf.mxu0
  %v315 = vadd.f32 0.0, %v314
  %316 = vmatmul.bf16.gmra.mxu0 %v168
  %v317 = vpop.f32.mrf.mxu0
  %v318 = vadd.f32 0.0, %v317
  %v319 = vpop.f32.mrf.mxu0
  %v320 = vadd.f32 0.0, %v319
  %321 = vmatmul.bf16.gmra.mxu0 %v170
  %v322 = vpop.f32.mrf.mxu0
  %v323 = vadd.f32 0.0, %v322
  %v324 = vpop.f32.mrf.mxu0
  %v325 = vadd.f32 0.0, %v324
  %326 = vmatmul.bf16.gmra.mxu0 %v172
  %v327 = vpop.f32.mrf.mxu0
  %v328 = vadd.f32 0.0, %v327
  %v329 = vpop.f32.mrf.mxu0
  %v330 = vadd.f32 0.0, %v329
  %331 = vmatmul.bf16.gmra.mxu0 %v174
  %v332 = vpop.f32.mrf.mxu0
  %v333 = vadd.f32 0.0, %v332
  %v334 = vpop.f32.mrf.mxu0
  %v335 = vadd.f32 0.0, %v334
  %336 = vdwg.mxu0
  %337 = vmatpush.bf16.msra.mxu0 %v271
  %338 = vmatpush.bf16.msra.mxu0 %v270
  %339 = vmatpush.bf16.msra.mxu0 %v269
  %340 = vmatpush.bf16.msra.mxu0 %v268
  %341 = vmatpush.bf16.msra.mxu0 %v267
  %342 = vmatpush.bf16.msra.mxu0 %v266
  %343 = vmatpush.bf16.msra.mxu0 %v265
  %344 = vmatpush.bf16.msra.mxu0 %v264
  %345 = vmatmul.bf16.gmra.mxu0 %v161
  %v346 = vpop.f32.mrf.mxu0
  %v347 = vadd.f32 %v298, %v346
  %v348 = vpop.f32.mrf.mxu0
  %v349 = vadd.f32 %v300, %v348
  %350 = vmatmul.bf16.gmra.mxu0 %v163
  %v351 = vpop.f32.mrf.mxu0
  %v352 = vadd.f32 %v303, %v351
  %v353 = vpop.f32.mrf.mxu0
  %v354 = vadd.f32 %v305, %v353
  %355 = vmatmul.bf16.gmra.mxu0 %v165
  %v356 = vpop.f32.mrf.mxu0
  %v357 = vadd.f32 %v308, %v356
  %v358 = vpop.f32.mrf.mxu0
  %v359 = vadd.f32 %v310, %v358
  %360 = vmatmul.bf16.gmra.mxu0 %v167
  %v361 = vpop.f32.mrf.mxu0
  %v362 = vadd.f32 %v313, %v361
  %v363 = vpop.f32.mrf.mxu0
  %v364 = vadd.f32 %v315, %v363
  %365 = vmatmul.bf16.gmra.mxu0 %v169
  %v366 = vpop.f32.mrf.mxu0
  %v367 = vadd.f32 %v318, %v366
  %v368 = vpop.f32.mrf.mxu0
  %v369 = vadd.f32 %v320, %v368
  %370 = vmatmul.bf16.gmra.mxu0 %v171
  %v371 = vpop.f32.mrf.mxu0
  %v372 = vadd.f32 %v323, %v371
  %v373 = vpop.f32.mrf.mxu0
  %v374 = vadd.f32 %v325, %v373
  %375 = vmatmul.bf16.gmra.mxu0 %v173
  %v376 = vpop.f32.mrf.mxu0
  %v377 = vadd.f32 %v328, %v376
  %v378 = vpop.f32.mrf.mxu0
  %v379 = vadd.f32 %v330, %v378
  %380 = vmatmul.bf16.gmra.mxu0 %v175
  %v381 = vpop.f32.mrf.mxu0
  %v382 = vadd.f32 %v333, %v381
  %v383 = vpop.f32.mrf.mxu0
  %v384 = vadd.f32 %v335, %v383
  %385 = vdwg.mxu0
  %v402 = vunpack.c.l.b16 %v14
  %v403 = vunpack.c.h.b16 %v14
  %v404 = vunpack.c.l.b16 %v15
  %v405 = vunpack.c.h.b16 %v15
  %v406 = vunpack.c.l.b16 %v16
  %v407 = vunpack.c.h.b16 %v16
  %v408 = vunpack.c.l.b16 %v17
  %v409 = vunpack.c.h.b16 %v17
  %v410 = vunpack.c.l.b16 %v18
  %v411 = vunpack.c.h.b16 %v18
  %v412 = vunpack.c.l.b16 %v19
  %v413 = vunpack.c.h.b16 %v19
  %v414 = vunpack.c.l.b16 %v20
  %v415 = vunpack.c.h.b16 %v20
  %v416 = vunpack.c.l.b16 %v21
  %v417 = vunpack.c.h.b16 %v21
  %v418 = vunpack.c.l.b16 %v22
  %v419 = vunpack.c.h.b16 %v22
  %v420 = vunpack.c.l.b16 %v23
  %v421 = vunpack.c.h.b16 %v23
  %v422 = vunpack.c.l.b16 %v24
  %v423 = vunpack.c.h.b16 %v24
  %v424 = vunpack.c.l.b16 %v25
  %v425 = vunpack.c.h.b16 %v25
  %v426 = vunpack.c.l.b16 %v26
  %v427 = vunpack.c.h.b16 %v26
  %v428 = vunpack.c.l.b16 %v27
  %v429 = vunpack.c.h.b16 %v27
  %v430 = vunpack.c.l.b16 %v28
  %v431 = vunpack.c.h.b16 %v28
  %v432 = vunpack.c.l.b16 %v29
  %v433 = vunpack.c.h.b16 %v29
  %v434 = vpack.c.b16 %v404, %v402
  %v435 = vpack.c.b16 %v405, %v403
  %v436 = vpack.c.b16 %v408, %v406
  %v437 = vpack.c.b16 %v409, %v407
  %v438 = vpack.c.b16 %v412, %v410
  %v439 = vpack.c.b16 %v413, %v411
  %v440 = vpack.c.b16 %v416, %v414
  %v441 = vpack.c.b16 %v417, %v415
  %v442 = vpack.c.b16 %v420, %v418
  %v443 = vpack.c.b16 %v421, %v419
  %v444 = vpack.c.b16 %v424, %v422
  %v445 = vpack.c.b16 %v425, %v423
  %v446 = vpack.c.b16 %v428, %v426
  %v447 = vpack.c.b16 %v429, %v427
  %v448 = vpack.c.b16 %v432, %v430
  %v449 = vpack.c.b16 %v433, %v431
  %v498 = vunpack.c.l.b16 %v30
  %v499 = vunpack.c.l.b16 %v31
  %v500 = vunpack.c.l.b16 %v32
  %v501 = vunpack.c.l.b16 %v33
  %v502 = vunpack.c.l.b16 %v34
  %v503 = vunpack.c.l.b16 %v35
  %v504 = vunpack.c.l.b16 %v36
  %v505 = vunpack.c.l.b16 %v37
  %v506 = vunpack.c.l.b16 %v38
  %v507 = vunpack.c.l.b16 %v39
  %v508 = vunpack.c.l.b16 %v40
  %v509 = vunpack.c.l.b16 %v41
  %v510 = vunpack.c.l.b16 %v42
  %v511 = vunpack.c.l.b16 %v43
  %v512 = vunpack.c.l.b16 %v44
  %v513 = vunpack.c.l.b16 %v45
  %v514 = vunpack.c.l.b16 %v46
  %v515 = vunpack.c.l.b16 %v47
  %v516 = vunpack.c.l.b16 %v48
  %v517 = vunpack.c.l.b16 %v49
  %v518 = vunpack.c.l.b16 %v50
  %v519 = vunpack.c.l.b16 %v51
  %v520 = vunpack.c.l.b16 %v52
  %v521 = vunpack.c.l.b16 %v53
  %v522 = vunpack.c.l.b16 %v54
  %v523 = vunpack.c.l.b16 %v55
  %v524 = vunpack.c.l.b16 %v56
  %v525 = vunpack.c.l.b16 %v57
  %v526 = vunpack.c.l.b16 %v58
  %v527 = vunpack.c.l.b16 %v59
  %v528 = vunpack.c.l.b16 %v60
  %v529 = vunpack.c.l.b16 %v61
  %v530 = vpack.c.b16 %v499, %v498
  %v531 = vpack.c.b16 %v501, %v500
  %v532 = vpack.c.b16 %v503, %v502
  %v533 = vpack.c.b16 %v505, %v504
  %v534 = vpack.c.b16 %v507, %v506
  %v535 = vpack.c.b16 %v509, %v508
  %v536 = vpack.c.b16 %v511, %v510
  %v537 = vpack.c.b16 %v513, %v512
  %v538 = vpack.c.b16 %v515, %v514
  %v539 = vpack.c.b16 %v517, %v516
  %v540 = vpack.c.b16 %v519, %v518
  %v541 = vpack.c.b16 %v521, %v520
  %v542 = vpack.c.b16 %v523, %v522
  %v543 = vpack.c.b16 %v525, %v524
  %v544 = vpack.c.b16 %v527, %v526
  %v545 = vpack.c.b16 %v529, %v528
  %562 = vmatpush.bf16.msra.mxu0 %v537
  %563 = vmatpush.bf16.msra.mxu0 %v536
  %564 = vmatpush.bf16.msra.mxu0 %v535
  %565 = vmatpush.bf16.msra.mxu0 %v534
  %566 = vmatpush.bf16.msra.mxu0 %v533
  %567 = vmatpush.bf16.msra.mxu0 %v532
  %568 = vmatpush.bf16.msra.mxu0 %v531
  %569 = vmatpush.bf16.msra.mxu0 %v530
  %570 = vmatmul.bf16.gmra.mxu0 %v434
  %v571 = vpop.f32.mrf.mxu0
  %v572 = vadd.f32 %v347, %v571
  %v573 = vpop.f32.mrf.mxu0
  %v574 = vadd.f32 %v349, %v573
  %575 = vmatmul.bf16.gmra.mxu0 %v436
  %v576 = vpop.f32.mrf.mxu0
  %v577 = vadd.f32 %v352, %v576
  %v578 = vpop.f32.mrf.mxu0
  %v579 = vadd.f32 %v354, %v578
  %580 = vmatmul.bf16.gmra.mxu0 %v438
  %v581 = vpop.f32.mrf.mxu0
  %v582 = vadd.f32 %v357, %v581
  %v583 = vpop.f32.mrf.mxu0
  %v584 = vadd.f32 %v359, %v583
  %585 = vmatmul.bf16.gmra.mxu0 %v440
  %v586 = vpop.f32.mrf.mxu0
  %v587 = vadd.f32 %v362, %v586
  %v588 = vpop.f32.mrf.mxu0
  %v589 = vadd.f32 %v364, %v588
  %590 = vmatmul.bf16.gmra.mxu0 %v442
  %v591 = vpop.f32.mrf.mxu0
  %v592 = vadd.f32 %v367, %v591
  %v593 = vpop.f32.mrf.mxu0
  %v594 = vadd.f32 %v369, %v593
  %595 = vmatmul.bf16.gmra.mxu0 %v444
  %v596 = vpop.f32.mrf.mxu0
  %v597 = vadd.f32 %v372, %v596
  %v598 = vpop.f32.mrf.mxu0
  %v599 = vadd.f32 %v374, %v598
  %600 = vmatmul.bf16.gmra.mxu0 %v446
  %v601 = vpop.f32.mrf.mxu0
  %v602 = vadd.f32 %v377, %v601
  %v603 = vpop.f32.mrf.mxu0
  %v604 = vadd.f32 %v379, %v603
  %605 = vmatmul.bf16.gmra.mxu0 %v448
  %v606 = vpop.f32.mrf.mxu0
  %v607 = vadd.f32 %v382, %v606
  %v608 = vpop.f32.mrf.mxu0
  %v609 = vadd.f32 %v384, %v608
  %610 = vdwg.mxu0
  %611 = vmatpush.bf16.msra.mxu0 %v545
  %612 = vmatpush.bf16.msra.mxu0 %v544
  %613 = vmatpush.bf16.msra.mxu0 %v543
  %614 = vmatpush.bf16.msra.mxu0 %v542
  %615 = vmatpush.bf16.msra.mxu0 %v541
  %616 = vmatpush.bf16.msra.mxu0 %v540
  %617 = vmatpush.bf16.msra.mxu0 %v539
  %618 = vmatpush.bf16.msra.mxu0 %v538
  %619 = vmatmul.bf16.gmra.mxu0 %v435
  %v620 = vpop.f32.mrf.mxu0
  %v621 = vadd.f32 %v572, %v620
  %v622 = vpop.f32.mrf.mxu0
  %v623 = vadd.f32 %v574, %v622
  %624 = vmatmul.bf16.gmra.mxu0 %v437
  %v625 = vpop.f32.mrf.mxu0
  %v626 = vadd.f32 %v577, %v625
  %v627 = vpop.f32.mrf.mxu0
  %v628 = vadd.f32 %v579, %v627
  %629 = vmatmul.bf16.gmra.mxu0 %v439
  %v630 = vpop.f32.mrf.mxu0
  %v631 = vadd.f32 %v582, %v630
  %v632 = vpop.f32.mrf.mxu0
  %v633 = vadd.f32 %v584, %v632
  %634 = vmatmul.bf16.gmra.mxu0 %v441
  %v635 = vpop.f32.mrf.mxu0
  %v636 = vadd.f32 %v587, %v635
  %v637 = vpop.f32.mrf.mxu0
  %v638 = vadd.f32 %v589, %v637
  %639 = vmatmul.bf16.gmra.mxu0 %v443
  %v640 = vpop.f32.mrf.mxu0
  %v641 = vadd.f32 %v592, %v640
  %v642 = vpop.f32.mrf.mxu0
  %v643 = vadd.f32 %v594, %v642
  %644 = vmatmul.bf16.gmra.mxu0 %v445
  %v645 = vpop.f32.mrf.mxu0
  %v646 = vadd.f32 %v597, %v645
  %v647 = vpop.f32.mrf.mxu0
  %v648 = vadd.f32 %v599, %v647
  %649 = vmatmul.bf16.gmra.mxu0 %v447
  %v650 = vpop.f32.mrf.mxu0
  %v651 = vadd.f32 %v602, %v650
  %v652 = vpop.f32.mrf.mxu0
  %v653 = vadd.f32 %v604, %v652
  %654 = vmatmul.bf16.gmra.mxu0 %v449
  %v655 = vpop.f32.mrf.mxu0
  %v656 = vadd.f32 %v607, %v655
  %v657 = vpop.f32.mrf.mxu0
  %v658 = vadd.f32 %v609, %v657
  %659 = vdwg.mxu0
  %s660 = scalar_lea.vmem %s0, 256
  %v661 = vld [vmem:[%s660] sm:$0xff]
  %v662 = vld [vmem:[%s660 + $0x8] sm:$0xff]
  %v663 = vld [vmem:[%s660 + $0x10] sm:$0xff]
  %v664 = vld [vmem:[%s660 + $0x18] sm:$0xff]
  %v665 = vld [vmem:[%s660 + $0x20] sm:$0xff]
  %v666 = vld [vmem:[%s660 + $0x28] sm:$0xff]
  %v667 = vld [vmem:[%s660 + $0x30] sm:$0xff]
  %v668 = vld [vmem:[%s660 + $0x38] sm:$0xff]
  %v669 = vld [vmem:[%s660 + $0x40] sm:$0xff]
  %v670 = vld [vmem:[%s660 + $0x48] sm:$0xff]
  %v671 = vld [vmem:[%s660 + $0x50] sm:$0xff]
  %v672 = vld [vmem:[%s660 + $0x58] sm:$0xff]
  %v673 = vld [vmem:[%s660 + $0x60] sm:$0xff]
  %v674 = vld [vmem:[%s660 + $0x68] sm:$0xff]
  %v675 = vld [vmem:[%s660 + $0x70] sm:$0xff]
  %v676 = vld [vmem:[%s660 + $0x78] sm:$0xff]
  %s677 = scalar_lea.vmem %s1, 256
  %v678 = vld [vmem:[%s677] sm:$0xf]
  %v679 = vld [vmem:[%s677 + $0x4] sm:$0xf]
  %v680 = vld [vmem:[%s677 + $0x8] sm:$0xf]
  %v681 = vld [vmem:[%s677 + $0xc] sm:$0xf]
  %v682 = vld [vmem:[%s677 + $0x10] sm:$0xf]
  %v683 = vld [vmem:[%s677 + $0x14] sm:$0xf]
  %v684 = vld [vmem:[%s677 + $0x18] sm:$0xf]
  %v685 = vld [vmem:[%s677 + $0x1c] sm:$0xf]
  %v686 = vld [vmem:[%s677 + $0x20] sm:$0xf]
  %v687 = vld [vmem:[%s677 + $0x24] sm:$0xf]
  %v688 = vld [vmem:[%s677 + $0x28] sm:$0xf]
  %v689 = vld [vmem:[%s677 + $0x2c] sm:$0xf]
  %v690 = vld [vmem:[%s677 + $0x30] sm:$0xf]
  %v691 = vld [vmem:[%s677 + $0x34] sm:$0xf]
  %v692 = vld [vmem:[%s677 + $0x38] sm:$0xf]
  %v693 = vld [vmem:[%s677 + $0x3c] sm:$0xf]
  %v694 = vld [vmem:[%s677 + $0x40] sm:$0xf]
  %v695 = vld [vmem:[%s677 + $0x44] sm:$0xf]
  %v696 = vld [vmem:[%s677 + $0x48] sm:$0xf]
  %v697 = vld [vmem:[%s677 + $0x4c] sm:$0xf]
  %v698 = vld [vmem:[%s677 + $0x50] sm:$0xf]
  %v699 = vld [vmem:[%s677 + $0x54] sm:$0xf]
  %v700 = vld [vmem:[%s677 + $0x58] sm:$0xf]
  %v701 = vld [vmem:[%s677 + $0x5c] sm:$0xf]
  %v702 = vld [vmem:[%s677 + $0x60] sm:$0xf]
  %v703 = vld [vmem:[%s677 + $0x64] sm:$0xf]
  %v704 = vld [vmem:[%s677 + $0x68] sm:$0xf]
  %v705 = vld [vmem:[%s677 + $0x6c] sm:$0xf]
  %v706 = vld [vmem:[%s677 + $0x70] sm:$0xf]
  %v707 = vld [vmem:[%s677 + $0x74] sm:$0xf]
  %v708 = vld [vmem:[%s677 + $0x78] sm:$0xf]
  %v709 = vld [vmem:[%s677 + $0x7c] sm:$0xf]
  %v726 = vunpack.c.l.b16 %v661
  %v727 = vunpack.c.h.b16 %v661
  %v728 = vunpack.c.l.b16 %v662
  %v729 = vunpack.c.h.b16 %v662
  %v730 = vunpack.c.l.b16 %v663
  %v731 = vunpack.c.h.b16 %v663
  %v732 = vunpack.c.l.b16 %v664
  %v733 = vunpack.c.h.b16 %v664
  %v734 = vunpack.c.l.b16 %v665
  %v735 = vunpack.c.h.b16 %v665
  %v736 = vunpack.c.l.b16 %v666
  %v737 = vunpack.c.h.b16 %v666
  %v738 = vunpack.c.l.b16 %v667
  %v739 = vunpack.c.h.b16 %v667
  %v740 = vunpack.c.l.b16 %v668
  %v741 = vunpack.c.h.b16 %v668
  %v742 = vunpack.c.l.b16 %v669
  %v743 = vunpack.c.h.b16 %v669
  %v744 = vunpack.c.l.b16 %v670
  %v745 = vunpack.c.h.b16 %v670
  %v746 = vunpack.c.l.b16 %v671
  %v747 = vunpack.c.h.b16 %v671
  %v748 = vunpack.c.l.b16 %v672
  %v749 = vunpack.c.h.b16 %v672
  %v750 = vunpack.c.l.b16 %v673
  %v751 = vunpack.c.h.b16 %v673
  %v752 = vunpack.c.l.b16 %v674
  %v753 = vunpack.c.h.b16 %v674
  %v754 = vunpack.c.l.b16 %v675
  %v755 = vunpack.c.h.b16 %v675
  %v756 = vunpack.c.l.b16 %v676
  %v757 = vunpack.c.h.b16 %v676
  %v758 = vpack.c.b16 %v728, %v726
  %v759 = vpack.c.b16 %v729, %v727
  %v760 = vpack.c.b16 %v732, %v730
  %v761 = vpack.c.b16 %v733, %v731
  %v762 = vpack.c.b16 %v736, %v734
  %v763 = vpack.c.b16 %v737, %v735
  %v764 = vpack.c.b16 %v740, %v738
  %v765 = vpack.c.b16 %v741, %v739
  %v766 = vpack.c.b16 %v744, %v742
  %v767 = vpack.c.b16 %v745, %v743
  %v768 = vpack.c.b16 %v748, %v746
  %v769 = vpack.c.b16 %v749, %v747
  %v770 = vpack.c.b16 %v752, %v750
  %v771 = vpack.c.b16 %v753, %v751
  %v772 = vpack.c.b16 %v756, %v754
  %v773 = vpack.c.b16 %v757, %v755
  %v822 = vunpack.c.l.b16 %v678
  %v823 = vunpack.c.l.b16 %v679
  %v824 = vunpack.c.l.b16 %v680
  %v825 = vunpack.c.l.b16 %v681
  %v826 = vunpack.c.l.b16 %v682
  %v827 = vunpack.c.l.b16 %v683
  %v828 = vunpack.c.l.b16 %v684
  %v829 = vunpack.c.l.b16 %v685
  %v830 = vunpack.c.l.b16 %v686
  %v831 = vunpack.c.l.b16 %v687
  %v832 = vunpack.c.l.b16 %v688
  %v833 = vunpack.c.l.b16 %v689
  %v834 = vunpack.c.l.b16 %v690
  %v835 = vunpack.c.l.b16 %v691
  %v836 = vunpack.c.l.b16 %v692
  %v837 = vunpack.c.l.b16 %v693
  %v838 = vunpack.c.l.b16 %v694
  %v839 = vunpack.c.l.b16 %v695
  %v840 = vunpack.c.l.b16 %v696
  %v841 = vunpack.c.l.b16 %v697
  %v842 = vunpack.c.l.b16 %v698
  %v843 = vunpack.c.l.b16 %v699
  %v844 = vunpack.c.l.b16 %v700
  %v845 = vunpack.c.l.b16 %v701
  %v846 = vunpack.c.l.b16 %v702
  %v847 = vunpack.c.l.b16 %v703
  %v848 = vunpack.c.l.b16 %v704
  %v849 = vunpack.c.l.b16 %v705
  %v850 = vunpack.c.l.b16 %v706
  %v851 = vunpack.c.l.b16 %v707
  %v852 = vunpack.c.l.b16 %v708
  %v853 = vunpack.c.l.b16 %v709
  %v854 = vpack.c.b16 %v823, %v822
  %v855 = vpack.c.b16 %v825, %v824
  %v856 = vpack.c.b16 %v827, %v826
  %v857 = vpack.c.b16 %v829, %v828
  %v858 = vpack.c.b16 %v831, %v830
  %v859 = vpack.c.b16 %v833, %v832
  %v860 = vpack.c.b16 %v835, %v834
  %v861 = vpack.c.b16 %v837, %v836
  %v862 = vpack.c.b16 %v839, %v838
  %v863 = vpack.c.b16 %v841, %v840
  %v864 = vpack.c.b16 %v843, %v842
  %v865 = vpack.c.b16 %v845, %v844
  %v866 = vpack.c.b16 %v847, %v846
  %v867 = vpack.c.b16 %v849, %v848
  %v868 = vpack.c.b16 %v851, %v850
  %v869 = vpack.c.b16 %v853, %v852
  %886 = vmatpush.bf16.msra.mxu0 %v861
  %887 = vmatpush.bf16.msra.mxu0 %v860
  %888 = vmatpush.bf16.msra.mxu0 %v859
  %889 = vmatpush.bf16.msra.mxu0 %v858
  %890 = vmatpush.bf16.msra.mxu0 %v857
  %891 = vmatpush.bf16.msra.mxu0 %v856
  %892 = vmatpush.bf16.msra.mxu0 %v855
  %893 = vmatpush.bf16.msra.mxu0 %v854
  %894 = vmatmul.bf16.gmra.mxu0 %v758
  %v895 = vpop.f32.mrf.mxu0
  %v896 = vadd.f32 0.0, %v895
  %v897 = vpop.f32.mrf.mxu0
  %v898 = vadd.f32 0.0, %v897
  %899 = vmatmul.bf16.gmra.mxu0 %v760
  %v900 = vpop.f32.mrf.mxu0
  %v901 = vadd.f32 0.0, %v900
  %v902 = vpop.f32.mrf.mxu0
  %v903 = vadd.f32 0.0, %v902
  %904 = vmatmul.bf16.gmra.mxu0 %v762
  %v905 = vpop.f32.mrf.mxu0
  %v906 = vadd.f32 0.0, %v905
  %v907 = vpop.f32.mrf.mxu0
  %v908 = vadd.f32 0.0, %v907
  %909 = vmatmul.bf16.gmra.mxu0 %v764
  %v910 = vpop.f32.mrf.mxu0
  %v911 = vadd.f32 0.0, %v910
  %v912 = vpop.f32.mrf.mxu0
  %v913 = vadd.f32 0.0, %v912
  %914 = vmatmul.bf16.gmra.mxu0 %v766
  %v915 = vpop.f32.mrf.mxu0
  %v916 = vadd.f32 0.0, %v915
  %v917 = vpop.f32.mrf.mxu0
  %v918 = vadd.f32 0.0, %v917
  %919 = vmatmul.bf16.gmra.mxu0 %v768
  %v920 = vpop.f32.mrf.mxu0
  %v921 = vadd.f32 0.0, %v920
  %v922 = vpop.f32.mrf.mxu0
  %v923 = vadd.f32 0.0, %v922
  %924 = vmatmul.bf16.gmra.mxu0 %v770
  %v925 = vpop.f32.mrf.mxu0
  %v926 = vadd.f32 0.0, %v925
  %v927 = vpop.f32.mrf.mxu0
  %v928 = vadd.f32 0.0, %v927
  %929 = vmatmul.bf16.gmra.mxu0 %v772
  %v930 = vpop.f32.mrf.mxu0
  %v931 = vadd.f32 0.0, %v930
  %v932 = vpop.f32.mrf.mxu0
  %v933 = vadd.f32 0.0, %v932
  %934 = vdwg.mxu0
  %935 = vmatpush.bf16.msra.mxu0 %v869
  %936 = vmatpush.bf16.msra.mxu0 %v868
  %937 = vmatpush.bf16.msra.mxu0 %v867
  %938 = vmatpush.bf16.msra.mxu0 %v866
  %939 = vmatpush.bf16.msra.mxu0 %v865
  %940 = vmatpush.bf16.msra.mxu0 %v864
  %941 = vmatpush.bf16.msra.mxu0 %v863
  %942 = vmatpush.bf16.msra.mxu0 %v862
  %943 = vmatmul.bf16.gmra.mxu0 %v759
  %v944 = vpop.f32.mrf.mxu0
  %v945 = vadd.f32 %v896, %v944
  %v946 = vpop.f32.mrf.mxu0
  %v947 = vadd.f32 %v898, %v946
  %948 = vmatmul.bf16.gmra.mxu0 %v761
  %v949 = vpop.f32.mrf.mxu0
  %v950 = vadd.f32 %v901, %v949
  %v951 = vpop.f32.mrf.mxu0
  %v952 = vadd.f32 %v903, %v951
  %953 = vmatmul.bf16.gmra.mxu0 %v763
  %v954 = vpop.f32.mrf.mxu0
  %v955 = vadd.f32 %v906, %v954
  %v956 = vpop.f32.mrf.mxu0
  %v957 = vadd.f32 %v908, %v956
  %958 = vmatmul.bf16.gmra.mxu0 %v765
  %v959 = vpop.f32.mrf.mxu0
  %v960 = vadd.f32 %v911, %v959
  %v961 = vpop.f32.mrf.mxu0
  %v962 = vadd.f32 %v913, %v961
  %963 = vmatmul.bf16.gmra.mxu0 %v767
  %v964 = vpop.f32.mrf.mxu0
  %v965 = vadd.f32 %v916, %v964
  %v966 = vpop.f32.mrf.mxu0
  %v967 = vadd.f32 %v918, %v966
  %968 = vmatmul.bf16.gmra.mxu0 %v769
  %v969 = vpop.f32.mrf.mxu0
  %v970 = vadd.f32 %v921, %v969
  %v971 = vpop.f32.mrf.mxu0
  %v972 = vadd.f32 %v923, %v971
  %973 = vmatmul.bf16.gmra.mxu0 %v771
  %v974 = vpop.f32.mrf.mxu0
  %v975 = vadd.f32 %v926, %v974
  %v976 = vpop.f32.mrf.mxu0
  %v977 = vadd.f32 %v928, %v976
  %978 = vmatmul.bf16.gmra.mxu0 %v773
  %v979 = vpop.f32.mrf.mxu0
  %v980 = vadd.f32 %v931, %v979
  %v981 = vpop.f32.mrf.mxu0
  %v982 = vadd.f32 %v933, %v981
  %983 = vdwg.mxu0
  %v984 = vadd.f32 %v621, %v945
  %v985 = vadd.f32 %v623, %v947
  %v986 = vadd.f32 %v626, %v950
  %v987 = vadd.f32 %v628, %v952
  %v988 = vadd.f32 %v631, %v955
  %v989 = vadd.f32 %v633, %v957
  %v990 = vadd.f32 %v636, %v960
  %v991 = vadd.f32 %v638, %v962
  %v992 = vadd.f32 %v641, %v965
  %v993 = vadd.f32 %v643, %v967
  %v994 = vadd.f32 %v646, %v970
  %v995 = vadd.f32 %v648, %v972
  %v996 = vadd.f32 %v651, %v975
  %v997 = vadd.f32 %v653, %v977
  %v998 = vadd.f32 %v656, %v980
  %v999 = vadd.f32 %v658, %v982
  %s1000 = scalar_lea.vmem %s0, 384
  %v1001 = vld [vmem:[%s1000] sm:$0xff]
  %v1002 = vld [vmem:[%s1000 + $0x8] sm:$0xff]
  %v1003 = vld [vmem:[%s1000 + $0x10] sm:$0xff]
  %v1004 = vld [vmem:[%s1000 + $0x18] sm:$0xff]
  %v1005 = vld [vmem:[%s1000 + $0x20] sm:$0xff]
  %v1006 = vld [vmem:[%s1000 + $0x28] sm:$0xff]
  %v1007 = vld [vmem:[%s1000 + $0x30] sm:$0xff]
  %v1008 = vld [vmem:[%s1000 + $0x38] sm:$0xff]
  %v1009 = vld [vmem:[%s1000 + $0x40] sm:$0xff]
  %v1010 = vld [vmem:[%s1000 + $0x48] sm:$0xff]
  %v1011 = vld [vmem:[%s1000 + $0x50] sm:$0xff]
  %v1012 = vld [vmem:[%s1000 + $0x58] sm:$0xff]
  %v1013 = vld [vmem:[%s1000 + $0x60] sm:$0xff]
  %v1014 = vld [vmem:[%s1000 + $0x68] sm:$0xff]
  %v1015 = vld [vmem:[%s1000 + $0x70] sm:$0xff]
  %v1016 = vld [vmem:[%s1000 + $0x78] sm:$0xff]
  %s1017 = scalar_lea.vmem %s1, 384
  %v1018 = vld [vmem:[%s1017] sm:$0xf]
  %v1019 = vld [vmem:[%s1017 + $0x4] sm:$0xf]
  %v1020 = vld [vmem:[%s1017 + $0x8] sm:$0xf]
  %v1021 = vld [vmem:[%s1017 + $0xc] sm:$0xf]
  %v1022 = vld [vmem:[%s1017 + $0x10] sm:$0xf]
  %v1023 = vld [vmem:[%s1017 + $0x14] sm:$0xf]
  %v1024 = vld [vmem:[%s1017 + $0x18] sm:$0xf]
  %v1025 = vld [vmem:[%s1017 + $0x1c] sm:$0xf]
  %v1026 = vld [vmem:[%s1017 + $0x20] sm:$0xf]
  %v1027 = vld [vmem:[%s1017 + $0x24] sm:$0xf]
  %v1028 = vld [vmem:[%s1017 + $0x28] sm:$0xf]
  %v1029 = vld [vmem:[%s1017 + $0x2c] sm:$0xf]
  %v1030 = vld [vmem:[%s1017 + $0x30] sm:$0xf]
  %v1031 = vld [vmem:[%s1017 + $0x34] sm:$0xf]
  %v1032 = vld [vmem:[%s1017 + $0x38] sm:$0xf]
  %v1033 = vld [vmem:[%s1017 + $0x3c] sm:$0xf]
  %v1034 = vld [vmem:[%s1017 + $0x40] sm:$0xf]
  %v1035 = vld [vmem:[%s1017 + $0x44] sm:$0xf]
  %v1036 = vld [vmem:[%s1017 + $0x48] sm:$0xf]
  %v1037 = vld [vmem:[%s1017 + $0x4c] sm:$0xf]
  %v1038 = vld [vmem:[%s1017 + $0x50] sm:$0xf]
  %v1039 = vld [vmem:[%s1017 + $0x54] sm:$0xf]
  %v1040 = vld [vmem:[%s1017 + $0x58] sm:$0xf]
  %v1041 = vld [vmem:[%s1017 + $0x5c] sm:$0xf]
  %v1042 = vld [vmem:[%s1017 + $0x60] sm:$0xf]
  %v1043 = vld [vmem:[%s1017 + $0x64] sm:$0xf]
  %v1044 = vld [vmem:[%s1017 + $0x68] sm:$0xf]
  %v1045 = vld [vmem:[%s1017 + $0x6c] sm:$0xf]
  %v1046 = vld [vmem:[%s1017 + $0x70] sm:$0xf]
  %v1047 = vld [vmem:[%s1017 + $0x74] sm:$0xf]
  %v1048 = vld [vmem:[%s1017 + $0x78] sm:$0xf]
  %v1049 = vld [vmem:[%s1017 + $0x7c] sm:$0xf]
  %v1066 = vunpack.c.l.b16 %v1001
  %v1067 = vunpack.c.h.b16 %v1001
  %v1068 = vunpack.c.l.b16 %v1002
  %v1069 = vunpack.c.h.b16 %v1002
  %v1070 = vunpack.c.l.b16 %v1003
  %v1071 = vunpack.c.h.b16 %v1003
  %v1072 = vunpack.c.l.b16 %v1004
  %v1073 = vunpack.c.h.b16 %v1004
  %v1074 = vunpack.c.l.b16 %v1005
  %v1075 = vunpack.c.h.b16 %v1005
  %v1076 = vunpack.c.l.b16 %v1006
  %v1077 = vunpack.c.h.b16 %v1006
  %v1078 = vunpack.c.l.b16 %v1007
  %v1079 = vunpack.c.h.b16 %v1007
  %v1080 = vunpack.c.l.b16 %v1008
  %v1081 = vunpack.c.h.b16 %v1008
  %v1082 = vunpack.c.l.b16 %v1009
  %v1083 = vunpack.c.h.b16 %v1009
  %v1084 = vunpack.c.l.b16 %v1010
  %v1085 = vunpack.c.h.b16 %v1010
  %v1086 = vunpack.c.l.b16 %v1011
  %v1087 = vunpack.c.h.b16 %v1011
  %v1088 = vunpack.c.l.b16 %v1012
  %v1089 = vunpack.c.h.b16 %v1012
  %v1090 = vunpack.c.l.b16 %v1013
  %v1091 = vunpack.c.h.b16 %v1013
  %v1092 = vunpack.c.l.b16 %v1014
  %v1093 = vunpack.c.h.b16 %v1014
  %v1094 = vunpack.c.l.b16 %v1015
  %v1095 = vunpack.c.h.b16 %v1015
  %v1096 = vunpack.c.l.b16 %v1016
  %v1097 = vunpack.c.h.b16 %v1016
  %v1098 = vpack.c.b16 %v1068, %v1066
  %v1099 = vpack.c.b16 %v1069, %v1067
  %v1100 = vpack.c.b16 %v1072, %v1070
  %v1101 = vpack.c.b16 %v1073, %v1071
  %v1102 = vpack.c.b16 %v1076, %v1074
  %v1103 = vpack.c.b16 %v1077, %v1075
  %v1104 = vpack.c.b16 %v1080, %v1078
  %v1105 = vpack.c.b16 %v1081, %v1079
  %v1106 = vpack.c.b16 %v1084, %v1082
  %v1107 = vpack.c.b16 %v1085, %v1083
  %v1108 = vpack.c.b16 %v1088, %v1086
  %v1109 = vpack.c.b16 %v1089, %v1087
  %v1110 = vpack.c.b16 %v1092, %v1090
  %v1111 = vpack.c.b16 %v1093, %v1091
  %v1112 = vpack.c.b16 %v1096, %v1094
  %v1113 = vpack.c.b16 %v1097, %v1095
  %v1162 = vunpack.c.l.b16 %v1018
  %v1163 = vunpack.c.l.b16 %v1019
  %v1164 = vunpack.c.l.b16 %v1020
  %v1165 = vunpack.c.l.b16 %v1021
  %v1166 = vunpack.c.l.b16 %v1022
  %v1167 = vunpack.c.l.b16 %v1023
  %v1168 = vunpack.c.l.b16 %v1024
  %v1169 = vunpack.c.l.b16 %v1025
  %v1170 = vunpack.c.l.b16 %v1026
  %v1171 = vunpack.c.l.b16 %v1027
  %v1172 = vunpack.c.l.b16 %v1028
  %v1173 = vunpack.c.l.b16 %v1029
  %v1174 = vunpack.c.l.b16 %v1030
  %v1175 = vunpack.c.l.b16 %v1031
  %v1176 = vunpack.c.l.b16 %v1032
  %v1177 = vunpack.c.l.b16 %v1033
  %v1178 = vunpack.c.l.b16 %v1034
  %v1179 = vunpack.c.l.b16 %v1035
  %v1180 = vunpack.c.l.b16 %v1036
  %v1181 = vunpack.c.l.b16 %v1037
  %v1182 = vunpack.c.l.b16 %v1038
  %v1183 = vunpack.c.l.b16 %v1039
  %v1184 = vunpack.c.l.b16 %v1040
  %v1185 = vunpack.c.l.b16 %v1041
  %v1186 = vunpack.c.l.b16 %v1042
  %v1187 = vunpack.c.l.b16 %v1043
  %v1188 = vunpack.c.l.b16 %v1044
  %v1189 = vunpack.c.l.b16 %v1045
  %v1190 = vunpack.c.l.b16 %v1046
  %v1191 = vunpack.c.l.b16 %v1047
  %v1192 = vunpack.c.l.b16 %v1048
  %v1193 = vunpack.c.l.b16 %v1049
  %v1194 = vpack.c.b16 %v1163, %v1162
  %v1195 = vpack.c.b16 %v1165, %v1164
  %v1196 = vpack.c.b16 %v1167, %v1166
  %v1197 = vpack.c.b16 %v1169, %v1168
  %v1198 = vpack.c.b16 %v1171, %v1170
  %v1199 = vpack.c.b16 %v1173, %v1172
  %v1200 = vpack.c.b16 %v1175, %v1174
  %v1201 = vpack.c.b16 %v1177, %v1176
  %v1202 = vpack.c.b16 %v1179, %v1178
  %v1203 = vpack.c.b16 %v1181, %v1180
  %v1204 = vpack.c.b16 %v1183, %v1182
  %v1205 = vpack.c.b16 %v1185, %v1184
  %v1206 = vpack.c.b16 %v1187, %v1186
  %v1207 = vpack.c.b16 %v1189, %v1188
  %v1208 = vpack.c.b16 %v1191, %v1190
  %v1209 = vpack.c.b16 %v1193, %v1192
  %1226 = vmatpush.bf16.msra.mxu0 %v1201
  %1227 = vmatpush.bf16.msra.mxu0 %v1200
  %1228 = vmatpush.bf16.msra.mxu0 %v1199
  %1229 = vmatpush.bf16.msra.mxu0 %v1198
  %1230 = vmatpush.bf16.msra.mxu0 %v1197
  %1231 = vmatpush.bf16.msra.mxu0 %v1196
  %1232 = vmatpush.bf16.msra.mxu0 %v1195
  %1233 = vmatpush.bf16.msra.mxu0 %v1194
  %1234 = vmatmul.bf16.gmra.mxu0 %v1098
  %v1235 = vpop.f32.mrf.mxu0
  %v1236 = vadd.f32 0.0, %v1235
  %v1237 = vpop.f32.mrf.mxu0
  %v1238 = vadd.f32 0.0, %v1237
  %1239 = vmatmul.bf16.gmra.mxu0 %v1100
  %v1240 = vpop.f32.mrf.mxu0
  %v1241 = vadd.f32 0.0, %v1240
  %v1242 = vpop.f32.mrf.mxu0
  %v1243 = vadd.f32 0.0, %v1242
  %1244 = vmatmul.bf16.gmra.mxu0 %v1102
  %v1245 = vpop.f32.mrf.mxu0
  %v1246 = vadd.f32 0.0, %v1245
  %v1247 = vpop.f32.mrf.mxu0
  %v1248 = vadd.f32 0.0, %v1247
  %1249 = vmatmul.bf16.gmra.mxu0 %v1104
  %v1250 = vpop.f32.mrf.mxu0
  %v1251 = vadd.f32 0.0, %v1250
  %v1252 = vpop.f32.mrf.mxu0
  %v1253 = vadd.f32 0.0, %v1252
  %1254 = vmatmul.bf16.gmra.mxu0 %v1106
  %v1255 = vpop.f32.mrf.mxu0
  %v1256 = vadd.f32 0.0, %v1255
  %v1257 = vpop.f32.mrf.mxu0
  %v1258 = vadd.f32 0.0, %v1257
  %1259 = vmatmul.bf16.gmra.mxu0 %v1108
  %v1260 = vpop.f32.mrf.mxu0
  %v1261 = vadd.f32 0.0, %v1260
  %v1262 = vpop.f32.mrf.mxu0
  %v1263 = vadd.f32 0.0, %v1262
  %1264 = vmatmul.bf16.gmra.mxu0 %v1110
  %v1265 = vpop.f32.mrf.mxu0
  %v1266 = vadd.f32 0.0, %v1265
  %v1267 = vpop.f32.mrf.mxu0
  %v1268 = vadd.f32 0.0, %v1267
  %1269 = vmatmul.bf16.gmra.mxu0 %v1112
  %v1270 = vpop.f32.mrf.mxu0
  %v1271 = vadd.f32 0.0, %v1270
  %v1272 = vpop.f32.mrf.mxu0
  %v1273 = vadd.f32 0.0, %v1272
  %1274 = vdwg.mxu0
  %1275 = vmatpush.bf16.msra.mxu0 %v1209
  %1276 = vmatpush.bf16.msra.mxu0 %v1208
  %1277 = vmatpush.bf16.msra.mxu0 %v1207
  %1278 = vmatpush.bf16.msra.mxu0 %v1206
  %1279 = vmatpush.bf16.msra.mxu0 %v1205
  %1280 = vmatpush.bf16.msra.mxu0 %v1204
  %1281 = vmatpush.bf16.msra.mxu0 %v1203
  %1282 = vmatpush.bf16.msra.mxu0 %v1202
  %1283 = vmatmul.bf16.gmra.mxu0 %v1099
  %v1284 = vpop.f32.mrf.mxu0
  %v1285 = vadd.f32 %v1236, %v1284
  %v1286 = vpop.f32.mrf.mxu0
  %v1287 = vadd.f32 %v1238, %v1286
  %1288 = vmatmul.bf16.gmra.mxu0 %v1101
  %v1289 = vpop.f32.mrf.mxu0
  %v1290 = vadd.f32 %v1241, %v1289
  %v1291 = vpop.f32.mrf.mxu0
  %v1292 = vadd.f32 %v1243, %v1291
  %1293 = vmatmul.bf16.gmra.mxu0 %v1103
  %v1294 = vpop.f32.mrf.mxu0
  %v1295 = vadd.f32 %v1246, %v1294
  %v1296 = vpop.f32.mrf.mxu0
  %v1297 = vadd.f32 %v1248, %v1296
  %1298 = vmatmul.bf16.gmra.mxu0 %v1105
  %v1299 = vpop.f32.mrf.mxu0
  %v1300 = vadd.f32 %v1251, %v1299
  %v1301 = vpop.f32.mrf.mxu0
  %v1302 = vadd.f32 %v1253, %v1301
  %1303 = vmatmul.bf16.gmra.mxu0 %v1107
  %v1304 = vpop.f32.mrf.mxu0
  %v1305 = vadd.f32 %v1256, %v1304
  %v1306 = vpop.f32.mrf.mxu0
  %v1307 = vadd.f32 %v1258, %v1306
  %1308 = vmatmul.bf16.gmra.mxu0 %v1109
  %v1309 = vpop.f32.mrf.mxu0
  %v1310 = vadd.f32 %v1261, %v1309
  %v1311 = vpop.f32.mrf.mxu0
  %v1312 = vadd.f32 %v1263, %v1311
  %1313 = vmatmul.bf16.gmra.mxu0 %v1111
  %v1314 = vpop.f32.mrf.mxu0
  %v1315 = vadd.f32 %v1266, %v1314
  %v1316 = vpop.f32.mrf.mxu0
  %v1317 = vadd.f32 %v1268, %v1316
  %1318 = vmatmul.bf16.gmra.mxu0 %v1113
  %v1319 = vpop.f32.mrf.mxu0
  %v1320 = vadd.f32 %v1271, %v1319
  %v1321 = vpop.f32.mrf.mxu0
  %v1322 = vadd.f32 %v1273, %v1321
  %1323 = vdwg.mxu0
  %v1324 = vadd.f32 %v984, %v1285
  %v1325 = vadd.f32 %v985, %v1287
  %v1326 = vadd.f32 %v986, %v1290
  %v1327 = vadd.f32 %v987, %v1292
  %v1328 = vadd.f32 %v988, %v1295
  %v1329 = vadd.f32 %v989, %v1297
  %v1330 = vadd.f32 %v990, %v1300
  %v1331 = vadd.f32 %v991, %v1302
  %v1332 = vadd.f32 %v992, %v1305
  %v1333 = vadd.f32 %v993, %v1307
  %v1334 = vadd.f32 %v994, %v1310
  %v1335 = vadd.f32 %v995, %v1312
  %v1336 = vadd.f32 %v996, %v1315
  %v1337 = vadd.f32 %v997, %v1317
  %v1338 = vadd.f32 %v998, %v1320
  %v1339 = vadd.f32 %v999, %v1322
  %s1340 = scalar_lea.vmem %s0, 512
  %v1341 = vld [vmem:[%s1340] sm:$0xff]
  %v1342 = vld [vmem:[%s1340 + $0x8] sm:$0xff]
  %v1343 = vld [vmem:[%s1340 + $0x10] sm:$0xff]
  %v1344 = vld [vmem:[%s1340 + $0x18] sm:$0xff]
  %v1345 = vld [vmem:[%s1340 + $0x20] sm:$0xff]
  %v1346 = vld [vmem:[%s1340 + $0x28] sm:$0xff]
  %v1347 = vld [vmem:[%s1340 + $0x30] sm:$0xff]
  %v1348 = vld [vmem:[%s1340 + $0x38] sm:$0xff]
  %v1349 = vld [vmem:[%s1340 + $0x40] sm:$0xff]
  %v1350 = vld [vmem:[%s1340 + $0x48] sm:$0xff]
  %v1351 = vld [vmem:[%s1340 + $0x50] sm:$0xff]
  %v1352 = vld [vmem:[%s1340 + $0x58] sm:$0xff]
  %v1353 = vld [vmem:[%s1340 + $0x60] sm:$0xff]
  %v1354 = vld [vmem:[%s1340 + $0x68] sm:$0xff]
  %v1355 = vld [vmem:[%s1340 + $0x70] sm:$0xff]
  %v1356 = vld [vmem:[%s1340 + $0x78] sm:$0xff]
  %s1357 = scalar_lea.vmem %s1, 512
  %v1358 = vld [vmem:[%s1357] sm:$0xf]
  %v1359 = vld [vmem:[%s1357 + $0x4] sm:$0xf]
  %v1360 = vld [vmem:[%s1357 + $0x8] sm:$0xf]
  %v1361 = vld [vmem:[%s1357 + $0xc] sm:$0xf]
  %v1362 = vld [vmem:[%s1357 + $0x10] sm:$0xf]
  %v1363 = vld [vmem:[%s1357 + $0x14] sm:$0xf]
  %v1364 = vld [vmem:[%s1357 + $0x18] sm:$0xf]
  %v1365 = vld [vmem:[%s1357 + $0x1c] sm:$0xf]
  %v1366 = vld [vmem:[%s1357 + $0x20] sm:$0xf]
  %v1367 = vld [vmem:[%s1357 + $0x24] sm:$0xf]
  %v1368 = vld [vmem:[%s1357 + $0x28] sm:$0xf]
  %v1369 = vld [vmem:[%s1357 + $0x2c] sm:$0xf]
  %v1370 = vld [vmem:[%s1357 + $0x30] sm:$0xf]
  %v1371 = vld [vmem:[%s1357 + $0x34] sm:$0xf]
  %v1372 = vld [vmem:[%s1357 + $0x38] sm:$0xf]
  %v1373 = vld [vmem:[%s1357 + $0x3c] sm:$0xf]
  %v1374 = vld [vmem:[%s1357 + $0x40] sm:$0xf]
  %v1375 = vld [vmem:[%s1357 + $0x44] sm:$0xf]
  %v1376 = vld [vmem:[%s1357 + $0x48] sm:$0xf]
  %v1377 = vld [vmem:[%s1357 + $0x4c] sm:$0xf]
  %v1378 = vld [vmem:[%s1357 + $0x50] sm:$0xf]
  %v1379 = vld [vmem:[%s1357 + $0x54] sm:$0xf]
  %v1380 = vld [vmem:[%s1357 + $0x58] sm:$0xf]
  %v1381 = vld [vmem:[%s1357 + $0x5c] sm:$0xf]
  %v1382 = vld [vmem:[%s1357 + $0x60] sm:$0xf]
  %v1383 = vld [vmem:[%s1357 + $0x64] sm:$0xf]
  %v1384 = vld [vmem:[%s1357 + $0x68] sm:$0xf]
  %v1385 = vld [vmem:[%s1357 + $0x6c] sm:$0xf]
  %v1386 = vld [vmem:[%s1357 + $0x70] sm:$0xf]
  %v1387 = vld [vmem:[%s1357 + $0x74] sm:$0xf]
  %v1388 = vld [vmem:[%s1357 + $0x78] sm:$0xf]
  %v1389 = vld [vmem:[%s1357 + $0x7c] sm:$0xf]
  %v1406 = vunpack.c.l.b16 %v1341
  %v1407 = vunpack.c.h.b16 %v1341
  %v1408 = vunpack.c.l.b16 %v1342
  %v1409 = vunpack.c.h.b16 %v1342
  %v1410 = vunpack.c.l.b16 %v1343
  %v1411 = vunpack.c.h.b16 %v1343
  %v1412 = vunpack.c.l.b16 %v1344
  %v1413 = vunpack.c.h.b16 %v1344
  %v1414 = vunpack.c.l.b16 %v1345
  %v1415 = vunpack.c.h.b16 %v1345
  %v1416 = vunpack.c.l.b16 %v1346
  %v1417 = vunpack.c.h.b16 %v1346
  %v1418 = vunpack.c.l.b16 %v1347
  %v1419 = vunpack.c.h.b16 %v1347
  %v1420 = vunpack.c.l.b16 %v1348
  %v1421 = vunpack.c.h.b16 %v1348
  %v1422 = vunpack.c.l.b16 %v1349
  %v1423 = vunpack.c.h.b16 %v1349
  %v1424 = vunpack.c.l.b16 %v1350
  %v1425 = vunpack.c.h.b16 %v1350
  %v1426 = vunpack.c.l.b16 %v1351
  %v1427 = vunpack.c.h.b16 %v1351
  %v1428 = vunpack.c.l.b16 %v1352
  %v1429 = vunpack.c.h.b16 %v1352
  %v1430 = vunpack.c.l.b16 %v1353
  %v1431 = vunpack.c.h.b16 %v1353
  %v1432 = vunpack.c.l.b16 %v1354
  %v1433 = vunpack.c.h.b16 %v1354
  %v1434 = vunpack.c.l.b16 %v1355
  %v1435 = vunpack.c.h.b16 %v1355
  %v1436 = vunpack.c.l.b16 %v1356
  %v1437 = vunpack.c.h.b16 %v1356
  %v1438 = vpack.c.b16 %v1408, %v1406
  %v1439 = vpack.c.b16 %v1409, %v1407
  %v1440 = vpack.c.b16 %v1412, %v1410
  %v1441 = vpack.c.b16 %v1413, %v1411
  %v1442 = vpack.c.b16 %v1416, %v1414
  %v1443 = vpack.c.b16 %v1417, %v1415
  %v1444 = vpack.c.b16 %v1420, %v1418
  %v1445 = vpack.c.b16 %v1421, %v1419
  %v1446 = vpack.c.b16 %v1424, %v1422
  %v1447 = vpack.c.b16 %v1425, %v1423
  %v1448 = vpack.c.b16 %v1428, %v1426
  %v1449 = vpack.c.b16 %v1429, %v1427
  %v1450 = vpack.c.b16 %v1432, %v1430
  %v1451 = vpack.c.b16 %v1433, %v1431
  %v1452 = vpack.c.b16 %v1436, %v1434
  %v1453 = vpack.c.b16 %v1437, %v1435
  %v1502 = vunpack.c.l.b16 %v1358
  %v1503 = vunpack.c.l.b16 %v1359
  %v1504 = vunpack.c.l.b16 %v1360
  %v1505 = vunpack.c.l.b16 %v1361
  %v1506 = vunpack.c.l.b16 %v1362
  %v1507 = vunpack.c.l.b16 %v1363
  %v1508 = vunpack.c.l.b16 %v1364
  %v1509 = vunpack.c.l.b16 %v1365
  %v1510 = vunpack.c.l.b16 %v1366
  %v1511 = vunpack.c.l.b16 %v1367
  %v1512 = vunpack.c.l.b16 %v1368
  %v1513 = vunpack.c.l.b16 %v1369
  %v1514 = vunpack.c.l.b16 %v1370
  %v1515 = vunpack.c.l.b16 %v1371
  %v1516 = vunpack.c.l.b16 %v1372
  %v1517 = vunpack.c.l.b16 %v1373
  %v1518 = vunpack.c.l.b16 %v1374
  %v1519 = vunpack.c.l.b16 %v1375
  %v1520 = vunpack.c.l.b16 %v1376
  %v1521 = vunpack.c.l.b16 %v1377
  %v1522 = vunpack.c.l.b16 %v1378
  %v1523 = vunpack.c.l.b16 %v1379
  %v1524 = vunpack.c.l.b16 %v1380
  %v1525 = vunpack.c.l.b16 %v1381
  %v1526 = vunpack.c.l.b16 %v1382
  %v1527 = vunpack.c.l.b16 %v1383
  %v1528 = vunpack.c.l.b16 %v1384
  %v1529 = vunpack.c.l.b16 %v1385
  %v1530 = vunpack.c.l.b16 %v1386
  %v1531 = vunpack.c.l.b16 %v1387
  %v1532 = vunpack.c.l.b16 %v1388
  %v1533 = vunpack.c.l.b16 %v1389
  %v1534 = vpack.c.b16 %v1503, %v1502
  %v1535 = vpack.c.b16 %v1505, %v1504
  %v1536 = vpack.c.b16 %v1507, %v1506
  %v1537 = vpack.c.b16 %v1509, %v1508
  %v1538 = vpack.c.b16 %v1511, %v1510
  %v1539 = vpack.c.b16 %v1513, %v1512
  %v1540 = vpack.c.b16 %v1515, %v1514
  %v1541 = vpack.c.b16 %v1517, %v1516
  %v1542 = vpack.c.b16 %v1519, %v1518
  %v1543 = vpack.c.b16 %v1521, %v1520
  %v1544 = vpack.c.b16 %v1523, %v1522
  %v1545 = vpack.c.b16 %v1525, %v1524
  %v1546 = vpack.c.b16 %v1527, %v1526
  %v1547 = vpack.c.b16 %v1529, %v1528
  %v1548 = vpack.c.b16 %v1531, %v1530
  %v1549 = vpack.c.b16 %v1533, %v1532
  %1566 = vmatpush.bf16.msra.mxu0 %v1541
  %1567 = vmatpush.bf16.msra.mxu0 %v1540
  %1568 = vmatpush.bf16.msra.mxu0 %v1539
  %1569 = vmatpush.bf16.msra.mxu0 %v1538
  %1570 = vmatpush.bf16.msra.mxu0 %v1537
  %1571 = vmatpush.bf16.msra.mxu0 %v1536
  %1572 = vmatpush.bf16.msra.mxu0 %v1535
  %1573 = vmatpush.bf16.msra.mxu0 %v1534
  %1574 = vmatmul.bf16.gmra.mxu0 %v1438
  %v1575 = vpop.f32.mrf.mxu0
  %v1576 = vadd.f32 0.0, %v1575
  %v1577 = vpop.f32.mrf.mxu0
  %v1578 = vadd.f32 0.0, %v1577
  %1579 = vmatmul.bf16.gmra.mxu0 %v1440
  %v1580 = vpop.f32.mrf.mxu0
  %v1581 = vadd.f32 0.0, %v1580
  %v1582 = vpop.f32.mrf.mxu0
  %v1583 = vadd.f32 0.0, %v1582
  %1584 = vmatmul.bf16.gmra.mxu0 %v1442
  %v1585 = vpop.f32.mrf.mxu0
  %v1586 = vadd.f32 0.0, %v1585
  %v1587 = vpop.f32.mrf.mxu0
  %v1588 = vadd.f32 0.0, %v1587
  %1589 = vmatmul.bf16.gmra.mxu0 %v1444
  %v1590 = vpop.f32.mrf.mxu0
  %v1591 = vadd.f32 0.0, %v1590
  %v1592 = vpop.f32.mrf.mxu0
  %v1593 = vadd.f32 0.0, %v1592
  %1594 = vmatmul.bf16.gmra.mxu0 %v1446
  %v1595 = vpop.f32.mrf.mxu0
  %v1596 = vadd.f32 0.0, %v1595
  %v1597 = vpop.f32.mrf.mxu0
  %v1598 = vadd.f32 0.0, %v1597
  %1599 = vmatmul.bf16.gmra.mxu0 %v1448
  %v1600 = vpop.f32.mrf.mxu0
  %v1601 = vadd.f32 0.0, %v1600
  %v1602 = vpop.f32.mrf.mxu0
  %v1603 = vadd.f32 0.0, %v1602
  %1604 = vmatmul.bf16.gmra.mxu0 %v1450
  %v1605 = vpop.f32.mrf.mxu0
  %v1606 = vadd.f32 0.0, %v1605
  %v1607 = vpop.f32.mrf.mxu0
  %v1608 = vadd.f32 0.0, %v1607
  %1609 = vmatmul.bf16.gmra.mxu0 %v1452
  %v1610 = vpop.f32.mrf.mxu0
  %v1611 = vadd.f32 0.0, %v1610
  %v1612 = vpop.f32.mrf.mxu0
  %v1613 = vadd.f32 0.0, %v1612
  %1614 = vdwg.mxu0
  %1615 = vmatpush.bf16.msra.mxu0 %v1549
  %1616 = vmatpush.bf16.msra.mxu0 %v1548
  %1617 = vmatpush.bf16.msra.mxu0 %v1547
  %1618 = vmatpush.bf16.msra.mxu0 %v1546
  %1619 = vmatpush.bf16.msra.mxu0 %v1545
  %1620 = vmatpush.bf16.msra.mxu0 %v1544
  %1621 = vmatpush.bf16.msra.mxu0 %v1543
  %1622 = vmatpush.bf16.msra.mxu0 %v1542
  %1623 = vmatmul.bf16.gmra.mxu0 %v1439
  %v1624 = vpop.f32.mrf.mxu0
  %v1625 = vadd.f32 %v1576, %v1624
  %v1626 = vpop.f32.mrf.mxu0
  %v1627 = vadd.f32 %v1578, %v1626
  %1628 = vmatmul.bf16.gmra.mxu0 %v1441
  %v1629 = vpop.f32.mrf.mxu0
  %v1630 = vadd.f32 %v1581, %v1629
  %v1631 = vpop.f32.mrf.mxu0
  %v1632 = vadd.f32 %v1583, %v1631
  %1633 = vmatmul.bf16.gmra.mxu0 %v1443
  %v1634 = vpop.f32.mrf.mxu0
  %v1635 = vadd.f32 %v1586, %v1634
  %v1636 = vpop.f32.mrf.mxu0
  %v1637 = vadd.f32 %v1588, %v1636
  %1638 = vmatmul.bf16.gmra.mxu0 %v1445
  %v1639 = vpop.f32.mrf.mxu0
  %v1640 = vadd.f32 %v1591, %v1639
  %v1641 = vpop.f32.mrf.mxu0
  %v1642 = vadd.f32 %v1593, %v1641
  %1643 = vmatmul.bf16.gmra.mxu0 %v1447
  %v1644 = vpop.f32.mrf.mxu0
  %v1645 = vadd.f32 %v1596, %v1644
  %v1646 = vpop.f32.mrf.mxu0
  %v1647 = vadd.f32 %v1598, %v1646
  %1648 = vmatmul.bf16.gmra.mxu0 %v1449
  %v1649 = vpop.f32.mrf.mxu0
  %v1650 = vadd.f32 %v1601, %v1649
  %v1651 = vpop.f32.mrf.mxu0
  %v1652 = vadd.f32 %v1603, %v1651
  %1653 = vmatmul.bf16.gmra.mxu0 %v1451
  %v1654 = vpop.f32.mrf.mxu0
  %v1655 = vadd.f32 %v1606, %v1654
  %v1656 = vpop.f32.mrf.mxu0
  %v1657 = vadd.f32 %v1608, %v1656
  %1658 = vmatmul.bf16.gmra.mxu0 %v1453
  %v1659 = vpop.f32.mrf.mxu0
  %v1660 = vadd.f32 %v1611, %v1659
  %v1661 = vpop.f32.mrf.mxu0
  %v1662 = vadd.f32 %v1613, %v1661
  %1663 = vdwg.mxu0
  %v1664 = vadd.f32 %v1324, %v1625
  %v1665 = vadd.f32 %v1325, %v1627
  %v1666 = vadd.f32 %v1326, %v1630
  %v1667 = vadd.f32 %v1327, %v1632
  %v1668 = vadd.f32 %v1328, %v1635
  %v1669 = vadd.f32 %v1329, %v1637
  %v1670 = vadd.f32 %v1330, %v1640
  %v1671 = vadd.f32 %v1331, %v1642
  %v1672 = vadd.f32 %v1332, %v1645
  %v1673 = vadd.f32 %v1333, %v1647
  %v1674 = vadd.f32 %v1334, %v1650
  %v1675 = vadd.f32 %v1335, %v1652
  %v1676 = vadd.f32 %v1336, %v1655
  %v1677 = vadd.f32 %v1337, %v1657
  %v1678 = vadd.f32 %v1338, %v1660
  %v1679 = vadd.f32 %v1339, %v1662
  %s1680 = scalar_lea.vmem %s0, 640
  %v1681 = vld [vmem:[%s1680] sm:$0xff]
  %v1682 = vld [vmem:[%s1680 + $0x8] sm:$0xff]
  %v1683 = vld [vmem:[%s1680 + $0x10] sm:$0xff]
  %v1684 = vld [vmem:[%s1680 + $0x18] sm:$0xff]
  %v1685 = vld [vmem:[%s1680 + $0x20] sm:$0xff]
  %v1686 = vld [vmem:[%s1680 + $0x28] sm:$0xff]
  %v1687 = vld [vmem:[%s1680 + $0x30] sm:$0xff]
  %v1688 = vld [vmem:[%s1680 + $0x38] sm:$0xff]
  %v1689 = vld [vmem:[%s1680 + $0x40] sm:$0xff]
  %v1690 = vld [vmem:[%s1680 + $0x48] sm:$0xff]
  %v1691 = vld [vmem:[%s1680 + $0x50] sm:$0xff]
  %v1692 = vld [vmem:[%s1680 + $0x58] sm:$0xff]
  %v1693 = vld [vmem:[%s1680 + $0x60] sm:$0xff]
  %v1694 = vld [vmem:[%s1680 + $0x68] sm:$0xff]
  %v1695 = vld [vmem:[%s1680 + $0x70] sm:$0xff]
  %v1696 = vld [vmem:[%s1680 + $0x78] sm:$0xff]
  %s1697 = scalar_lea.vmem %s1, 640
  %v1698 = vld [vmem:[%s1697] sm:$0xf]
  %v1699 = vld [vmem:[%s1697 + $0x4] sm:$0xf]
  %v1700 = vld [vmem:[%s1697 + $0x8] sm:$0xf]
  %v1701 = vld [vmem:[%s1697 + $0xc] sm:$0xf]
  %v1702 = vld [vmem:[%s1697 + $0x10] sm:$0xf]
  %v1703 = vld [vmem:[%s1697 + $0x14] sm:$0xf]
  %v1704 = vld [vmem:[%s1697 + $0x18] sm:$0xf]
  %v1705 = vld [vmem:[%s1697 + $0x1c] sm:$0xf]
  %v1706 = vld [vmem:[%s1697 + $0x20] sm:$0xf]
  %v1707 = vld [vmem:[%s1697 + $0x24] sm:$0xf]
  %v1708 = vld [vmem:[%s1697 + $0x28] sm:$0xf]
  %v1709 = vld [vmem:[%s1697 + $0x2c] sm:$0xf]
  %v1710 = vld [vmem:[%s1697 + $0x30] sm:$0xf]
  %v1711 = vld [vmem:[%s1697 + $0x34] sm:$0xf]
  %v1712 = vld [vmem:[%s1697 + $0x38] sm:$0xf]
  %v1713 = vld [vmem:[%s1697 + $0x3c] sm:$0xf]
  %v1714 = vld [vmem:[%s1697 + $0x40] sm:$0xf]
  %v1715 = vld [vmem:[%s1697 + $0x44] sm:$0xf]
  %v1716 = vld [vmem:[%s1697 + $0x48] sm:$0xf]
  %v1717 = vld [vmem:[%s1697 + $0x4c] sm:$0xf]
  %v1718 = vld [vmem:[%s1697 + $0x50] sm:$0xf]
  %v1719 = vld [vmem:[%s1697 + $0x54] sm:$0xf]
  %v1720 = vld [vmem:[%s1697 + $0x58] sm:$0xf]
  %v1721 = vld [vmem:[%s1697 + $0x5c] sm:$0xf]
  %v1722 = vld [vmem:[%s1697 + $0x60] sm:$0xf]
  %v1723 = vld [vmem:[%s1697 + $0x64] sm:$0xf]
  %v1724 = vld [vmem:[%s1697 + $0x68] sm:$0xf]
  %v1725 = vld [vmem:[%s1697 + $0x6c] sm:$0xf]
  %v1726 = vld [vmem:[%s1697 + $0x70] sm:$0xf]
  %v1727 = vld [vmem:[%s1697 + $0x74] sm:$0xf]
  %v1728 = vld [vmem:[%s1697 + $0x78] sm:$0xf]
  %v1729 = vld [vmem:[%s1697 + $0x7c] sm:$0xf]
  %v1746 = vunpack.c.l.b16 %v1681
  %v1747 = vunpack.c.h.b16 %v1681
  %v1748 = vunpack.c.l.b16 %v1682
  %v1749 = vunpack.c.h.b16 %v1682
  %v1750 = vunpack.c.l.b16 %v1683
  %v1751 = vunpack.c.h.b16 %v1683
  %v1752 = vunpack.c.l.b16 %v1684
  %v1753 = vunpack.c.h.b16 %v1684
  %v1754 = vunpack.c.l.b16 %v1685
  %v1755 = vunpack.c.h.b16 %v1685
  %v1756 = vunpack.c.l.b16 %v1686
  %v1757 = vunpack.c.h.b16 %v1686
  %v1758 = vunpack.c.l.b16 %v1687
  %v1759 = vunpack.c.h.b16 %v1687
  %v1760 = vunpack.c.l.b16 %v1688
  %v1761 = vunpack.c.h.b16 %v1688
  %v1762 = vunpack.c.l.b16 %v1689
  %v1763 = vunpack.c.h.b16 %v1689
  %v1764 = vunpack.c.l.b16 %v1690
  %v1765 = vunpack.c.h.b16 %v1690
  %v1766 = vunpack.c.l.b16 %v1691
  %v1767 = vunpack.c.h.b16 %v1691
  %v1768 = vunpack.c.l.b16 %v1692
  %v1769 = vunpack.c.h.b16 %v1692
  %v1770 = vunpack.c.l.b16 %v1693
  %v1771 = vunpack.c.h.b16 %v1693
  %v1772 = vunpack.c.l.b16 %v1694
  %v1773 = vunpack.c.h.b16 %v1694
  %v1774 = vunpack.c.l.b16 %v1695
  %v1775 = vunpack.c.h.b16 %v1695
  %v1776 = vunpack.c.l.b16 %v1696
  %v1777 = vunpack.c.h.b16 %v1696
  %v1778 = vpack.c.b16 %v1748, %v1746
  %v1779 = vpack.c.b16 %v1749, %v1747
  %v1780 = vpack.c.b16 %v1752, %v1750
  %v1781 = vpack.c.b16 %v1753, %v1751
  %v1782 = vpack.c.b16 %v1756, %v1754
  %v1783 = vpack.c.b16 %v1757, %v1755
  %v1784 = vpack.c.b16 %v1760, %v1758
  %v1785 = vpack.c.b16 %v1761, %v1759
  %v1786 = vpack.c.b16 %v1764, %v1762
  %v1787 = vpack.c.b16 %v1765, %v1763
  %v1788 = vpack.c.b16 %v1768, %v1766
  %v1789 = vpack.c.b16 %v1769, %v1767
  %v1790 = vpack.c.b16 %v1772, %v1770
  %v1791 = vpack.c.b16 %v1773, %v1771
  %v1792 = vpack.c.b16 %v1776, %v1774
  %v1793 = vpack.c.b16 %v1777, %v1775
  %v1842 = vunpack.c.l.b16 %v1698
  %v1843 = vunpack.c.l.b16 %v1699
  %v1844 = vunpack.c.l.b16 %v1700
  %v1845 = vunpack.c.l.b16 %v1701
  %v1846 = vunpack.c.l.b16 %v1702
  %v1847 = vunpack.c.l.b16 %v1703
  %v1848 = vunpack.c.l.b16 %v1704
  %v1849 = vunpack.c.l.b16 %v1705
  %v1850 = vunpack.c.l.b16 %v1706
  %v1851 = vunpack.c.l.b16 %v1707
  %v1852 = vunpack.c.l.b16 %v1708
  %v1853 = vunpack.c.l.b16 %v1709
  %v1854 = vunpack.c.l.b16 %v1710
  %v1855 = vunpack.c.l.b16 %v1711
  %v1856 = vunpack.c.l.b16 %v1712
  %v1857 = vunpack.c.l.b16 %v1713
  %v1858 = vunpack.c.l.b16 %v1714
  %v1859 = vunpack.c.l.b16 %v1715
  %v1860 = vunpack.c.l.b16 %v1716
  %v1861 = vunpack.c.l.b16 %v1717
  %v1862 = vunpack.c.l.b16 %v1718
  %v1863 = vunpack.c.l.b16 %v1719
  %v1864 = vunpack.c.l.b16 %v1720
  %v1865 = vunpack.c.l.b16 %v1721
  %v1866 = vunpack.c.l.b16 %v1722
  %v1867 = vunpack.c.l.b16 %v1723
  %v1868 = vunpack.c.l.b16 %v1724
  %v1869 = vunpack.c.l.b16 %v1725
  %v1870 = vunpack.c.l.b16 %v1726
  %v1871 = vunpack.c.l.b16 %v1727
  %v1872 = vunpack.c.l.b16 %v1728
  %v1873 = vunpack.c.l.b16 %v1729
  %v1874 = vpack.c.b16 %v1843, %v1842
  %v1875 = vpack.c.b16 %v1845, %v1844
  %v1876 = vpack.c.b16 %v1847, %v1846
  %v1877 = vpack.c.b16 %v1849, %v1848
  %v1878 = vpack.c.b16 %v1851, %v1850
  %v1879 = vpack.c.b16 %v1853, %v1852
  %v1880 = vpack.c.b16 %v1855, %v1854
  %v1881 = vpack.c.b16 %v1857, %v1856
  %v1882 = vpack.c.b16 %v1859, %v1858
  %v1883 = vpack.c.b16 %v1861, %v1860
  %v1884 = vpack.c.b16 %v1863, %v1862
  %v1885 = vpack.c.b16 %v1865, %v1864
  %v1886 = vpack.c.b16 %v1867, %v1866
  %v1887 = vpack.c.b16 %v1869, %v1868
  %v1888 = vpack.c.b16 %v1871, %v1870
  %v1889 = vpack.c.b16 %v1873, %v1872
  %1906 = vmatpush.bf16.msra.mxu0 %v1881
  %1907 = vmatpush.bf16.msra.mxu0 %v1880
  %1908 = vmatpush.bf16.msra.mxu0 %v1879
  %1909 = vmatpush.bf16.msra.mxu0 %v1878
  %1910 = vmatpush.bf16.msra.mxu0 %v1877
  %1911 = vmatpush.bf16.msra.mxu0 %v1876
  %1912 = vmatpush.bf16.msra.mxu0 %v1875
  %1913 = vmatpush.bf16.msra.mxu0 %v1874
  %1914 = vmatmul.bf16.gmra.mxu0 %v1778
  %v1915 = vpop.f32.mrf.mxu0
  %v1916 = vadd.f32 0.0, %v1915
  %v1917 = vpop.f32.mrf.mxu0
  %v1918 = vadd.f32 0.0, %v1917
  %1919 = vmatmul.bf16.gmra.mxu0 %v1780
  %v1920 = vpop.f32.mrf.mxu0
  %v1921 = vadd.f32 0.0, %v1920
  %v1922 = vpop.f32.mrf.mxu0
  %v1923 = vadd.f32 0.0, %v1922
  %1924 = vmatmul.bf16.gmra.mxu0 %v1782
  %v1925 = vpop.f32.mrf.mxu0
  %v1926 = vadd.f32 0.0, %v1925
  %v1927 = vpop.f32.mrf.mxu0
  %v1928 = vadd.f32 0.0, %v1927
  %1929 = vmatmul.bf16.gmra.mxu0 %v1784
  %v1930 = vpop.f32.mrf.mxu0
  %v1931 = vadd.f32 0.0, %v1930
  %v1932 = vpop.f32.mrf.mxu0
  %v1933 = vadd.f32 0.0, %v1932
  %1934 = vmatmul.bf16.gmra.mxu0 %v1786
  %v1935 = vpop.f32.mrf.mxu0
  %v1936 = vadd.f32 0.0, %v1935
  %v1937 = vpop.f32.mrf.mxu0
  %v1938 = vadd.f32 0.0, %v1937
  %1939 = vmatmul.bf16.gmra.mxu0 %v1788
  %v1940 = vpop.f32.mrf.mxu0
  %v1941 = vadd.f32 0.0, %v1940
  %v1942 = vpop.f32.mrf.mxu0
  %v1943 = vadd.f32 0.0, %v1942
  %1944 = vmatmul.bf16.gmra.mxu0 %v1790
  %v1945 = vpop.f32.mrf.mxu0
  %v1946 = vadd.f32 0.0, %v1945
  %v1947 = vpop.f32.mrf.mxu0
  %v1948 = vadd.f32 0.0, %v1947
  %1949 = vmatmul.bf16.gmra.mxu0 %v1792
  %v1950 = vpop.f32.mrf.mxu0
  %v1951 = vadd.f32 0.0, %v1950
  %v1952 = vpop.f32.mrf.mxu0
  %v1953 = vadd.f32 0.0, %v1952
  %1954 = vdwg.mxu0
  %1955 = vmatpush.bf16.msra.mxu0 %v1889
  %1956 = vmatpush.bf16.msra.mxu0 %v1888
  %1957 = vmatpush.bf16.msra.mxu0 %v1887
  %1958 = vmatpush.bf16.msra.mxu0 %v1886
  %1959 = vmatpush.bf16.msra.mxu0 %v1885
  %1960 = vmatpush.bf16.msra.mxu0 %v1884
  %1961 = vmatpush.bf16.msra.mxu0 %v1883
  %1962 = vmatpush.bf16.msra.mxu0 %v1882
  %1963 = vmatmul.bf16.gmra.mxu0 %v1779
  %v1964 = vpop.f32.mrf.mxu0
  %v1965 = vadd.f32 %v1916, %v1964
  %v1966 = vpop.f32.mrf.mxu0
  %v1967 = vadd.f32 %v1918, %v1966
  %1968 = vmatmul.bf16.gmra.mxu0 %v1781
  %v1969 = vpop.f32.mrf.mxu0
  %v1970 = vadd.f32 %v1921, %v1969
  %v1971 = vpop.f32.mrf.mxu0
  %v1972 = vadd.f32 %v1923, %v1971
  %1973 = vmatmul.bf16.gmra.mxu0 %v1783
  %v1974 = vpop.f32.mrf.mxu0
  %v1975 = vadd.f32 %v1926, %v1974
  %v1976 = vpop.f32.mrf.mxu0
  %v1977 = vadd.f32 %v1928, %v1976
  %1978 = vmatmul.bf16.gmra.mxu0 %v1785
  %v1979 = vpop.f32.mrf.mxu0
  %v1980 = vadd.f32 %v1931, %v1979
  %v1981 = vpop.f32.mrf.mxu0
  %v1982 = vadd.f32 %v1933, %v1981
  %1983 = vmatmul.bf16.gmra.mxu0 %v1787
  %v1984 = vpop.f32.mrf.mxu0
  %v1985 = vadd.f32 %v1936, %v1984
  %v1986 = vpop.f32.mrf.mxu0
  %v1987 = vadd.f32 %v1938, %v1986
  %1988 = vmatmul.bf16.gmra.mxu0 %v1789
  %v1989 = vpop.f32.mrf.mxu0
  %v1990 = vadd.f32 %v1941, %v1989
  %v1991 = vpop.f32.mrf.mxu0
  %v1992 = vadd.f32 %v1943, %v1991
  %1993 = vmatmul.bf16.gmra.mxu0 %v1791
  %v1994 = vpop.f32.mrf.mxu0
  %v1995 = vadd.f32 %v1946, %v1994
  %v1996 = vpop.f32.mrf.mxu0
  %v1997 = vadd.f32 %v1948, %v1996
  %1998 = vmatmul.bf16.gmra.mxu0 %v1793
  %v1999 = vpop.f32.mrf.mxu0
  %v2000 = vadd.f32 %v1951, %v1999
  %v2001 = vpop.f32.mrf.mxu0
  %v2002 = vadd.f32 %v1953, %v2001
  %2003 = vdwg.mxu0
  %v2004 = vadd.f32 %v1664, %v1965
  %v2005 = vadd.f32 %v1665, %v1967
  %v2006 = vadd.f32 %v1666, %v1970
  %v2007 = vadd.f32 %v1667, %v1972
  %v2008 = vadd.f32 %v1668, %v1975
  %v2009 = vadd.f32 %v1669, %v1977
  %v2010 = vadd.f32 %v1670, %v1980
  %v2011 = vadd.f32 %v1671, %v1982
  %v2012 = vadd.f32 %v1672, %v1985
  %v2013 = vadd.f32 %v1673, %v1987
  %v2014 = vadd.f32 %v1674, %v1990
  %v2015 = vadd.f32 %v1675, %v1992
  %v2016 = vadd.f32 %v1676, %v1995
  %v2017 = vadd.f32 %v1677, %v1997
  %v2018 = vadd.f32 %v1678, %v2000
  %v2019 = vadd.f32 %v1679, %v2002
  %s2020 = scalar_lea.vmem %s0, 768
  %v2021 = vld [vmem:[%s2020] sm:$0xff]
  %v2022 = vld [vmem:[%s2020 + $0x8] sm:$0xff]
  %v2023 = vld [vmem:[%s2020 + $0x10] sm:$0xff]
  %v2024 = vld [vmem:[%s2020 + $0x18] sm:$0xff]
  %v2025 = vld [vmem:[%s2020 + $0x20] sm:$0xff]
  %v2026 = vld [vmem:[%s2020 + $0x28] sm:$0xff]
  %v2027 = vld [vmem:[%s2020 + $0x30] sm:$0xff]
  %v2028 = vld [vmem:[%s2020 + $0x38] sm:$0xff]
  %v2029 = vld [vmem:[%s2020 + $0x40] sm:$0xff]
  %v2030 = vld [vmem:[%s2020 + $0x48] sm:$0xff]
  %v2031 = vld [vmem:[%s2020 + $0x50] sm:$0xff]
  %v2032 = vld [vmem:[%s2020 + $0x58] sm:$0xff]
  %v2033 = vld [vmem:[%s2020 + $0x60] sm:$0xff]
  %v2034 = vld [vmem:[%s2020 + $0x68] sm:$0xff]
  %v2035 = vld [vmem:[%s2020 + $0x70] sm:$0xff]
  %v2036 = vld [vmem:[%s2020 + $0x78] sm:$0xff]
  %s2037 = scalar_lea.vmem %s1, 768
  %v2038 = vld [vmem:[%s2037] sm:$0xf]
  %v2039 = vld [vmem:[%s2037 + $0x4] sm:$0xf]
  %v2040 = vld [vmem:[%s2037 + $0x8] sm:$0xf]
  %v2041 = vld [vmem:[%s2037 + $0xc] sm:$0xf]
  %v2042 = vld [vmem:[%s2037 + $0x10] sm:$0xf]
  %v2043 = vld [vmem:[%s2037 + $0x14] sm:$0xf]
  %v2044 = vld [vmem:[%s2037 + $0x18] sm:$0xf]
  %v2045 = vld [vmem:[%s2037 + $0x1c] sm:$0xf]
  %v2046 = vld [vmem:[%s2037 + $0x20] sm:$0xf]
  %v2047 = vld [vmem:[%s2037 + $0x24] sm:$0xf]
  %v2048 = vld [vmem:[%s2037 + $0x28] sm:$0xf]
  %v2049 = vld [vmem:[%s2037 + $0x2c] sm:$0xf]
  %v2050 = vld [vmem:[%s2037 + $0x30] sm:$0xf]
  %v2051 = vld [vmem:[%s2037 + $0x34] sm:$0xf]
  %v2052 = vld [vmem:[%s2037 + $0x38] sm:$0xf]
  %v2053 = vld [vmem:[%s2037 + $0x3c] sm:$0xf]
  %v2054 = vld [vmem:[%s2037 + $0x40] sm:$0xf]
  %v2055 = vld [vmem:[%s2037 + $0x44] sm:$0xf]
  %v2056 = vld [vmem:[%s2037 + $0x48] sm:$0xf]
  %v2057 = vld [vmem:[%s2037 + $0x4c] sm:$0xf]
  %v2058 = vld [vmem:[%s2037 + $0x50] sm:$0xf]
  %v2059 = vld [vmem:[%s2037 + $0x54] sm:$0xf]
  %v2060 = vld [vmem:[%s2037 + $0x58] sm:$0xf]
  %v2061 = vld [vmem:[%s2037 + $0x5c] sm:$0xf]
  %v2062 = vld [vmem:[%s2037 + $0x60] sm:$0xf]
  %v2063 = vld [vmem:[%s2037 + $0x64] sm:$0xf]
  %v2064 = vld [vmem:[%s2037 + $0x68] sm:$0xf]
  %v2065 = vld [vmem:[%s2037 + $0x6c] sm:$0xf]
  %v2066 = vld [vmem:[%s2037 + $0x70] sm:$0xf]
  %v2067 = vld [vmem:[%s2037 + $0x74] sm:$0xf]
  %v2068 = vld [vmem:[%s2037 + $0x78] sm:$0xf]
  %v2069 = vld [vmem:[%s2037 + $0x7c] sm:$0xf]
  %v2086 = vunpack.c.l.b16 %v2021
  %v2087 = vunpack.c.h.b16 %v2021
  %v2088 = vunpack.c.l.b16 %v2022
  %v2089 = vunpack.c.h.b16 %v2022
  %v2090 = vunpack.c.l.b16 %v2023
  %v2091 = vunpack.c.h.b16 %v2023
  %v2092 = vunpack.c.l.b16 %v2024
  %v2093 = vunpack.c.h.b16 %v2024
  %v2094 = vunpack.c.l.b16 %v2025
  %v2095 = vunpack.c.h.b16 %v2025
  %v2096 = vunpack.c.l.b16 %v2026
  %v2097 = vunpack.c.h.b16 %v2026
  %v2098 = vunpack.c.l.b16 %v2027
  %v2099 = vunpack.c.h.b16 %v2027
  %v2100 = vunpack.c.l.b16 %v2028
  %v2101 = vunpack.c.h.b16 %v2028
  %v2102 = vunpack.c.l.b16 %v2029
  %v2103 = vunpack.c.h.b16 %v2029
  %v2104 = vunpack.c.l.b16 %v2030
  %v2105 = vunpack.c.h.b16 %v2030
  %v2106 = vunpack.c.l.b16 %v2031
  %v2107 = vunpack.c.h.b16 %v2031
  %v2108 = vunpack.c.l.b16 %v2032
  %v2109 = vunpack.c.h.b16 %v2032
  %v2110 = vunpack.c.l.b16 %v2033
  %v2111 = vunpack.c.h.b16 %v2033
  %v2112 = vunpack.c.l.b16 %v2034
  %v2113 = vunpack.c.h.b16 %v2034
  %v2114 = vunpack.c.l.b16 %v2035
  %v2115 = vunpack.c.h.b16 %v2035
  %v2116 = vunpack.c.l.b16 %v2036
  %v2117 = vunpack.c.h.b16 %v2036
  %v2118 = vpack.c.b16 %v2088, %v2086
  %v2119 = vpack.c.b16 %v2089, %v2087
  %v2120 = vpack.c.b16 %v2092, %v2090
  %v2121 = vpack.c.b16 %v2093, %v2091
  %v2122 = vpack.c.b16 %v2096, %v2094
  %v2123 = vpack.c.b16 %v2097, %v2095
  %v2124 = vpack.c.b16 %v2100, %v2098
  %v2125 = vpack.c.b16 %v2101, %v2099
  %v2126 = vpack.c.b16 %v2104, %v2102
  %v2127 = vpack.c.b16 %v2105, %v2103
  %v2128 = vpack.c.b16 %v2108, %v2106
  %v2129 = vpack.c.b16 %v2109, %v2107
  %v2130 = vpack.c.b16 %v2112, %v2110
  %v2131 = vpack.c.b16 %v2113, %v2111
  %v2132 = vpack.c.b16 %v2116, %v2114
  %v2133 = vpack.c.b16 %v2117, %v2115
  %v2182 = vunpack.c.l.b16 %v2038
  %v2183 = vunpack.c.l.b16 %v2039
  %v2184 = vunpack.c.l.b16 %v2040
  %v2185 = vunpack.c.l.b16 %v2041
  %v2186 = vunpack.c.l.b16 %v2042
  %v2187 = vunpack.c.l.b16 %v2043
  %v2188 = vunpack.c.l.b16 %v2044
  %v2189 = vunpack.c.l.b16 %v2045
  %v2190 = vunpack.c.l.b16 %v2046
  %v2191 = vunpack.c.l.b16 %v2047
  %v2192 = vunpack.c.l.b16 %v2048
  %v2193 = vunpack.c.l.b16 %v2049
  %v2194 = vunpack.c.l.b16 %v2050
  %v2195 = vunpack.c.l.b16 %v2051
  %v2196 = vunpack.c.l.b16 %v2052
  %v2197 = vunpack.c.l.b16 %v2053
  %v2198 = vunpack.c.l.b16 %v2054
  %v2199 = vunpack.c.l.b16 %v2055
  %v2200 = vunpack.c.l.b16 %v2056
  %v2201 = vunpack.c.l.b16 %v2057
  %v2202 = vunpack.c.l.b16 %v2058
  %v2203 = vunpack.c.l.b16 %v2059
  %v2204 = vunpack.c.l.b16 %v2060
  %v2205 = vunpack.c.l.b16 %v2061
  %v2206 = vunpack.c.l.b16 %v2062
  %v2207 = vunpack.c.l.b16 %v2063
  %v2208 = vunpack.c.l.b16 %v2064
  %v2209 = vunpack.c.l.b16 %v2065
  %v2210 = vunpack.c.l.b16 %v2066
  %v2211 = vunpack.c.l.b16 %v2067
  %v2212 = vunpack.c.l.b16 %v2068
  %v2213 = vunpack.c.l.b16 %v2069
  %v2214 = vpack.c.b16 %v2183, %v2182
  %v2215 = vpack.c.b16 %v2185, %v2184
  %v2216 = vpack.c.b16 %v2187, %v2186
  %v2217 = vpack.c.b16 %v2189, %v2188
  %v2218 = vpack.c.b16 %v2191, %v2190
  %v2219 = vpack.c.b16 %v2193, %v2192
  %v2220 = vpack.c.b16 %v2195, %v2194
  %v2221 = vpack.c.b16 %v2197, %v2196
  %v2222 = vpack.c.b16 %v2199, %v2198
  %v2223 = vpack.c.b16 %v2201, %v2200
  %v2224 = vpack.c.b16 %v2203, %v2202
  %v2225 = vpack.c.b16 %v2205, %v2204
  %v2226 = vpack.c.b16 %v2207, %v2206
  %v2227 = vpack.c.b16 %v2209, %v2208
  %v2228 = vpack.c.b16 %v2211, %v2210
  %v2229 = vpack.c.b16 %v2213, %v2212
  %2246 = vmatpush.bf16.msra.mxu0 %v2221
  %2247 = vmatpush.bf16.msra.mxu0 %v2220
  %2248 = vmatpush.bf16.msra.mxu0 %v2219
  %2249 = vmatpush.bf16.msra.mxu0 %v2218
  %2250 = vmatpush.bf16.msra.mxu0 %v2217
  %2251 = vmatpush.bf16.msra.mxu0 %v2216
  %2252 = vmatpush.bf16.msra.mxu0 %v2215
  %2253 = vmatpush.bf16.msra.mxu0 %v2214
  %2254 = vmatmul.bf16.gmra.mxu0 %v2118
  %v2255 = vpop.f32.mrf.mxu0
  %v2256 = vadd.f32 0.0, %v2255
  %v2257 = vpop.f32.mrf.mxu0
  %v2258 = vadd.f32 0.0, %v2257
  %2259 = vmatmul.bf16.gmra.mxu0 %v2120
  %v2260 = vpop.f32.mrf.mxu0
  %v2261 = vadd.f32 0.0, %v2260
  %v2262 = vpop.f32.mrf.mxu0
  %v2263 = vadd.f32 0.0, %v2262
  %2264 = vmatmul.bf16.gmra.mxu0 %v2122
  %v2265 = vpop.f32.mrf.mxu0
  %v2266 = vadd.f32 0.0, %v2265
  %v2267 = vpop.f32.mrf.mxu0
  %v2268 = vadd.f32 0.0, %v2267
  %2269 = vmatmul.bf16.gmra.mxu0 %v2124
  %v2270 = vpop.f32.mrf.mxu0
  %v2271 = vadd.f32 0.0, %v2270
  %v2272 = vpop.f32.mrf.mxu0
  %v2273 = vadd.f32 0.0, %v2272
  %2274 = vmatmul.bf16.gmra.mxu0 %v2126
  %v2275 = vpop.f32.mrf.mxu0
  %v2276 = vadd.f32 0.0, %v2275
  %v2277 = vpop.f32.mrf.mxu0
  %v2278 = vadd.f32 0.0, %v2277
  %2279 = vmatmul.bf16.gmra.mxu0 %v2128
  %v2280 = vpop.f32.mrf.mxu0
  %v2281 = vadd.f32 0.0, %v2280
  %v2282 = vpop.f32.mrf.mxu0
  %v2283 = vadd.f32 0.0, %v2282
  %2284 = vmatmul.bf16.gmra.mxu0 %v2130
  %v2285 = vpop.f32.mrf.mxu0
  %v2286 = vadd.f32 0.0, %v2285
  %v2287 = vpop.f32.mrf.mxu0
  %v2288 = vadd.f32 0.0, %v2287
  %2289 = vmatmul.bf16.gmra.mxu0 %v2132
  %v2290 = vpop.f32.mrf.mxu0
  %v2291 = vadd.f32 0.0, %v2290
  %v2292 = vpop.f32.mrf.mxu0
  %v2293 = vadd.f32 0.0, %v2292
  %2294 = vdwg.mxu0
  %2295 = vmatpush.bf16.msra.mxu0 %v2229
  %2296 = vmatpush.bf16.msra.mxu0 %v2228
  %2297 = vmatpush.bf16.msra.mxu0 %v2227
  %2298 = vmatpush.bf16.msra.mxu0 %v2226
  %2299 = vmatpush.bf16.msra.mxu0 %v2225
  %2300 = vmatpush.bf16.msra.mxu0 %v2224
  %2301 = vmatpush.bf16.msra.mxu0 %v2223
  %2302 = vmatpush.bf16.msra.mxu0 %v2222
  %2303 = vmatmul.bf16.gmra.mxu0 %v2119
  %v2304 = vpop.f32.mrf.mxu0
  %v2305 = vadd.f32 %v2256, %v2304
  %v2306 = vpop.f32.mrf.mxu0
  %v2307 = vadd.f32 %v2258, %v2306
  %2308 = vmatmul.bf16.gmra.mxu0 %v2121
  %v2309 = vpop.f32.mrf.mxu0
  %v2310 = vadd.f32 %v2261, %v2309
  %v2311 = vpop.f32.mrf.mxu0
  %v2312 = vadd.f32 %v2263, %v2311
  %2313 = vmatmul.bf16.gmra.mxu0 %v2123
  %v2314 = vpop.f32.mrf.mxu0
  %v2315 = vadd.f32 %v2266, %v2314
  %v2316 = vpop.f32.mrf.mxu0
  %v2317 = vadd.f32 %v2268, %v2316
  %2318 = vmatmul.bf16.gmra.mxu0 %v2125
  %v2319 = vpop.f32.mrf.mxu0
  %v2320 = vadd.f32 %v2271, %v2319
  %v2321 = vpop.f32.mrf.mxu0
  %v2322 = vadd.f32 %v2273, %v2321
  %2323 = vmatmul.bf16.gmra.mxu0 %v2127
  %v2324 = vpop.f32.mrf.mxu0
  %v2325 = vadd.f32 %v2276, %v2324
  %v2326 = vpop.f32.mrf.mxu0
  %v2327 = vadd.f32 %v2278, %v2326
  %2328 = vmatmul.bf16.gmra.mxu0 %v2129
  %v2329 = vpop.f32.mrf.mxu0
  %v2330 = vadd.f32 %v2281, %v2329
  %v2331 = vpop.f32.mrf.mxu0
  %v2332 = vadd.f32 %v2283, %v2331
  %2333 = vmatmul.bf16.gmra.mxu0 %v2131
  %v2334 = vpop.f32.mrf.mxu0
  %v2335 = vadd.f32 %v2286, %v2334
  %v2336 = vpop.f32.mrf.mxu0
  %v2337 = vadd.f32 %v2288, %v2336
  %2338 = vmatmul.bf16.gmra.mxu0 %v2133
  %v2339 = vpop.f32.mrf.mxu0
  %v2340 = vadd.f32 %v2291, %v2339
  %v2341 = vpop.f32.mrf.mxu0
  %v2342 = vadd.f32 %v2293, %v2341
  %2343 = vdwg.mxu0
  %v2344 = vadd.f32 %v2004, %v2305
  %v2345 = vadd.f32 %v2005, %v2307
  %v2346 = vadd.f32 %v2006, %v2310
  %v2347 = vadd.f32 %v2007, %v2312
  %v2348 = vadd.f32 %v2008, %v2315
  %v2349 = vadd.f32 %v2009, %v2317
  %v2350 = vadd.f32 %v2010, %v2320
  %v2351 = vadd.f32 %v2011, %v2322
  %v2352 = vadd.f32 %v2012, %v2325
  %v2353 = vadd.f32 %v2013, %v2327
  %v2354 = vadd.f32 %v2014, %v2330
  %v2355 = vadd.f32 %v2015, %v2332
  %v2356 = vadd.f32 %v2016, %v2335
  %v2357 = vadd.f32 %v2017, %v2337
  %v2358 = vadd.f32 %v2018, %v2340
  %v2359 = vadd.f32 %v2019, %v2342
  %s2360 = scalar_lea.vmem %s0, 896
  %v2361 = vld [vmem:[%s2360] sm:$0xff]
  %v2362 = vld [vmem:[%s2360 + $0x8] sm:$0xff]
  %v2363 = vld [vmem:[%s2360 + $0x10] sm:$0xff]
  %v2364 = vld [vmem:[%s2360 + $0x18] sm:$0xff]
  %v2365 = vld [vmem:[%s2360 + $0x20] sm:$0xff]
  %v2366 = vld [vmem:[%s2360 + $0x28] sm:$0xff]
  %v2367 = vld [vmem:[%s2360 + $0x30] sm:$0xff]
  %v2368 = vld [vmem:[%s2360 + $0x38] sm:$0xff]
  %v2369 = vld [vmem:[%s2360 + $0x40] sm:$0xff]
  %v2370 = vld [vmem:[%s2360 + $0x48] sm:$0xff]
  %v2371 = vld [vmem:[%s2360 + $0x50] sm:$0xff]
  %v2372 = vld [vmem:[%s2360 + $0x58] sm:$0xff]
  %v2373 = vld [vmem:[%s2360 + $0x60] sm:$0xff]
  %v2374 = vld [vmem:[%s2360 + $0x68] sm:$0xff]
  %v2375 = vld [vmem:[%s2360 + $0x70] sm:$0xff]
  %v2376 = vld [vmem:[%s2360 + $0x78] sm:$0xff]
  %s2377 = scalar_lea.vmem %s1, 896
  %v2378 = vld [vmem:[%s2377] sm:$0xf]
  %v2379 = vld [vmem:[%s2377 + $0x4] sm:$0xf]
  %v2380 = vld [vmem:[%s2377 + $0x8] sm:$0xf]
  %v2381 = vld [vmem:[%s2377 + $0xc] sm:$0xf]
  %v2382 = vld [vmem:[%s2377 + $0x10] sm:$0xf]
  %v2383 = vld [vmem:[%s2377 + $0x14] sm:$0xf]
  %v2384 = vld [vmem:[%s2377 + $0x18] sm:$0xf]
  %v2385 = vld [vmem:[%s2377 + $0x1c] sm:$0xf]
  %v2386 = vld [vmem:[%s2377 + $0x20] sm:$0xf]
  %v2387 = vld [vmem:[%s2377 + $0x24] sm:$0xf]
  %v2388 = vld [vmem:[%s2377 + $0x28] sm:$0xf]
  %v2389 = vld [vmem:[%s2377 + $0x2c] sm:$0xf]
  %v2390 = vld [vmem:[%s2377 + $0x30] sm:$0xf]
  %v2391 = vld [vmem:[%s2377 + $0x34] sm:$0xf]
  %v2392 = vld [vmem:[%s2377 + $0x38] sm:$0xf]
  %v2393 = vld [vmem:[%s2377 + $0x3c] sm:$0xf]
  %v2394 = vld [vmem:[%s2377 + $0x40] sm:$0xf]
  %v2395 = vld [vmem:[%s2377 + $0x44] sm:$0xf]
  %v2396 = vld [vmem:[%s2377 + $0x48] sm:$0xf]
  %v2397 = vld [vmem:[%s2377 + $0x4c] sm:$0xf]
  %v2398 = vld [vmem:[%s2377 + $0x50] sm:$0xf]
  %v2399 = vld [vmem:[%s2377 + $0x54] sm:$0xf]
  %v2400 = vld [vmem:[%s2377 + $0x58] sm:$0xf]
  %v2401 = vld [vmem:[%s2377 + $0x5c] sm:$0xf]
  %v2402 = vld [vmem:[%s2377 + $0x60] sm:$0xf]
  %v2403 = vld [vmem:[%s2377 + $0x64] sm:$0xf]
  %v2404 = vld [vmem:[%s2377 + $0x68] sm:$0xf]
  %v2405 = vld [vmem:[%s2377 + $0x6c] sm:$0xf]
  %v2406 = vld [vmem:[%s2377 + $0x70] sm:$0xf]
  %v2407 = vld [vmem:[%s2377 + $0x74] sm:$0xf]
  %v2408 = vld [vmem:[%s2377 + $0x78] sm:$0xf]
  %v2409 = vld [vmem:[%s2377 + $0x7c] sm:$0xf]
  %v2426 = vunpack.c.l.b16 %v2361
  %v2427 = vunpack.c.h.b16 %v2361
  %v2428 = vunpack.c.l.b16 %v2362
  %v2429 = vunpack.c.h.b16 %v2362
  %v2430 = vunpack.c.l.b16 %v2363
  %v2431 = vunpack.c.h.b16 %v2363
  %v2432 = vunpack.c.l.b16 %v2364
  %v2433 = vunpack.c.h.b16 %v2364
  %v2434 = vunpack.c.l.b16 %v2365
  %v2435 = vunpack.c.h.b16 %v2365
  %v2436 = vunpack.c.l.b16 %v2366
  %v2437 = vunpack.c.h.b16 %v2366
  %v2438 = vunpack.c.l.b16 %v2367
  %v2439 = vunpack.c.h.b16 %v2367
  %v2440 = vunpack.c.l.b16 %v2368
  %v2441 = vunpack.c.h.b16 %v2368
  %v2442 = vunpack.c.l.b16 %v2369
  %v2443 = vunpack.c.h.b16 %v2369
  %v2444 = vunpack.c.l.b16 %v2370
  %v2445 = vunpack.c.h.b16 %v2370
  %v2446 = vunpack.c.l.b16 %v2371
  %v2447 = vunpack.c.h.b16 %v2371
  %v2448 = vunpack.c.l.b16 %v2372
  %v2449 = vunpack.c.h.b16 %v2372
  %v2450 = vunpack.c.l.b16 %v2373
  %v2451 = vunpack.c.h.b16 %v2373
  %v2452 = vunpack.c.l.b16 %v2374
  %v2453 = vunpack.c.h.b16 %v2374
  %v2454 = vunpack.c.l.b16 %v2375
  %v2455 = vunpack.c.h.b16 %v2375
  %v2456 = vunpack.c.l.b16 %v2376
  %v2457 = vunpack.c.h.b16 %v2376
  %v2458 = vpack.c.b16 %v2428, %v2426
  %v2459 = vpack.c.b16 %v2429, %v2427
  %v2460 = vpack.c.b16 %v2432, %v2430
  %v2461 = vpack.c.b16 %v2433, %v2431
  %v2462 = vpack.c.b16 %v2436, %v2434
  %v2463 = vpack.c.b16 %v2437, %v2435
  %v2464 = vpack.c.b16 %v2440, %v2438
  %v2465 = vpack.c.b16 %v2441, %v2439
  %v2466 = vpack.c.b16 %v2444, %v2442
  %v2467 = vpack.c.b16 %v2445, %v2443
  %v2468 = vpack.c.b16 %v2448, %v2446
  %v2469 = vpack.c.b16 %v2449, %v2447
  %v2470 = vpack.c.b16 %v2452, %v2450
  %v2471 = vpack.c.b16 %v2453, %v2451
  %v2472 = vpack.c.b16 %v2456, %v2454
  %v2473 = vpack.c.b16 %v2457, %v2455
  %v2522 = vunpack.c.l.b16 %v2378
  %v2523 = vunpack.c.l.b16 %v2379
  %v2524 = vunpack.c.l.b16 %v2380
  %v2525 = vunpack.c.l.b16 %v2381
  %v2526 = vunpack.c.l.b16 %v2382
  %v2527 = vunpack.c.l.b16 %v2383
  %v2528 = vunpack.c.l.b16 %v2384
  %v2529 = vunpack.c.l.b16 %v2385
  %v2530 = vunpack.c.l.b16 %v2386
  %v2531 = vunpack.c.l.b16 %v2387
  %v2532 = vunpack.c.l.b16 %v2388
  %v2533 = vunpack.c.l.b16 %v2389
  %v2534 = vunpack.c.l.b16 %v2390
  %v2535 = vunpack.c.l.b16 %v2391
  %v2536 = vunpack.c.l.b16 %v2392
  %v2537 = vunpack.c.l.b16 %v2393
  %v2538 = vunpack.c.l.b16 %v2394
  %v2539 = vunpack.c.l.b16 %v2395
  %v2540 = vunpack.c.l.b16 %v2396
  %v2541 = vunpack.c.l.b16 %v2397
  %v2542 = vunpack.c.l.b16 %v2398
  %v2543 = vunpack.c.l.b16 %v2399
  %v2544 = vunpack.c.l.b16 %v2400
  %v2545 = vunpack.c.l.b16 %v2401
  %v2546 = vunpack.c.l.b16 %v2402
  %v2547 = vunpack.c.l.b16 %v2403
  %v2548 = vunpack.c.l.b16 %v2404
  %v2549 = vunpack.c.l.b16 %v2405
  %v2550 = vunpack.c.l.b16 %v2406
  %v2551 = vunpack.c.l.b16 %v2407
  %v2552 = vunpack.c.l.b16 %v2408
  %v2553 = vunpack.c.l.b16 %v2409
  %v2554 = vpack.c.b16 %v2523, %v2522
  %v2555 = vpack.c.b16 %v2525, %v2524
  %v2556 = vpack.c.b16 %v2527, %v2526
  %v2557 = vpack.c.b16 %v2529, %v2528
  %v2558 = vpack.c.b16 %v2531, %v2530
  %v2559 = vpack.c.b16 %v2533, %v2532
  %v2560 = vpack.c.b16 %v2535, %v2534
  %v2561 = vpack.c.b16 %v2537, %v2536
  %v2562 = vpack.c.b16 %v2539, %v2538
  %v2563 = vpack.c.b16 %v2541, %v2540
  %v2564 = vpack.c.b16 %v2543, %v2542
  %v2565 = vpack.c.b16 %v2545, %v2544
  %v2566 = vpack.c.b16 %v2547, %v2546
  %v2567 = vpack.c.b16 %v2549, %v2548
  %v2568 = vpack.c.b16 %v2551, %v2550
  %v2569 = vpack.c.b16 %v2553, %v2552
  %2586 = vmatpush.bf16.msra.mxu0 %v2561
  %2587 = vmatpush.bf16.msra.mxu0 %v2560
  %2588 = vmatpush.bf16.msra.mxu0 %v2559
  %2589 = vmatpush.bf16.msra.mxu0 %v2558
  %2590 = vmatpush.bf16.msra.mxu0 %v2557
  %2591 = vmatpush.bf16.msra.mxu0 %v2556
  %2592 = vmatpush.bf16.msra.mxu0 %v2555
  %2593 = vmatpush.bf16.msra.mxu0 %v2554
  %2594 = vmatmul.bf16.gmra.mxu0 %v2458
  %v2595 = vpop.f32.mrf.mxu0
  %v2596 = vadd.f32 0.0, %v2595
  %v2597 = vpop.f32.mrf.mxu0
  %v2598 = vadd.f32 0.0, %v2597
  %2599 = vmatmul.bf16.gmra.mxu0 %v2460
  %v2600 = vpop.f32.mrf.mxu0
  %v2601 = vadd.f32 0.0, %v2600
  %v2602 = vpop.f32.mrf.mxu0
  %v2603 = vadd.f32 0.0, %v2602
  %2604 = vmatmul.bf16.gmra.mxu0 %v2462
  %v2605 = vpop.f32.mrf.mxu0
  %v2606 = vadd.f32 0.0, %v2605
  %v2607 = vpop.f32.mrf.mxu0
  %v2608 = vadd.f32 0.0, %v2607
  %2609 = vmatmul.bf16.gmra.mxu0 %v2464
  %v2610 = vpop.f32.mrf.mxu0
  %v2611 = vadd.f32 0.0, %v2610
  %v2612 = vpop.f32.mrf.mxu0
  %v2613 = vadd.f32 0.0, %v2612
  %2614 = vmatmul.bf16.gmra.mxu0 %v2466
  %v2615 = vpop.f32.mrf.mxu0
  %v2616 = vadd.f32 0.0, %v2615
  %v2617 = vpop.f32.mrf.mxu0
  %v2618 = vadd.f32 0.0, %v2617
  %2619 = vmatmul.bf16.gmra.mxu0 %v2468
  %v2620 = vpop.f32.mrf.mxu0
  %v2621 = vadd.f32 0.0, %v2620
  %v2622 = vpop.f32.mrf.mxu0
  %v2623 = vadd.f32 0.0, %v2622
  %2624 = vmatmul.bf16.gmra.mxu0 %v2470
  %v2625 = vpop.f32.mrf.mxu0
  %v2626 = vadd.f32 0.0, %v2625
  %v2627 = vpop.f32.mrf.mxu0
  %v2628 = vadd.f32 0.0, %v2627
  %2629 = vmatmul.bf16.gmra.mxu0 %v2472
  %v2630 = vpop.f32.mrf.mxu0
  %v2631 = vadd.f32 0.0, %v2630
  %v2632 = vpop.f32.mrf.mxu0
  %v2633 = vadd.f32 0.0, %v2632
  %2634 = vdwg.mxu0
  %2635 = vmatpush.bf16.msra.mxu0 %v2569
  %2636 = vmatpush.bf16.msra.mxu0 %v2568
  %2637 = vmatpush.bf16.msra.mxu0 %v2567
  %2638 = vmatpush.bf16.msra.mxu0 %v2566
  %2639 = vmatpush.bf16.msra.mxu0 %v2565
  %2640 = vmatpush.bf16.msra.mxu0 %v2564
  %2641 = vmatpush.bf16.msra.mxu0 %v2563
  %2642 = vmatpush.bf16.msra.mxu0 %v2562
  %2643 = vmatmul.bf16.gmra.mxu0 %v2459
  %v2644 = vpop.f32.mrf.mxu0
  %v2645 = vadd.f32 %v2596, %v2644
  %v2646 = vpop.f32.mrf.mxu0
  %v2647 = vadd.f32 %v2598, %v2646
  %2648 = vmatmul.bf16.gmra.mxu0 %v2461
  %v2649 = vpop.f32.mrf.mxu0
  %v2650 = vadd.f32 %v2601, %v2649
  %v2651 = vpop.f32.mrf.mxu0
  %v2652 = vadd.f32 %v2603, %v2651
  %2653 = vmatmul.bf16.gmra.mxu0 %v2463
  %v2654 = vpop.f32.mrf.mxu0
  %v2655 = vadd.f32 %v2606, %v2654
  %v2656 = vpop.f32.mrf.mxu0
  %v2657 = vadd.f32 %v2608, %v2656
  %2658 = vmatmul.bf16.gmra.mxu0 %v2465
  %v2659 = vpop.f32.mrf.mxu0
  %v2660 = vadd.f32 %v2611, %v2659
  %v2661 = vpop.f32.mrf.mxu0
  %v2662 = vadd.f32 %v2613, %v2661
  %2663 = vmatmul.bf16.gmra.mxu0 %v2467
  %v2664 = vpop.f32.mrf.mxu0
  %v2665 = vadd.f32 %v2616, %v2664
  %v2666 = vpop.f32.mrf.mxu0
  %v2667 = vadd.f32 %v2618, %v2666
  %2668 = vmatmul.bf16.gmra.mxu0 %v2469
  %v2669 = vpop.f32.mrf.mxu0
  %v2670 = vadd.f32 %v2621, %v2669
  %v2671 = vpop.f32.mrf.mxu0
  %v2672 = vadd.f32 %v2623, %v2671
  %2673 = vmatmul.bf16.gmra.mxu0 %v2471
  %v2674 = vpop.f32.mrf.mxu0
  %v2675 = vadd.f32 %v2626, %v2674
  %v2676 = vpop.f32.mrf.mxu0
  %v2677 = vadd.f32 %v2628, %v2676
  %2678 = vmatmul.bf16.gmra.mxu0 %v2473
  %v2679 = vpop.f32.mrf.mxu0
  %v2680 = vadd.f32 %v2631, %v2679
  %v2681 = vpop.f32.mrf.mxu0
  %v2682 = vadd.f32 %v2633, %v2681
  %2683 = vdwg.mxu0
  %v2684 = vadd.f32 %v2344, %v2645
  %v2685 = vadd.f32 %v2345, %v2647
  %v2686 = vadd.f32 %v2346, %v2650
  %v2687 = vadd.f32 %v2347, %v2652
  %v2688 = vadd.f32 %v2348, %v2655
  %v2689 = vadd.f32 %v2349, %v2657
  %v2690 = vadd.f32 %v2350, %v2660
  %v2691 = vadd.f32 %v2351, %v2662
  %v2692 = vadd.f32 %v2352, %v2665
  %v2693 = vadd.f32 %v2353, %v2667
  %v2694 = vadd.f32 %v2354, %v2670
  %v2695 = vadd.f32 %v2355, %v2672
  %v2696 = vadd.f32 %v2356, %v2675
  %v2697 = vadd.f32 %v2357, %v2677
  %v2698 = vadd.f32 %v2358, %v2680
  %v2699 = vadd.f32 %v2359, %v2682
  %v2700 = vld [vmem:[%s2] sm:$0x1]
  %v2702 = vperm.slane %v2700, 0
  %v2704 = vadd.f32 %v2684, %v2702
  %v2705 = vadd.f32 %v2685, %v2702
  %v2706 = vadd.f32 %v2686, %v2702
  %v2707 = vadd.f32 %v2687, %v2702
  %v2708 = vadd.f32 %v2688, %v2702
  %v2709 = vadd.f32 %v2689, %v2702
  %v2710 = vadd.f32 %v2690, %v2702
  %v2711 = vadd.f32 %v2691, %v2702
  %v2712 = vadd.f32 %v2692, %v2702
  %v2713 = vadd.f32 %v2693, %v2702
  %v2714 = vadd.f32 %v2694, %v2702
  %v2715 = vadd.f32 %v2695, %v2702
  %v2716 = vadd.f32 %v2696, %v2702
  %v2717 = vadd.f32 %v2697, %v2702
  %v2718 = vadd.f32 %v2698, %v2702
  %v2719 = vadd.f32 %v2699, %v2702
  %v2720 = vmax.f32 %v2704, 0.0
  %v2721 = vmax.f32 %v2705, 0.0
  %v2722 = vmax.f32 %v2706, 0.0
  %v2723 = vmax.f32 %v2707, 0.0
  %v2724 = vmax.f32 %v2708, 0.0
  %v2725 = vmax.f32 %v2709, 0.0
  %v2726 = vmax.f32 %v2710, 0.0
  %v2727 = vmax.f32 %v2711, 0.0
  %v2728 = vmax.f32 %v2712, 0.0
  %v2729 = vmax.f32 %v2713, 0.0
  %v2730 = vmax.f32 %v2714, 0.0
  %v2731 = vmax.f32 %v2715, 0.0
  %v2732 = vmax.f32 %v2716, 0.0
  %v2733 = vmax.f32 %v2717, 0.0
  %v2734 = vmax.f32 %v2718, 0.0
  %v2735 = vmax.f32 %v2719, 0.0
  %v2736 = vpack.c.bf16 %v2720, %v2720
  %v2737 = vpack.c.bf16 %v2721, %v2721
  %v2738 = vpack.c.bf16 %v2722, %v2722
  %v2739 = vpack.c.bf16 %v2723, %v2723
  %v2740 = vpack.c.bf16 %v2724, %v2724
  %v2741 = vpack.c.bf16 %v2725, %v2725
  %v2742 = vpack.c.bf16 %v2726, %v2726
  %v2743 = vpack.c.bf16 %v2727, %v2727
  %v2744 = vpack.c.bf16 %v2728, %v2728
  %v2745 = vpack.c.bf16 %v2729, %v2729
  %v2746 = vpack.c.bf16 %v2730, %v2730
  %v2747 = vpack.c.bf16 %v2731, %v2731
  %v2748 = vpack.c.bf16 %v2732, %v2732
  %v2749 = vpack.c.bf16 %v2733, %v2733
  %v2750 = vpack.c.bf16 %v2734, %v2734
  %v2751 = vpack.c.bf16 %v2735, %v2735
  %vm2752 = vcmask 519168
  %2753 = vst.msk [vmem:[%s3] sm:$0xf] %vm2752, %v2736
  %2754 = vst.msk [vmem:[%s3 + $0x4] sm:$0xf] %vm2752, %v2737
  %2755 = vst.msk [vmem:[%s3 + $0x8] sm:$0xf] %vm2752, %v2738
  %2756 = vst.msk [vmem:[%s3 + $0xc] sm:$0xf] %vm2752, %v2739
  %2757 = vst.msk [vmem:[%s3 + $0x10] sm:$0xf] %vm2752, %v2740
  %2758 = vst.msk [vmem:[%s3 + $0x14] sm:$0xf] %vm2752, %v2741
  %2759 = vst.msk [vmem:[%s3 + $0x18] sm:$0xf] %vm2752, %v2742
  %2760 = vst.msk [vmem:[%s3 + $0x1c] sm:$0xf] %vm2752, %v2743
  %2761 = vst.msk [vmem:[%s3 + $0x20] sm:$0xf] %vm2752, %v2744
  %2762 = vst.msk [vmem:[%s3 + $0x24] sm:$0xf] %vm2752, %v2745
  %2763 = vst.msk [vmem:[%s3 + $0x28] sm:$0xf] %vm2752, %v2746
  %2764 = vst.msk [vmem:[%s3 + $0x2c] sm:$0xf] %vm2752, %v2747
  %2765 = vst.msk [vmem:[%s3 + $0x30] sm:$0xf] %vm2752, %v2748
  %2766 = vst.msk [vmem:[%s3 + $0x34] sm:$0xf] %vm2752, %v2749
  %2767 = vst.msk [vmem:[%s3 + $0x38] sm:$0xf] %vm2752, %v2750
  %2768 = vst.msk [vmem:[%s3 + $0x3c] sm:$0xf] %vm2752, %v2751
  // Predicated region
  $region14: #{discriminator_forward.4} parent=0 // pred_check
    _
  $region15: #{discriminator_forward.4} parent=0 // pred_check_branch
    %2770 = sbr.rel (0) target = $region17
  $region16: #{discriminator_forward.4} parent=0 // pred_region
    _
  $region17: #{discriminator_forward.4} parent=0 // pred_fallthru
    _
  // Predicated region
  $region18: #{discriminator_forward.4} parent=0 // pred_check
    _
  $region19: #{discriminator_forward.4} parent=0 // pred_check_branch
    %2772 = sbr.rel (0) target = $region21
  $region20: #{discriminator_forward.4} parent=0 // pred_region
    _
  $region21: #{discriminator_forward.4} parent=0 // pred_fallthru
    _

// kernel: discriminator_forward.5
$region0: #{discriminator_forward.5}
  #allocation0 [shape = 'u32[]', space=smem, size = 0x4, offset = 0x4, fixed_abs, tag = 'smem constant byte address 0x4 - core index']
  #allocation1 [shape = 'u32[72,128]{1,0:T(1,128)}', space=vmem, size = 0x9000, scoped, tag = 'internal scratch']
  #allocation2 [shape = 'f32[1,1]{1,0:T(1,128)S(1)}', space=vmem, size = 0x200, scoped, tag = 'scoped memory for discriminator_forward.5']
  %s0 = inlined_call_operand.vmem [shape: bf16[8,128,512], index: 0, kind: input, shape index: {}]
  %s1 = inlined_call_operand.vmem [shape: bf16[8,512,128], index: 1, kind: input, shape index: {}]
  %s2 = inlined_call_operand.vmem [shape: f32[1,128], index: 2, kind: input, shape index: {}]
  %s3 = inlined_call_operand.vmem [shape: bf16[8,128,256], index: 3, kind: input, shape index: {}]
  %s4 = inlined_call_operand.vmem [shape: f32[1,256], index: 4, kind: input, shape index: {}]
  %s5 = inlined_call_operand.vmem [shape: f32[1,256], index: 5, kind: input, shape index: {}]
  %s6 = inlined_call_operand.<no memory space> [shape: f32[1,1], index: 6, kind: input, shape index: {}]
  %s7 = inlined_call_operand.vmem [shape: f32[2,1], index: 7, kind: output, shape index: {}]
  %s8 = sld [smem:[#allocation0]]
  $region38: #{discriminator_forward.5} parent=0
    _
  %s10 = ssub.s32 1, %s8
  %s11 = scalar_select 0, %s10, %s8
  %v12 = vstv %s6
  %13 = vst [vmem:[#allocation2] sm:$0x1] %v12
  // Predicated region
  $region2: #{discriminator_forward.5} parent=0 // pred_check
    _
  $region3: #{discriminator_forward.5} parent=0 // pred_check_branch
    %15 = sbr.rel (0) target = $region5
  $region4: #{discriminator_forward.5} parent=0 // pred_region
    _
  $region5: #{discriminator_forward.5} parent=0 // pred_fallthru
    _
  // Predicated region
  $region6: #{discriminator_forward.5} parent=0 // pred_check
    _
  $region7: #{discriminator_forward.5} parent=0 // pred_check_branch
    %17 = sbr.rel (0) target = $region9
  $region8: #{discriminator_forward.5} parent=0 // pred_region
    _
  $region9: #{discriminator_forward.5} parent=0 // pred_fallthru
    _
  // Predicated region
  $region10: #{discriminator_forward.5} parent=0 // pred_check
    _
  $region11: #{discriminator_forward.5} parent=0 // pred_check_branch
    %19 = sbr.rel (0) target = $region13
  $region12: #{discriminator_forward.5} parent=0 // pred_region
    _
  $region13: #{discriminator_forward.5} parent=0 // pred_fallthru
    _
  // Predicated region
  $region14: #{discriminator_forward.5} parent=0 // pred_check
    _
  $region15: #{discriminator_forward.5} parent=0 // pred_check_branch
    %21 = sbr.rel (0) target = $region17
  $region16: #{discriminator_forward.5} parent=0 // pred_region
    _
  $region17: #{discriminator_forward.5} parent=0 // pred_fallthru
    _
  // Predicated region
  $region18: #{discriminator_forward.5} parent=0 // pred_check
    _
  $region19: #{discriminator_forward.5} parent=0 // pred_check_branch
    %23 = sbr.rel (0) target = $region21
  $region20: #{discriminator_forward.5} parent=0 // pred_region
    _
  $region21: #{discriminator_forward.5} parent=0 // pred_fallthru
    _
  // Predicated region
  $region22: #{discriminator_forward.5} parent=0 // pred_check
    _
  $region23: #{discriminator_forward.5} parent=0 // pred_check_branch
    %25 = sbr.rel (0) target = $region25
  $region24: #{discriminator_forward.5} parent=0 // pred_region
    _
  $region25: #{discriminator_forward.5} parent=0 // pred_fallthru
    _
  // Predicated region
  $region26: #{discriminator_forward.5} parent=0 // pred_check
    _
  $region27: #{discriminator_forward.5} parent=0 // pred_check_branch
    %27 = sbr.rel (0) target = $region29
  $region28: #{discriminator_forward.5} parent=0 // pred_region
    _
  $region29: #{discriminator_forward.5} parent=0 // pred_fallthru
    _
  %v28 = vld [vmem:[%s0] sm:$0xff]
  %v29 = vld [vmem:[%s0 + $0x8] sm:$0xff]
  %v30 = vld [vmem:[%s0 + $0x10] sm:$0xff]
  %v31 = vld [vmem:[%s0 + $0x18] sm:$0xff]
  %v32 = vld [vmem:[%s0 + $0x20] sm:$0xff]
  %v33 = vld [vmem:[%s0 + $0x28] sm:$0xff]
  %v34 = vld [vmem:[%s0 + $0x30] sm:$0xff]
  %v35 = vld [vmem:[%s0 + $0x38] sm:$0xff]
  %v36 = vld [vmem:[%s0 + $0x40] sm:$0xff]
  %v37 = vld [vmem:[%s0 + $0x48] sm:$0xff]
  %v38 = vld [vmem:[%s0 + $0x50] sm:$0xff]
  %v39 = vld [vmem:[%s0 + $0x58] sm:$0xff]
  %v40 = vld [vmem:[%s0 + $0x60] sm:$0xff]
  %v41 = vld [vmem:[%s0 + $0x68] sm:$0xff]
  %v42 = vld [vmem:[%s0 + $0x70] sm:$0xff]
  %v43 = vld [vmem:[%s0 + $0x78] sm:$0xff]
  %v44 = vld [vmem:[%s0 + $0x80] sm:$0xff]
  %v45 = vld [vmem:[%s0 + $0x88] sm:$0xff]
  %v46 = vld [vmem:[%s0 + $0x90] sm:$0xff]
  %v47 = vld [vmem:[%s0 + $0x98] sm:$0xff]
  %v48 = vld [vmem:[%s0 + $0xa0] sm:$0xff]
  %v49 = vld [vmem:[%s0 + $0xa8] sm:$0xff]
  %v50 = vld [vmem:[%s0 + $0xb0] sm:$0xff]
  %v51 = vld [vmem:[%s0 + $0xb8] sm:$0xff]
  %v52 = vld [vmem:[%s0 + $0xc0] sm:$0xff]
  %v53 = vld [vmem:[%s0 + $0xc8] sm:$0xff]
  %v54 = vld [vmem:[%s0 + $0xd0] sm:$0xff]
  %v55 = vld [vmem:[%s0 + $0xd8] sm:$0xff]
  %v56 = vld [vmem:[%s0 + $0xe0] sm:$0xff]
  %v57 = vld [vmem:[%s0 + $0xe8] sm:$0xff]
  %v58 = vld [vmem:[%s0 + $0xf0] sm:$0xff]
  %v59 = vld [vmem:[%s0 + $0xf8] sm:$0xff]
  %v60 = vld [vmem:[%s1] sm:$0xf]
  %v61 = vld [vmem:[%s1 + $0x4] sm:$0xf]
  %v62 = vld [vmem:[%s1 + $0x8] sm:$0xf]
  %v63 = vld [vmem:[%s1 + $0xc] sm:$0xf]
  %v64 = vld [vmem:[%s1 + $0x10] sm:$0xf]
  %v65 = vld [vmem:[%s1 + $0x14] sm:$0xf]
  %v66 = vld [vmem:[%s1 + $0x18] sm:$0xf]
  %v67 = vld [vmem:[%s1 + $0x1c] sm:$0xf]
  %v68 = vld [vmem:[%s1 + $0x20] sm:$0xf]
  %v69 = vld [vmem:[%s1 + $0x24] sm:$0xf]
  %v70 = vld [vmem:[%s1 + $0x28] sm:$0xf]
  %v71 = vld [vmem:[%s1 + $0x2c] sm:$0xf]
  %v72 = vld [vmem:[%s1 + $0x30] sm:$0xf]
  %v73 = vld [vmem:[%s1 + $0x34] sm:$0xf]
  %v74 = vld [vmem:[%s1 + $0x38] sm:$0xf]
  %v75 = vld [vmem:[%s1 + $0x3c] sm:$0xf]
  %v76 = vld [vmem:[%s1 + $0x40] sm:$0xf]
  %v77 = vld [vmem:[%s1 + $0x44] sm:$0xf]
  %v78 = vld [vmem:[%s1 + $0x48] sm:$0xf]
  %v79 = vld [vmem:[%s1 + $0x4c] sm:$0xf]
  %v80 = vld [vmem:[%s1 + $0x50] sm:$0xf]
  %v81 = vld [vmem:[%s1 + $0x54] sm:$0xf]
  %v82 = vld [vmem:[%s1 + $0x58] sm:$0xf]
  %v83 = vld [vmem:[%s1 + $0x5c] sm:$0xf]
  %v84 = vld [vmem:[%s1 + $0x60] sm:$0xf]
  %v85 = vld [vmem:[%s1 + $0x64] sm:$0xf]
  %v86 = vld [vmem:[%s1 + $0x68] sm:$0xf]
  %v87 = vld [vmem:[%s1 + $0x6c] sm:$0xf]
  %v88 = vld [vmem:[%s1 + $0x70] sm:$0xf]
  %v89 = vld [vmem:[%s1 + $0x74] sm:$0xf]
  %v90 = vld [vmem:[%s1 + $0x78] sm:$0xf]
  %v91 = vld [vmem:[%s1 + $0x7c] sm:$0xf]
  %v92 = vld [vmem:[%s1 + $0x80] sm:$0xf]
  %v93 = vld [vmem:[%s1 + $0x84] sm:$0xf]
  %v94 = vld [vmem:[%s1 + $0x88] sm:$0xf]
  %v95 = vld [vmem:[%s1 + $0x8c] sm:$0xf]
  %v96 = vld [vmem:[%s1 + $0x90] sm:$0xf]
  %v97 = vld [vmem:[%s1 + $0x94] sm:$0xf]
  %v98 = vld [vmem:[%s1 + $0x98] sm:$0xf]
  %v99 = vld [vmem:[%s1 + $0x9c] sm:$0xf]
  %v100 = vld [vmem:[%s1 + $0xa0] sm:$0xf]
  %v101 = vld [vmem:[%s1 + $0xa4] sm:$0xf]
  %v102 = vld [vmem:[%s1 + $0xa8] sm:$0xf]
  %v103 = vld [vmem:[%s1 + $0xac] sm:$0xf]
  %v104 = vld [vmem:[%s1 + $0xb0] sm:$0xf]
  %v105 = vld [vmem:[%s1 + $0xb4] sm:$0xf]
  %v106 = vld [vmem:[%s1 + $0xb8] sm:$0xf]
  %v107 = vld [vmem:[%s1 + $0xbc] sm:$0xf]
  %v108 = vld [vmem:[%s1 + $0xc0] sm:$0xf]
  %v109 = vld [vmem:[%s1 + $0xc4] sm:$0xf]
  %v110 = vld [vmem:[%s1 + $0xc8] sm:$0xf]
  %v111 = vld [vmem:[%s1 + $0xcc] sm:$0xf]
  %v112 = vld [vmem:[%s1 + $0xd0] sm:$0xf]
  %v113 = vld [vmem:[%s1 + $0xd4] sm:$0xf]
  %v114 = vld [vmem:[%s1 + $0xd8] sm:$0xf]
  %v115 = vld [vmem:[%s1 + $0xdc] sm:$0xf]
  %v116 = vld [vmem:[%s1 + $0xe0] sm:$0xf]
  %v117 = vld [vmem:[%s1 + $0xe4] sm:$0xf]
  %v118 = vld [vmem:[%s1 + $0xe8] sm:$0xf]
  %v119 = vld [vmem:[%s1 + $0xec] sm:$0xf]
  %v120 = vld [vmem:[%s1 + $0xf0] sm:$0xf]
  %v121 = vld [vmem:[%s1 + $0xf4] sm:$0xf]
  %v122 = vld [vmem:[%s1 + $0xf8] sm:$0xf]
  %v123 = vld [vmem:[%s1 + $0xfc] sm:$0xf]
  %s124 = scalar_lea.vmem %s0, 256
  %v125 = vld [vmem:[%s124] sm:$0xff]
  %v126 = vld [vmem:[%s124 + $0x8] sm:$0xff]
  %v127 = vld [vmem:[%s124 + $0x10] sm:$0xff]
  %v128 = vld [vmem:[%s124 + $0x18] sm:$0xff]
  %v129 = vld [vmem:[%s124 + $0x20] sm:$0xff]
  %v130 = vld [vmem:[%s124 + $0x28] sm:$0xff]
  %v131 = vld [vmem:[%s124 + $0x30] sm:$0xff]
  %v132 = vld [vmem:[%s124 + $0x38] sm:$0xff]
  %v133 = vld [vmem:[%s124 + $0x40] sm:$0xff]
  %v134 = vld [vmem:[%s124 + $0x48] sm:$0xff]
  %v135 = vld [vmem:[%s124 + $0x50] sm:$0xff]
  %v136 = vld [vmem:[%s124 + $0x58] sm:$0xff]
  %v137 = vld [vmem:[%s124 + $0x60] sm:$0xff]
  %v138 = vld [vmem:[%s124 + $0x68] sm:$0xff]
  %v139 = vld [vmem:[%s124 + $0x70] sm:$0xff]
  %v140 = vld [vmem:[%s124 + $0x78] sm:$0xff]
  %v141 = vld [vmem:[%s124 + $0x80] sm:$0xff]
  %v142 = vld [vmem:[%s124 + $0x88] sm:$0xff]
  %v143 = vld [vmem:[%s124 + $0x90] sm:$0xff]
  %v144 = vld [vmem:[%s124 + $0x98] sm:$0xff]
  %v145 = vld [vmem:[%s124 + $0xa0] sm:$0xff]
  %v146 = vld [vmem:[%s124 + $0xa8] sm:$0xff]
  %v147 = vld [vmem:[%s124 + $0xb0] sm:$0xff]
  %v148 = vld [vmem:[%s124 + $0xb8] sm:$0xff]
  %v149 = vld [vmem:[%s124 + $0xc0] sm:$0xff]
  %v150 = vld [vmem:[%s124 + $0xc8] sm:$0xff]
  %v151 = vld [vmem:[%s124 + $0xd0] sm:$0xff]
  %v152 = vld [vmem:[%s124 + $0xd8] sm:$0xff]
  %v153 = vld [vmem:[%s124 + $0xe0] sm:$0xff]
  %v154 = vld [vmem:[%s124 + $0xe8] sm:$0xff]
  %v155 = vld [vmem:[%s124 + $0xf0] sm:$0xff]
  %v156 = vld [vmem:[%s124 + $0xf8] sm:$0xff]
  %s157 = scalar_lea.vmem %s1, 256
  %v158 = vld [vmem:[%s157] sm:$0xf]
  %v159 = vld [vmem:[%s157 + $0x4] sm:$0xf]
  %v160 = vld [vmem:[%s157 + $0x8] sm:$0xf]
  %v161 = vld [vmem:[%s157 + $0xc] sm:$0xf]
  %v162 = vld [vmem:[%s157 + $0x10] sm:$0xf]
  %v163 = vld [vmem:[%s157 + $0x14] sm:$0xf]
  %v164 = vld [vmem:[%s157 + $0x18] sm:$0xf]
  %v165 = vld [vmem:[%s157 + $0x1c] sm:$0xf]
  %v166 = vld [vmem:[%s157 + $0x20] sm:$0xf]
  %v167 = vld [vmem:[%s157 + $0x24] sm:$0xf]
  %v168 = vld [vmem:[%s157 + $0x28] sm:$0xf]
  %v169 = vld [vmem:[%s157 + $0x2c] sm:$0xf]
  %v170 = vld [vmem:[%s157 + $0x30] sm:$0xf]
  %v171 = vld [vmem:[%s157 + $0x34] sm:$0xf]
  %v172 = vld [vmem:[%s157 + $0x38] sm:$0xf]
  %v173 = vld [vmem:[%s157 + $0x3c] sm:$0xf]
  %v174 = vld [vmem:[%s157 + $0x40] sm:$0xf]
  %v175 = vld [vmem:[%s157 + $0x44] sm:$0xf]
  %v176 = vld [vmem:[%s157 + $0x48] sm:$0xf]
  %v177 = vld [vmem:[%s157 + $0x4c] sm:$0xf]
  %v178 = vld [vmem:[%s157 + $0x50] sm:$0xf]
  %v179 = vld [vmem:[%s157 + $0x54] sm:$0xf]
  %v180 = vld [vmem:[%s157 + $0x58] sm:$0xf]
  %v181 = vld [vmem:[%s157 + $0x5c] sm:$0xf]
  %v182 = vld [vmem:[%s157 + $0x60] sm:$0xf]
  %v183 = vld [vmem:[%s157 + $0x64] sm:$0xf]
  %v184 = vld [vmem:[%s157 + $0x68] sm:$0xf]
  %v185 = vld [vmem:[%s157 + $0x6c] sm:$0xf]
  %v186 = vld [vmem:[%s157 + $0x70] sm:$0xf]
  %v187 = vld [vmem:[%s157 + $0x74] sm:$0xf]
  %v188 = vld [vmem:[%s157 + $0x78] sm:$0xf]
  %v189 = vld [vmem:[%s157 + $0x7c] sm:$0xf]
  %v190 = vld [vmem:[%s157 + $0x80] sm:$0xf]
  %v191 = vld [vmem:[%s157 + $0x84] sm:$0xf]
  %v192 = vld [vmem:[%s157 + $0x88] sm:$0xf]
  %v193 = vld [vmem:[%s157 + $0x8c] sm:$0xf]
  %v194 = vld [vmem:[%s157 + $0x90] sm:$0xf]
  %v195 = vld [vmem:[%s157 + $0x94] sm:$0xf]
  %v196 = vld [vmem:[%s157 + $0x98] sm:$0xf]
  %v197 = vld [vmem:[%s157 + $0x9c] sm:$0xf]
  %v198 = vld [vmem:[%s157 + $0xa0] sm:$0xf]
  %v199 = vld [vmem:[%s157 + $0xa4] sm:$0xf]
  %v200 = vld [vmem:[%s157 + $0xa8] sm:$0xf]
  %v201 = vld [vmem:[%s157 + $0xac] sm:$0xf]
  %v202 = vld [vmem:[%s157 + $0xb0] sm:$0xf]
  %v203 = vld [vmem:[%s157 + $0xb4] sm:$0xf]
  %v204 = vld [vmem:[%s157 + $0xb8] sm:$0xf]
  %v205 = vld [vmem:[%s157 + $0xbc] sm:$0xf]
  %v206 = vld [vmem:[%s157 + $0xc0] sm:$0xf]
  %v207 = vld [vmem:[%s157 + $0xc4] sm:$0xf]
  %v208 = vld [vmem:[%s157 + $0xc8] sm:$0xf]
  %v209 = vld [vmem:[%s157 + $0xcc] sm:$0xf]
  %v210 = vld [vmem:[%s157 + $0xd0] sm:$0xf]
  %v211 = vld [vmem:[%s157 + $0xd4] sm:$0xf]
  %v212 = vld [vmem:[%s157 + $0xd8] sm:$0xf]
  %v213 = vld [vmem:[%s157 + $0xdc] sm:$0xf]
  %v214 = vld [vmem:[%s157 + $0xe0] sm:$0xf]
  %v215 = vld [vmem:[%s157 + $0xe4] sm:$0xf]
  %v216 = vld [vmem:[%s157 + $0xe8] sm:$0xf]
  %v217 = vld [vmem:[%s157 + $0xec] sm:$0xf]
  %v218 = vld [vmem:[%s157 + $0xf0] sm:$0xf]
  %v219 = vld [vmem:[%s157 + $0xf4] sm:$0xf]
  %v220 = vld [vmem:[%s157 + $0xf8] sm:$0xf]
  %v221 = vld [vmem:[%s157 + $0xfc] sm:$0xf]
  %v254 = vunpack.c.l.b16 %v125
  %v255 = vunpack.c.h.b16 %v125
  %v256 = vunpack.c.l.b16 %v126
  %v257 = vunpack.c.h.b16 %v126
  %v258 = vunpack.c.l.b16 %v127
  %v259 = vunpack.c.h.b16 %v127
  %v260 = vunpack.c.l.b16 %v128
  %v261 = vunpack.c.h.b16 %v128
  %v262 = vunpack.c.l.b16 %v129
  %v263 = vunpack.c.h.b16 %v129
  %v264 = vunpack.c.l.b16 %v130
  %v265 = vunpack.c.h.b16 %v130
  %v266 = vunpack.c.l.b16 %v131
  %v267 = vunpack.c.h.b16 %v131
  %v268 = vunpack.c.l.b16 %v132
  %v269 = vunpack.c.h.b16 %v132
  %v270 = vunpack.c.l.b16 %v133
  %v271 = vunpack.c.h.b16 %v133
  %v272 = vunpack.c.l.b16 %v134
  %v273 = vunpack.c.h.b16 %v134
  %v274 = vunpack.c.l.b16 %v135
  %v275 = vunpack.c.h.b16 %v135
  %v276 = vunpack.c.l.b16 %v136
  %v277 = vunpack.c.h.b16 %v136
  %v278 = vunpack.c.l.b16 %v137
  %v279 = vunpack.c.h.b16 %v137
  %v280 = vunpack.c.l.b16 %v138
  %v281 = vunpack.c.h.b16 %v138
  %v282 = vunpack.c.l.b16 %v139
  %v283 = vunpack.c.h.b16 %v139
  %v284 = vunpack.c.l.b16 %v140
  %v285 = vunpack.c.h.b16 %v140
  %v286 = vunpack.c.l.b16 %v141
  %v287 = vunpack.c.h.b16 %v141
  %v288 = vunpack.c.l.b16 %v142
  %v289 = vunpack.c.h.b16 %v142
  %v290 = vunpack.c.l.b16 %v143
  %v291 = vunpack.c.h.b16 %v143
  %v292 = vunpack.c.l.b16 %v144
  %v293 = vunpack.c.h.b16 %v144
  %v294 = vunpack.c.l.b16 %v145
  %v295 = vunpack.c.h.b16 %v145
  %v296 = vunpack.c.l.b16 %v146
  %v297 = vunpack.c.h.b16 %v146
  %v298 = vunpack.c.l.b16 %v147
  %v299 = vunpack.c.h.b16 %v147
  %v300 = vunpack.c.l.b16 %v148
  %v301 = vunpack.c.h.b16 %v148
  %v302 = vunpack.c.l.b16 %v149
  %v303 = vunpack.c.h.b16 %v149
  %v304 = vunpack.c.l.b16 %v150
  %v305 = vunpack.c.h.b16 %v150
  %v306 = vunpack.c.l.b16 %v151
  %v307 = vunpack.c.h.b16 %v151
  %v308 = vunpack.c.l.b16 %v152
  %v309 = vunpack.c.h.b16 %v152
  %v310 = vunpack.c.l.b16 %v153
  %v311 = vunpack.c.h.b16 %v153
  %v312 = vunpack.c.l.b16 %v154
  %v313 = vunpack.c.h.b16 %v154
  %v314 = vunpack.c.l.b16 %v155
  %v315 = vunpack.c.h.b16 %v155
  %v316 = vunpack.c.l.b16 %v156
  %v317 = vunpack.c.h.b16 %v156
  %v318 = vpack.c.b16 %v258, %v254
  %v319 = vpack.c.b16 %v259, %v255
  %v320 = vpack.c.b16 %v260, %v256
  %v321 = vpack.c.b16 %v261, %v257
  %v322 = vpack.c.b16 %v266, %v262
  %v323 = vpack.c.b16 %v267, %v263
  %v324 = vpack.c.b16 %v268, %v264
  %v325 = vpack.c.b16 %v269, %v265
  %v326 = vpack.c.b16 %v274, %v270
  %v327 = vpack.c.b16 %v275, %v271
  %v328 = vpack.c.b16 %v276, %v272
  %v329 = vpack.c.b16 %v277, %v273
  %v330 = vpack.c.b16 %v282, %v278
  %v331 = vpack.c.b16 %v283, %v279
  %v332 = vpack.c.b16 %v284, %v280
  %v333 = vpack.c.b16 %v285, %v281
  %v334 = vpack.c.b16 %v290, %v286
  %v335 = vpack.c.b16 %v291, %v287
  %v336 = vpack.c.b16 %v292, %v288
  %v337 = vpack.c.b16 %v293, %v289
  %v338 = vpack.c.b16 %v298, %v294
  %v339 = vpack.c.b16 %v299, %v295
  %v340 = vpack.c.b16 %v300, %v296
  %v341 = vpack.c.b16 %v301, %v297
  %v342 = vpack.c.b16 %v306, %v302
  %v343 = vpack.c.b16 %v307, %v303
  %v344 = vpack.c.b16 %v308, %v304
  %v345 = vpack.c.b16 %v309, %v305
  %v346 = vpack.c.b16 %v314, %v310
  %v347 = vpack.c.b16 %v315, %v311
  %v348 = vpack.c.b16 %v316, %v312
  %v349 = vpack.c.b16 %v317, %v313
  %v446 = vunpack.c.l.b16 %v158
  %v447 = vunpack.c.l.b16 %v159
  %v448 = vunpack.c.l.b16 %v160
  %v449 = vunpack.c.l.b16 %v161
  %v450 = vunpack.c.l.b16 %v162
  %v451 = vunpack.c.l.b16 %v163
  %v452 = vunpack.c.l.b16 %v164
  %v453 = vunpack.c.l.b16 %v165
  %v454 = vunpack.c.l.b16 %v166
  %v455 = vunpack.c.l.b16 %v167
  %v456 = vunpack.c.l.b16 %v168
  %v457 = vunpack.c.l.b16 %v169
  %v458 = vunpack.c.l.b16 %v170
  %v459 = vunpack.c.l.b16 %v171
  %v460 = vunpack.c.l.b16 %v172
  %v461 = vunpack.c.l.b16 %v173
  %v462 = vunpack.c.l.b16 %v174
  %v463 = vunpack.c.l.b16 %v175
  %v464 = vunpack.c.l.b16 %v176
  %v465 = vunpack.c.l.b16 %v177
  %v466 = vunpack.c.l.b16 %v178
  %v467 = vunpack.c.l.b16 %v179
  %v468 = vunpack.c.l.b16 %v180
  %v469 = vunpack.c.l.b16 %v181
  %v470 = vunpack.c.l.b16 %v182
  %v471 = vunpack.c.l.b16 %v183
  %v472 = vunpack.c.l.b16 %v184
  %v473 = vunpack.c.l.b16 %v185
  %v474 = vunpack.c.l.b16 %v186
  %v475 = vunpack.c.l.b16 %v187
  %v476 = vunpack.c.l.b16 %v188
  %v477 = vunpack.c.l.b16 %v189
  %v478 = vunpack.c.l.b16 %v190
  %v479 = vunpack.c.l.b16 %v191
  %v480 = vunpack.c.l.b16 %v192
  %v481 = vunpack.c.l.b16 %v193
  %v482 = vunpack.c.l.b16 %v194
  %v483 = vunpack.c.l.b16 %v195
  %v484 = vunpack.c.l.b16 %v196
  %v485 = vunpack.c.l.b16 %v197
  %v486 = vunpack.c.l.b16 %v198
  %v487 = vunpack.c.l.b16 %v199
  %v488 = vunpack.c.l.b16 %v200
  %v489 = vunpack.c.l.b16 %v201
  %v490 = vunpack.c.l.b16 %v202
  %v491 = vunpack.c.l.b16 %v203
  %v492 = vunpack.c.l.b16 %v204
  %v493 = vunpack.c.l.b16 %v205
  %v494 = vunpack.c.l.b16 %v206
  %v495 = vunpack.c.l.b16 %v207
  %v496 = vunpack.c.l.b16 %v208
  %v497 = vunpack.c.l.b16 %v209
  %v498 = vunpack.c.l.b16 %v210
  %v499 = vunpack.c.l.b16 %v211
  %v500 = vunpack.c.l.b16 %v212
  %v501 = vunpack.c.l.b16 %v213
  %v502 = vunpack.c.l.b16 %v214
  %v503 = vunpack.c.l.b16 %v215
  %v504 = vunpack.c.l.b16 %v216
  %v505 = vunpack.c.l.b16 %v217
  %v506 = vunpack.c.l.b16 %v218
  %v507 = vunpack.c.l.b16 %v219
  %v508 = vunpack.c.l.b16 %v220
  %v509 = vunpack.c.l.b16 %v221
  %v510 = vpack.c.b16 %v447, %v446
  %v511 = vpack.c.b16 %v449, %v448
  %v512 = vpack.c.b16 %v451, %v450
  %v513 = vpack.c.b16 %v453, %v452
  %v514 = vpack.c.b16 %v455, %v454
  %v515 = vpack.c.b16 %v457, %v456
  %v516 = vpack.c.b16 %v459, %v458
  %v517 = vpack.c.b16 %v461, %v460
  %v518 = vpack.c.b16 %v463, %v462
  %v519 = vpack.c.b16 %v465, %v464
  %v520 = vpack.c.b16 %v467, %v466
  %v521 = vpack.c.b16 %v469, %v468
  %v522 = vpack.c.b16 %v471, %v470
  %v523 = vpack.c.b16 %v473, %v472
  %v524 = vpack.c.b16 %v475, %v474
  %v525 = vpack.c.b16 %v477, %v476
  %v526 = vpack.c.b16 %v479, %v478
  %v527 = vpack.c.b16 %v481, %v480
  %v528 = vpack.c.b16 %v483, %v482
  %v529 = vpack.c.b16 %v485, %v484
  %v530 = vpack.c.b16 %v487, %v486
  %v531 = vpack.c.b16 %v489, %v488
  %v532 = vpack.c.b16 %v491, %v490
  %v533 = vpack.c.b16 %v493, %v492
  %v534 = vpack.c.b16 %v495, %v494
  %v535 = vpack.c.b16 %v497, %v496
  %v536 = vpack.c.b16 %v499, %v498
  %v537 = vpack.c.b16 %v501, %v500
  %v538 = vpack.c.b16 %v503, %v502
  %v539 = vpack.c.b16 %v505, %v504
  %v540 = vpack.c.b16 %v507, %v506
  %v541 = vpack.c.b16 %v509, %v508
  %574 = vmatpush.bf16.msra.mxu0 %v517
  %575 = vmatpush.bf16.msra.mxu0 %v516
  %576 = vmatpush.bf16.msra.mxu0 %v515
  %577 = vmatpush.bf16.msra.mxu0 %v514
  %578 = vmatpush.bf16.msra.mxu0 %v513
  %579 = vmatpush.bf16.msra.mxu0 %v512
  %580 = vmatpush.bf16.msra.mxu0 %v511
  %581 = vmatpush.bf16.msra.mxu0 %v510
  %582 = vmatmul.bf16.gmra.mxu0 %v318
  %v583 = vpop.f32.mrf.mxu0
  %v584 = vadd.f32 0.0, %v583
  %v585 = vpop.f32.mrf.mxu0
  %v586 = vadd.f32 0.0, %v585
  %587 = vmatmul.bf16.gmra.mxu0 %v322
  %v588 = vpop.f32.mrf.mxu0
  %v589 = vadd.f32 0.0, %v588
  %v590 = vpop.f32.mrf.mxu0
  %v591 = vadd.f32 0.0, %v590
  %592 = vmatmul.bf16.gmra.mxu0 %v326
  %v593 = vpop.f32.mrf.mxu0
  %v594 = vadd.f32 0.0, %v593
  %v595 = vpop.f32.mrf.mxu0
  %v596 = vadd.f32 0.0, %v595
  %597 = vmatmul.bf16.gmra.mxu0 %v330
  %v598 = vpop.f32.mrf.mxu0
  %v599 = vadd.f32 0.0, %v598
  %v600 = vpop.f32.mrf.mxu0
  %v601 = vadd.f32 0.0, %v600
  %602 = vmatmul.bf16.gmra.mxu0 %v334
  %v603 = vpop.f32.mrf.mxu0
  %v604 = vadd.f32 0.0, %v603
  %v605 = vpop.f32.mrf.mxu0
  %v606 = vadd.f32 0.0, %v605
  %607 = vmatmul.bf16.gmra.mxu0 %v338
  %v608 = vpop.f32.mrf.mxu0
  %v609 = vadd.f32 0.0, %v608
  %v610 = vpop.f32.mrf.mxu0
  %v611 = vadd.f32 0.0, %v610
  %612 = vmatmul.bf16.gmra.mxu0 %v342
  %v613 = vpop.f32.mrf.mxu0
  %v614 = vadd.f32 0.0, %v613
  %v615 = vpop.f32.mrf.mxu0
  %v616 = vadd.f32 0.0, %v615
  %617 = vmatmul.bf16.gmra.mxu0 %v346
  %v618 = vpop.f32.mrf.mxu0
  %v619 = vadd.f32 0.0, %v618
  %v620 = vpop.f32.mrf.mxu0
  %v621 = vadd.f32 0.0, %v620
  %622 = vdwg.mxu0
  %623 = vmatpush.bf16.msra.mxu0 %v525
  %624 = vmatpush.bf16.msra.mxu0 %v524
  %625 = vmatpush.bf16.msra.mxu0 %v523
  %626 = vmatpush.bf16.msra.mxu0 %v522
  %627 = vmatpush.bf16.msra.mxu0 %v521
  %628 = vmatpush.bf16.msra.mxu0 %v520
  %629 = vmatpush.bf16.msra.mxu0 %v519
  %630 = vmatpush.bf16.msra.mxu0 %v518
  %631 = vmatmul.bf16.gmra.mxu0 %v319
  %v632 = vpop.f32.mrf.mxu0
  %v633 = vadd.f32 %v584, %v632
  %v634 = vpop.f32.mrf.mxu0
  %v635 = vadd.f32 %v586, %v634
  %636 = vmatmul.bf16.gmra.mxu0 %v323
  %v637 = vpop.f32.mrf.mxu0
  %v638 = vadd.f32 %v589, %v637
  %v639 = vpop.f32.mrf.mxu0
  %v640 = vadd.f32 %v591, %v639
  %641 = vmatmul.bf16.gmra.mxu0 %v327
  %v642 = vpop.f32.mrf.mxu0
  %v643 = vadd.f32 %v594, %v642
  %v644 = vpop.f32.mrf.mxu0
  %v645 = vadd.f32 %v596, %v644
  %646 = vmatmul.bf16.gmra.mxu0 %v331
  %v647 = vpop.f32.mrf.mxu0
  %v648 = vadd.f32 %v599, %v647
  %v649 = vpop.f32.mrf.mxu0
  %v650 = vadd.f32 %v601, %v649
  %651 = vmatmul.bf16.gmra.mxu0 %v335
  %v652 = vpop.f32.mrf.mxu0
  %v653 = vadd.f32 %v604, %v652
  %v654 = vpop.f32.mrf.mxu0
  %v655 = vadd.f32 %v606, %v654
  %656 = vmatmul.bf16.gmra.mxu0 %v339
  %v657 = vpop.f32.mrf.mxu0
  %v658 = vadd.f32 %v609, %v657
  %v659 = vpop.f32.mrf.mxu0
  %v660 = vadd.f32 %v611, %v659
  %661 = vmatmul.bf16.gmra.mxu0 %v343
  %v662 = vpop.f32.mrf.mxu0
  %v663 = vadd.f32 %v614, %v662
  %v664 = vpop.f32.mrf.mxu0
  %v665 = vadd.f32 %v616, %v664
  %666 = vmatmul.bf16.gmra.mxu0 %v347
  %v667 = vpop.f32.mrf.mxu0
  %v668 = vadd.f32 %v619, %v667
  %v669 = vpop.f32.mrf.mxu0
  %v670 = vadd.f32 %v621, %v669
  %671 = vdwg.mxu0
  %672 = vmatpush.bf16.msra.mxu0 %v533
  %673 = vmatpush.bf16.msra.mxu0 %v532
  %674 = vmatpush.bf16.msra.mxu0 %v531
  %675 = vmatpush.bf16.msra.mxu0 %v530
  %676 = vmatpush.bf16.msra.mxu0 %v529
  %677 = vmatpush.bf16.msra.mxu0 %v528
  %678 = vmatpush.bf16.msra.mxu0 %v527
  %679 = vmatpush.bf16.msra.mxu0 %v526
  %680 = vmatmul.bf16.gmra.mxu0 %v320
  %v681 = vpop.f32.mrf.mxu0
  %v682 = vadd.f32 %v633, %v681
  %v683 = vpop.f32.mrf.mxu0
  %v684 = vadd.f32 %v635, %v683
  %685 = vmatmul.bf16.gmra.mxu0 %v324
  %v686 = vpop.f32.mrf.mxu0
  %v687 = vadd.f32 %v638, %v686
  %v688 = vpop.f32.mrf.mxu0
  %v689 = vadd.f32 %v640, %v688
  %690 = vmatmul.bf16.gmra.mxu0 %v328
  %v691 = vpop.f32.mrf.mxu0
  %v692 = vadd.f32 %v643, %v691
  %v693 = vpop.f32.mrf.mxu0
  %v694 = vadd.f32 %v645, %v693
  %695 = vmatmul.bf16.gmra.mxu0 %v332
  %v696 = vpop.f32.mrf.mxu0
  %v697 = vadd.f32 %v648, %v696
  %v698 = vpop.f32.mrf.mxu0
  %v699 = vadd.f32 %v650, %v698
  %700 = vmatmul.bf16.gmra.mxu0 %v336
  %v701 = vpop.f32.mrf.mxu0
  %v702 = vadd.f32 %v653, %v701
  %v703 = vpop.f32.mrf.mxu0
  %v704 = vadd.f32 %v655, %v703
  %705 = vmatmul.bf16.gmra.mxu0 %v340
  %v706 = vpop.f32.mrf.mxu0
  %v707 = vadd.f32 %v658, %v706
  %v708 = vpop.f32.mrf.mxu0
  %v709 = vadd.f32 %v660, %v708
  %710 = vmatmul.bf16.gmra.mxu0 %v344
  %v711 = vpop.f32.mrf.mxu0
  %v712 = vadd.f32 %v663, %v711
  %v713 = vpop.f32.mrf.mxu0
  %v714 = vadd.f32 %v665, %v713
  %715 = vmatmul.bf16.gmra.mxu0 %v348
  %v716 = vpop.f32.mrf.mxu0
  %v717 = vadd.f32 %v668, %v716
  %v718 = vpop.f32.mrf.mxu0
  %v719 = vadd.f32 %v670, %v718
  %720 = vdwg.mxu0
  %721 = vmatpush.bf16.msra.mxu0 %v541
  %722 = vmatpush.bf16.msra.mxu0 %v540
  %723 = vmatpush.bf16.msra.mxu0 %v539
  %724 = vmatpush.bf16.msra.mxu0 %v538
  %725 = vmatpush.bf16.msra.mxu0 %v537
  %726 = vmatpush.bf16.msra.mxu0 %v536
  %727 = vmatpush.bf16.msra.mxu0 %v535
  %728 = vmatpush.bf16.msra.mxu0 %v534
  %729 = vmatmul.bf16.gmra.mxu0 %v321
  %v730 = vpop.f32.mrf.mxu0
  %v731 = vadd.f32 %v682, %v730
  %v732 = vpop.f32.mrf.mxu0
  %v733 = vadd.f32 %v684, %v732
  %734 = vmatmul.bf16.gmra.mxu0 %v325
  %v735 = vpop.f32.mrf.mxu0
  %v736 = vadd.f32 %v687, %v735
  %v737 = vpop.f32.mrf.mxu0
  %v738 = vadd.f32 %v689, %v737
  %739 = vmatmul.bf16.gmra.mxu0 %v329
  %v740 = vpop.f32.mrf.mxu0
  %v741 = vadd.f32 %v692, %v740
  %v742 = vpop.f32.mrf.mxu0
  %v743 = vadd.f32 %v694, %v742
  %744 = vmatmul.bf16.gmra.mxu0 %v333
  %v745 = vpop.f32.mrf.mxu0
  %v746 = vadd.f32 %v697, %v745
  %v747 = vpop.f32.mrf.mxu0
  %v748 = vadd.f32 %v699, %v747
  %749 = vmatmul.bf16.gmra.mxu0 %v337
  %v750 = vpop.f32.mrf.mxu0
  %v751 = vadd.f32 %v702, %v750
  %v752 = vpop.f32.mrf.mxu0
  %v753 = vadd.f32 %v704, %v752
  %754 = vmatmul.bf16.gmra.mxu0 %v341
  %v755 = vpop.f32.mrf.mxu0
  %v756 = vadd.f32 %v707, %v755
  %v757 = vpop.f32.mrf.mxu0
  %v758 = vadd.f32 %v709, %v757
  %759 = vmatmul.bf16.gmra.mxu0 %v345
  %v760 = vpop.f32.mrf.mxu0
  %v761 = vadd.f32 %v712, %v760
  %v762 = vpop.f32.mrf.mxu0
  %v763 = vadd.f32 %v714, %v762
  %764 = vmatmul.bf16.gmra.mxu0 %v349
  %v765 = vpop.f32.mrf.mxu0
  %v766 = vadd.f32 %v717, %v765
  %v767 = vpop.f32.mrf.mxu0
  %v768 = vadd.f32 %v719, %v767
  %769 = vdwg.mxu0
  %v802 = vunpack.c.l.b16 %v28
  %v803 = vunpack.c.h.b16 %v28
  %v804 = vunpack.c.l.b16 %v29
  %v805 = vunpack.c.h.b16 %v29
  %v806 = vunpack.c.l.b16 %v30
  %v807 = vunpack.c.h.b16 %v30
  %v808 = vunpack.c.l.b16 %v31
  %v809 = vunpack.c.h.b16 %v31
  %v810 = vunpack.c.l.b16 %v32
  %v811 = vunpack.c.h.b16 %v32
  %v812 = vunpack.c.l.b16 %v33
  %v813 = vunpack.c.h.b16 %v33
  %v814 = vunpack.c.l.b16 %v34
  %v815 = vunpack.c.h.b16 %v34
  %v816 = vunpack.c.l.b16 %v35
  %v817 = vunpack.c.h.b16 %v35
  %v818 = vunpack.c.l.b16 %v36
  %v819 = vunpack.c.h.b16 %v36
  %v820 = vunpack.c.l.b16 %v37
  %v821 = vunpack.c.h.b16 %v37
  %v822 = vunpack.c.l.b16 %v38
  %v823 = vunpack.c.h.b16 %v38
  %v824 = vunpack.c.l.b16 %v39
  %v825 = vunpack.c.h.b16 %v39
  %v826 = vunpack.c.l.b16 %v40
  %v827 = vunpack.c.h.b16 %v40
  %v828 = vunpack.c.l.b16 %v41
  %v829 = vunpack.c.h.b16 %v41
  %v830 = vunpack.c.l.b16 %v42
  %v831 = vunpack.c.h.b16 %v42
  %v832 = vunpack.c.l.b16 %v43
  %v833 = vunpack.c.h.b16 %v43
  %v834 = vunpack.c.l.b16 %v44
  %v835 = vunpack.c.h.b16 %v44
  %v836 = vunpack.c.l.b16 %v45
  %v837 = vunpack.c.h.b16 %v45
  %v838 = vunpack.c.l.b16 %v46
  %v839 = vunpack.c.h.b16 %v46
  %v840 = vunpack.c.l.b16 %v47
  %v841 = vunpack.c.h.b16 %v47
  %v842 = vunpack.c.l.b16 %v48
  %v843 = vunpack.c.h.b16 %v48
  %v844 = vunpack.c.l.b16 %v49
  %v845 = vunpack.c.h.b16 %v49
  %v846 = vunpack.c.l.b16 %v50
  %v847 = vunpack.c.h.b16 %v50
  %v848 = vunpack.c.l.b16 %v51
  %v849 = vunpack.c.h.b16 %v51
  %v850 = vunpack.c.l.b16 %v52
  %v851 = vunpack.c.h.b16 %v52
  %v852 = vunpack.c.l.b16 %v53
  %v853 = vunpack.c.h.b16 %v53
  %v854 = vunpack.c.l.b16 %v54
  %v855 = vunpack.c.h.b16 %v54
  %v856 = vunpack.c.l.b16 %v55
  %v857 = vunpack.c.h.b16 %v55
  %v858 = vunpack.c.l.b16 %v56
  %v859 = vunpack.c.h.b16 %v56
  %v860 = vunpack.c.l.b16 %v57
  %v861 = vunpack.c.h.b16 %v57
  %v862 = vunpack.c.l.b16 %v58
  %v863 = vunpack.c.h.b16 %v58
  %v864 = vunpack.c.l.b16 %v59
  %v865 = vunpack.c.h.b16 %v59
  %v866 = vpack.c.b16 %v806, %v802
  %v867 = vpack.c.b16 %v807, %v803
  %v868 = vpack.c.b16 %v808, %v804
  %v869 = vpack.c.b16 %v809, %v805
  %v870 = vpack.c.b16 %v814, %v810
  %v871 = vpack.c.b16 %v815, %v811
  %v872 = vpack.c.b16 %v816, %v812
  %v873 = vpack.c.b16 %v817, %v813
  %v874 = vpack.c.b16 %v822, %v818
  %v875 = vpack.c.b16 %v823, %v819
  %v876 = vpack.c.b16 %v824, %v820
  %v877 = vpack.c.b16 %v825, %v821
  %v878 = vpack.c.b16 %v830, %v826
  %v879 = vpack.c.b16 %v831, %v827
  %v880 = vpack.c.b16 %v832, %v828
  %v881 = vpack.c.b16 %v833, %v829
  %v882 = vpack.c.b16 %v838, %v834
  %v883 = vpack.c.b16 %v839, %v835
  %v884 = vpack.c.b16 %v840, %v836
  %v885 = vpack.c.b16 %v841, %v837
  %v886 = vpack.c.b16 %v846, %v842
  %v887 = vpack.c.b16 %v847, %v843
  %v888 = vpack.c.b16 %v848, %v844
  %v889 = vpack.c.b16 %v849, %v845
  %v890 = vpack.c.b16 %v854, %v850
  %v891 = vpack.c.b16 %v855, %v851
  %v892 = vpack.c.b16 %v856, %v852
  %v893 = vpack.c.b16 %v857, %v853
  %v894 = vpack.c.b16 %v862, %v858
  %v895 = vpack.c.b16 %v863, %v859
  %v896 = vpack.c.b16 %v864, %v860
  %v897 = vpack.c.b16 %v865, %v861
  %v994 = vunpack.c.l.b16 %v60
  %v995 = vunpack.c.l.b16 %v61
  %v996 = vunpack.c.l.b16 %v62
  %v997 = vunpack.c.l.b16 %v63
  %v998 = vunpack.c.l.b16 %v64
  %v999 = vunpack.c.l.b16 %v65
  %v1000 = vunpack.c.l.b16 %v66
  %v1001 = vunpack.c.l.b16 %v67
  %v1002 = vunpack.c.l.b16 %v68
  %v1003 = vunpack.c.l.b16 %v69
  %v1004 = vunpack.c.l.b16 %v70
  %v1005 = vunpack.c.l.b16 %v71
  %v1006 = vunpack.c.l.b16 %v72
  %v1007 = vunpack.c.l.b16 %v73
  %v1008 = vunpack.c.l.b16 %v74
  %v1009 = vunpack.c.l.b16 %v75
  %v1010 = vunpack.c.l.b16 %v76
  %v1011 = vunpack.c.l.b16 %v77
  %v1012 = vunpack.c.l.b16 %v78
  %v1013 = vunpack.c.l.b16 %v79
  %v1014 = vunpack.c.l.b16 %v80
  %v1015 = vunpack.c.l.b16 %v81
  %v1016 = vunpack.c.l.b16 %v82
  %v1017 = vunpack.c.l.b16 %v83
  %v1018 = vunpack.c.l.b16 %v84
  %v1019 = vunpack.c.l.b16 %v85
  %v1020 = vunpack.c.l.b16 %v86
  %v1021 = vunpack.c.l.b16 %v87
  %v1022 = vunpack.c.l.b16 %v88
  %v1023 = vunpack.c.l.b16 %v89
  %v1024 = vunpack.c.l.b16 %v90
  %v1025 = vunpack.c.l.b16 %v91
  %v1026 = vunpack.c.l.b16 %v92
  %v1027 = vunpack.c.l.b16 %v93
  %v1028 = vunpack.c.l.b16 %v94
  %v1029 = vunpack.c.l.b16 %v95
  %v1030 = vunpack.c.l.b16 %v96
  %v1031 = vunpack.c.l.b16 %v97
  %v1032 = vunpack.c.l.b16 %v98
  %v1033 = vunpack.c.l.b16 %v99
  %v1034 = vunpack.c.l.b16 %v100
  %v1035 = vunpack.c.l.b16 %v101
  %v1036 = vunpack.c.l.b16 %v102
  %v1037 = vunpack.c.l.b16 %v103
  %v1038 = vunpack.c.l.b16 %v104
  %v1039 = vunpack.c.l.b16 %v105
  %v1040 = vunpack.c.l.b16 %v106
  %v1041 = vunpack.c.l.b16 %v107
  %v1042 = vunpack.c.l.b16 %v108
  %v1043 = vunpack.c.l.b16 %v109
  %v1044 = vunpack.c.l.b16 %v110
  %v1045 = vunpack.c.l.b16 %v111
  %v1046 = vunpack.c.l.b16 %v112
  %v1047 = vunpack.c.l.b16 %v113
  %v1048 = vunpack.c.l.b16 %v114
  %v1049 = vunpack.c.l.b16 %v115
  %v1050 = vunpack.c.l.b16 %v116
  %v1051 = vunpack.c.l.b16 %v117
  %v1052 = vunpack.c.l.b16 %v118
  %v1053 = vunpack.c.l.b16 %v119
  %v1054 = vunpack.c.l.b16 %v120
  %v1055 = vunpack.c.l.b16 %v121
  %v1056 = vunpack.c.l.b16 %v122
  %v1057 = vunpack.c.l.b16 %v123
  %v1058 = vpack.c.b16 %v995, %v994
  %v1059 = vpack.c.b16 %v997, %v996
  %v1060 = vpack.c.b16 %v999, %v998
  %v1061 = vpack.c.b16 %v1001, %v1000
  %v1062 = vpack.c.b16 %v1003, %v1002
  %v1063 = vpack.c.b16 %v1005, %v1004
  %v1064 = vpack.c.b16 %v1007, %v1006
  %v1065 = vpack.c.b16 %v1009, %v1008
  %v1066 = vpack.c.b16 %v1011, %v1010
  %v1067 = vpack.c.b16 %v1013, %v1012
  %v1068 = vpack.c.b16 %v1015, %v1014
  %v1069 = vpack.c.b16 %v1017, %v1016
  %v1070 = vpack.c.b16 %v1019, %v1018
  %v1071 = vpack.c.b16 %v1021, %v1020
  %v1072 = vpack.c.b16 %v1023, %v1022
  %v1073 = vpack.c.b16 %v1025, %v1024
  %v1074 = vpack.c.b16 %v1027, %v1026
  %v1075 = vpack.c.b16 %v1029, %v1028
  %v1076 = vpack.c.b16 %v1031, %v1030
  %v1077 = vpack.c.b16 %v1033, %v1032
  %v1078 = vpack.c.b16 %v1035, %v1034
  %v1079 = vpack.c.b16 %v1037, %v1036
  %v1080 = vpack.c.b16 %v1039, %v1038
  %v1081 = vpack.c.b16 %v1041, %v1040
  %v1082 = vpack.c.b16 %v1043, %v1042
  %v1083 = vpack.c.b16 %v1045, %v1044
  %v1084 = vpack.c.b16 %v1047, %v1046
  %v1085 = vpack.c.b16 %v1049, %v1048
  %v1086 = vpack.c.b16 %v1051, %v1050
  %v1087 = vpack.c.b16 %v1053, %v1052
  %v1088 = vpack.c.b16 %v1055, %v1054
  %v1089 = vpack.c.b16 %v1057, %v1056
  %1122 = vmatpush.bf16.msra.mxu0 %v1065
  %1123 = vmatpush.bf16.msra.mxu0 %v1064
  %1124 = vmatpush.bf16.msra.mxu0 %v1063
  %1125 = vmatpush.bf16.msra.mxu0 %v1062
  %1126 = vmatpush.bf16.msra.mxu0 %v1061
  %1127 = vmatpush.bf16.msra.mxu0 %v1060
  %1128 = vmatpush.bf16.msra.mxu0 %v1059
  %1129 = vmatpush.bf16.msra.mxu0 %v1058
  %1130 = vmatmul.bf16.gmra.mxu0 %v866
  %v1131 = vpop.f32.mrf.mxu0
  %v1132 = vadd.f32 %v731, %v1131
  %v1133 = vpop.f32.mrf.mxu0
  %v1134 = vadd.f32 %v733, %v1133
  %1135 = vmatmul.bf16.gmra.mxu0 %v870
  %v1136 = vpop.f32.mrf.mxu0
  %v1137 = vadd.f32 %v736, %v1136
  %v1138 = vpop.f32.mrf.mxu0
  %v1139 = vadd.f32 %v738, %v1138
  %1140 = vmatmul.bf16.gmra.mxu0 %v874
  %v1141 = vpop.f32.mrf.mxu0
  %v1142 = vadd.f32 %v741, %v1141
  %v1143 = vpop.f32.mrf.mxu0
  %v1144 = vadd.f32 %v743, %v1143
  %1145 = vmatmul.bf16.gmra.mxu0 %v878
  %v1146 = vpop.f32.mrf.mxu0
  %v1147 = vadd.f32 %v746, %v1146
  %v1148 = vpop.f32.mrf.mxu0
  %v1149 = vadd.f32 %v748, %v1148
  %1150 = vmatmul.bf16.gmra.mxu0 %v882
  %v1151 = vpop.f32.mrf.mxu0
  %v1152 = vadd.f32 %v751, %v1151
  %v1153 = vpop.f32.mrf.mxu0
  %v1154 = vadd.f32 %v753, %v1153
  %1155 = vmatmul.bf16.gmra.mxu0 %v886
  %v1156 = vpop.f32.mrf.mxu0
  %v1157 = vadd.f32 %v756, %v1156
  %v1158 = vpop.f32.mrf.mxu0
  %v1159 = vadd.f32 %v758, %v1158
  %1160 = vmatmul.bf16.gmra.mxu0 %v890
  %v1161 = vpop.f32.mrf.mxu0
  %v1162 = vadd.f32 %v761, %v1161
  %v1163 = vpop.f32.mrf.mxu0
  %v1164 = vadd.f32 %v763, %v1163
  %1165 = vmatmul.bf16.gmra.mxu0 %v894
  %v1166 = vpop.f32.mrf.mxu0
  %v1167 = vadd.f32 %v766, %v1166
  %v1168 = vpop.f32.mrf.mxu0
  %v1169 = vadd.f32 %v768, %v1168
  %1170 = vdwg.mxu0
  %1171 = vmatpush.bf16.msra.mxu0 %v1073
  %1172 = vmatpush.bf16.msra.mxu0 %v1072
  %1173 = vmatpush.bf16.msra.mxu0 %v1071
  %1174 = vmatpush.bf16.msra.mxu0 %v1070
  %1175 = vmatpush.bf16.msra.mxu0 %v1069
  %1176 = vmatpush.bf16.msra.mxu0 %v1068
  %1177 = vmatpush.bf16.msra.mxu0 %v1067
  %1178 = vmatpush.bf16.msra.mxu0 %v1066
  %1179 = vmatmul.bf16.gmra.mxu0 %v867
  %v1180 = vpop.f32.mrf.mxu0
  %v1181 = vadd.f32 %v1132, %v1180
  %v1182 = vpop.f32.mrf.mxu0
  %v1183 = vadd.f32 %v1134, %v1182
  %1184 = vmatmul.bf16.gmra.mxu0 %v871
  %v1185 = vpop.f32.mrf.mxu0
  %v1186 = vadd.f32 %v1137, %v1185
  %v1187 = vpop.f32.mrf.mxu0
  %v1188 = vadd.f32 %v1139, %v1187
  %1189 = vmatmul.bf16.gmra.mxu0 %v875
  %v1190 = vpop.f32.mrf.mxu0
  %v1191 = vadd.f32 %v1142, %v1190
  %v1192 = vpop.f32.mrf.mxu0
  %v1193 = vadd.f32 %v1144, %v1192
  %1194 = vmatmul.bf16.gmra.mxu0 %v879
  %v1195 = vpop.f32.mrf.mxu0
  %v1196 = vadd.f32 %v1147, %v1195
  %v1197 = vpop.f32.mrf.mxu0
  %v1198 = vadd.f32 %v1149, %v1197
  %1199 = vmatmul.bf16.gmra.mxu0 %v883
  %v1200 = vpop.f32.mrf.mxu0
  %v1201 = vadd.f32 %v1152, %v1200
  %v1202 = vpop.f32.mrf.mxu0
  %v1203 = vadd.f32 %v1154, %v1202
  %1204 = vmatmul.bf16.gmra.mxu0 %v887
  %v1205 = vpop.f32.mrf.mxu0
  %v1206 = vadd.f32 %v1157, %v1205
  %v1207 = vpop.f32.mrf.mxu0
  %v1208 = vadd.f32 %v1159, %v1207
  %1209 = vmatmul.bf16.gmra.mxu0 %v891
  %v1210 = vpop.f32.mrf.mxu0
  %v1211 = vadd.f32 %v1162, %v1210
  %v1212 = vpop.f32.mrf.mxu0
  %v1213 = vadd.f32 %v1164, %v1212
  %1214 = vmatmul.bf16.gmra.mxu0 %v895
  %v1215 = vpop.f32.mrf.mxu0
  %v1216 = vadd.f32 %v1167, %v1215
  %v1217 = vpop.f32.mrf.mxu0
  %v1218 = vadd.f32 %v1169, %v1217
  %1219 = vdwg.mxu0
  %1220 = vmatpush.bf16.msra.mxu0 %v1081
  %1221 = vmatpush.bf16.msra.mxu0 %v1080
  %1222 = vmatpush.bf16.msra.mxu0 %v1079
  %1223 = vmatpush.bf16.msra.mxu0 %v1078
  %1224 = vmatpush.bf16.msra.mxu0 %v1077
  %1225 = vmatpush.bf16.msra.mxu0 %v1076
  %1226 = vmatpush.bf16.msra.mxu0 %v1075
  %1227 = vmatpush.bf16.msra.mxu0 %v1074
  %1228 = vmatmul.bf16.gmra.mxu0 %v868
  %v1229 = vpop.f32.mrf.mxu0
  %v1230 = vadd.f32 %v1181, %v1229
  %v1231 = vpop.f32.mrf.mxu0
  %v1232 = vadd.f32 %v1183, %v1231
  %1233 = vmatmul.bf16.gmra.mxu0 %v872
  %v1234 = vpop.f32.mrf.mxu0
  %v1235 = vadd.f32 %v1186, %v1234
  %v1236 = vpop.f32.mrf.mxu0
  %v1237 = vadd.f32 %v1188, %v1236
  %1238 = vmatmul.bf16.gmra.mxu0 %v876
  %v1239 = vpop.f32.mrf.mxu0
  %v1240 = vadd.f32 %v1191, %v1239
  %v1241 = vpop.f32.mrf.mxu0
  %v1242 = vadd.f32 %v1193, %v1241
  %1243 = vmatmul.bf16.gmra.mxu0 %v880
  %v1244 = vpop.f32.mrf.mxu0
  %v1245 = vadd.f32 %v1196, %v1244
  %v1246 = vpop.f32.mrf.mxu0
  %v1247 = vadd.f32 %v1198, %v1246
  %1248 = vmatmul.bf16.gmra.mxu0 %v884
  %v1249 = vpop.f32.mrf.mxu0
  %v1250 = vadd.f32 %v1201, %v1249
  %v1251 = vpop.f32.mrf.mxu0
  %v1252 = vadd.f32 %v1203, %v1251
  %1253 = vmatmul.bf16.gmra.mxu0 %v888
  %v1254 = vpop.f32.mrf.mxu0
  %v1255 = vadd.f32 %v1206, %v1254
  %v1256 = vpop.f32.mrf.mxu0
  %v1257 = vadd.f32 %v1208, %v1256
  %1258 = vmatmul.bf16.gmra.mxu0 %v892
  %v1259 = vpop.f32.mrf.mxu0
  %v1260 = vadd.f32 %v1211, %v1259
  %v1261 = vpop.f32.mrf.mxu0
  %v1262 = vadd.f32 %v1213, %v1261
  %1263 = vmatmul.bf16.gmra.mxu0 %v896
  %v1264 = vpop.f32.mrf.mxu0
  %v1265 = vadd.f32 %v1216, %v1264
  %v1266 = vpop.f32.mrf.mxu0
  %v1267 = vadd.f32 %v1218, %v1266
  %1268 = vdwg.mxu0
  %1269 = vmatpush.bf16.msra.mxu0 %v1089
  %1270 = vmatpush.bf16.msra.mxu0 %v1088
  %1271 = vmatpush.bf16.msra.mxu0 %v1087
  %1272 = vmatpush.bf16.msra.mxu0 %v1086
  %1273 = vmatpush.bf16.msra.mxu0 %v1085
  %1274 = vmatpush.bf16.msra.mxu0 %v1084
  %1275 = vmatpush.bf16.msra.mxu0 %v1083
  %1276 = vmatpush.bf16.msra.mxu0 %v1082
  %1277 = vmatmul.bf16.gmra.mxu0 %v869
  %v1278 = vpop.f32.mrf.mxu0
  %v1279 = vadd.f32 %v1230, %v1278
  %v1280 = vpop.f32.mrf.mxu0
  %v1281 = vadd.f32 %v1232, %v1280
  %1282 = vmatmul.bf16.gmra.mxu0 %v873
  %v1283 = vpop.f32.mrf.mxu0
  %v1284 = vadd.f32 %v1235, %v1283
  %v1285 = vpop.f32.mrf.mxu0
  %v1286 = vadd.f32 %v1237, %v1285
  %1287 = vmatmul.bf16.gmra.mxu0 %v877
  %v1288 = vpop.f32.mrf.mxu0
  %v1289 = vadd.f32 %v1240, %v1288
  %v1290 = vpop.f32.mrf.mxu0
  %v1291 = vadd.f32 %v1242, %v1290
  %1292 = vmatmul.bf16.gmra.mxu0 %v881
  %v1293 = vpop.f32.mrf.mxu0
  %v1294 = vadd.f32 %v1245, %v1293
  %v1295 = vpop.f32.mrf.mxu0
  %v1296 = vadd.f32 %v1247, %v1295
  %1297 = vmatmul.bf16.gmra.mxu0 %v885
  %v1298 = vpop.f32.mrf.mxu0
  %v1299 = vadd.f32 %v1250, %v1298
  %v1300 = vpop.f32.mrf.mxu0
  %v1301 = vadd.f32 %v1252, %v1300
  %1302 = vmatmul.bf16.gmra.mxu0 %v889
  %v1303 = vpop.f32.mrf.mxu0
  %v1304 = vadd.f32 %v1255, %v1303
  %v1305 = vpop.f32.mrf.mxu0
  %v1306 = vadd.f32 %v1257, %v1305
  %1307 = vmatmul.bf16.gmra.mxu0 %v893
  %v1308 = vpop.f32.mrf.mxu0
  %v1309 = vadd.f32 %v1260, %v1308
  %v1310 = vpop.f32.mrf.mxu0
  %v1311 = vadd.f32 %v1262, %v1310
  %1312 = vmatmul.bf16.gmra.mxu0 %v897
  %v1313 = vpop.f32.mrf.mxu0
  %v1314 = vadd.f32 %v1265, %v1313
  %v1315 = vpop.f32.mrf.mxu0
  %v1316 = vadd.f32 %v1267, %v1315
  %1317 = vdwg.mxu0
  %s1318 = scalar_lea.vmem %s0, 512
  %v1319 = vld [vmem:[%s1318] sm:$0xff]
  %v1320 = vld [vmem:[%s1318 + $0x8] sm:$0xff]
  %v1321 = vld [vmem:[%s1318 + $0x10] sm:$0xff]
  %v1322 = vld [vmem:[%s1318 + $0x18] sm:$0xff]
  %v1323 = vld [vmem:[%s1318 + $0x20] sm:$0xff]
  %v1324 = vld [vmem:[%s1318 + $0x28] sm:$0xff]
  %v1325 = vld [vmem:[%s1318 + $0x30] sm:$0xff]
  %v1326 = vld [vmem:[%s1318 + $0x38] sm:$0xff]
  %v1327 = vld [vmem:[%s1318 + $0x40] sm:$0xff]
  %v1328 = vld [vmem:[%s1318 + $0x48] sm:$0xff]
  %v1329 = vld [vmem:[%s1318 + $0x50] sm:$0xff]
  %v1330 = vld [vmem:[%s1318 + $0x58] sm:$0xff]
  %v1331 = vld [vmem:[%s1318 + $0x60] sm:$0xff]
  %v1332 = vld [vmem:[%s1318 + $0x68] sm:$0xff]
  %v1333 = vld [vmem:[%s1318 + $0x70] sm:$0xff]
  %v1334 = vld [vmem:[%s1318 + $0x78] sm:$0xff]
  %v1335 = vld [vmem:[%s1318 + $0x80] sm:$0xff]
  %v1336 = vld [vmem:[%s1318 + $0x88] sm:$0xff]
  %v1337 = vld [vmem:[%s1318 + $0x90] sm:$0xff]
  %v1338 = vld [vmem:[%s1318 + $0x98] sm:$0xff]
  %v1339 = vld [vmem:[%s1318 + $0xa0] sm:$0xff]
  %v1340 = vld [vmem:[%s1318 + $0xa8] sm:$0xff]
  %v1341 = vld [vmem:[%s1318 + $0xb0] sm:$0xff]
  %v1342 = vld [vmem:[%s1318 + $0xb8] sm:$0xff]
  %v1343 = vld [vmem:[%s1318 + $0xc0] sm:$0xff]
  %v1344 = vld [vmem:[%s1318 + $0xc8] sm:$0xff]
  %v1345 = vld [vmem:[%s1318 + $0xd0] sm:$0xff]
  %v1346 = vld [vmem:[%s1318 + $0xd8] sm:$0xff]
  %v1347 = vld [vmem:[%s1318 + $0xe0] sm:$0xff]
  %v1348 = vld [vmem:[%s1318 + $0xe8] sm:$0xff]
  %v1349 = vld [vmem:[%s1318 + $0xf0] sm:$0xff]
  %v1350 = vld [vmem:[%s1318 + $0xf8] sm:$0xff]
  %s1351 = scalar_lea.vmem %s1, 512
  %v1352 = vld [vmem:[%s1351] sm:$0xf]
  %v1353 = vld [vmem:[%s1351 + $0x4] sm:$0xf]
  %v1354 = vld [vmem:[%s1351 + $0x8] sm:$0xf]
  %v1355 = vld [vmem:[%s1351 + $0xc] sm:$0xf]
  %v1356 = vld [vmem:[%s1351 + $0x10] sm:$0xf]
  %v1357 = vld [vmem:[%s1351 + $0x14] sm:$0xf]
  %v1358 = vld [vmem:[%s1351 + $0x18] sm:$0xf]
  %v1359 = vld [vmem:[%s1351 + $0x1c] sm:$0xf]
  %v1360 = vld [vmem:[%s1351 + $0x20] sm:$0xf]
  %v1361 = vld [vmem:[%s1351 + $0x24] sm:$0xf]
  %v1362 = vld [vmem:[%s1351 + $0x28] sm:$0xf]
  %v1363 = vld [vmem:[%s1351 + $0x2c] sm:$0xf]
  %v1364 = vld [vmem:[%s1351 + $0x30] sm:$0xf]
  %v1365 = vld [vmem:[%s1351 + $0x34] sm:$0xf]
  %v1366 = vld [vmem:[%s1351 + $0x38] sm:$0xf]
  %v1367 = vld [vmem:[%s1351 + $0x3c] sm:$0xf]
  %v1368 = vld [vmem:[%s1351 + $0x40] sm:$0xf]
  %v1369 = vld [vmem:[%s1351 + $0x44] sm:$0xf]
  %v1370 = vld [vmem:[%s1351 + $0x48] sm:$0xf]
  %v1371 = vld [vmem:[%s1351 + $0x4c] sm:$0xf]
  %v1372 = vld [vmem:[%s1351 + $0x50] sm:$0xf]
  %v1373 = vld [vmem:[%s1351 + $0x54] sm:$0xf]
  %v1374 = vld [vmem:[%s1351 + $0x58] sm:$0xf]
  %v1375 = vld [vmem:[%s1351 + $0x5c] sm:$0xf]
  %v1376 = vld [vmem:[%s1351 + $0x60] sm:$0xf]
  %v1377 = vld [vmem:[%s1351 + $0x64] sm:$0xf]
  %v1378 = vld [vmem:[%s1351 + $0x68] sm:$0xf]
  %v1379 = vld [vmem:[%s1351 + $0x6c] sm:$0xf]
  %v1380 = vld [vmem:[%s1351 + $0x70] sm:$0xf]
  %v1381 = vld [vmem:[%s1351 + $0x74] sm:$0xf]
  %v1382 = vld [vmem:[%s1351 + $0x78] sm:$0xf]
  %v1383 = vld [vmem:[%s1351 + $0x7c] sm:$0xf]
  %v1384 = vld [vmem:[%s1351 + $0x80] sm:$0xf]
  %v1385 = vld [vmem:[%s1351 + $0x84] sm:$0xf]
  %v1386 = vld [vmem:[%s1351 + $0x88] sm:$0xf]
  %v1387 = vld [vmem:[%s1351 + $0x8c] sm:$0xf]
  %v1388 = vld [vmem:[%s1351 + $0x90] sm:$0xf]
  %v1389 = vld [vmem:[%s1351 + $0x94] sm:$0xf]
  %v1390 = vld [vmem:[%s1351 + $0x98] sm:$0xf]
  %v1391 = vld [vmem:[%s1351 + $0x9c] sm:$0xf]
  %v1392 = vld [vmem:[%s1351 + $0xa0] sm:$0xf]
  %v1393 = vld [vmem:[%s1351 + $0xa4] sm:$0xf]
  %v1394 = vld [vmem:[%s1351 + $0xa8] sm:$0xf]
  %v1395 = vld [vmem:[%s1351 + $0xac] sm:$0xf]
  %v1396 = vld [vmem:[%s1351 + $0xb0] sm:$0xf]
  %v1397 = vld [vmem:[%s1351 + $0xb4] sm:$0xf]
  %v1398 = vld [vmem:[%s1351 + $0xb8] sm:$0xf]
  %v1399 = vld [vmem:[%s1351 + $0xbc] sm:$0xf]
  %v1400 = vld [vmem:[%s1351 + $0xc0] sm:$0xf]
  %v1401 = vld [vmem:[%s1351 + $0xc4] sm:$0xf]
  %v1402 = vld [vmem:[%s1351 + $0xc8] sm:$0xf]
  %v1403 = vld [vmem:[%s1351 + $0xcc] sm:$0xf]
  %v1404 = vld [vmem:[%s1351 + $0xd0] sm:$0xf]
  %v1405 = vld [vmem:[%s1351 + $0xd4] sm:$0xf]
  %v1406 = vld [vmem:[%s1351 + $0xd8] sm:$0xf]
  %v1407 = vld [vmem:[%s1351 + $0xdc] sm:$0xf]
  %v1408 = vld [vmem:[%s1351 + $0xe0] sm:$0xf]
  %v1409 = vld [vmem:[%s1351 + $0xe4] sm:$0xf]
  %v1410 = vld [vmem:[%s1351 + $0xe8] sm:$0xf]
  %v1411 = vld [vmem:[%s1351 + $0xec] sm:$0xf]
  %v1412 = vld [vmem:[%s1351 + $0xf0] sm:$0xf]
  %v1413 = vld [vmem:[%s1351 + $0xf4] sm:$0xf]
  %v1414 = vld [vmem:[%s1351 + $0xf8] sm:$0xf]
  %v1415 = vld [vmem:[%s1351 + $0xfc] sm:$0xf]
  %v1448 = vunpack.c.l.b16 %v1319
  %v1449 = vunpack.c.h.b16 %v1319
  %v1450 = vunpack.c.l.b16 %v1320
  %v1451 = vunpack.c.h.b16 %v1320
  %v1452 = vunpack.c.l.b16 %v1321
  %v1453 = vunpack.c.h.b16 %v1321
  %v1454 = vunpack.c.l.b16 %v1322
  %v1455 = vunpack.c.h.b16 %v1322
  %v1456 = vunpack.c.l.b16 %v1323
  %v1457 = vunpack.c.h.b16 %v1323
  %v1458 = vunpack.c.l.b16 %v1324
  %v1459 = vunpack.c.h.b16 %v1324
  %v1460 = vunpack.c.l.b16 %v1325
  %v1461 = vunpack.c.h.b16 %v1325
  %v1462 = vunpack.c.l.b16 %v1326
  %v1463 = vunpack.c.h.b16 %v1326
  %v1464 = vunpack.c.l.b16 %v1327
  %v1465 = vunpack.c.h.b16 %v1327
  %v1466 = vunpack.c.l.b16 %v1328
  %v1467 = vunpack.c.h.b16 %v1328
  %v1468 = vunpack.c.l.b16 %v1329
  %v1469 = vunpack.c.h.b16 %v1329
  %v1470 = vunpack.c.l.b16 %v1330
  %v1471 = vunpack.c.h.b16 %v1330
  %v1472 = vunpack.c.l.b16 %v1331
  %v1473 = vunpack.c.h.b16 %v1331
  %v1474 = vunpack.c.l.b16 %v1332
  %v1475 = vunpack.c.h.b16 %v1332
  %v1476 = vunpack.c.l.b16 %v1333
  %v1477 = vunpack.c.h.b16 %v1333
  %v1478 = vunpack.c.l.b16 %v1334
  %v1479 = vunpack.c.h.b16 %v1334
  %v1480 = vunpack.c.l.b16 %v1335
  %v1481 = vunpack.c.h.b16 %v1335
  %v1482 = vunpack.c.l.b16 %v1336
  %v1483 = vunpack.c.h.b16 %v1336
  %v1484 = vunpack.c.l.b16 %v1337
  %v1485 = vunpack.c.h.b16 %v1337
  %v1486 = vunpack.c.l.b16 %v1338
  %v1487 = vunpack.c.h.b16 %v1338
  %v1488 = vunpack.c.l.b16 %v1339
  %v1489 = vunpack.c.h.b16 %v1339
  %v1490 = vunpack.c.l.b16 %v1340
  %v1491 = vunpack.c.h.b16 %v1340
  %v1492 = vunpack.c.l.b16 %v1341
  %v1493 = vunpack.c.h.b16 %v1341
  %v1494 = vunpack.c.l.b16 %v1342
  %v1495 = vunpack.c.h.b16 %v1342
  %v1496 = vunpack.c.l.b16 %v1343
  %v1497 = vunpack.c.h.b16 %v1343
  %v1498 = vunpack.c.l.b16 %v1344
  %v1499 = vunpack.c.h.b16 %v1344
  %v1500 = vunpack.c.l.b16 %v1345
  %v1501 = vunpack.c.h.b16 %v1345
  %v1502 = vunpack.c.l.b16 %v1346
  %v1503 = vunpack.c.h.b16 %v1346
  %v1504 = vunpack.c.l.b16 %v1347
  %v1505 = vunpack.c.h.b16 %v1347
  %v1506 = vunpack.c.l.b16 %v1348
  %v1507 = vunpack.c.h.b16 %v1348
  %v1508 = vunpack.c.l.b16 %v1349
  %v1509 = vunpack.c.h.b16 %v1349
  %v1510 = vunpack.c.l.b16 %v1350
  %v1511 = vunpack.c.h.b16 %v1350
  %v1512 = vpack.c.b16 %v1452, %v1448
  %v1513 = vpack.c.b16 %v1453, %v1449
  %v1514 = vpack.c.b16 %v1454, %v1450
  %v1515 = vpack.c.b16 %v1455, %v1451
  %v1516 = vpack.c.b16 %v1460, %v1456
  %v1517 = vpack.c.b16 %v1461, %v1457
  %v1518 = vpack.c.b16 %v1462, %v1458
  %v1519 = vpack.c.b16 %v1463, %v1459
  %v1520 = vpack.c.b16 %v1468, %v1464
  %v1521 = vpack.c.b16 %v1469, %v1465
  %v1522 = vpack.c.b16 %v1470, %v1466
  %v1523 = vpack.c.b16 %v1471, %v1467
  %v1524 = vpack.c.b16 %v1476, %v1472
  %v1525 = vpack.c.b16 %v1477, %v1473
  %v1526 = vpack.c.b16 %v1478, %v1474
  %v1527 = vpack.c.b16 %v1479, %v1475
  %v1528 = vpack.c.b16 %v1484, %v1480
  %v1529 = vpack.c.b16 %v1485, %v1481
  %v1530 = vpack.c.b16 %v1486, %v1482
  %v1531 = vpack.c.b16 %v1487, %v1483
  %v1532 = vpack.c.b16 %v1492, %v1488
  %v1533 = vpack.c.b16 %v1493, %v1489
  %v1534 = vpack.c.b16 %v1494, %v1490
  %v1535 = vpack.c.b16 %v1495, %v1491
  %v1536 = vpack.c.b16 %v1500, %v1496
  %v1537 = vpack.c.b16 %v1501, %v1497
  %v1538 = vpack.c.b16 %v1502, %v1498
  %v1539 = vpack.c.b16 %v1503, %v1499
  %v1540 = vpack.c.b16 %v1508, %v1504
  %v1541 = vpack.c.b16 %v1509, %v1505
  %v1542 = vpack.c.b16 %v1510, %v1506
  %v1543 = vpack.c.b16 %v1511, %v1507
  %v1640 = vunpack.c.l.b16 %v1352
  %v1641 = vunpack.c.l.b16 %v1353
  %v1642 = vunpack.c.l.b16 %v1354
  %v1643 = vunpack.c.l.b16 %v1355
  %v1644 = vunpack.c.l.b16 %v1356
  %v1645 = vunpack.c.l.b16 %v1357
  %v1646 = vunpack.c.l.b16 %v1358
  %v1647 = vunpack.c.l.b16 %v1359
  %v1648 = vunpack.c.l.b16 %v1360
  %v1649 = vunpack.c.l.b16 %v1361
  %v1650 = vunpack.c.l.b16 %v1362
  %v1651 = vunpack.c.l.b16 %v1363
  %v1652 = vunpack.c.l.b16 %v1364
  %v1653 = vunpack.c.l.b16 %v1365
  %v1654 = vunpack.c.l.b16 %v1366
  %v1655 = vunpack.c.l.b16 %v1367
  %v1656 = vunpack.c.l.b16 %v1368
  %v1657 = vunpack.c.l.b16 %v1369
  %v1658 = vunpack.c.l.b16 %v1370
  %v1659 = vunpack.c.l.b16 %v1371
  %v1660 = vunpack.c.l.b16 %v1372
  %v1661 = vunpack.c.l.b16 %v1373
  %v1662 = vunpack.c.l.b16 %v1374
  %v1663 = vunpack.c.l.b16 %v1375
  %v1664 = vunpack.c.l.b16 %v1376
  %v1665 = vunpack.c.l.b16 %v1377
  %v1666 = vunpack.c.l.b16 %v1378
  %v1667 = vunpack.c.l.b16 %v1379
  %v1668 = vunpack.c.l.b16 %v1380
  %v1669 = vunpack.c.l.b16 %v1381
  %v1670 = vunpack.c.l.b16 %v1382
  %v1671 = vunpack.c.l.b16 %v1383
  %v1672 = vunpack.c.l.b16 %v1384
  %v1673 = vunpack.c.l.b16 %v1385
  %v1674 = vunpack.c.l.b16 %v1386
  %v1675 = vunpack.c.l.b16 %v1387
  %v1676 = vunpack.c.l.b16 %v1388
  %v1677 = vunpack.c.l.b16 %v1389
  %v1678 = vunpack.c.l.b16 %v1390
  %v1679 = vunpack.c.l.b16 %v1391
  %v1680 = vunpack.c.l.b16 %v1392
  %v1681 = vunpack.c.l.b16 %v1393
  %v1682 = vunpack.c.l.b16 %v1394
  %v1683 = vunpack.c.l.b16 %v1395
  %v1684 = vunpack.c.l.b16 %v1396
  %v1685 = vunpack.c.l.b16 %v1397
  %v1686 = vunpack.c.l.b16 %v1398
  %v1687 = vunpack.c.l.b16 %v1399
  %v1688 = vunpack.c.l.b16 %v1400
  %v1689 = vunpack.c.l.b16 %v1401
  %v1690 = vunpack.c.l.b16 %v1402
  %v1691 = vunpack.c.l.b16 %v1403
  %v1692 = vunpack.c.l.b16 %v1404
  %v1693 = vunpack.c.l.b16 %v1405
  %v1694 = vunpack.c.l.b16 %v1406
  %v1695 = vunpack.c.l.b16 %v1407
  %v1696 = vunpack.c.l.b16 %v1408
  %v1697 = vunpack.c.l.b16 %v1409
  %v1698 = vunpack.c.l.b16 %v1410
  %v1699 = vunpack.c.l.b16 %v1411
  %v1700 = vunpack.c.l.b16 %v1412
  %v1701 = vunpack.c.l.b16 %v1413
  %v1702 = vunpack.c.l.b16 %v1414
  %v1703 = vunpack.c.l.b16 %v1415
  %v1704 = vpack.c.b16 %v1641, %v1640
  %v1705 = vpack.c.b16 %v1643, %v1642
  %v1706 = vpack.c.b16 %v1645, %v1644
  %v1707 = vpack.c.b16 %v1647, %v1646
  %v1708 = vpack.c.b16 %v1649, %v1648
  %v1709 = vpack.c.b16 %v1651, %v1650
  %v1710 = vpack.c.b16 %v1653, %v1652
  %v1711 = vpack.c.b16 %v1655, %v1654
  %v1712 = vpack.c.b16 %v1657, %v1656
  %v1713 = vpack.c.b16 %v1659, %v1658
  %v1714 = vpack.c.b16 %v1661, %v1660
  %v1715 = vpack.c.b16 %v1663, %v1662
  %v1716 = vpack.c.b16 %v1665, %v1664
  %v1717 = vpack.c.b16 %v1667, %v1666
  %v1718 = vpack.c.b16 %v1669, %v1668
  %v1719 = vpack.c.b16 %v1671, %v1670
  %v1720 = vpack.c.b16 %v1673, %v1672
  %v1721 = vpack.c.b16 %v1675, %v1674
  %v1722 = vpack.c.b16 %v1677, %v1676
  %v1723 = vpack.c.b16 %v1679, %v1678
  %v1724 = vpack.c.b16 %v1681, %v1680
  %v1725 = vpack.c.b16 %v1683, %v1682
  %v1726 = vpack.c.b16 %v1685, %v1684
  %v1727 = vpack.c.b16 %v1687, %v1686
  %v1728 = vpack.c.b16 %v1689, %v1688
  %v1729 = vpack.c.b16 %v1691, %v1690
  %v1730 = vpack.c.b16 %v1693, %v1692
  %v1731 = vpack.c.b16 %v1695, %v1694
  %v1732 = vpack.c.b16 %v1697, %v1696
  %v1733 = vpack.c.b16 %v1699, %v1698
  %v1734 = vpack.c.b16 %v1701, %v1700
  %v1735 = vpack.c.b16 %v1703, %v1702
  %1768 = vmatpush.bf16.msra.mxu0 %v1711
  %1769 = vmatpush.bf16.msra.mxu0 %v1710
  %1770 = vmatpush.bf16.msra.mxu0 %v1709
  %1771 = vmatpush.bf16.msra.mxu0 %v1708
  %1772 = vmatpush.bf16.msra.mxu0 %v1707
  %1773 = vmatpush.bf16.msra.mxu0 %v1706
  %1774 = vmatpush.bf16.msra.mxu0 %v1705
  %1775 = vmatpush.bf16.msra.mxu0 %v1704
  %1776 = vmatmul.bf16.gmra.mxu0 %v1512
  %v1777 = vpop.f32.mrf.mxu0
  %v1778 = vadd.f32 0.0, %v1777
  %v1779 = vpop.f32.mrf.mxu0
  %v1780 = vadd.f32 0.0, %v1779
  %1781 = vmatmul.bf16.gmra.mxu0 %v1516
  %v1782 = vpop.f32.mrf.mxu0
  %v1783 = vadd.f32 0.0, %v1782
  %v1784 = vpop.f32.mrf.mxu0
  %v1785 = vadd.f32 0.0, %v1784
  %1786 = vmatmul.bf16.gmra.mxu0 %v1520
  %v1787 = vpop.f32.mrf.mxu0
  %v1788 = vadd.f32 0.0, %v1787
  %v1789 = vpop.f32.mrf.mxu0
  %v1790 = vadd.f32 0.0, %v1789
  %1791 = vmatmul.bf16.gmra.mxu0 %v1524
  %v1792 = vpop.f32.mrf.mxu0
  %v1793 = vadd.f32 0.0, %v1792
  %v1794 = vpop.f32.mrf.mxu0
  %v1795 = vadd.f32 0.0, %v1794
  %1796 = vmatmul.bf16.gmra.mxu0 %v1528
  %v1797 = vpop.f32.mrf.mxu0
  %v1798 = vadd.f32 0.0, %v1797
  %v1799 = vpop.f32.mrf.mxu0
  %v1800 = vadd.f32 0.0, %v1799
  %1801 = vmatmul.bf16.gmra.mxu0 %v1532
  %v1802 = vpop.f32.mrf.mxu0
  %v1803 = vadd.f32 0.0, %v1802
  %v1804 = vpop.f32.mrf.mxu0
  %v1805 = vadd.f32 0.0, %v1804
  %1806 = vmatmul.bf16.gmra.mxu0 %v1536
  %v1807 = vpop.f32.mrf.mxu0
  %v1808 = vadd.f32 0.0, %v1807
  %v1809 = vpop.f32.mrf.mxu0
  %v1810 = vadd.f32 0.0, %v1809
  %1811 = vmatmul.bf16.gmra.mxu0 %v1540
  %v1812 = vpop.f32.mrf.mxu0
  %v1813 = vadd.f32 0.0, %v1812
  %v1814 = vpop.f32.mrf.mxu0
  %v1815 = vadd.f32 0.0, %v1814
  %1816 = vdwg.mxu0
  %1817 = vmatpush.bf16.msra.mxu0 %v1719
  %1818 = vmatpush.bf16.msra.mxu0 %v1718
  %1819 = vmatpush.bf16.msra.mxu0 %v1717
  %1820 = vmatpush.bf16.msra.mxu0 %v1716
  %1821 = vmatpush.bf16.msra.mxu0 %v1715
  %1822 = vmatpush.bf16.msra.mxu0 %v1714
  %1823 = vmatpush.bf16.msra.mxu0 %v1713
  %1824 = vmatpush.bf16.msra.mxu0 %v1712
  %1825 = vmatmul.bf16.gmra.mxu0 %v1513
  %v1826 = vpop.f32.mrf.mxu0
  %v1827 = vadd.f32 %v1778, %v1826
  %v1828 = vpop.f32.mrf.mxu0
  %v1829 = vadd.f32 %v1780, %v1828
  %1830 = vmatmul.bf16.gmra.mxu0 %v1517
  %v1831 = vpop.f32.mrf.mxu0
  %v1832 = vadd.f32 %v1783, %v1831
  %v1833 = vpop.f32.mrf.mxu0
  %v1834 = vadd.f32 %v1785, %v1833
  %1835 = vmatmul.bf16.gmra.mxu0 %v1521
  %v1836 = vpop.f32.mrf.mxu0
  %v1837 = vadd.f32 %v1788, %v1836
  %v1838 = vpop.f32.mrf.mxu0
  %v1839 = vadd.f32 %v1790, %v1838
  %1840 = vmatmul.bf16.gmra.mxu0 %v1525
  %v1841 = vpop.f32.mrf.mxu0
  %v1842 = vadd.f32 %v1793, %v1841
  %v1843 = vpop.f32.mrf.mxu0
  %v1844 = vadd.f32 %v1795, %v1843
  %1845 = vmatmul.bf16.gmra.mxu0 %v1529
  %v1846 = vpop.f32.mrf.mxu0
  %v1847 = vadd.f32 %v1798, %v1846
  %v1848 = vpop.f32.mrf.mxu0
  %v1849 = vadd.f32 %v1800, %v1848
  %1850 = vmatmul.bf16.gmra.mxu0 %v1533
  %v1851 = vpop.f32.mrf.mxu0
  %v1852 = vadd.f32 %v1803, %v1851
  %v1853 = vpop.f32.mrf.mxu0
  %v1854 = vadd.f32 %v1805, %v1853
  %1855 = vmatmul.bf16.gmra.mxu0 %v1537
  %v1856 = vpop.f32.mrf.mxu0
  %v1857 = vadd.f32 %v1808, %v1856
  %v1858 = vpop.f32.mrf.mxu0
  %v1859 = vadd.f32 %v1810, %v1858
  %1860 = vmatmul.bf16.gmra.mxu0 %v1541
  %v1861 = vpop.f32.mrf.mxu0
  %v1862 = vadd.f32 %v1813, %v1861
  %v1863 = vpop.f32.mrf.mxu0
  %v1864 = vadd.f32 %v1815, %v1863
  %1865 = vdwg.mxu0
  %1866 = vmatpush.bf16.msra.mxu0 %v1727
  %1867 = vmatpush.bf16.msra.mxu0 %v1726
  %1868 = vmatpush.bf16.msra.mxu0 %v1725
  %1869 = vmatpush.bf16.msra.mxu0 %v1724
  %1870 = vmatpush.bf16.msra.mxu0 %v1723
  %1871 = vmatpush.bf16.msra.mxu0 %v1722
  %1872 = vmatpush.bf16.msra.mxu0 %v1721
  %1873 = vmatpush.bf16.msra.mxu0 %v1720
  %1874 = vmatmul.bf16.gmra.mxu0 %v1514
  %v1875 = vpop.f32.mrf.mxu0
  %v1876 = vadd.f32 %v1827, %v1875
  %v1877 = vpop.f32.mrf.mxu0
  %v1878 = vadd.f32 %v1829, %v1877
  %1879 = vmatmul.bf16.gmra.mxu0 %v1518
  %v1880 = vpop.f32.mrf.mxu0
  %v1881 = vadd.f32 %v1832, %v1880
  %v1882 = vpop.f32.mrf.mxu0
  %v1883 = vadd.f32 %v1834, %v1882
  %1884 = vmatmul.bf16.gmra.mxu0 %v1522
  %v1885 = vpop.f32.mrf.mxu0
  %v1886 = vadd.f32 %v1837, %v1885
  %v1887 = vpop.f32.mrf.mxu0
  %v1888 = vadd.f32 %v1839, %v1887
  %1889 = vmatmul.bf16.gmra.mxu0 %v1526
  %v1890 = vpop.f32.mrf.mxu0
  %v1891 = vadd.f32 %v1842, %v1890
  %v1892 = vpop.f32.mrf.mxu0
  %v1893 = vadd.f32 %v1844, %v1892
  %1894 = vmatmul.bf16.gmra.mxu0 %v1530
  %v1895 = vpop.f32.mrf.mxu0
  %v1896 = vadd.f32 %v1847, %v1895
  %v1897 = vpop.f32.mrf.mxu0
  %v1898 = vadd.f32 %v1849, %v1897
  %1899 = vmatmul.bf16.gmra.mxu0 %v1534
  %v1900 = vpop.f32.mrf.mxu0
  %v1901 = vadd.f32 %v1852, %v1900
  %v1902 = vpop.f32.mrf.mxu0
  %v1903 = vadd.f32 %v1854, %v1902
  %1904 = vmatmul.bf16.gmra.mxu0 %v1538
  %v1905 = vpop.f32.mrf.mxu0
  %v1906 = vadd.f32 %v1857, %v1905
  %v1907 = vpop.f32.mrf.mxu0
  %v1908 = vadd.f32 %v1859, %v1907
  %1909 = vmatmul.bf16.gmra.mxu0 %v1542
  %v1910 = vpop.f32.mrf.mxu0
  %v1911 = vadd.f32 %v1862, %v1910
  %v1912 = vpop.f32.mrf.mxu0
  %v1913 = vadd.f32 %v1864, %v1912
  %1914 = vdwg.mxu0
  %1915 = vmatpush.bf16.msra.mxu0 %v1735
  %1916 = vmatpush.bf16.msra.mxu0 %v1734
  %1917 = vmatpush.bf16.msra.mxu0 %v1733
  %1918 = vmatpush.bf16.msra.mxu0 %v1732
  %1919 = vmatpush.bf16.msra.mxu0 %v1731
  %1920 = vmatpush.bf16.msra.mxu0 %v1730
  %1921 = vmatpush.bf16.msra.mxu0 %v1729
  %1922 = vmatpush.bf16.msra.mxu0 %v1728
  %1923 = vmatmul.bf16.gmra.mxu0 %v1515
  %v1924 = vpop.f32.mrf.mxu0
  %v1925 = vadd.f32 %v1876, %v1924
  %v1926 = vpop.f32.mrf.mxu0
  %v1927 = vadd.f32 %v1878, %v1926
  %1928 = vmatmul.bf16.gmra.mxu0 %v1519
  %v1929 = vpop.f32.mrf.mxu0
  %v1930 = vadd.f32 %v1881, %v1929
  %v1931 = vpop.f32.mrf.mxu0
  %v1932 = vadd.f32 %v1883, %v1931
  %1933 = vmatmul.bf16.gmra.mxu0 %v1523
  %v1934 = vpop.f32.mrf.mxu0
  %v1935 = vadd.f32 %v1886, %v1934
  %v1936 = vpop.f32.mrf.mxu0
  %v1937 = vadd.f32 %v1888, %v1936
  %1938 = vmatmul.bf16.gmra.mxu0 %v1527
  %v1939 = vpop.f32.mrf.mxu0
  %v1940 = vadd.f32 %v1891, %v1939
  %v1941 = vpop.f32.mrf.mxu0
  %v1942 = vadd.f32 %v1893, %v1941
  %1943 = vmatmul.bf16.gmra.mxu0 %v1531
  %v1944 = vpop.f32.mrf.mxu0
  %v1945 = vadd.f32 %v1896, %v1944
  %v1946 = vpop.f32.mrf.mxu0
  %v1947 = vadd.f32 %v1898, %v1946
  %1948 = vmatmul.bf16.gmra.mxu0 %v1535
  %v1949 = vpop.f32.mrf.mxu0
  %v1950 = vadd.f32 %v1901, %v1949
  %v1951 = vpop.f32.mrf.mxu0
  %v1952 = vadd.f32 %v1903, %v1951
  %1953 = vmatmul.bf16.gmra.mxu0 %v1539
  %v1954 = vpop.f32.mrf.mxu0
  %v1955 = vadd.f32 %v1906, %v1954
  %v1956 = vpop.f32.mrf.mxu0
  %v1957 = vadd.f32 %v1908, %v1956
  %1958 = vmatmul.bf16.gmra.mxu0 %v1543
  %v1959 = vpop.f32.mrf.mxu0
  %v1960 = vadd.f32 %v1911, %v1959
  %v1961 = vpop.f32.mrf.mxu0
  %v1962 = vadd.f32 %v1913, %v1961
  %1963 = vdwg.mxu0
  %v1964 = vadd.f32 %v1279, %v1925
  %v1965 = vadd.f32 %v1281, %v1927
  %v1966 = vadd.f32 %v1284, %v1930
  %v1967 = vadd.f32 %v1286, %v1932
  %v1968 = vadd.f32 %v1289, %v1935
  %v1969 = vadd.f32 %v1291, %v1937
  %v1970 = vadd.f32 %v1294, %v1940
  %v1971 = vadd.f32 %v1296, %v1942
  %v1972 = vadd.f32 %v1299, %v1945
  %v1973 = vadd.f32 %v1301, %v1947
  %v1974 = vadd.f32 %v1304, %v1950
  %v1975 = vadd.f32 %v1306, %v1952
  %v1976 = vadd.f32 %v1309, %v1955
  %v1977 = vadd.f32 %v1311, %v1957
  %v1978 = vadd.f32 %v1314, %v1960
  %v1979 = vadd.f32 %v1316, %v1962
  %s1980 = scalar_lea.vmem %s0, 768
  %v1981 = vld [vmem:[%s1980] sm:$0xff]
  %v1982 = vld [vmem:[%s1980 + $0x8] sm:$0xff]
  %v1983 = vld [vmem:[%s1980 + $0x10] sm:$0xff]
  %v1984 = vld [vmem:[%s1980 + $0x18] sm:$0xff]
  %v1985 = vld [vmem:[%s1980 + $0x20] sm:$0xff]
  %v1986 = vld [vmem:[%s1980 + $0x28] sm:$0xff]
  %v1987 = vld [vmem:[%s1980 + $0x30] sm:$0xff]
  %v1988 = vld [vmem:[%s1980 + $0x38] sm:$0xff]
  %v1989 = vld [vmem:[%s1980 + $0x40] sm:$0xff]
  %v1990 = vld [vmem:[%s1980 + $0x48] sm:$0xff]
  %v1991 = vld [vmem:[%s1980 + $0x50] sm:$0xff]
  %v1992 = vld [vmem:[%s1980 + $0x58] sm:$0xff]
  %v1993 = vld [vmem:[%s1980 + $0x60] sm:$0xff]
  %v1994 = vld [vmem:[%s1980 + $0x68] sm:$0xff]
  %v1995 = vld [vmem:[%s1980 + $0x70] sm:$0xff]
  %v1996 = vld [vmem:[%s1980 + $0x78] sm:$0xff]
  %v1997 = vld [vmem:[%s1980 + $0x80] sm:$0xff]
  %v1998 = vld [vmem:[%s1980 + $0x88] sm:$0xff]
  %v1999 = vld [vmem:[%s1980 + $0x90] sm:$0xff]
  %v2000 = vld [vmem:[%s1980 + $0x98] sm:$0xff]
  %v2001 = vld [vmem:[%s1980 + $0xa0] sm:$0xff]
  %v2002 = vld [vmem:[%s1980 + $0xa8] sm:$0xff]
  %v2003 = vld [vmem:[%s1980 + $0xb0] sm:$0xff]
  %v2004 = vld [vmem:[%s1980 + $0xb8] sm:$0xff]
  %v2005 = vld [vmem:[%s1980 + $0xc0] sm:$0xff]
  %v2006 = vld [vmem:[%s1980 + $0xc8] sm:$0xff]
  %v2007 = vld [vmem:[%s1980 + $0xd0] sm:$0xff]
  %v2008 = vld [vmem:[%s1980 + $0xd8] sm:$0xff]
  %v2009 = vld [vmem:[%s1980 + $0xe0] sm:$0xff]
  %v2010 = vld [vmem:[%s1980 + $0xe8] sm:$0xff]
  %v2011 = vld [vmem:[%s1980 + $0xf0] sm:$0xff]
  %v2012 = vld [vmem:[%s1980 + $0xf8] sm:$0xff]
  %s2013 = scalar_lea.vmem %s1, 768
  %v2014 = vld [vmem:[%s2013] sm:$0xf]
  %v2015 = vld [vmem:[%s2013 + $0x4] sm:$0xf]
  %v2016 = vld [vmem:[%s2013 + $0x8] sm:$0xf]
  %v2017 = vld [vmem:[%s2013 + $0xc] sm:$0xf]
  %v2018 = vld [vmem:[%s2013 + $0x10] sm:$0xf]
  %v2019 = vld [vmem:[%s2013 + $0x14] sm:$0xf]
  %v2020 = vld [vmem:[%s2013 + $0x18] sm:$0xf]
  %v2021 = vld [vmem:[%s2013 + $0x1c] sm:$0xf]
  %v2022 = vld [vmem:[%s2013 + $0x20] sm:$0xf]
  %v2023 = vld [vmem:[%s2013 + $0x24] sm:$0xf]
  %v2024 = vld [vmem:[%s2013 + $0x28] sm:$0xf]
  %v2025 = vld [vmem:[%s2013 + $0x2c] sm:$0xf]
  %v2026 = vld [vmem:[%s2013 + $0x30] sm:$0xf]
  %v2027 = vld [vmem:[%s2013 + $0x34] sm:$0xf]
  %v2028 = vld [vmem:[%s2013 + $0x38] sm:$0xf]
  %v2029 = vld [vmem:[%s2013 + $0x3c] sm:$0xf]
  %v2030 = vld [vmem:[%s2013 + $0x40] sm:$0xf]
  %v2031 = vld [vmem:[%s2013 + $0x44] sm:$0xf]
  %v2032 = vld [vmem:[%s2013 + $0x48] sm:$0xf]
  %v2033 = vld [vmem:[%s2013 + $0x4c] sm:$0xf]
  %v2034 = vld [vmem:[%s2013 + $0x50] sm:$0xf]
  %v2035 = vld [vmem:[%s2013 + $0x54] sm:$0xf]
  %v2036 = vld [vmem:[%s2013 + $0x58] sm:$0xf]
  %v2037 = vld [vmem:[%s2013 + $0x5c] sm:$0xf]
  %v2038 = vld [vmem:[%s2013 + $0x60] sm:$0xf]
  %v2039 = vld [vmem:[%s2013 + $0x64] sm:$0xf]
  %v2040 = vld [vmem:[%s2013 + $0x68] sm:$0xf]
  %v2041 = vld [vmem:[%s2013 + $0x6c] sm:$0xf]
  %v2042 = vld [vmem:[%s2013 + $0x70] sm:$0xf]
  %v2043 = vld [vmem:[%s2013 + $0x74] sm:$0xf]
  %v2044 = vld [vmem:[%s2013 + $0x78] sm:$0xf]
  %v2045 = vld [vmem:[%s2013 + $0x7c] sm:$0xf]
  %v2046 = vld [vmem:[%s2013 + $0x80] sm:$0xf]
  %v2047 = vld [vmem:[%s2013 + $0x84] sm:$0xf]
  %v2048 = vld [vmem:[%s2013 + $0x88] sm:$0xf]
  %v2049 = vld [vmem:[%s2013 + $0x8c] sm:$0xf]
  %v2050 = vld [vmem:[%s2013 + $0x90] sm:$0xf]
  %v2051 = vld [vmem:[%s2013 + $0x94] sm:$0xf]
  %v2052 = vld [vmem:[%s2013 + $0x98] sm:$0xf]
  %v2053 = vld [vmem:[%s2013 + $0x9c] sm:$0xf]
  %v2054 = vld [vmem:[%s2013 + $0xa0] sm:$0xf]
  %v2055 = vld [vmem:[%s2013 + $0xa4] sm:$0xf]
  %v2056 = vld [vmem:[%s2013 + $0xa8] sm:$0xf]
  %v2057 = vld [vmem:[%s2013 + $0xac] sm:$0xf]
  %v2058 = vld [vmem:[%s2013 + $0xb0] sm:$0xf]
  %v2059 = vld [vmem:[%s2013 + $0xb4] sm:$0xf]
  %v2060 = vld [vmem:[%s2013 + $0xb8] sm:$0xf]
  %v2061 = vld [vmem:[%s2013 + $0xbc] sm:$0xf]
  %v2062 = vld [vmem:[%s2013 + $0xc0] sm:$0xf]
  %v2063 = vld [vmem:[%s2013 + $0xc4] sm:$0xf]
  %v2064 = vld [vmem:[%s2013 + $0xc8] sm:$0xf]
  %v2065 = vld [vmem:[%s2013 + $0xcc] sm:$0xf]
  %v2066 = vld [vmem:[%s2013 + $0xd0] sm:$0xf]
  %v2067 = vld [vmem:[%s2013 + $0xd4] sm:$0xf]
  %v2068 = vld [vmem:[%s2013 + $0xd8] sm:$0xf]
  %v2069 = vld [vmem:[%s2013 + $0xdc] sm:$0xf]
  %v2070 = vld [vmem:[%s2013 + $0xe0] sm:$0xf]
  %v2071 = vld [vmem:[%s2013 + $0xe4] sm:$0xf]
  %v2072 = vld [vmem:[%s2013 + $0xe8] sm:$0xf]
  %v2073 = vld [vmem:[%s2013 + $0xec] sm:$0xf]
  %v2074 = vld [vmem:[%s2013 + $0xf0] sm:$0xf]
  %v2075 = vld [vmem:[%s2013 + $0xf4] sm:$0xf]
  %v2076 = vld [vmem:[%s2013 + $0xf8] sm:$0xf]
  %v2077 = vld [vmem:[%s2013 + $0xfc] sm:$0xf]
  %v2110 = vunpack.c.l.b16 %v1981
  %v2111 = vunpack.c.h.b16 %v1981
  %v2112 = vunpack.c.l.b16 %v1982
  %v2113 = vunpack.c.h.b16 %v1982
  %v2114 = vunpack.c.l.b16 %v1983
  %v2115 = vunpack.c.h.b16 %v1983
  %v2116 = vunpack.c.l.b16 %v1984
  %v2117 = vunpack.c.h.b16 %v1984
  %v2118 = vunpack.c.l.b16 %v1985
  %v2119 = vunpack.c.h.b16 %v1985
  %v2120 = vunpack.c.l.b16 %v1986
  %v2121 = vunpack.c.h.b16 %v1986
  %v2122 = vunpack.c.l.b16 %v1987
  %v2123 = vunpack.c.h.b16 %v1987
  %v2124 = vunpack.c.l.b16 %v1988
  %v2125 = vunpack.c.h.b16 %v1988
  %v2126 = vunpack.c.l.b16 %v1989
  %v2127 = vunpack.c.h.b16 %v1989
  %v2128 = vunpack.c.l.b16 %v1990
  %v2129 = vunpack.c.h.b16 %v1990
  %v2130 = vunpack.c.l.b16 %v1991
  %v2131 = vunpack.c.h.b16 %v1991
  %v2132 = vunpack.c.l.b16 %v1992
  %v2133 = vunpack.c.h.b16 %v1992
  %v2134 = vunpack.c.l.b16 %v1993
  %v2135 = vunpack.c.h.b16 %v1993
  %v2136 = vunpack.c.l.b16 %v1994
  %v2137 = vunpack.c.h.b16 %v1994
  %v2138 = vunpack.c.l.b16 %v1995
  %v2139 = vunpack.c.h.b16 %v1995
  %v2140 = vunpack.c.l.b16 %v1996
  %v2141 = vunpack.c.h.b16 %v1996
  %v2142 = vunpack.c.l.b16 %v1997
  %v2143 = vunpack.c.h.b16 %v1997
  %v2144 = vunpack.c.l.b16 %v1998
  %v2145 = vunpack.c.h.b16 %v1998
  %v2146 = vunpack.c.l.b16 %v1999
  %v2147 = vunpack.c.h.b16 %v1999
  %v2148 = vunpack.c.l.b16 %v2000
  %v2149 = vunpack.c.h.b16 %v2000
  %v2150 = vunpack.c.l.b16 %v2001
  %v2151 = vunpack.c.h.b16 %v2001
  %v2152 = vunpack.c.l.b16 %v2002
  %v2153 = vunpack.c.h.b16 %v2002
  %v2154 = vunpack.c.l.b16 %v2003
  %v2155 = vunpack.c.h.b16 %v2003
  %v2156 = vunpack.c.l.b16 %v2004
  %v2157 = vunpack.c.h.b16 %v2004
  %v2158 = vunpack.c.l.b16 %v2005
  %v2159 = vunpack.c.h.b16 %v2005
  %v2160 = vunpack.c.l.b16 %v2006
  %v2161 = vunpack.c.h.b16 %v2006
  %v2162 = vunpack.c.l.b16 %v2007
  %v2163 = vunpack.c.h.b16 %v2007
  %v2164 = vunpack.c.l.b16 %v2008
  %v2165 = vunpack.c.h.b16 %v2008
  %v2166 = vunpack.c.l.b16 %v2009
  %v2167 = vunpack.c.h.b16 %v2009
  %v2168 = vunpack.c.l.b16 %v2010
  %v2169 = vunpack.c.h.b16 %v2010
  %v2170 = vunpack.c.l.b16 %v2011
  %v2171 = vunpack.c.h.b16 %v2011
  %v2172 = vunpack.c.l.b16 %v2012
  %v2173 = vunpack.c.h.b16 %v2012
  %v2174 = vpack.c.b16 %v2114, %v2110
  %v2175 = vpack.c.b16 %v2115, %v2111
  %v2176 = vpack.c.b16 %v2116, %v2112
  %v2177 = vpack.c.b16 %v2117, %v2113
  %v2178 = vpack.c.b16 %v2122, %v2118
  %v2179 = vpack.c.b16 %v2123, %v2119
  %v2180 = vpack.c.b16 %v2124, %v2120
  %v2181 = vpack.c.b16 %v2125, %v2121
  %v2182 = vpack.c.b16 %v2130, %v2126
  %v2183 = vpack.c.b16 %v2131, %v2127
  %v2184 = vpack.c.b16 %v2132, %v2128
  %v2185 = vpack.c.b16 %v2133, %v2129
  %v2186 = vpack.c.b16 %v2138, %v2134
  %v2187 = vpack.c.b16 %v2139, %v2135
  %v2188 = vpack.c.b16 %v2140, %v2136
  %v2189 = vpack.c.b16 %v2141, %v2137
  %v2190 = vpack.c.b16 %v2146, %v2142
  %v2191 = vpack.c.b16 %v2147, %v2143
  %v2192 = vpack.c.b16 %v2148, %v2144
  %v2193 = vpack.c.b16 %v2149, %v2145
  %v2194 = vpack.c.b16 %v2154, %v2150
  %v2195 = vpack.c.b16 %v2155, %v2151
  %v2196 = vpack.c.b16 %v2156, %v2152
  %v2197 = vpack.c.b16 %v2157, %v2153
  %v2198 = vpack.c.b16 %v2162, %v2158
  %v2199 = vpack.c.b16 %v2163, %v2159
  %v2200 = vpack.c.b16 %v2164, %v2160
  %v2201 = vpack.c.b16 %v2165, %v2161
  %v2202 = vpack.c.b16 %v2170, %v2166
  %v2203 = vpack.c.b16 %v2171, %v2167
  %v2204 = vpack.c.b16 %v2172, %v2168
  %v2205 = vpack.c.b16 %v2173, %v2169
  %v2302 = vunpack.c.l.b16 %v2014
  %v2303 = vunpack.c.l.b16 %v2015
  %v2304 = vunpack.c.l.b16 %v2016
  %v2305 = vunpack.c.l.b16 %v2017
  %v2306 = vunpack.c.l.b16 %v2018
  %v2307 = vunpack.c.l.b16 %v2019
  %v2308 = vunpack.c.l.b16 %v2020
  %v2309 = vunpack.c.l.b16 %v2021
  %v2310 = vunpack.c.l.b16 %v2022
  %v2311 = vunpack.c.l.b16 %v2023
  %v2312 = vunpack.c.l.b16 %v2024
  %v2313 = vunpack.c.l.b16 %v2025
  %v2314 = vunpack.c.l.b16 %v2026
  %v2315 = vunpack.c.l.b16 %v2027
  %v2316 = vunpack.c.l.b16 %v2028
  %v2317 = vunpack.c.l.b16 %v2029
  %v2318 = vunpack.c.l.b16 %v2030
  %v2319 = vunpack.c.l.b16 %v2031
  %v2320 = vunpack.c.l.b16 %v2032
  %v2321 = vunpack.c.l.b16 %v2033
  %v2322 = vunpack.c.l.b16 %v2034
  %v2323 = vunpack.c.l.b16 %v2035
  %v2324 = vunpack.c.l.b16 %v2036
  %v2325 = vunpack.c.l.b16 %v2037
  %v2326 = vunpack.c.l.b16 %v2038
  %v2327 = vunpack.c.l.b16 %v2039
  %v2328 = vunpack.c.l.b16 %v2040
  %v2329 = vunpack.c.l.b16 %v2041
  %v2330 = vunpack.c.l.b16 %v2042
  %v2331 = vunpack.c.l.b16 %v2043
  %v2332 = vunpack.c.l.b16 %v2044
  %v2333 = vunpack.c.l.b16 %v2045
  %v2334 = vunpack.c.l.b16 %v2046
  %v2335 = vunpack.c.l.b16 %v2047
  %v2336 = vunpack.c.l.b16 %v2048
  %v2337 = vunpack.c.l.b16 %v2049
  %v2338 = vunpack.c.l.b16 %v2050
  %v2339 = vunpack.c.l.b16 %v2051
  %v2340 = vunpack.c.l.b16 %v2052
  %v2341 = vunpack.c.l.b16 %v2053
  %v2342 = vunpack.c.l.b16 %v2054
  %v2343 = vunpack.c.l.b16 %v2055
  %v2344 = vunpack.c.l.b16 %v2056
  %v2345 = vunpack.c.l.b16 %v2057
  %v2346 = vunpack.c.l.b16 %v2058
  %v2347 = vunpack.c.l.b16 %v2059
  %v2348 = vunpack.c.l.b16 %v2060
  %v2349 = vunpack.c.l.b16 %v2061
  %v2350 = vunpack.c.l.b16 %v2062
  %v2351 = vunpack.c.l.b16 %v2063
  %v2352 = vunpack.c.l.b16 %v2064
  %v2353 = vunpack.c.l.b16 %v2065
  %v2354 = vunpack.c.l.b16 %v2066
  %v2355 = vunpack.c.l.b16 %v2067
  %v2356 = vunpack.c.l.b16 %v2068
  %v2357 = vunpack.c.l.b16 %v2069
  %v2358 = vunpack.c.l.b16 %v2070
  %v2359 = vunpack.c.l.b16 %v2071
  %v2360 = vunpack.c.l.b16 %v2072
  %v2361 = vunpack.c.l.b16 %v2073
  %v2362 = vunpack.c.l.b16 %v2074
  %v2363 = vunpack.c.l.b16 %v2075
  %v2364 = vunpack.c.l.b16 %v2076
  %v2365 = vunpack.c.l.b16 %v2077
  %v2366 = vpack.c.b16 %v2303, %v2302
  %v2367 = vpack.c.b16 %v2305, %v2304
  %v2368 = vpack.c.b16 %v2307, %v2306
  %v2369 = vpack.c.b16 %v2309, %v2308
  %v2370 = vpack.c.b16 %v2311, %v2310
  %v2371 = vpack.c.b16 %v2313, %v2312
  %v2372 = vpack.c.b16 %v2315, %v2314
  %v2373 = vpack.c.b16 %v2317, %v2316
  %v2374 = vpack.c.b16 %v2319, %v2318
  %v2375 = vpack.c.b16 %v2321, %v2320
  %v2376 = vpack.c.b16 %v2323, %v2322
  %v2377 = vpack.c.b16 %v2325, %v2324
  %v2378 = vpack.c.b16 %v2327, %v2326
  %v2379 = vpack.c.b16 %v2329, %v2328
  %v2380 = vpack.c.b16 %v2331, %v2330
  %v2381 = vpack.c.b16 %v2333, %v2332
  %v2382 = vpack.c.b16 %v2335, %v2334
  %v2383 = vpack.c.b16 %v2337, %v2336
  %v2384 = vpack.c.b16 %v2339, %v2338
  %v2385 = vpack.c.b16 %v2341, %v2340
  %v2386 = vpack.c.b16 %v2343, %v2342
  %v2387 = vpack.c.b16 %v2345, %v2344
  %v2388 = vpack.c.b16 %v2347, %v2346
  %v2389 = vpack.c.b16 %v2349, %v2348
  %v2390 = vpack.c.b16 %v2351, %v2350
  %v2391 = vpack.c.b16 %v2353, %v2352
  %v2392 = vpack.c.b16 %v2355, %v2354
  %v2393 = vpack.c.b16 %v2357, %v2356
  %v2394 = vpack.c.b16 %v2359, %v2358
  %v2395 = vpack.c.b16 %v2361, %v2360
  %v2396 = vpack.c.b16 %v2363, %v2362
  %v2397 = vpack.c.b16 %v2365, %v2364
  %2430 = vmatpush.bf16.msra.mxu0 %v2373
  %2431 = vmatpush.bf16.msra.mxu0 %v2372
  %2432 = vmatpush.bf16.msra.mxu0 %v2371
  %2433 = vmatpush.bf16.msra.mxu0 %v2370
  %2434 = vmatpush.bf16.msra.mxu0 %v2369
  %2435 = vmatpush.bf16.msra.mxu0 %v2368
  %2436 = vmatpush.bf16.msra.mxu0 %v2367
  %2437 = vmatpush.bf16.msra.mxu0 %v2366
  %2438 = vmatmul.bf16.gmra.mxu0 %v2174
  %v2439 = vpop.f32.mrf.mxu0
  %v2440 = vadd.f32 0.0, %v2439
  %v2441 = vpop.f32.mrf.mxu0
  %v2442 = vadd.f32 0.0, %v2441
  %2443 = vmatmul.bf16.gmra.mxu0 %v2178
  %v2444 = vpop.f32.mrf.mxu0
  %v2445 = vadd.f32 0.0, %v2444
  %v2446 = vpop.f32.mrf.mxu0
  %v2447 = vadd.f32 0.0, %v2446
  %2448 = vmatmul.bf16.gmra.mxu0 %v2182
  %v2449 = vpop.f32.mrf.mxu0
  %v2450 = vadd.f32 0.0, %v2449
  %v2451 = vpop.f32.mrf.mxu0
  %v2452 = vadd.f32 0.0, %v2451
  %2453 = vmatmul.bf16.gmra.mxu0 %v2186
  %v2454 = vpop.f32.mrf.mxu0
  %v2455 = vadd.f32 0.0, %v2454
  %v2456 = vpop.f32.mrf.mxu0
  %v2457 = vadd.f32 0.0, %v2456
  %2458 = vmatmul.bf16.gmra.mxu0 %v2190
  %v2459 = vpop.f32.mrf.mxu0
  %v2460 = vadd.f32 0.0, %v2459
  %v2461 = vpop.f32.mrf.mxu0
  %v2462 = vadd.f32 0.0, %v2461
  %2463 = vmatmul.bf16.gmra.mxu0 %v2194
  %v2464 = vpop.f32.mrf.mxu0
  %v2465 = vadd.f32 0.0, %v2464
  %v2466 = vpop.f32.mrf.mxu0
  %v2467 = vadd.f32 0.0, %v2466
  %2468 = vmatmul.bf16.gmra.mxu0 %v2198
  %v2469 = vpop.f32.mrf.mxu0
  %v2470 = vadd.f32 0.0, %v2469
  %v2471 = vpop.f32.mrf.mxu0
  %v2472 = vadd.f32 0.0, %v2471
  %2473 = vmatmul.bf16.gmra.mxu0 %v2202
  %v2474 = vpop.f32.mrf.mxu0
  %v2475 = vadd.f32 0.0, %v2474
  %v2476 = vpop.f32.mrf.mxu0
  %v2477 = vadd.f32 0.0, %v2476
  %2478 = vdwg.mxu0
  %2479 = vmatpush.bf16.msra.mxu0 %v2381
  %2480 = vmatpush.bf16.msra.mxu0 %v2380
  %2481 = vmatpush.bf16.msra.mxu0 %v2379
  %2482 = vmatpush.bf16.msra.mxu0 %v2378
  %2483 = vmatpush.bf16.msra.mxu0 %v2377
  %2484 = vmatpush.bf16.msra.mxu0 %v2376
  %2485 = vmatpush.bf16.msra.mxu0 %v2375
  %2486 = vmatpush.bf16.msra.mxu0 %v2374
  %2487 = vmatmul.bf16.gmra.mxu0 %v2175
  %v2488 = vpop.f32.mrf.mxu0
  %v2489 = vadd.f32 %v2440, %v2488
  %v2490 = vpop.f32.mrf.mxu0
  %v2491 = vadd.f32 %v2442, %v2490
  %2492 = vmatmul.bf16.gmra.mxu0 %v2179
  %v2493 = vpop.f32.mrf.mxu0
  %v2494 = vadd.f32 %v2445, %v2493
  %v2495 = vpop.f32.mrf.mxu0
  %v2496 = vadd.f32 %v2447, %v2495
  %2497 = vmatmul.bf16.gmra.mxu0 %v2183
  %v2498 = vpop.f32.mrf.mxu0
  %v2499 = vadd.f32 %v2450, %v2498
  %v2500 = vpop.f32.mrf.mxu0
  %v2501 = vadd.f32 %v2452, %v2500
  %2502 = vmatmul.bf16.gmra.mxu0 %v2187
  %v2503 = vpop.f32.mrf.mxu0
  %v2504 = vadd.f32 %v2455, %v2503
  %v2505 = vpop.f32.mrf.mxu0
  %v2506 = vadd.f32 %v2457, %v2505
  %2507 = vmatmul.bf16.gmra.mxu0 %v2191
  %v2508 = vpop.f32.mrf.mxu0
  %v2509 = vadd.f32 %v2460, %v2508
  %v2510 = vpop.f32.mrf.mxu0
  %v2511 = vadd.f32 %v2462, %v2510
  %2512 = vmatmul.bf16.gmra.mxu0 %v2195
  %v2513 = vpop.f32.mrf.mxu0
  %v2514 = vadd.f32 %v2465, %v2513
  %v2515 = vpop.f32.mrf.mxu0
  %v2516 = vadd.f32 %v2467, %v2515
  %2517 = vmatmul.bf16.gmra.mxu0 %v2199
  %v2518 = vpop.f32.mrf.mxu0
  %v2519 = vadd.f32 %v2470, %v2518
  %v2520 = vpop.f32.mrf.mxu0
  %v2521 = vadd.f32 %v2472, %v2520
  %2522 = vmatmul.bf16.gmra.mxu0 %v2203
  %v2523 = vpop.f32.mrf.mxu0
  %v2524 = vadd.f32 %v2475, %v2523
  %v2525 = vpop.f32.mrf.mxu0
  %v2526 = vadd.f32 %v2477, %v2525
  %2527 = vdwg.mxu0
  %2528 = vmatpush.bf16.msra.mxu0 %v2389
  %2529 = vmatpush.bf16.msra.mxu0 %v2388
  %2530 = vmatpush.bf16.msra.mxu0 %v2387
  %2531 = vmatpush.bf16.msra.mxu0 %v2386
  %2532 = vmatpush.bf16.msra.mxu0 %v2385
  %2533 = vmatpush.bf16.msra.mxu0 %v2384
  %2534 = vmatpush.bf16.msra.mxu0 %v2383
  %2535 = vmatpush.bf16.msra.mxu0 %v2382
  %2536 = vmatmul.bf16.gmra.mxu0 %v2176
  %v2537 = vpop.f32.mrf.mxu0
  %v2538 = vadd.f32 %v2489, %v2537
  %v2539 = vpop.f32.mrf.mxu0
  %v2540 = vadd.f32 %v2491, %v2539
  %2541 = vmatmul.bf16.gmra.mxu0 %v2180
  %v2542 = vpop.f32.mrf.mxu0
  %v2543 = vadd.f32 %v2494, %v2542
  %v2544 = vpop.f32.mrf.mxu0
  %v2545 = vadd.f32 %v2496, %v2544
  %2546 = vmatmul.bf16.gmra.mxu0 %v2184
  %v2547 = vpop.f32.mrf.mxu0
  %v2548 = vadd.f32 %v2499, %v2547
  %v2549 = vpop.f32.mrf.mxu0
  %v2550 = vadd.f32 %v2501, %v2549
  %2551 = vmatmul.bf16.gmra.mxu0 %v2188
  %v2552 = vpop.f32.mrf.mxu0
  %v2553 = vadd.f32 %v2504, %v2552
  %v2554 = vpop.f32.mrf.mxu0
  %v2555 = vadd.f32 %v2506, %v2554
  %2556 = vmatmul.bf16.gmra.mxu0 %v2192
  %v2557 = vpop.f32.mrf.mxu0
  %v2558 = vadd.f32 %v2509, %v2557
  %v2559 = vpop.f32.mrf.mxu0
  %v2560 = vadd.f32 %v2511, %v2559
  %2561 = vmatmul.bf16.gmra.mxu0 %v2196
  %v2562 = vpop.f32.mrf.mxu0
  %v2563 = vadd.f32 %v2514, %v2562
  %v2564 = vpop.f32.mrf.mxu0
  %v2565 = vadd.f32 %v2516, %v2564
  %2566 = vmatmul.bf16.gmra.mxu0 %v2200
  %v2567 = vpop.f32.mrf.mxu0
  %v2568 = vadd.f32 %v2519, %v2567
  %v2569 = vpop.f32.mrf.mxu0
  %v2570 = vadd.f32 %v2521, %v2569
  %2571 = vmatmul.bf16.gmra.mxu0 %v2204
  %v2572 = vpop.f32.mrf.mxu0
  %v2573 = vadd.f32 %v2524, %v2572
  %v2574 = vpop.f32.mrf.mxu0
  %v2575 = vadd.f32 %v2526, %v2574
  %2576 = vdwg.mxu0
  %2577 = vmatpush.bf16.msra.mxu0 %v2397
  %2578 = vmatpush.bf16.msra.mxu0 %v2396
  %2579 = vmatpush.bf16.msra.mxu0 %v2395
  %2580 = vmatpush.bf16.msra.mxu0 %v2394
  %2581 = vmatpush.bf16.msra.mxu0 %v2393
  %2582 = vmatpush.bf16.msra.mxu0 %v2392
  %2583 = vmatpush.bf16.msra.mxu0 %v2391
  %2584 = vmatpush.bf16.msra.mxu0 %v2390
  %2585 = vmatmul.bf16.gmra.mxu0 %v2177
  %v2586 = vpop.f32.mrf.mxu0
  %v2587 = vadd.f32 %v2538, %v2586
  %v2588 = vpop.f32.mrf.mxu0
  %v2589 = vadd.f32 %v2540, %v2588
  %2590 = vmatmul.bf16.gmra.mxu0 %v2181
  %v2591 = vpop.f32.mrf.mxu0
  %v2592 = vadd.f32 %v2543, %v2591
  %v2593 = vpop.f32.mrf.mxu0
  %v2594 = vadd.f32 %v2545, %v2593
  %2595 = vmatmul.bf16.gmra.mxu0 %v2185
  %v2596 = vpop.f32.mrf.mxu0
  %v2597 = vadd.f32 %v2548, %v2596
  %v2598 = vpop.f32.mrf.mxu0
  %v2599 = vadd.f32 %v2550, %v2598
  %2600 = vmatmul.bf16.gmra.mxu0 %v2189
  %v2601 = vpop.f32.mrf.mxu0
  %v2602 = vadd.f32 %v2553, %v2601
  %v2603 = vpop.f32.mrf.mxu0
  %v2604 = vadd.f32 %v2555, %v2603
  %2605 = vmatmul.bf16.gmra.mxu0 %v2193
  %v2606 = vpop.f32.mrf.mxu0
  %v2607 = vadd.f32 %v2558, %v2606
  %v2608 = vpop.f32.mrf.mxu0
  %v2609 = vadd.f32 %v2560, %v2608
  %2610 = vmatmul.bf16.gmra.mxu0 %v2197
  %v2611 = vpop.f32.mrf.mxu0
  %v2612 = vadd.f32 %v2563, %v2611
  %v2613 = vpop.f32.mrf.mxu0
  %v2614 = vadd.f32 %v2565, %v2613
  %2615 = vmatmul.bf16.gmra.mxu0 %v2201
  %v2616 = vpop.f32.mrf.mxu0
  %v2617 = vadd.f32 %v2568, %v2616
  %v2618 = vpop.f32.mrf.mxu0
  %v2619 = vadd.f32 %v2570, %v2618
  %2620 = vmatmul.bf16.gmra.mxu0 %v2205
  %v2621 = vpop.f32.mrf.mxu0
  %v2622 = vadd.f32 %v2573, %v2621
  %v2623 = vpop.f32.mrf.mxu0
  %v2624 = vadd.f32 %v2575, %v2623
  %2625 = vdwg.mxu0
  %v2626 = vadd.f32 %v1964, %v2587
  %v2627 = vadd.f32 %v1965, %v2589
  %v2628 = vadd.f32 %v1966, %v2592
  %v2629 = vadd.f32 %v1967, %v2594
  %v2630 = vadd.f32 %v1968, %v2597
  %v2631 = vadd.f32 %v1969, %v2599
  %v2632 = vadd.f32 %v1970, %v2602
  %v2633 = vadd.f32 %v1971, %v2604
  %v2634 = vadd.f32 %v1972, %v2607
  %v2635 = vadd.f32 %v1973, %v2609
  %v2636 = vadd.f32 %v1974, %v2612
  %v2637 = vadd.f32 %v1975, %v2614
  %v2638 = vadd.f32 %v1976, %v2617
  %v2639 = vadd.f32 %v1977, %v2619
  %v2640 = vadd.f32 %v1978, %v2622
  %v2641 = vadd.f32 %v1979, %v2624
  %s2642 = scalar_lea.vmem %s0, 1024
  %v2643 = vld [vmem:[%s2642] sm:$0xff]
  %v2644 = vld [vmem:[%s2642 + $0x8] sm:$0xff]
  %v2645 = vld [vmem:[%s2642 + $0x10] sm:$0xff]
  %v2646 = vld [vmem:[%s2642 + $0x18] sm:$0xff]
  %v2647 = vld [vmem:[%s2642 + $0x20] sm:$0xff]
  %v2648 = vld [vmem:[%s2642 + $0x28] sm:$0xff]
  %v2649 = vld [vmem:[%s2642 + $0x30] sm:$0xff]
  %v2650 = vld [vmem:[%s2642 + $0x38] sm:$0xff]
  %v2651 = vld [vmem:[%s2642 + $0x40] sm:$0xff]
  %v2652 = vld [vmem:[%s2642 + $0x48] sm:$0xff]
  %v2653 = vld [vmem:[%s2642 + $0x50] sm:$0xff]
  %v2654 = vld [vmem:[%s2642 + $0x58] sm:$0xff]
  %v2655 = vld [vmem:[%s2642 + $0x60] sm:$0xff]
  %v2656 = vld [vmem:[%s2642 + $0x68] sm:$0xff]
  %v2657 = vld [vmem:[%s2642 + $0x70] sm:$0xff]
  %v2658 = vld [vmem:[%s2642 + $0x78] sm:$0xff]
  %v2659 = vld [vmem:[%s2642 + $0x80] sm:$0xff]
  %v2660 = vld [vmem:[%s2642 + $0x88] sm:$0xff]
  %v2661 = vld [vmem:[%s2642 + $0x90] sm:$0xff]
  %v2662 = vld [vmem:[%s2642 + $0x98] sm:$0xff]
  %v2663 = vld [vmem:[%s2642 + $0xa0] sm:$0xff]
  %v2664 = vld [vmem:[%s2642 + $0xa8] sm:$0xff]
  %v2665 = vld [vmem:[%s2642 + $0xb0] sm:$0xff]
  %v2666 = vld [vmem:[%s2642 + $0xb8] sm:$0xff]
  %v2667 = vld [vmem:[%s2642 + $0xc0] sm:$0xff]
  %v2668 = vld [vmem:[%s2642 + $0xc8] sm:$0xff]
  %v2669 = vld [vmem:[%s2642 + $0xd0] sm:$0xff]
  %v2670 = vld [vmem:[%s2642 + $0xd8] sm:$0xff]
  %v2671 = vld [vmem:[%s2642 + $0xe0] sm:$0xff]
  %v2672 = vld [vmem:[%s2642 + $0xe8] sm:$0xff]
  %v2673 = vld [vmem:[%s2642 + $0xf0] sm:$0xff]
  %v2674 = vld [vmem:[%s2642 + $0xf8] sm:$0xff]
  %s2675 = scalar_lea.vmem %s1, 1024
  %v2676 = vld [vmem:[%s2675] sm:$0xf]
  %v2677 = vld [vmem:[%s2675 + $0x4] sm:$0xf]
  %v2678 = vld [vmem:[%s2675 + $0x8] sm:$0xf]
  %v2679 = vld [vmem:[%s2675 + $0xc] sm:$0xf]
  %v2680 = vld [vmem:[%s2675 + $0x10] sm:$0xf]
  %v2681 = vld [vmem:[%s2675 + $0x14] sm:$0xf]
  %v2682 = vld [vmem:[%s2675 + $0x18] sm:$0xf]
  %v2683 = vld [vmem:[%s2675 + $0x1c] sm:$0xf]
  %v2684 = vld [vmem:[%s2675 + $0x20] sm:$0xf]
  %v2685 = vld [vmem:[%s2675 + $0x24] sm:$0xf]
  %v2686 = vld [vmem:[%s2675 + $0x28] sm:$0xf]
  %v2687 = vld [vmem:[%s2675 + $0x2c] sm:$0xf]
  %v2688 = vld [vmem:[%s2675 + $0x30] sm:$0xf]
  %v2689 = vld [vmem:[%s2675 + $0x34] sm:$0xf]
  %v2690 = vld [vmem:[%s2675 + $0x38] sm:$0xf]
  %v2691 = vld [vmem:[%s2675 + $0x3c] sm:$0xf]
  %v2692 = vld [vmem:[%s2675 + $0x40] sm:$0xf]
  %v2693 = vld [vmem:[%s2675 + $0x44] sm:$0xf]
  %v2694 = vld [vmem:[%s2675 + $0x48] sm:$0xf]
  %v2695 = vld [vmem:[%s2675 + $0x4c] sm:$0xf]
  %v2696 = vld [vmem:[%s2675 + $0x50] sm:$0xf]
  %v2697 = vld [vmem:[%s2675 + $0x54] sm:$0xf]
  %v2698 = vld [vmem:[%s2675 + $0x58] sm:$0xf]
  %v2699 = vld [vmem:[%s2675 + $0x5c] sm:$0xf]
  %v2700 = vld [vmem:[%s2675 + $0x60] sm:$0xf]
  %v2701 = vld [vmem:[%s2675 + $0x64] sm:$0xf]
  %v2702 = vld [vmem:[%s2675 + $0x68] sm:$0xf]
  %v2703 = vld [vmem:[%s2675 + $0x6c] sm:$0xf]
  %v2704 = vld [vmem:[%s2675 + $0x70] sm:$0xf]
  %v2705 = vld [vmem:[%s2675 + $0x74] sm:$0xf]
  %v2706 = vld [vmem:[%s2675 + $0x78] sm:$0xf]
  %v2707 = vld [vmem:[%s2675 + $0x7c] sm:$0xf]
  %v2708 = vld [vmem:[%s2675 + $0x80] sm:$0xf]
  %v2709 = vld [vmem:[%s2675 + $0x84] sm:$0xf]
  %v2710 = vld [vmem:[%s2675 + $0x88] sm:$0xf]
  %v2711 = vld [vmem:[%s2675 + $0x8c] sm:$0xf]
  %v2712 = vld [vmem:[%s2675 + $0x90] sm:$0xf]
  %v2713 = vld [vmem:[%s2675 + $0x94] sm:$0xf]
  %v2714 = vld [vmem:[%s2675 + $0x98] sm:$0xf]
  %v2715 = vld [vmem:[%s2675 + $0x9c] sm:$0xf]
  %v2716 = vld [vmem:[%s2675 + $0xa0] sm:$0xf]
  %v2717 = vld [vmem:[%s2675 + $0xa4] sm:$0xf]
  %v2718 = vld [vmem:[%s2675 + $0xa8] sm:$0xf]
  %v2719 = vld [vmem:[%s2675 + $0xac] sm:$0xf]
  %v2720 = vld [vmem:[%s2675 + $0xb0] sm:$0xf]
  %v2721 = vld [vmem:[%s2675 + $0xb4] sm:$0xf]
  %v2722 = vld [vmem:[%s2675 + $0xb8] sm:$0xf]
  %v2723 = vld [vmem:[%s2675 + $0xbc] sm:$0xf]
  %v2724 = vld [vmem:[%s2675 + $0xc0] sm:$0xf]
  %v2725 = vld [vmem:[%s2675 + $0xc4] sm:$0xf]
  %v2726 = vld [vmem:[%s2675 + $0xc8] sm:$0xf]
  %v2727 = vld [vmem:[%s2675 + $0xcc] sm:$0xf]
  %v2728 = vld [vmem:[%s2675 + $0xd0] sm:$0xf]
  %v2729 = vld [vmem:[%s2675 + $0xd4] sm:$0xf]
  %v2730 = vld [vmem:[%s2675 + $0xd8] sm:$0xf]
  %v2731 = vld [vmem:[%s2675 + $0xdc] sm:$0xf]
  %v2732 = vld [vmem:[%s2675 + $0xe0] sm:$0xf]
  %v2733 = vld [vmem:[%s2675 + $0xe4] sm:$0xf]
  %v2734 = vld [vmem:[%s2675 + $0xe8] sm:$0xf]
  %v2735 = vld [vmem:[%s2675 + $0xec] sm:$0xf]
  %v2736 = vld [vmem:[%s2675 + $0xf0] sm:$0xf]
  %v2737 = vld [vmem:[%s2675 + $0xf4] sm:$0xf]
  %v2738 = vld [vmem:[%s2675 + $0xf8] sm:$0xf]
  %v2739 = vld [vmem:[%s2675 + $0xfc] sm:$0xf]
  %v2772 = vunpack.c.l.b16 %v2643
  %v2773 = vunpack.c.h.b16 %v2643
  %v2774 = vunpack.c.l.b16 %v2644
  %v2775 = vunpack.c.h.b16 %v2644
  %v2776 = vunpack.c.l.b16 %v2645
  %v2777 = vunpack.c.h.b16 %v2645
  %v2778 = vunpack.c.l.b16 %v2646
  %v2779 = vunpack.c.h.b16 %v2646
  %v2780 = vunpack.c.l.b16 %v2647
  %v2781 = vunpack.c.h.b16 %v2647
  %v2782 = vunpack.c.l.b16 %v2648
  %v2783 = vunpack.c.h.b16 %v2648
  %v2784 = vunpack.c.l.b16 %v2649
  %v2785 = vunpack.c.h.b16 %v2649
  %v2786 = vunpack.c.l.b16 %v2650
  %v2787 = vunpack.c.h.b16 %v2650
  %v2788 = vunpack.c.l.b16 %v2651
  %v2789 = vunpack.c.h.b16 %v2651
  %v2790 = vunpack.c.l.b16 %v2652
  %v2791 = vunpack.c.h.b16 %v2652
  %v2792 = vunpack.c.l.b16 %v2653
  %v2793 = vunpack.c.h.b16 %v2653
  %v2794 = vunpack.c.l.b16 %v2654
  %v2795 = vunpack.c.h.b16 %v2654
  %v2796 = vunpack.c.l.b16 %v2655
  %v2797 = vunpack.c.h.b16 %v2655
  %v2798 = vunpack.c.l.b16 %v2656
  %v2799 = vunpack.c.h.b16 %v2656
  %v2800 = vunpack.c.l.b16 %v2657
  %v2801 = vunpack.c.h.b16 %v2657
  %v2802 = vunpack.c.l.b16 %v2658
  %v2803 = vunpack.c.h.b16 %v2658
  %v2804 = vunpack.c.l.b16 %v2659
  %v2805 = vunpack.c.h.b16 %v2659
  %v2806 = vunpack.c.l.b16 %v2660
  %v2807 = vunpack.c.h.b16 %v2660
  %v2808 = vunpack.c.l.b16 %v2661
  %v2809 = vunpack.c.h.b16 %v2661
  %v2810 = vunpack.c.l.b16 %v2662
  %v2811 = vunpack.c.h.b16 %v2662
  %v2812 = vunpack.c.l.b16 %v2663
  %v2813 = vunpack.c.h.b16 %v2663
  %v2814 = vunpack.c.l.b16 %v2664
  %v2815 = vunpack.c.h.b16 %v2664
  %v2816 = vunpack.c.l.b16 %v2665
  %v2817 = vunpack.c.h.b16 %v2665
  %v2818 = vunpack.c.l.b16 %v2666
  %v2819 = vunpack.c.h.b16 %v2666
  %v2820 = vunpack.c.l.b16 %v2667
  %v2821 = vunpack.c.h.b16 %v2667
  %v2822 = vunpack.c.l.b16 %v2668
  %v2823 = vunpack.c.h.b16 %v2668
  %v2824 = vunpack.c.l.b16 %v2669
  %v2825 = vunpack.c.h.b16 %v2669
  %v2826 = vunpack.c.l.b16 %v2670
  %v2827 = vunpack.c.h.b16 %v2670
  %v2828 = vunpack.c.l.b16 %v2671
  %v2829 = vunpack.c.h.b16 %v2671
  %v2830 = vunpack.c.l.b16 %v2672
  %v2831 = vunpack.c.h.b16 %v2672
  %v2832 = vunpack.c.l.b16 %v2673
  %v2833 = vunpack.c.h.b16 %v2673
  %v2834 = vunpack.c.l.b16 %v2674
  %v2835 = vunpack.c.h.b16 %v2674
  %v2836 = vpack.c.b16 %v2776, %v2772
  %v2837 = vpack.c.b16 %v2777, %v2773
  %v2838 = vpack.c.b16 %v2778, %v2774
  %v2839 = vpack.c.b16 %v2779, %v2775
  %v2840 = vpack.c.b16 %v2784, %v2780
  %v2841 = vpack.c.b16 %v2785, %v2781
  %v2842 = vpack.c.b16 %v2786, %v2782
  %v2843 = vpack.c.b16 %v2787, %v2783
  %v2844 = vpack.c.b16 %v2792, %v2788
  %v2845 = vpack.c.b16 %v2793, %v2789
  %v2846 = vpack.c.b16 %v2794, %v2790
  %v2847 = vpack.c.b16 %v2795, %v2791
  %v2848 = vpack.c.b16 %v2800, %v2796
  %v2849 = vpack.c.b16 %v2801, %v2797
  %v2850 = vpack.c.b16 %v2802, %v2798
  %v2851 = vpack.c.b16 %v2803, %v2799
  %v2852 = vpack.c.b16 %v2808, %v2804
  %v2853 = vpack.c.b16 %v2809, %v2805
  %v2854 = vpack.c.b16 %v2810, %v2806
  %v2855 = vpack.c.b16 %v2811, %v2807
  %v2856 = vpack.c.b16 %v2816, %v2812
  %v2857 = vpack.c.b16 %v2817, %v2813
  %v2858 = vpack.c.b16 %v2818, %v2814
  %v2859 = vpack.c.b16 %v2819, %v2815
  %v2860 = vpack.c.b16 %v2824, %v2820
  %v2861 = vpack.c.b16 %v2825, %v2821
  %v2862 = vpack.c.b16 %v2826, %v2822
  %v2863 = vpack.c.b16 %v2827, %v2823
  %v2864 = vpack.c.b16 %v2832, %v2828
  %v2865 = vpack.c.b16 %v2833, %v2829
  %v2866 = vpack.c.b16 %v2834, %v2830
  %v2867 = vpack.c.b16 %v2835, %v2831
  %v2964 = vunpack.c.l.b16 %v2676
  %v2965 = vunpack.c.l.b16 %v2677
  %v2966 = vunpack.c.l.b16 %v2678
  %v2967 = vunpack.c.l.b16 %v2679
  %v2968 = vunpack.c.l.b16 %v2680
  %v2969 = vunpack.c.l.b16 %v2681
  %v2970 = vunpack.c.l.b16 %v2682
  %v2971 = vunpack.c.l.b16 %v2683
  %v2972 = vunpack.c.l.b16 %v2684
  %v2973 = vunpack.c.l.b16 %v2685
  %v2974 = vunpack.c.l.b16 %v2686
  %v2975 = vunpack.c.l.b16 %v2687
  %v2976 = vunpack.c.l.b16 %v2688
  %v2977 = vunpack.c.l.b16 %v2689
  %v2978 = vunpack.c.l.b16 %v2690
  %v2979 = vunpack.c.l.b16 %v2691
  %v2980 = vunpack.c.l.b16 %v2692
  %v2981 = vunpack.c.l.b16 %v2693
  %v2982 = vunpack.c.l.b16 %v2694
  %v2983 = vunpack.c.l.b16 %v2695
  %v2984 = vunpack.c.l.b16 %v2696
  %v2985 = vunpack.c.l.b16 %v2697
  %v2986 = vunpack.c.l.b16 %v2698
  %v2987 = vunpack.c.l.b16 %v2699
  %v2988 = vunpack.c.l.b16 %v2700
  %v2989 = vunpack.c.l.b16 %v2701
  %v2990 = vunpack.c.l.b16 %v2702
  %v2991 = vunpack.c.l.b16 %v2703
  %v2992 = vunpack.c.l.b16 %v2704
  %v2993 = vunpack.c.l.b16 %v2705
  %v2994 = vunpack.c.l.b16 %v2706
  %v2995 = vunpack.c.l.b16 %v2707
  %v2996 = vunpack.c.l.b16 %v2708
  %v2997 = vunpack.c.l.b16 %v2709
  %v2998 = vunpack.c.l.b16 %v2710
  %v2999 = vunpack.c.l.b16 %v2711
  %v3000 = vunpack.c.l.b16 %v2712
  %v3001 = vunpack.c.l.b16 %v2713
  %v3002 = vunpack.c.l.b16 %v2714
  %v3003 = vunpack.c.l.b16 %v2715
  %v3004 = vunpack.c.l.b16 %v2716
  %v3005 = vunpack.c.l.b16 %v2717
  %v3006 = vunpack.c.l.b16 %v2718
  %v3007 = vunpack.c.l.b16 %v2719
  %v3008 = vunpack.c.l.b16 %v2720
  %v3009 = vunpack.c.l.b16 %v2721
  %v3010 = vunpack.c.l.b16 %v2722
  %v3011 = vunpack.c.l.b16 %v2723
  %v3012 = vunpack.c.l.b16 %v2724
  %v3013 = vunpack.c.l.b16 %v2725
  %v3014 = vunpack.c.l.b16 %v2726
  %v3015 = vunpack.c.l.b16 %v2727
  %v3016 = vunpack.c.l.b16 %v2728
  %v3017 = vunpack.c.l.b16 %v2729
  %v3018 = vunpack.c.l.b16 %v2730
  %v3019 = vunpack.c.l.b16 %v2731
  %v3020 = vunpack.c.l.b16 %v2732
  %v3021 = vunpack.c.l.b16 %v2733
  %v3022 = vunpack.c.l.b16 %v2734
  %v3023 = vunpack.c.l.b16 %v2735
  %v3024 = vunpack.c.l.b16 %v2736
  %v3025 = vunpack.c.l.b16 %v2737
  %v3026 = vunpack.c.l.b16 %v2738
  %v3027 = vunpack.c.l.b16 %v2739
  %v3028 = vpack.c.b16 %v2965, %v2964
  %v3029 = vpack.c.b16 %v2967, %v2966
  %v3030 = vpack.c.b16 %v2969, %v2968
  %v3031 = vpack.c.b16 %v2971, %v2970
  %v3032 = vpack.c.b16 %v2973, %v2972
  %v3033 = vpack.c.b16 %v2975, %v2974
  %v3034 = vpack.c.b16 %v2977, %v2976
  %v3035 = vpack.c.b16 %v2979, %v2978
  %v3036 = vpack.c.b16 %v2981, %v2980
  %v3037 = vpack.c.b16 %v2983, %v2982
  %v3038 = vpack.c.b16 %v2985, %v2984
  %v3039 = vpack.c.b16 %v2987, %v2986
  %v3040 = vpack.c.b16 %v2989, %v2988
  %v3041 = vpack.c.b16 %v2991, %v2990
  %v3042 = vpack.c.b16 %v2993, %v2992
  %v3043 = vpack.c.b16 %v2995, %v2994
  %v3044 = vpack.c.b16 %v2997, %v2996
  %v3045 = vpack.c.b16 %v2999, %v2998
  %v3046 = vpack.c.b16 %v3001, %v3000
  %v3047 = vpack.c.b16 %v3003, %v3002
  %v3048 = vpack.c.b16 %v3005, %v3004
  %v3049 = vpack.c.b16 %v3007, %v3006
  %v3050 = vpack.c.b16 %v3009, %v3008
  %v3051 = vpack.c.b16 %v3011, %v3010
  %v3052 = vpack.c.b16 %v3013, %v3012
  %v3053 = vpack.c.b16 %v3015, %v3014
  %v3054 = vpack.c.b16 %v3017, %v3016
  %v3055 = vpack.c.b16 %v3019, %v3018
  %v3056 = vpack.c.b16 %v3021, %v3020
  %v3057 = vpack.c.b16 %v3023, %v3022
  %v3058 = vpack.c.b16 %v3025, %v3024
  %v3059 = vpack.c.b16 %v3027, %v3026
  %3092 = vmatpush.bf16.msra.mxu0 %v3035
  %3093 = vmatpush.bf16.msra.mxu0 %v3034
  %3094 = vmatpush.bf16.msra.mxu0 %v3033
  %3095 = vmatpush.bf16.msra.mxu0 %v3032
  %3096 = vmatpush.bf16.msra.mxu0 %v3031
  %3097 = vmatpush.bf16.msra.mxu0 %v3030
  %3098 = vmatpush.bf16.msra.mxu0 %v3029
  %3099 = vmatpush.bf16.msra.mxu0 %v3028
  %3100 = vmatmul.bf16.gmra.mxu0 %v2836
  %v3101 = vpop.f32.mrf.mxu0
  %v3102 = vadd.f32 0.0, %v3101
  %v3103 = vpop.f32.mrf.mxu0
  %v3104 = vadd.f32 0.0, %v3103
  %3105 = vmatmul.bf16.gmra.mxu0 %v2840
  %v3106 = vpop.f32.mrf.mxu0
  %v3107 = vadd.f32 0.0, %v3106
  %v3108 = vpop.f32.mrf.mxu0
  %v3109 = vadd.f32 0.0, %v3108
  %3110 = vmatmul.bf16.gmra.mxu0 %v2844
  %v3111 = vpop.f32.mrf.mxu0
  %v3112 = vadd.f32 0.0, %v3111
  %v3113 = vpop.f32.mrf.mxu0
  %v3114 = vadd.f32 0.0, %v3113
  %3115 = vmatmul.bf16.gmra.mxu0 %v2848
  %v3116 = vpop.f32.mrf.mxu0
  %v3117 = vadd.f32 0.0, %v3116
  %v3118 = vpop.f32.mrf.mxu0
  %v3119 = vadd.f32 0.0, %v3118
  %3120 = vmatmul.bf16.gmra.mxu0 %v2852
  %v3121 = vpop.f32.mrf.mxu0
  %v3122 = vadd.f32 0.0, %v3121
  %v3123 = vpop.f32.mrf.mxu0
  %v3124 = vadd.f32 0.0, %v3123
  %3125 = vmatmul.bf16.gmra.mxu0 %v2856
  %v3126 = vpop.f32.mrf.mxu0
  %v3127 = vadd.f32 0.0, %v3126
  %v3128 = vpop.f32.mrf.mxu0
  %v3129 = vadd.f32 0.0, %v3128
  %3130 = vmatmul.bf16.gmra.mxu0 %v2860
  %v3131 = vpop.f32.mrf.mxu0
  %v3132 = vadd.f32 0.0, %v3131
  %v3133 = vpop.f32.mrf.mxu0
  %v3134 = vadd.f32 0.0, %v3133
  %3135 = vmatmul.bf16.gmra.mxu0 %v2864
  %v3136 = vpop.f32.mrf.mxu0
  %v3137 = vadd.f32 0.0, %v3136
  %v3138 = vpop.f32.mrf.mxu0
  %v3139 = vadd.f32 0.0, %v3138
  %3140 = vdwg.mxu0
  %3141 = vmatpush.bf16.msra.mxu0 %v3043
  %3142 = vmatpush.bf16.msra.mxu0 %v3042
  %3143 = vmatpush.bf16.msra.mxu0 %v3041
  %3144 = vmatpush.bf16.msra.mxu0 %v3040
  %3145 = vmatpush.bf16.msra.mxu0 %v3039
  %3146 = vmatpush.bf16.msra.mxu0 %v3038
  %3147 = vmatpush.bf16.msra.mxu0 %v3037
  %3148 = vmatpush.bf16.msra.mxu0 %v3036
  %3149 = vmatmul.bf16.gmra.mxu0 %v2837
  %v3150 = vpop.f32.mrf.mxu0
  %v3151 = vadd.f32 %v3102, %v3150
  %v3152 = vpop.f32.mrf.mxu0
  %v3153 = vadd.f32 %v3104, %v3152
  %3154 = vmatmul.bf16.gmra.mxu0 %v2841
  %v3155 = vpop.f32.mrf.mxu0
  %v3156 = vadd.f32 %v3107, %v3155
  %v3157 = vpop.f32.mrf.mxu0
  %v3158 = vadd.f32 %v3109, %v3157
  %3159 = vmatmul.bf16.gmra.mxu0 %v2845
  %v3160 = vpop.f32.mrf.mxu0
  %v3161 = vadd.f32 %v3112, %v3160
  %v3162 = vpop.f32.mrf.mxu0
  %v3163 = vadd.f32 %v3114, %v3162
  %3164 = vmatmul.bf16.gmra.mxu0 %v2849
  %v3165 = vpop.f32.mrf.mxu0
  %v3166 = vadd.f32 %v3117, %v3165
  %v3167 = vpop.f32.mrf.mxu0
  %v3168 = vadd.f32 %v3119, %v3167
  %3169 = vmatmul.bf16.gmra.mxu0 %v2853
  %v3170 = vpop.f32.mrf.mxu0
  %v3171 = vadd.f32 %v3122, %v3170
  %v3172 = vpop.f32.mrf.mxu0
  %v3173 = vadd.f32 %v3124, %v3172
  %3174 = vmatmul.bf16.gmra.mxu0 %v2857
  %v3175 = vpop.f32.mrf.mxu0
  %v3176 = vadd.f32 %v3127, %v3175
  %v3177 = vpop.f32.mrf.mxu0
  %v3178 = vadd.f32 %v3129, %v3177
  %3179 = vmatmul.bf16.gmra.mxu0 %v2861
  %v3180 = vpop.f32.mrf.mxu0
  %v3181 = vadd.f32 %v3132, %v3180
  %v3182 = vpop.f32.mrf.mxu0
  %v3183 = vadd.f32 %v3134, %v3182
  %3184 = vmatmul.bf16.gmra.mxu0 %v2865
  %v3185 = vpop.f32.mrf.mxu0
  %v3186 = vadd.f32 %v3137, %v3185
  %v3187 = vpop.f32.mrf.mxu0
  %v3188 = vadd.f32 %v3139, %v3187
  %3189 = vdwg.mxu0
  %3190 = vmatpush.bf16.msra.mxu0 %v3051
  %3191 = vmatpush.bf16.msra.mxu0 %v3050
  %3192 = vmatpush.bf16.msra.mxu0 %v3049
  %3193 = vmatpush.bf16.msra.mxu0 %v3048
  %3194 = vmatpush.bf16.msra.mxu0 %v3047
  %3195 = vmatpush.bf16.msra.mxu0 %v3046
  %3196 = vmatpush.bf16.msra.mxu0 %v3045
  %3197 = vmatpush.bf16.msra.mxu0 %v3044
  %3198 = vmatmul.bf16.gmra.mxu0 %v2838
  %v3199 = vpop.f32.mrf.mxu0
  %v3200 = vadd.f32 %v3151, %v3199
  %v3201 = vpop.f32.mrf.mxu0
  %v3202 = vadd.f32 %v3153, %v3201
  %3203 = vmatmul.bf16.gmra.mxu0 %v2842
  %v3204 = vpop.f32.mrf.mxu0
  %v3205 = vadd.f32 %v3156, %v3204
  %v3206 = vpop.f32.mrf.mxu0
  %v3207 = vadd.f32 %v3158, %v3206
  %3208 = vmatmul.bf16.gmra.mxu0 %v2846
  %v3209 = vpop.f32.mrf.mxu0
  %v3210 = vadd.f32 %v3161, %v3209
  %v3211 = vpop.f32.mrf.mxu0
  %v3212 = vadd.f32 %v3163, %v3211
  %3213 = vmatmul.bf16.gmra.mxu0 %v2850
  %v3214 = vpop.f32.mrf.mxu0
  %v3215 = vadd.f32 %v3166, %v3214
  %v3216 = vpop.f32.mrf.mxu0
  %v3217 = vadd.f32 %v3168, %v3216
  %3218 = vmatmul.bf16.gmra.mxu0 %v2854
  %v3219 = vpop.f32.mrf.mxu0
  %v3220 = vadd.f32 %v3171, %v3219
  %v3221 = vpop.f32.mrf.mxu0
  %v3222 = vadd.f32 %v3173, %v3221
  %3223 = vmatmul.bf16.gmra.mxu0 %v2858
  %v3224 = vpop.f32.mrf.mxu0
  %v3225 = vadd.f32 %v3176, %v3224
  %v3226 = vpop.f32.mrf.mxu0
  %v3227 = vadd.f32 %v3178, %v3226
  %3228 = vmatmul.bf16.gmra.mxu0 %v2862
  %v3229 = vpop.f32.mrf.mxu0
  %v3230 = vadd.f32 %v3181, %v3229
  %v3231 = vpop.f32.mrf.mxu0
  %v3232 = vadd.f32 %v3183, %v3231
  %3233 = vmatmul.bf16.gmra.mxu0 %v2866
  %v3234 = vpop.f32.mrf.mxu0
  %v3235 = vadd.f32 %v3186, %v3234
  %v3236 = vpop.f32.mrf.mxu0
  %v3237 = vadd.f32 %v3188, %v3236
  %3238 = vdwg.mxu0
  %3239 = vmatpush.bf16.msra.mxu0 %v3059
  %3240 = vmatpush.bf16.msra.mxu0 %v3058
  %3241 = vmatpush.bf16.msra.mxu0 %v3057
  %3242 = vmatpush.bf16.msra.mxu0 %v3056
  %3243 = vmatpush.bf16.msra.mxu0 %v3055
  %3244 = vmatpush.bf16.msra.mxu0 %v3054
  %3245 = vmatpush.bf16.msra.mxu0 %v3053
  %3246 = vmatpush.bf16.msra.mxu0 %v3052
  %3247 = vmatmul.bf16.gmra.mxu0 %v2839
  %v3248 = vpop.f32.mrf.mxu0
  %v3249 = vadd.f32 %v3200, %v3248
  %v3250 = vpop.f32.mrf.mxu0
  %v3251 = vadd.f32 %v3202, %v3250
  %3252 = vmatmul.bf16.gmra.mxu0 %v2843
  %v3253 = vpop.f32.mrf.mxu0
  %v3254 = vadd.f32 %v3205, %v3253
  %v3255 = vpop.f32.mrf.mxu0
  %v3256 = vadd.f32 %v3207, %v3255
  %3257 = vmatmul.bf16.gmra.mxu0 %v2847
  %v3258 = vpop.f32.mrf.mxu0
  %v3259 = vadd.f32 %v3210, %v3258
  %v3260 = vpop.f32.mrf.mxu0
  %v3261 = vadd.f32 %v3212, %v3260
  %3262 = vmatmul.bf16.gmra.mxu0 %v2851
  %v3263 = vpop.f32.mrf.mxu0
  %v3264 = vadd.f32 %v3215, %v3263
  %v3265 = vpop.f32.mrf.mxu0
  %v3266 = vadd.f32 %v3217, %v3265
  %3267 = vmatmul.bf16.gmra.mxu0 %v2855
  %v3268 = vpop.f32.mrf.mxu0
  %v3269 = vadd.f32 %v3220, %v3268
  %v3270 = vpop.f32.mrf.mxu0
  %v3271 = vadd.f32 %v3222, %v3270
  %3272 = vmatmul.bf16.gmra.mxu0 %v2859
  %v3273 = vpop.f32.mrf.mxu0
  %v3274 = vadd.f32 %v3225, %v3273
  %v3275 = vpop.f32.mrf.mxu0
  %v3276 = vadd.f32 %v3227, %v3275
  %3277 = vmatmul.bf16.gmra.mxu0 %v2863
  %v3278 = vpop.f32.mrf.mxu0
  %v3279 = vadd.f32 %v3230, %v3278
  %v3280 = vpop.f32.mrf.mxu0
  %v3281 = vadd.f32 %v3232, %v3280
  %3282 = vmatmul.bf16.gmra.mxu0 %v2867
  %v3283 = vpop.f32.mrf.mxu0
  %v3284 = vadd.f32 %v3235, %v3283
  %v3285 = vpop.f32.mrf.mxu0
  %v3286 = vadd.f32 %v3237, %v3285
  %3287 = vdwg.mxu0
  %v3288 = vadd.f32 %v2626, %v3249
  %v3289 = vadd.f32 %v2627, %v3251
  %v3290 = vadd.f32 %v2628, %v3254
  %v3291 = vadd.f32 %v2629, %v3256
  %v3292 = vadd.f32 %v2630, %v3259
  %v3293 = vadd.f32 %v2631, %v3261
  %v3294 = vadd.f32 %v2632, %v3264
  %v3295 = vadd.f32 %v2633, %v3266
  %v3296 = vadd.f32 %v2634, %v3269
  %v3297 = vadd.f32 %v2635, %v3271
  %v3298 = vadd.f32 %v2636, %v3274
  %v3299 = vadd.f32 %v2637, %v3276
  %v3300 = vadd.f32 %v2638, %v3279
  %v3301 = vadd.f32 %v2639, %v3281
  %v3302 = vadd.f32 %v2640, %v3284
  %v3303 = vadd.f32 %v2641, %v3286
  %s3304 = scalar_lea.vmem %s0, 1280
  %v3305 = vld [vmem:[%s3304] sm:$0xff]
  %v3306 = vld [vmem:[%s3304 + $0x8] sm:$0xff]
  %v3307 = vld [vmem:[%s3304 + $0x10] sm:$0xff]
  %v3308 = vld [vmem:[%s3304 + $0x18] sm:$0xff]
  %v3309 = vld [vmem:[%s3304 + $0x20] sm:$0xff]
  %v3310 = vld [vmem:[%s3304 + $0x28] sm:$0xff]
  %v3311 = vld [vmem:[%s3304 + $0x30] sm:$0xff]
  %v3312 = vld [vmem:[%s3304 + $0x38] sm:$0xff]
  %v3313 = vld [vmem:[%s3304 + $0x40] sm:$0xff]
  %v3314 = vld [vmem:[%s3304 + $0x48] sm:$0xff]
  %v3315 = vld [vmem:[%s3304 + $0x50] sm:$0xff]
  %v3316 = vld [vmem:[%s3304 + $0x58] sm:$0xff]
  %v3317 = vld [vmem:[%s3304 + $0x60] sm:$0xff]
  %v3318 = vld [vmem:[%s3304 + $0x68] sm:$0xff]
  %v3319 = vld [vmem:[%s3304 + $0x70] sm:$0xff]
  %v3320 = vld [vmem:[%s3304 + $0x78] sm:$0xff]
  %v3321 = vld [vmem:[%s3304 + $0x80] sm:$0xff]
  %v3322 = vld [vmem:[%s3304 + $0x88] sm:$0xff]
  %v3323 = vld [vmem:[%s3304 + $0x90] sm:$0xff]
  %v3324 = vld [vmem:[%s3304 + $0x98] sm:$0xff]
  %v3325 = vld [vmem:[%s3304 + $0xa0] sm:$0xff]
  %v3326 = vld [vmem:[%s3304 + $0xa8] sm:$0xff]
  %v3327 = vld [vmem:[%s3304 + $0xb0] sm:$0xff]
  %v3328 = vld [vmem:[%s3304 + $0xb8] sm:$0xff]
  %v3329 = vld [vmem:[%s3304 + $0xc0] sm:$0xff]
  %v3330 = vld [vmem:[%s3304 + $0xc8] sm:$0xff]
  %v3331 = vld [vmem:[%s3304 + $0xd0] sm:$0xff]
  %v3332 = vld [vmem:[%s3304 + $0xd8] sm:$0xff]
  %v3333 = vld [vmem:[%s3304 + $0xe0] sm:$0xff]
  %v3334 = vld [vmem:[%s3304 + $0xe8] sm:$0xff]
  %v3335 = vld [vmem:[%s3304 + $0xf0] sm:$0xff]
  %v3336 = vld [vmem:[%s3304 + $0xf8] sm:$0xff]
  %s3337 = scalar_lea.vmem %s1, 1280
  %v3338 = vld [vmem:[%s3337] sm:$0xf]
  %v3339 = vld [vmem:[%s3337 + $0x4] sm:$0xf]
  %v3340 = vld [vmem:[%s3337 + $0x8] sm:$0xf]
  %v3341 = vld [vmem:[%s3337 + $0xc] sm:$0xf]
  %v3342 = vld [vmem:[%s3337 + $0x10] sm:$0xf]
  %v3343 = vld [vmem:[%s3337 + $0x14] sm:$0xf]
  %v3344 = vld [vmem:[%s3337 + $0x18] sm:$0xf]
  %v3345 = vld [vmem:[%s3337 + $0x1c] sm:$0xf]
  %v3346 = vld [vmem:[%s3337 + $0x20] sm:$0xf]
  %v3347 = vld [vmem:[%s3337 + $0x24] sm:$0xf]
  %v3348 = vld [vmem:[%s3337 + $0x28] sm:$0xf]
  %v3349 = vld [vmem:[%s3337 + $0x2c] sm:$0xf]
  %v3350 = vld [vmem:[%s3337 + $0x30] sm:$0xf]
  %v3351 = vld [vmem:[%s3337 + $0x34] sm:$0xf]
  %v3352 = vld [vmem:[%s3337 + $0x38] sm:$0xf]
  %v3353 = vld [vmem:[%s3337 + $0x3c] sm:$0xf]
  %v3354 = vld [vmem:[%s3337 + $0x40] sm:$0xf]
  %v3355 = vld [vmem:[%s3337 + $0x44] sm:$0xf]
  %v3356 = vld [vmem:[%s3337 + $0x48] sm:$0xf]
  %v3357 = vld [vmem:[%s3337 + $0x4c] sm:$0xf]
  %v3358 = vld [vmem:[%s3337 + $0x50] sm:$0xf]
  %v3359 = vld [vmem:[%s3337 + $0x54] sm:$0xf]
  %v3360 = vld [vmem:[%s3337 + $0x58] sm:$0xf]
  %v3361 = vld [vmem:[%s3337 + $0x5c] sm:$0xf]
  %v3362 = vld [vmem:[%s3337 + $0x60] sm:$0xf]
  %v3363 = vld [vmem:[%s3337 + $0x64] sm:$0xf]
  %v3364 = vld [vmem:[%s3337 + $0x68] sm:$0xf]
  %v3365 = vld [vmem:[%s3337 + $0x6c] sm:$0xf]
  %v3366 = vld [vmem:[%s3337 + $0x70] sm:$0xf]
  %v3367 = vld [vmem:[%s3337 + $0x74] sm:$0xf]
  %v3368 = vld [vmem:[%s3337 + $0x78] sm:$0xf]
  %v3369 = vld [vmem:[%s3337 + $0x7c] sm:$0xf]
  %v3370 = vld [vmem:[%s3337 + $0x80] sm:$0xf]
  %v3371 = vld [vmem:[%s3337 + $0x84] sm:$0xf]
  %v3372 = vld [vmem:[%s3337 + $0x88] sm:$0xf]
  %v3373 = vld [vmem:[%s3337 + $0x8c] sm:$0xf]
  %v3374 = vld [vmem:[%s3337 + $0x90] sm:$0xf]
  %v3375 = vld [vmem:[%s3337 + $0x94] sm:$0xf]
  %v3376 = vld [vmem:[%s3337 + $0x98] sm:$0xf]
  %v3377 = vld [vmem:[%s3337 + $0x9c] sm:$0xf]
  %v3378 = vld [vmem:[%s3337 + $0xa0] sm:$0xf]
  %v3379 = vld [vmem:[%s3337 + $0xa4] sm:$0xf]
  %v3380 = vld [vmem:[%s3337 + $0xa8] sm:$0xf]
  %v3381 = vld [vmem:[%s3337 + $0xac] sm:$0xf]
  %v3382 = vld [vmem:[%s3337 + $0xb0] sm:$0xf]
  %v3383 = vld [vmem:[%s3337 + $0xb4] sm:$0xf]
  %v3384 = vld [vmem:[%s3337 + $0xb8] sm:$0xf]
  %v3385 = vld [vmem:[%s3337 + $0xbc] sm:$0xf]
  %v3386 = vld [vmem:[%s3337 + $0xc0] sm:$0xf]
  %v3387 = vld [vmem:[%s3337 + $0xc4] sm:$0xf]
  %v3388 = vld [vmem:[%s3337 + $0xc8] sm:$0xf]
  %v3389 = vld [vmem:[%s3337 + $0xcc] sm:$0xf]
  %v3390 = vld [vmem:[%s3337 + $0xd0] sm:$0xf]
  %v3391 = vld [vmem:[%s3337 + $0xd4] sm:$0xf]
  %v3392 = vld [vmem:[%s3337 + $0xd8] sm:$0xf]
  %v3393 = vld [vmem:[%s3337 + $0xdc] sm:$0xf]
  %v3394 = vld [vmem:[%s3337 + $0xe0] sm:$0xf]
  %v3395 = vld [vmem:[%s3337 + $0xe4] sm:$0xf]
  %v3396 = vld [vmem:[%s3337 + $0xe8] sm:$0xf]
  %v3397 = vld [vmem:[%s3337 + $0xec] sm:$0xf]
  %v3398 = vld [vmem:[%s3337 + $0xf0] sm:$0xf]
  %v3399 = vld [vmem:[%s3337 + $0xf4] sm:$0xf]
  %v3400 = vld [vmem:[%s3337 + $0xf8] sm:$0xf]
  %v3401 = vld [vmem:[%s3337 + $0xfc] sm:$0xf]
  %v3434 = vunpack.c.l.b16 %v3305
  %v3435 = vunpack.c.h.b16 %v3305
  %v3436 = vunpack.c.l.b16 %v3306
  %v3437 = vunpack.c.h.b16 %v3306
  %v3438 = vunpack.c.l.b16 %v3307
  %v3439 = vunpack.c.h.b16 %v3307
  %v3440 = vunpack.c.l.b16 %v3308
  %v3441 = vunpack.c.h.b16 %v3308
  %v3442 = vunpack.c.l.b16 %v3309
  %v3443 = vunpack.c.h.b16 %v3309
  %v3444 = vunpack.c.l.b16 %v3310
  %v3445 = vunpack.c.h.b16 %v3310
  %v3446 = vunpack.c.l.b16 %v3311
  %v3447 = vunpack.c.h.b16 %v3311
  %v3448 = vunpack.c.l.b16 %v3312
  %v3449 = vunpack.c.h.b16 %v3312
  %v3450 = vunpack.c.l.b16 %v3313
  %v3451 = vunpack.c.h.b16 %v3313
  %v3452 = vunpack.c.l.b16 %v3314
  %v3453 = vunpack.c.h.b16 %v3314
  %v3454 = vunpack.c.l.b16 %v3315
  %v3455 = vunpack.c.h.b16 %v3315
  %v3456 = vunpack.c.l.b16 %v3316
  %v3457 = vunpack.c.h.b16 %v3316
  %v3458 = vunpack.c.l.b16 %v3317
  %v3459 = vunpack.c.h.b16 %v3317
  %v3460 = vunpack.c.l.b16 %v3318
  %v3461 = vunpack.c.h.b16 %v3318
  %v3462 = vunpack.c.l.b16 %v3319
  %v3463 = vunpack.c.h.b16 %v3319
  %v3464 = vunpack.c.l.b16 %v3320
  %v3465 = vunpack.c.h.b16 %v3320
  %v3466 = vunpack.c.l.b16 %v3321
  %v3467 = vunpack.c.h.b16 %v3321
  %v3468 = vunpack.c.l.b16 %v3322
  %v3469 = vunpack.c.h.b16 %v3322
  %v3470 = vunpack.c.l.b16 %v3323
  %v3471 = vunpack.c.h.b16 %v3323
  %v3472 = vunpack.c.l.b16 %v3324
  %v3473 = vunpack.c.h.b16 %v3324
  %v3474 = vunpack.c.l.b16 %v3325
  %v3475 = vunpack.c.h.b16 %v3325
  %v3476 = vunpack.c.l.b16 %v3326
  %v3477 = vunpack.c.h.b16 %v3326
  %v3478 = vunpack.c.l.b16 %v3327
  %v3479 = vunpack.c.h.b16 %v3327
  %v3480 = vunpack.c.l.b16 %v3328
  %v3481 = vunpack.c.h.b16 %v3328
  %v3482 = vunpack.c.l.b16 %v3329
  %v3483 = vunpack.c.h.b16 %v3329
  %v3484 = vunpack.c.l.b16 %v3330
  %v3485 = vunpack.c.h.b16 %v3330
  %v3486 = vunpack.c.l.b16 %v3331
  %v3487 = vunpack.c.h.b16 %v3331
  %v3488 = vunpack.c.l.b16 %v3332
  %v3489 = vunpack.c.h.b16 %v3332
  %v3490 = vunpack.c.l.b16 %v3333
  %v3491 = vunpack.c.h.b16 %v3333
  %v3492 = vunpack.c.l.b16 %v3334
  %v3493 = vunpack.c.h.b16 %v3334
  %v3494 = vunpack.c.l.b16 %v3335
  %v3495 = vunpack.c.h.b16 %v3335
  %v3496 = vunpack.c.l.b16 %v3336
  %v3497 = vunpack.c.h.b16 %v3336
  %v3498 = vpack.c.b16 %v3438, %v3434
  %v3499 = vpack.c.b16 %v3439, %v3435
  %v3500 = vpack.c.b16 %v3440, %v3436
  %v3501 = vpack.c.b16 %v3441, %v3437
  %v3502 = vpack.c.b16 %v3446, %v3442
  %v3503 = vpack.c.b16 %v3447, %v3443
  %v3504 = vpack.c.b16 %v3448, %v3444
  %v3505 = vpack.c.b16 %v3449, %v3445
  %v3506 = vpack.c.b16 %v3454, %v3450
  %v3507 = vpack.c.b16 %v3455, %v3451
  %v3508 = vpack.c.b16 %v3456, %v3452
  %v3509 = vpack.c.b16 %v3457, %v3453
  %v3510 = vpack.c.b16 %v3462, %v3458
  %v3511 = vpack.c.b16 %v3463, %v3459
  %v3512 = vpack.c.b16 %v3464, %v3460
  %v3513 = vpack.c.b16 %v3465, %v3461
  %v3514 = vpack.c.b16 %v3470, %v3466
  %v3515 = vpack.c.b16 %v3471, %v3467
  %v3516 = vpack.c.b16 %v3472, %v3468
  %v3517 = vpack.c.b16 %v3473, %v3469
  %v3518 = vpack.c.b16 %v3478, %v3474
  %v3519 = vpack.c.b16 %v3479, %v3475
  %v3520 = vpack.c.b16 %v3480, %v3476
  %v3521 = vpack.c.b16 %v3481, %v3477
  %v3522 = vpack.c.b16 %v3486, %v3482
  %v3523 = vpack.c.b16 %v3487, %v3483
  %v3524 = vpack.c.b16 %v3488, %v3484
  %v3525 = vpack.c.b16 %v3489, %v3485
  %v3526 = vpack.c.b16 %v3494, %v3490
  %v3527 = vpack.c.b16 %v3495, %v3491
  %v3528 = vpack.c.b16 %v3496, %v3492
  %v3529 = vpack.c.b16 %v3497, %v3493
  %v3626 = vunpack.c.l.b16 %v3338
  %v3627 = vunpack.c.l.b16 %v3339
  %v3628 = vunpack.c.l.b16 %v3340
  %v3629 = vunpack.c.l.b16 %v3341
  %v3630 = vunpack.c.l.b16 %v3342
  %v3631 = vunpack.c.l.b16 %v3343
  %v3632 = vunpack.c.l.b16 %v3344
  %v3633 = vunpack.c.l.b16 %v3345
  %v3634 = vunpack.c.l.b16 %v3346
  %v3635 = vunpack.c.l.b16 %v3347
  %v3636 = vunpack.c.l.b16 %v3348
  %v3637 = vunpack.c.l.b16 %v3349
  %v3638 = vunpack.c.l.b16 %v3350
  %v3639 = vunpack.c.l.b16 %v3351
  %v3640 = vunpack.c.l.b16 %v3352
  %v3641 = vunpack.c.l.b16 %v3353
  %v3642 = vunpack.c.l.b16 %v3354
  %v3643 = vunpack.c.l.b16 %v3355
  %v3644 = vunpack.c.l.b16 %v3356
  %v3645 = vunpack.c.l.b16 %v3357
  %v3646 = vunpack.c.l.b16 %v3358
  %v3647 = vunpack.c.l.b16 %v3359
  %v3648 = vunpack.c.l.b16 %v3360
  %v3649 = vunpack.c.l.b16 %v3361
  %v3650 = vunpack.c.l.b16 %v3362
  %v3651 = vunpack.c.l.b16 %v3363
  %v3652 = vunpack.c.l.b16 %v3364
  %v3653 = vunpack.c.l.b16 %v3365
  %v3654 = vunpack.c.l.b16 %v3366
  %v3655 = vunpack.c.l.b16 %v3367
  %v3656 = vunpack.c.l.b16 %v3368
  %v3657 = vunpack.c.l.b16 %v3369
  %v3658 = vunpack.c.l.b16 %v3370
  %v3659 = vunpack.c.l.b16 %v3371
  %v3660 = vunpack.c.l.b16 %v3372
  %v3661 = vunpack.c.l.b16 %v3373
  %v3662 = vunpack.c.l.b16 %v3374
  %v3663 = vunpack.c.l.b16 %v3375
  %v3664 = vunpack.c.l.b16 %v3376
  %v3665 = vunpack.c.l.b16 %v3377
  %v3666 = vunpack.c.l.b16 %v3378
  %v3667 = vunpack.c.l.b16 %v3379
  %v3668 = vunpack.c.l.b16 %v3380
  %v3669 = vunpack.c.l.b16 %v3381
  %v3670 = vunpack.c.l.b16 %v3382
  %v3671 = vunpack.c.l.b16 %v3383
  %v3672 = vunpack.c.l.b16 %v3384
  %v3673 = vunpack.c.l.b16 %v3385
  %v3674 = vunpack.c.l.b16 %v3386
  %v3675 = vunpack.c.l.b16 %v3387
  %v3676 = vunpack.c.l.b16 %v3388
  %v3677 = vunpack.c.l.b16 %v3389
  %v3678 = vunpack.c.l.b16 %v3390
  %v3679 = vunpack.c.l.b16 %v3391
  %v3680 = vunpack.c.l.b16 %v3392
  %v3681 = vunpack.c.l.b16 %v3393
  %v3682 = vunpack.c.l.b16 %v3394
  %v3683 = vunpack.c.l.b16 %v3395
  %v3684 = vunpack.c.l.b16 %v3396
  %v3685 = vunpack.c.l.b16 %v3397
  %v3686 = vunpack.c.l.b16 %v3398
  %v3687 = vunpack.c.l.b16 %v3399
  %v3688 = vunpack.c.l.b16 %v3400
  %v3689 = vunpack.c.l.b16 %v3401
  %v3690 = vpack.c.b16 %v3627, %v3626
  %v3691 = vpack.c.b16 %v3629, %v3628
  %v3692 = vpack.c.b16 %v3631, %v3630
  %v3693 = vpack.c.b16 %v3633, %v3632
  %v3694 = vpack.c.b16 %v3635, %v3634
  %v3695 = vpack.c.b16 %v3637, %v3636
  %v3696 = vpack.c.b16 %v3639, %v3638
  %v3697 = vpack.c.b16 %v3641, %v3640
  %v3698 = vpack.c.b16 %v3643, %v3642
  %v3699 = vpack.c.b16 %v3645, %v3644
  %v3700 = vpack.c.b16 %v3647, %v3646
  %v3701 = vpack.c.b16 %v3649, %v3648
  %v3702 = vpack.c.b16 %v3651, %v3650
  %v3703 = vpack.c.b16 %v3653, %v3652
  %v3704 = vpack.c.b16 %v3655, %v3654
  %v3705 = vpack.c.b16 %v3657, %v3656
  %v3706 = vpack.c.b16 %v3659, %v3658
  %v3707 = vpack.c.b16 %v3661, %v3660
  %v3708 = vpack.c.b16 %v3663, %v3662
  %v3709 = vpack.c.b16 %v3665, %v3664
  %v3710 = vpack.c.b16 %v3667, %v3666
  %v3711 = vpack.c.b16 %v3669, %v3668
  %v3712 = vpack.c.b16 %v3671, %v3670
  %v3713 = vpack.c.b16 %v3673, %v3672
  %v3714 = vpack.c.b16 %v3675, %v3674
  %v3715 = vpack.c.b16 %v3677, %v3676
  %v3716 = vpack.c.b16 %v3679, %v3678
  %v3717 = vpack.c.b16 %v3681, %v3680
  %v3718 = vpack.c.b16 %v3683, %v3682
  %v3719 = vpack.c.b16 %v3685, %v3684
  %v3720 = vpack.c.b16 %v3687, %v3686
  %v3721 = vpack.c.b16 %v3689, %v3688
  %3754 = vmatpush.bf16.msra.mxu0 %v3697
  %3755 = vmatpush.bf16.msra.mxu0 %v3696
  %3756 = vmatpush.bf16.msra.mxu0 %v3695
  %3757 = vmatpush.bf16.msra.mxu0 %v3694
  %3758 = vmatpush.bf16.msra.mxu0 %v3693
  %3759 = vmatpush.bf16.msra.mxu0 %v3692
  %3760 = vmatpush.bf16.msra.mxu0 %v3691
  %3761 = vmatpush.bf16.msra.mxu0 %v3690
  %3762 = vmatmul.bf16.gmra.mxu0 %v3498
  %v3763 = vpop.f32.mrf.mxu0
  %v3764 = vadd.f32 0.0, %v3763
  %v3765 = vpop.f32.mrf.mxu0
  %v3766 = vadd.f32 0.0, %v3765
  %3767 = vmatmul.bf16.gmra.mxu0 %v3502
  %v3768 = vpop.f32.mrf.mxu0
  %v3769 = vadd.f32 0.0, %v3768
  %v3770 = vpop.f32.mrf.mxu0
  %v3771 = vadd.f32 0.0, %v3770
  %3772 = vmatmul.bf16.gmra.mxu0 %v3506
  %v3773 = vpop.f32.mrf.mxu0
  %v3774 = vadd.f32 0.0, %v3773
  %v3775 = vpop.f32.mrf.mxu0
  %v3776 = vadd.f32 0.0, %v3775
  %3777 = vmatmul.bf16.gmra.mxu0 %v3510
  %v3778 = vpop.f32.mrf.mxu0
  %v3779 = vadd.f32 0.0, %v3778
  %v3780 = vpop.f32.mrf.mxu0
  %v3781 = vadd.f32 0.0, %v3780
  %3782 = vmatmul.bf16.gmra.mxu0 %v3514
  %v3783 = vpop.f32.mrf.mxu0
  %v3784 = vadd.f32 0.0, %v3783
  %v3785 = vpop.f32.mrf.mxu0
  %v3786 = vadd.f32 0.0, %v3785
  %3787 = vmatmul.bf16.gmra.mxu0 %v3518
  %v3788 = vpop.f32.mrf.mxu0
  %v3789 = vadd.f32 0.0, %v3788
  %v3790 = vpop.f32.mrf.mxu0
  %v3791 = vadd.f32 0.0, %v3790
  %3792 = vmatmul.bf16.gmra.mxu0 %v3522
  %v3793 = vpop.f32.mrf.mxu0
  %v3794 = vadd.f32 0.0, %v3793
  %v3795 = vpop.f32.mrf.mxu0
  %v3796 = vadd.f32 0.0, %v3795
  %3797 = vmatmul.bf16.gmra.mxu0 %v3526
  %v3798 = vpop.f32.mrf.mxu0
  %v3799 = vadd.f32 0.0, %v3798
  %v3800 = vpop.f32.mrf.mxu0
  %v3801 = vadd.f32 0.0, %v3800
  %3802 = vdwg.mxu0
  %3803 = vmatpush.bf16.msra.mxu0 %v3705
  %3804 = vmatpush.bf16.msra.mxu0 %v3704
  %3805 = vmatpush.bf16.msra.mxu0 %v3703
  %3806 = vmatpush.bf16.msra.mxu0 %v3702
  %3807 = vmatpush.bf16.msra.mxu0 %v3701
  %3808 = vmatpush.bf16.msra.mxu0 %v3700
  %3809 = vmatpush.bf16.msra.mxu0 %v3699
  %3810 = vmatpush.bf16.msra.mxu0 %v3698
  %3811 = vmatmul.bf16.gmra.mxu0 %v3499
  %v3812 = vpop.f32.mrf.mxu0
  %v3813 = vadd.f32 %v3764, %v3812
  %v3814 = vpop.f32.mrf.mxu0
  %v3815 = vadd.f32 %v3766, %v3814
  %3816 = vmatmul.bf16.gmra.mxu0 %v3503
  %v3817 = vpop.f32.mrf.mxu0
  %v3818 = vadd.f32 %v3769, %v3817
  %v3819 = vpop.f32.mrf.mxu0
  %v3820 = vadd.f32 %v3771, %v3819
  %3821 = vmatmul.bf16.gmra.mxu0 %v3507
  %v3822 = vpop.f32.mrf.mxu0
  %v3823 = vadd.f32 %v3774, %v3822
  %v3824 = vpop.f32.mrf.mxu0
  %v3825 = vadd.f32 %v3776, %v3824
  %3826 = vmatmul.bf16.gmra.mxu0 %v3511
  %v3827 = vpop.f32.mrf.mxu0
  %v3828 = vadd.f32 %v3779, %v3827
  %v3829 = vpop.f32.mrf.mxu0
  %v3830 = vadd.f32 %v3781, %v3829
  %3831 = vmatmul.bf16.gmra.mxu0 %v3515
  %v3832 = vpop.f32.mrf.mxu0
  %v3833 = vadd.f32 %v3784, %v3832
  %v3834 = vpop.f32.mrf.mxu0
  %v3835 = vadd.f32 %v3786, %v3834
  %3836 = vmatmul.bf16.gmra.mxu0 %v3519
  %v3837 = vpop.f32.mrf.mxu0
  %v3838 = vadd.f32 %v3789, %v3837
  %v3839 = vpop.f32.mrf.mxu0
  %v3840 = vadd.f32 %v3791, %v3839
  %3841 = vmatmul.bf16.gmra.mxu0 %v3523
  %v3842 = vpop.f32.mrf.mxu0
  %v3843 = vadd.f32 %v3794, %v3842
  %v3844 = vpop.f32.mrf.mxu0
  %v3845 = vadd.f32 %v3796, %v3844
  %3846 = vmatmul.bf16.gmra.mxu0 %v3527
  %v3847 = vpop.f32.mrf.mxu0
  %v3848 = vadd.f32 %v3799, %v3847
  %v3849 = vpop.f32.mrf.mxu0
  %v3850 = vadd.f32 %v3801, %v3849
  %3851 = vdwg.mxu0
  %3852 = vmatpush.bf16.msra.mxu0 %v3713
  %3853 = vmatpush.bf16.msra.mxu0 %v3712
  %3854 = vmatpush.bf16.msra.mxu0 %v3711
  %3855 = vmatpush.bf16.msra.mxu0 %v3710
  %3856 = vmatpush.bf16.msra.mxu0 %v3709
  %3857 = vmatpush.bf16.msra.mxu0 %v3708
  %3858 = vmatpush.bf16.msra.mxu0 %v3707
  %3859 = vmatpush.bf16.msra.mxu0 %v3706
  %3860 = vmatmul.bf16.gmra.mxu0 %v3500
  %v3861 = vpop.f32.mrf.mxu0
  %v3862 = vadd.f32 %v3813, %v3861
  %v3863 = vpop.f32.mrf.mxu0
  %v3864 = vadd.f32 %v3815, %v3863
  %3865 = vmatmul.bf16.gmra.mxu0 %v3504
  %v3866 = vpop.f32.mrf.mxu0
  %v3867 = vadd.f32 %v3818, %v3866
  %v3868 = vpop.f32.mrf.mxu0
  %v3869 = vadd.f32 %v3820, %v3868
  %3870 = vmatmul.bf16.gmra.mxu0 %v3508
  %v3871 = vpop.f32.mrf.mxu0
  %v3872 = vadd.f32 %v3823, %v3871
  %v3873 = vpop.f32.mrf.mxu0
  %v3874 = vadd.f32 %v3825, %v3873
  %3875 = vmatmul.bf16.gmra.mxu0 %v3512
  %v3876 = vpop.f32.mrf.mxu0
  %v3877 = vadd.f32 %v3828, %v3876
  %v3878 = vpop.f32.mrf.mxu0
  %v3879 = vadd.f32 %v3830, %v3878
  %3880 = vmatmul.bf16.gmra.mxu0 %v3516
  %v3881 = vpop.f32.mrf.mxu0
  %v3882 = vadd.f32 %v3833, %v3881
  %v3883 = vpop.f32.mrf.mxu0
  %v3884 = vadd.f32 %v3835, %v3883
  %3885 = vmatmul.bf16.gmra.mxu0 %v3520
  %v3886 = vpop.f32.mrf.mxu0
  %v3887 = vadd.f32 %v3838, %v3886
  %v3888 = vpop.f32.mrf.mxu0
  %v3889 = vadd.f32 %v3840, %v3888
  %3890 = vmatmul.bf16.gmra.mxu0 %v3524
  %v3891 = vpop.f32.mrf.mxu0
  %v3892 = vadd.f32 %v3843, %v3891
  %v3893 = vpop.f32.mrf.mxu0
  %v3894 = vadd.f32 %v3845, %v3893
  %3895 = vmatmul.bf16.gmra.mxu0 %v3528
  %v3896 = vpop.f32.mrf.mxu0
  %v3897 = vadd.f32 %v3848, %v3896
  %v3898 = vpop.f32.mrf.mxu0
  %v3899 = vadd.f32 %v3850, %v3898
  %3900 = vdwg.mxu0
  %3901 = vmatpush.bf16.msra.mxu0 %v3721
  %3902 = vmatpush.bf16.msra.mxu0 %v3720
  %3903 = vmatpush.bf16.msra.mxu0 %v3719
  %3904 = vmatpush.bf16.msra.mxu0 %v3718
  %3905 = vmatpush.bf16.msra.mxu0 %v3717
  %3906 = vmatpush.bf16.msra.mxu0 %v3716
  %3907 = vmatpush.bf16.msra.mxu0 %v3715
  %3908 = vmatpush.bf16.msra.mxu0 %v3714
  %3909 = vmatmul.bf16.gmra.mxu0 %v3501
  %v3910 = vpop.f32.mrf.mxu0
  %v3911 = vadd.f32 %v3862, %v3910
  %v3912 = vpop.f32.mrf.mxu0
  %v3913 = vadd.f32 %v3864, %v3912
  %3914 = vmatmul.bf16.gmra.mxu0 %v3505
  %v3915 = vpop.f32.mrf.mxu0
  %v3916 = vadd.f32 %v3867, %v3915
  %v3917 = vpop.f32.mrf.mxu0
  %v3918 = vadd.f32 %v3869, %v3917
  %3919 = vmatmul.bf16.gmra.mxu0 %v3509
  %v3920 = vpop.f32.mrf.mxu0
  %v3921 = vadd.f32 %v3872, %v3920
  %v3922 = vpop.f32.mrf.mxu0
  %v3923 = vadd.f32 %v3874, %v3922
  %3924 = vmatmul.bf16.gmra.mxu0 %v3513
  %v3925 = vpop.f32.mrf.mxu0
  %v3926 = vadd.f32 %v3877, %v3925
  %v3927 = vpop.f32.mrf.mxu0
  %v3928 = vadd.f32 %v3879, %v3927
  %3929 = vmatmul.bf16.gmra.mxu0 %v3517
  %v3930 = vpop.f32.mrf.mxu0
  %v3931 = vadd.f32 %v3882, %v3930
  %v3932 = vpop.f32.mrf.mxu0
  %v3933 = vadd.f32 %v3884, %v3932
  %3934 = vmatmul.bf16.gmra.mxu0 %v3521
  %v3935 = vpop.f32.mrf.mxu0
  %v3936 = vadd.f32 %v3887, %v3935
  %v3937 = vpop.f32.mrf.mxu0
  %v3938 = vadd.f32 %v3889, %v3937
  %3939 = vmatmul.bf16.gmra.mxu0 %v3525
  %v3940 = vpop.f32.mrf.mxu0
  %v3941 = vadd.f32 %v3892, %v3940
  %v3942 = vpop.f32.mrf.mxu0
  %v3943 = vadd.f32 %v3894, %v3942
  %3944 = vmatmul.bf16.gmra.mxu0 %v3529
  %v3945 = vpop.f32.mrf.mxu0
  %v3946 = vadd.f32 %v3897, %v3945
  %v3947 = vpop.f32.mrf.mxu0
  %v3948 = vadd.f32 %v3899, %v3947
  %3949 = vdwg.mxu0
  %v3950 = vadd.f32 %v3288, %v3911
  %v3951 = vadd.f32 %v3289, %v3913
  %v3952 = vadd.f32 %v3290, %v3916
  %v3953 = vadd.f32 %v3291, %v3918
  %v3954 = vadd.f32 %v3292, %v3921
  %v3955 = vadd.f32 %v3293, %v3923
  %v3956 = vadd.f32 %v3294, %v3926
  %v3957 = vadd.f32 %v3295, %v3928
  %v3958 = vadd.f32 %v3296, %v3931
  %v3959 = vadd.f32 %v3297, %v3933
  %v3960 = vadd.f32 %v3298, %v3936
  %v3961 = vadd.f32 %v3299, %v3938
  %v3962 = vadd.f32 %v3300, %v3941
  %v3963 = vadd.f32 %v3301, %v3943
  %v3964 = vadd.f32 %v3302, %v3946
  %v3965 = vadd.f32 %v3303, %v3948
  %s3966 = scalar_lea.vmem %s0, 1536
  %v3967 = vld [vmem:[%s3966] sm:$0xff]
  %v3968 = vld [vmem:[%s3966 + $0x8] sm:$0xff]
  %v3969 = vld [vmem:[%s3966 + $0x10] sm:$0xff]
  %v3970 = vld [vmem:[%s3966 + $0x18] sm:$0xff]
  %v3971 = vld [vmem:[%s3966 + $0x20] sm:$0xff]
  %v3972 = vld [vmem:[%s3966 + $0x28] sm:$0xff]
  %v3973 = vld [vmem:[%s3966 + $0x30] sm:$0xff]
  %v3974 = vld [vmem:[%s3966 + $0x38] sm:$0xff]
  %v3975 = vld [vmem:[%s3966 + $0x40] sm:$0xff]
  %v3976 = vld [vmem:[%s3966 + $0x48] sm:$0xff]
  %v3977 = vld [vmem:[%s3966 + $0x50] sm:$0xff]
  %v3978 = vld [vmem:[%s3966 + $0x58] sm:$0xff]
  %v3979 = vld [vmem:[%s3966 + $0x60] sm:$0xff]
  %v3980 = vld [vmem:[%s3966 + $0x68] sm:$0xff]
  %v3981 = vld [vmem:[%s3966 + $0x70] sm:$0xff]
  %v3982 = vld [vmem:[%s3966 + $0x78] sm:$0xff]
  %v3983 = vld [vmem:[%s3966 + $0x80] sm:$0xff]
  %v3984 = vld [vmem:[%s3966 + $0x88] sm:$0xff]
  %v3985 = vld [vmem:[%s3966 + $0x90] sm:$0xff]
  %v3986 = vld [vmem:[%s3966 + $0x98] sm:$0xff]
  %v3987 = vld [vmem:[%s3966 + $0xa0] sm:$0xff]
  %v3988 = vld [vmem:[%s3966 + $0xa8] sm:$0xff]
  %v3989 = vld [vmem:[%s3966 + $0xb0] sm:$0xff]
  %v3990 = vld [vmem:[%s3966 + $0xb8] sm:$0xff]
  %v3991 = vld [vmem:[%s3966 + $0xc0] sm:$0xff]
  %v3992 = vld [vmem:[%s3966 + $0xc8] sm:$0xff]
  %v3993 = vld [vmem:[%s3966 + $0xd0] sm:$0xff]
  %v3994 = vld [vmem:[%s3966 + $0xd8] sm:$0xff]
  %v3995 = vld [vmem:[%s3966 + $0xe0] sm:$0xff]
  %v3996 = vld [vmem:[%s3966 + $0xe8] sm:$0xff]
  %v3997 = vld [vmem:[%s3966 + $0xf0] sm:$0xff]
  %v3998 = vld [vmem:[%s3966 + $0xf8] sm:$0xff]
  %s3999 = scalar_lea.vmem %s1, 1536
  %v4000 = vld [vmem:[%s3999] sm:$0xf]
  %v4001 = vld [vmem:[%s3999 + $0x4] sm:$0xf]
  %v4002 = vld [vmem:[%s3999 + $0x8] sm:$0xf]
  %v4003 = vld [vmem:[%s3999 + $0xc] sm:$0xf]
  %v4004 = vld [vmem:[%s3999 + $0x10] sm:$0xf]
  %v4005 = vld [vmem:[%s3999 + $0x14] sm:$0xf]
  %v4006 = vld [vmem:[%s3999 + $0x18] sm:$0xf]
  %v4007 = vld [vmem:[%s3999 + $0x1c] sm:$0xf]
  %v4008 = vld [vmem:[%s3999 + $0x20] sm:$0xf]
  %v4009 = vld [vmem:[%s3999 + $0x24] sm:$0xf]
  %v4010 = vld [vmem:[%s3999 + $0x28] sm:$0xf]
  %v4011 = vld [vmem:[%s3999 + $0x2c] sm:$0xf]
  %v4012 = vld [vmem:[%s3999 + $0x30] sm:$0xf]
  %v4013 = vld [vmem:[%s3999 + $0x34] sm:$0xf]
  %v4014 = vld [vmem:[%s3999 + $0x38] sm:$0xf]
  %v4015 = vld [vmem:[%s3999 + $0x3c] sm:$0xf]
  %v4016 = vld [vmem:[%s3999 + $0x40] sm:$0xf]
  %v4017 = vld [vmem:[%s3999 + $0x44] sm:$0xf]
  %v4018 = vld [vmem:[%s3999 + $0x48] sm:$0xf]
  %v4019 = vld [vmem:[%s3999 + $0x4c] sm:$0xf]
  %v4020 = vld [vmem:[%s3999 + $0x50] sm:$0xf]
  %v4021 = vld [vmem:[%s3999 + $0x54] sm:$0xf]
  %v4022 = vld [vmem:[%s3999 + $0x58] sm:$0xf]
  %v4023 = vld [vmem:[%s3999 + $0x5c] sm:$0xf]
  %v4024 = vld [vmem:[%s3999 + $0x60] sm:$0xf]
  %v4025 = vld [vmem:[%s3999 + $0x64] sm:$0xf]
  %v4026 = vld [vmem:[%s3999 + $0x68] sm:$0xf]
  %v4027 = vld [vmem:[%s3999 + $0x6c] sm:$0xf]
  %v4028 = vld [vmem:[%s3999 + $0x70] sm:$0xf]
  %v4029 = vld [vmem:[%s3999 + $0x74] sm:$0xf]
  %v4030 = vld [vmem:[%s3999 + $0x78] sm:$0xf]
  %v4031 = vld [vmem:[%s3999 + $0x7c] sm:$0xf]
  %v4032 = vld [vmem:[%s3999 + $0x80] sm:$0xf]
  %v4033 = vld [vmem:[%s3999 + $0x84] sm:$0xf]
  %v4034 = vld [vmem:[%s3999 + $0x88] sm:$0xf]
  %v4035 = vld [vmem:[%s3999 + $0x8c] sm:$0xf]
  %v4036 = vld [vmem:[%s3999 + $0x90] sm:$0xf]
  %v4037 = vld [vmem:[%s3999 + $0x94] sm:$0xf]
  %v4038 = vld [vmem:[%s3999 + $0x98] sm:$0xf]
  %v4039 = vld [vmem:[%s3999 + $0x9c] sm:$0xf]
  %v4040 = vld [vmem:[%s3999 + $0xa0] sm:$0xf]
  %v4041 = vld [vmem:[%s3999 + $0xa4] sm:$0xf]
  %v4042 = vld [vmem:[%s3999 + $0xa8] sm:$0xf]
  %v4043 = vld [vmem:[%s3999 + $0xac] sm:$0xf]
  %v4044 = vld [vmem:[%s3999 + $0xb0] sm:$0xf]
  %v4045 = vld [vmem:[%s3999 + $0xb4] sm:$0xf]
  %v4046 = vld [vmem:[%s3999 + $0xb8] sm:$0xf]
  %v4047 = vld [vmem:[%s3999 + $0xbc] sm:$0xf]
  %v4048 = vld [vmem:[%s3999 + $0xc0] sm:$0xf]
  %v4049 = vld [vmem:[%s3999 + $0xc4] sm:$0xf]
  %v4050 = vld [vmem:[%s3999 + $0xc8] sm:$0xf]
  %v4051 = vld [vmem:[%s3999 + $0xcc] sm:$0xf]
  %v4052 = vld [vmem:[%s3999 + $0xd0] sm:$0xf]
  %v4053 = vld [vmem:[%s3999 + $0xd4] sm:$0xf]
  %v4054 = vld [vmem:[%s3999 + $0xd8] sm:$0xf]
  %v4055 = vld [vmem:[%s3999 + $0xdc] sm:$0xf]
  %v4056 = vld [vmem:[%s3999 + $0xe0] sm:$0xf]
  %v4057 = vld [vmem:[%s3999 + $0xe4] sm:$0xf]
  %v4058 = vld [vmem:[%s3999 + $0xe8] sm:$0xf]
  %v4059 = vld [vmem:[%s3999 + $0xec] sm:$0xf]
  %v4060 = vld [vmem:[%s3999 + $0xf0] sm:$0xf]
  %v4061 = vld [vmem:[%s3999 + $0xf4] sm:$0xf]
  %v4062 = vld [vmem:[%s3999 + $0xf8] sm:$0xf]
  %v4063 = vld [vmem:[%s3999 + $0xfc] sm:$0xf]
  %v4096 = vunpack.c.l.b16 %v3967
  %v4097 = vunpack.c.h.b16 %v3967
  %v4098 = vunpack.c.l.b16 %v3968
  %v4099 = vunpack.c.h.b16 %v3968
  %v4100 = vunpack.c.l.b16 %v3969
  %v4101 = vunpack.c.h.b16 %v3969
  %v4102 = vunpack.c.l.b16 %v3970
  %v4103 = vunpack.c.h.b16 %v3970
  %v4104 = vunpack.c.l.b16 %v3971
  %v4105 = vunpack.c.h.b16 %v3971
  %v4106 = vunpack.c.l.b16 %v3972
  %v4107 = vunpack.c.h.b16 %v3972
  %v4108 = vunpack.c.l.b16 %v3973
  %v4109 = vunpack.c.h.b16 %v3973
  %v4110 = vunpack.c.l.b16 %v3974
  %v4111 = vunpack.c.h.b16 %v3974
  %v4112 = vunpack.c.l.b16 %v3975
  %v4113 = vunpack.c.h.b16 %v3975
  %v4114 = vunpack.c.l.b16 %v3976
  %v4115 = vunpack.c.h.b16 %v3976
  %v4116 = vunpack.c.l.b16 %v3977
  %v4117 = vunpack.c.h.b16 %v3977
  %v4118 = vunpack.c.l.b16 %v3978
  %v4119 = vunpack.c.h.b16 %v3978
  %v4120 = vunpack.c.l.b16 %v3979
  %v4121 = vunpack.c.h.b16 %v3979
  %v4122 = vunpack.c.l.b16 %v3980
  %v4123 = vunpack.c.h.b16 %v3980
  %v4124 = vunpack.c.l.b16 %v3981
  %v4125 = vunpack.c.h.b16 %v3981
  %v4126 = vunpack.c.l.b16 %v3982
  %v4127 = vunpack.c.h.b16 %v3982
  %v4128 = vunpack.c.l.b16 %v3983
  %v4129 = vunpack.c.h.b16 %v3983
  %v4130 = vunpack.c.l.b16 %v3984
  %v4131 = vunpack.c.h.b16 %v3984
  %v4132 = vunpack.c.l.b16 %v3985
  %v4133 = vunpack.c.h.b16 %v3985
  %v4134 = vunpack.c.l.b16 %v3986
  %v4135 = vunpack.c.h.b16 %v3986
  %v4136 = vunpack.c.l.b16 %v3987
  %v4137 = vunpack.c.h.b16 %v3987
  %v4138 = vunpack.c.l.b16 %v3988
  %v4139 = vunpack.c.h.b16 %v3988
  %v4140 = vunpack.c.l.b16 %v3989
  %v4141 = vunpack.c.h.b16 %v3989
  %v4142 = vunpack.c.l.b16 %v3990
  %v4143 = vunpack.c.h.b16 %v3990
  %v4144 = vunpack.c.l.b16 %v3991
  %v4145 = vunpack.c.h.b16 %v3991
  %v4146 = vunpack.c.l.b16 %v3992
  %v4147 = vunpack.c.h.b16 %v3992
  %v4148 = vunpack.c.l.b16 %v3993
  %v4149 = vunpack.c.h.b16 %v3993
  %v4150 = vunpack.c.l.b16 %v3994
  %v4151 = vunpack.c.h.b16 %v3994
  %v4152 = vunpack.c.l.b16 %v3995
  %v4153 = vunpack.c.h.b16 %v3995
  %v4154 = vunpack.c.l.b16 %v3996
  %v4155 = vunpack.c.h.b16 %v3996
  %v4156 = vunpack.c.l.b16 %v3997
  %v4157 = vunpack.c.h.b16 %v3997
  %v4158 = vunpack.c.l.b16 %v3998
  %v4159 = vunpack.c.h.b16 %v3998
  %v4160 = vpack.c.b16 %v4100, %v4096
  %v4161 = vpack.c.b16 %v4101, %v4097
  %v4162 = vpack.c.b16 %v4102, %v4098
  %v4163 = vpack.c.b16 %v4103, %v4099
  %v4164 = vpack.c.b16 %v4108, %v4104
  %v4165 = vpack.c.b16 %v4109, %v4105
  %v4166 = vpack.c.b16 %v4110, %v4106
  %v4167 = vpack.c.b16 %v4111, %v4107
  %v4168 = vpack.c.b16 %v4116, %v4112
  %v4169 = vpack.c.b16 %v4117, %v4113
  %v4170 = vpack.c.b16 %v4118, %v4114
  %v4171 = vpack.c.b16 %v4119, %v4115
  %v4172 = vpack.c.b16 %v4124, %v4120
  %v4173 = vpack.c.b16 %v4125, %v4121
  %v4174 = vpack.c.b16 %v4126, %v4122
  %v4175 = vpack.c.b16 %v4127, %v4123
  %v4176 = vpack.c.b16 %v4132, %v4128
  %v4177 = vpack.c.b16 %v4133, %v4129
  %v4178 = vpack.c.b16 %v4134, %v4130
  %v4179 = vpack.c.b16 %v4135, %v4131
  %v4180 = vpack.c.b16 %v4140, %v4136
  %v4181 = vpack.c.b16 %v4141, %v4137
  %v4182 = vpack.c.b16 %v4142, %v4138
  %v4183 = vpack.c.b16 %v4143, %v4139
  %v4184 = vpack.c.b16 %v4148, %v4144
  %v4185 = vpack.c.b16 %v4149, %v4145
  %v4186 = vpack.c.b16 %v4150, %v4146
  %v4187 = vpack.c.b16 %v4151, %v4147
  %v4188 = vpack.c.b16 %v4156, %v4152
  %v4189 = vpack.c.b16 %v4157, %v4153
  %v4190 = vpack.c.b16 %v4158, %v4154
  %v4191 = vpack.c.b16 %v4159, %v4155
  %v4288 = vunpack.c.l.b16 %v4000
  %v4289 = vunpack.c.l.b16 %v4001
  %v4290 = vunpack.c.l.b16 %v4002
  %v4291 = vunpack.c.l.b16 %v4003
  %v4292 = vunpack.c.l.b16 %v4004
  %v4293 = vunpack.c.l.b16 %v4005
  %v4294 = vunpack.c.l.b16 %v4006
  %v4295 = vunpack.c.l.b16 %v4007
  %v4296 = vunpack.c.l.b16 %v4008
  %v4297 = vunpack.c.l.b16 %v4009
  %v4298 = vunpack.c.l.b16 %v4010
  %v4299 = vunpack.c.l.b16 %v4011
  %v4300 = vunpack.c.l.b16 %v4012
  %v4301 = vunpack.c.l.b16 %v4013
  %v4302 = vunpack.c.l.b16 %v4014
  %v4303 = vunpack.c.l.b16 %v4015
  %v4304 = vunpack.c.l.b16 %v4016
  %v4305 = vunpack.c.l.b16 %v4017
  %v4306 = vunpack.c.l.b16 %v4018
  %v4307 = vunpack.c.l.b16 %v4019
  %v4308 = vunpack.c.l.b16 %v4020
  %v4309 = vunpack.c.l.b16 %v4021
  %v4310 = vunpack.c.l.b16 %v4022
  %v4311 = vunpack.c.l.b16 %v4023
  %v4312 = vunpack.c.l.b16 %v4024
  %v4313 = vunpack.c.l.b16 %v4025
  %v4314 = vunpack.c.l.b16 %v4026
  %v4315 = vunpack.c.l.b16 %v4027
  %v4316 = vunpack.c.l.b16 %v4028
  %v4317 = vunpack.c.l.b16 %v4029
  %v4318 = vunpack.c.l.b16 %v4030
  %v4319 = vunpack.c.l.b16 %v4031
  %v4320 = vunpack.c.l.b16 %v4032
  %v4321 = vunpack.c.l.b16 %v4033
  %v4322 = vunpack.c.l.b16 %v4034
  %v4323 = vunpack.c.l.b16 %v4035
  %v4324 = vunpack.c.l.b16 %v4036
  %v4325 = vunpack.c.l.b16 %v4037
  %v4326 = vunpack.c.l.b16 %v4038
  %v4327 = vunpack.c.l.b16 %v4039
  %v4328 = vunpack.c.l.b16 %v4040
  %v4329 = vunpack.c.l.b16 %v4041
  %v4330 = vunpack.c.l.b16 %v4042
  %v4331 = vunpack.c.l.b16 %v4043
  %v4332 = vunpack.c.l.b16 %v4044
  %v4333 = vunpack.c.l.b16 %v4045
  %v4334 = vunpack.c.l.b16 %v4046
  %v4335 = vunpack.c.l.b16 %v4047
  %v4336 = vunpack.c.l.b16 %v4048
  %v4337 = vunpack.c.l.b16 %v4049
  %v4338 = vunpack.c.l.b16 %v4050
  %v4339 = vunpack.c.l.b16 %v4051
  %v4340 = vunpack.c.l.b16 %v4052
  %v4341 = vunpack.c.l.b16 %v4053
  %v4342 = vunpack.c.l.b16 %v4054
  %v4343 = vunpack.c.l.b16 %v4055
  %v4344 = vunpack.c.l.b16 %v4056
  %v4345 = vunpack.c.l.b16 %v4057
  %v4346 = vunpack.c.l.b16 %v4058
  %v4347 = vunpack.c.l.b16 %v4059
  %v4348 = vunpack.c.l.b16 %v4060
  %v4349 = vunpack.c.l.b16 %v4061
  %v4350 = vunpack.c.l.b16 %v4062
  %v4351 = vunpack.c.l.b16 %v4063
  %v4352 = vpack.c.b16 %v4289, %v4288
  %v4353 = vpack.c.b16 %v4291, %v4290
  %v4354 = vpack.c.b16 %v4293, %v4292
  %v4355 = vpack.c.b16 %v4295, %v4294
  %v4356 = vpack.c.b16 %v4297, %v4296
  %v4357 = vpack.c.b16 %v4299, %v4298
  %v4358 = vpack.c.b16 %v4301, %v4300
  %v4359 = vpack.c.b16 %v4303, %v4302
  %v4360 = vpack.c.b16 %v4305, %v4304
  %v4361 = vpack.c.b16 %v4307, %v4306
  %v4362 = vpack.c.b16 %v4309, %v4308
  %v4363 = vpack.c.b16 %v4311, %v4310
  %v4364 = vpack.c.b16 %v4313, %v4312
  %v4365 = vpack.c.b16 %v4315, %v4314
  %v4366 = vpack.c.b16 %v4317, %v4316
  %v4367 = vpack.c.b16 %v4319, %v4318
  %v4368 = vpack.c.b16 %v4321, %v4320
  %v4369 = vpack.c.b16 %v4323, %v4322
  %v4370 = vpack.c.b16 %v4325, %v4324
  %v4371 = vpack.c.b16 %v4327, %v4326
  %v4372 = vpack.c.b16 %v4329, %v4328
  %v4373 = vpack.c.b16 %v4331, %v4330
  %v4374 = vpack.c.b16 %v4333, %v4332
  %v4375 = vpack.c.b16 %v4335, %v4334
  %v4376 = vpack.c.b16 %v4337, %v4336
  %v4377 = vpack.c.b16 %v4339, %v4338
  %v4378 = vpack.c.b16 %v4341, %v4340
  %v4379 = vpack.c.b16 %v4343, %v4342
  %v4380 = vpack.c.b16 %v4345, %v4344
  %v4381 = vpack.c.b16 %v4347, %v4346
  %v4382 = vpack.c.b16 %v4349, %v4348
  %v4383 = vpack.c.b16 %v4351, %v4350
  %4416 = vmatpush.bf16.msra.mxu0 %v4359
  %4417 = vmatpush.bf16.msra.mxu0 %v4358
  %4418 = vmatpush.bf16.msra.mxu0 %v4357
  %4419 = vmatpush.bf16.msra.mxu0 %v4356
  %4420 = vmatpush.bf16.msra.mxu0 %v4355
  %4421 = vmatpush.bf16.msra.mxu0 %v4354
  %4422 = vmatpush.bf16.msra.mxu0 %v4353
  %4423 = vmatpush.bf16.msra.mxu0 %v4352
  %4424 = vmatmul.bf16.gmra.mxu0 %v4160
  %v4425 = vpop.f32.mrf.mxu0
  %v4426 = vadd.f32 0.0, %v4425
  %v4427 = vpop.f32.mrf.mxu0
  %v4428 = vadd.f32 0.0, %v4427
  %4429 = vmatmul.bf16.gmra.mxu0 %v4164
  %v4430 = vpop.f32.mrf.mxu0
  %v4431 = vadd.f32 0.0, %v4430
  %v4432 = vpop.f32.mrf.mxu0
  %v4433 = vadd.f32 0.0, %v4432
  %4434 = vmatmul.bf16.gmra.mxu0 %v4168
  %v4435 = vpop.f32.mrf.mxu0
  %v4436 = vadd.f32 0.0, %v4435
  %v4437 = vpop.f32.mrf.mxu0
  %v4438 = vadd.f32 0.0, %v4437
  %4439 = vmatmul.bf16.gmra.mxu0 %v4172
  %v4440 = vpop.f32.mrf.mxu0
  %v4441 = vadd.f32 0.0, %v4440
  %v4442 = vpop.f32.mrf.mxu0
  %v4443 = vadd.f32 0.0, %v4442
  %4444 = vmatmul.bf16.gmra.mxu0 %v4176
  %v4445 = vpop.f32.mrf.mxu0
  %v4446 = vadd.f32 0.0, %v4445
  %v4447 = vpop.f32.mrf.mxu0
  %v4448 = vadd.f32 0.0, %v4447
  %4449 = vmatmul.bf16.gmra.mxu0 %v4180
  %v4450 = vpop.f32.mrf.mxu0
  %v4451 = vadd.f32 0.0, %v4450
  %v4452 = vpop.f32.mrf.mxu0
  %v4453 = vadd.f32 0.0, %v4452
  %4454 = vmatmul.bf16.gmra.mxu0 %v4184
  %v4455 = vpop.f32.mrf.mxu0
  %v4456 = vadd.f32 0.0, %v4455
  %v4457 = vpop.f32.mrf.mxu0
  %v4458 = vadd.f32 0.0, %v4457
  %4459 = vmatmul.bf16.gmra.mxu0 %v4188
  %v4460 = vpop.f32.mrf.mxu0
  %v4461 = vadd.f32 0.0, %v4460
  %v4462 = vpop.f32.mrf.mxu0
  %v4463 = vadd.f32 0.0, %v4462
  %4464 = vdwg.mxu0
  %4465 = vmatpush.bf16.msra.mxu0 %v4367
  %4466 = vmatpush.bf16.msra.mxu0 %v4366
  %4467 = vmatpush.bf16.msra.mxu0 %v4365
  %4468 = vmatpush.bf16.msra.mxu0 %v4364
  %4469 = vmatpush.bf16.msra.mxu0 %v4363
  %4470 = vmatpush.bf16.msra.mxu0 %v4362
  %4471 = vmatpush.bf16.msra.mxu0 %v4361
  %4472 = vmatpush.bf16.msra.mxu0 %v4360
  %4473 = vmatmul.bf16.gmra.mxu0 %v4161
  %v4474 = vpop.f32.mrf.mxu0
  %v4475 = vadd.f32 %v4426, %v4474
  %v4476 = vpop.f32.mrf.mxu0
  %v4477 = vadd.f32 %v4428, %v4476
  %4478 = vmatmul.bf16.gmra.mxu0 %v4165
  %v4479 = vpop.f32.mrf.mxu0
  %v4480 = vadd.f32 %v4431, %v4479
  %v4481 = vpop.f32.mrf.mxu0
  %v4482 = vadd.f32 %v4433, %v4481
  %4483 = vmatmul.bf16.gmra.mxu0 %v4169
  %v4484 = vpop.f32.mrf.mxu0
  %v4485 = vadd.f32 %v4436, %v4484
  %v4486 = vpop.f32.mrf.mxu0
  %v4487 = vadd.f32 %v4438, %v4486
  %4488 = vmatmul.bf16.gmra.mxu0 %v4173
  %v4489 = vpop.f32.mrf.mxu0
  %v4490 = vadd.f32 %v4441, %v4489
  %v4491 = vpop.f32.mrf.mxu0
  %v4492 = vadd.f32 %v4443, %v4491
  %4493 = vmatmul.bf16.gmra.mxu0 %v4177
  %v4494 = vpop.f32.mrf.mxu0
  %v4495 = vadd.f32 %v4446, %v4494
  %v4496 = vpop.f32.mrf.mxu0
  %v4497 = vadd.f32 %v4448, %v4496
  %4498 = vmatmul.bf16.gmra.mxu0 %v4181
  %v4499 = vpop.f32.mrf.mxu0
  %v4500 = vadd.f32 %v4451, %v4499
  %v4501 = vpop.f32.mrf.mxu0
  %v4502 = vadd.f32 %v4453, %v4501
  %4503 = vmatmul.bf16.gmra.mxu0 %v4185
  %v4504 = vpop.f32.mrf.mxu0
  %v4505 = vadd.f32 %v4456, %v4504
  %v4506 = vpop.f32.mrf.mxu0
  %v4507 = vadd.f32 %v4458, %v4506
  %4508 = vmatmul.bf16.gmra.mxu0 %v4189
  %v4509 = vpop.f32.mrf.mxu0
  %v4510 = vadd.f32 %v4461, %v4509
  %v4511 = vpop.f32.mrf.mxu0
  %v4512 = vadd.f32 %v4463, %v4511
  %4513 = vdwg.mxu0
  %4514 = vmatpush.bf16.msra.mxu0 %v4375
  %4515 = vmatpush.bf16.msra.mxu0 %v4374
  %4516 = vmatpush.bf16.msra.mxu0 %v4373
  %4517 = vmatpush.bf16.msra.mxu0 %v4372
  %4518 = vmatpush.bf16.msra.mxu0 %v4371
  %4519 = vmatpush.bf16.msra.mxu0 %v4370
  %4520 = vmatpush.bf16.msra.mxu0 %v4369
  %4521 = vmatpush.bf16.msra.mxu0 %v4368
  %4522 = vmatmul.bf16.gmra.mxu0 %v4162
  %v4523 = vpop.f32.mrf.mxu0
  %v4524 = vadd.f32 %v4475, %v4523
  %v4525 = vpop.f32.mrf.mxu0
  %v4526 = vadd.f32 %v4477, %v4525
  %4527 = vmatmul.bf16.gmra.mxu0 %v4166
  %v4528 = vpop.f32.mrf.mxu0
  %v4529 = vadd.f32 %v4480, %v4528
  %v4530 = vpop.f32.mrf.mxu0
  %v4531 = vadd.f32 %v4482, %v4530
  %4532 = vmatmul.bf16.gmra.mxu0 %v4170
  %v4533 = vpop.f32.mrf.mxu0
  %v4534 = vadd.f32 %v4485, %v4533
  %v4535 = vpop.f32.mrf.mxu0
  %v4536 = vadd.f32 %v4487, %v4535
  %4537 = vmatmul.bf16.gmra.mxu0 %v4174
  %v4538 = vpop.f32.mrf.mxu0
  %v4539 = vadd.f32 %v4490, %v4538
  %v4540 = vpop.f32.mrf.mxu0
  %v4541 = vadd.f32 %v4492, %v4540
  %4542 = vmatmul.bf16.gmra.mxu0 %v4178
  %v4543 = vpop.f32.mrf.mxu0
  %v4544 = vadd.f32 %v4495, %v4543
  %v4545 = vpop.f32.mrf.mxu0
  %v4546 = vadd.f32 %v4497, %v4545
  %4547 = vmatmul.bf16.gmra.mxu0 %v4182
  %v4548 = vpop.f32.mrf.mxu0
  %v4549 = vadd.f32 %v4500, %v4548
  %v4550 = vpop.f32.mrf.mxu0
  %v4551 = vadd.f32 %v4502, %v4550
  %4552 = vmatmul.bf16.gmra.mxu0 %v4186
  %v4553 = vpop.f32.mrf.mxu0
  %v4554 = vadd.f32 %v4505, %v4553
  %v4555 = vpop.f32.mrf.mxu0
  %v4556 = vadd.f32 %v4507, %v4555
  %4557 = vmatmul.bf16.gmra.mxu0 %v4190
  %v4558 = vpop.f32.mrf.mxu0
  %v4559 = vadd.f32 %v4510, %v4558
  %v4560 = vpop.f32.mrf.mxu0
  %v4561 = vadd.f32 %v4512, %v4560
  %4562 = vdwg.mxu0
  %4563 = vmatpush.bf16.msra.mxu0 %v4383
  %4564 = vmatpush.bf16.msra.mxu0 %v4382
  %4565 = vmatpush.bf16.msra.mxu0 %v4381
  %4566 = vmatpush.bf16.msra.mxu0 %v4380
  %4567 = vmatpush.bf16.msra.mxu0 %v4379
  %4568 = vmatpush.bf16.msra.mxu0 %v4378
  %4569 = vmatpush.bf16.msra.mxu0 %v4377
  %4570 = vmatpush.bf16.msra.mxu0 %v4376
  %4571 = vmatmul.bf16.gmra.mxu0 %v4163
  %v4572 = vpop.f32.mrf.mxu0
  %v4573 = vadd.f32 %v4524, %v4572
  %v4574 = vpop.f32.mrf.mxu0
  %v4575 = vadd.f32 %v4526, %v4574
  %4576 = vmatmul.bf16.gmra.mxu0 %v4167
  %v4577 = vpop.f32.mrf.mxu0
  %v4578 = vadd.f32 %v4529, %v4577
  %v4579 = vpop.f32.mrf.mxu0
  %v4580 = vadd.f32 %v4531, %v4579
  %4581 = vmatmul.bf16.gmra.mxu0 %v4171
  %v4582 = vpop.f32.mrf.mxu0
  %v4583 = vadd.f32 %v4534, %v4582
  %v4584 = vpop.f32.mrf.mxu0
  %v4585 = vadd.f32 %v4536, %v4584
  %4586 = vmatmul.bf16.gmra.mxu0 %v4175
  %v4587 = vpop.f32.mrf.mxu0
  %v4588 = vadd.f32 %v4539, %v4587
  %v4589 = vpop.f32.mrf.mxu0
  %v4590 = vadd.f32 %v4541, %v4589
  %4591 = vmatmul.bf16.gmra.mxu0 %v4179
  %v4592 = vpop.f32.mrf.mxu0
  %v4593 = vadd.f32 %v4544, %v4592
  %v4594 = vpop.f32.mrf.mxu0
  %v4595 = vadd.f32 %v4546, %v4594
  %4596 = vmatmul.bf16.gmra.mxu0 %v4183
  %v4597 = vpop.f32.mrf.mxu0
  %v4598 = vadd.f32 %v4549, %v4597
  %v4599 = vpop.f32.mrf.mxu0
  %v4600 = vadd.f32 %v4551, %v4599
  %4601 = vmatmul.bf16.gmra.mxu0 %v4187
  %v4602 = vpop.f32.mrf.mxu0
  %v4603 = vadd.f32 %v4554, %v4602
  %v4604 = vpop.f32.mrf.mxu0
  %v4605 = vadd.f32 %v4556, %v4604
  %4606 = vmatmul.bf16.gmra.mxu0 %v4191
  %v4607 = vpop.f32.mrf.mxu0
  %v4608 = vadd.f32 %v4559, %v4607
  %v4609 = vpop.f32.mrf.mxu0
  %v4610 = vadd.f32 %v4561, %v4609
  %4611 = vdwg.mxu0
  %v4612 = vadd.f32 %v3950, %v4573
  %v4613 = vadd.f32 %v3951, %v4575
  %v4614 = vadd.f32 %v3952, %v4578
  %v4615 = vadd.f32 %v3953, %v4580
  %v4616 = vadd.f32 %v3954, %v4583
  %v4617 = vadd.f32 %v3955, %v4585
  %v4618 = vadd.f32 %v3956, %v4588
  %v4619 = vadd.f32 %v3957, %v4590
  %v4620 = vadd.f32 %v3958, %v4593
  %v4621 = vadd.f32 %v3959, %v4595
  %v4622 = vadd.f32 %v3960, %v4598
  %v4623 = vadd.f32 %v3961, %v4600
  %v4624 = vadd.f32 %v3962, %v4603
  %v4625 = vadd.f32 %v3963, %v4605
  %v4626 = vadd.f32 %v3964, %v4608
  %v4627 = vadd.f32 %v3965, %v4610
  %s4628 = scalar_lea.vmem %s0, 1792
  %v4629 = vld [vmem:[%s4628] sm:$0xff]
  %v4630 = vld [vmem:[%s4628 + $0x8] sm:$0xff]
  %v4631 = vld [vmem:[%s4628 + $0x10] sm:$0xff]
  %v4632 = vld [vmem:[%s4628 + $0x18] sm:$0xff]
  %v4633 = vld [vmem:[%s4628 + $0x20] sm:$0xff]
  %v4634 = vld [vmem:[%s4628 + $0x28] sm:$0xff]
  %v4635 = vld [vmem:[%s4628 + $0x30] sm:$0xff]
  %v4636 = vld [vmem:[%s4628 + $0x38] sm:$0xff]
  %v4637 = vld [vmem:[%s4628 + $0x40] sm:$0xff]
  %v4638 = vld [vmem:[%s4628 + $0x48] sm:$0xff]
  %v4639 = vld [vmem:[%s4628 + $0x50] sm:$0xff]
  %v4640 = vld [vmem:[%s4628 + $0x58] sm:$0xff]
  %v4641 = vld [vmem:[%s4628 + $0x60] sm:$0xff]
  %v4642 = vld [vmem:[%s4628 + $0x68] sm:$0xff]
  %v4643 = vld [vmem:[%s4628 + $0x70] sm:$0xff]
  %v4644 = vld [vmem:[%s4628 + $0x78] sm:$0xff]
  %v4645 = vld [vmem:[%s4628 + $0x80] sm:$0xff]
  %v4646 = vld [vmem:[%s4628 + $0x88] sm:$0xff]
  %v4647 = vld [vmem:[%s4628 + $0x90] sm:$0xff]
  %v4648 = vld [vmem:[%s4628 + $0x98] sm:$0xff]
  %v4649 = vld [vmem:[%s4628 + $0xa0] sm:$0xff]
  %v4650 = vld [vmem:[%s4628 + $0xa8] sm:$0xff]
  %v4651 = vld [vmem:[%s4628 + $0xb0] sm:$0xff]
  %v4652 = vld [vmem:[%s4628 + $0xb8] sm:$0xff]
  %v4653 = vld [vmem:[%s4628 + $0xc0] sm:$0xff]
  %v4654 = vld [vmem:[%s4628 + $0xc8] sm:$0xff]
  %v4655 = vld [vmem:[%s4628 + $0xd0] sm:$0xff]
  %v4656 = vld [vmem:[%s4628 + $0xd8] sm:$0xff]
  %v4657 = vld [vmem:[%s4628 + $0xe0] sm:$0xff]
  %v4658 = vld [vmem:[%s4628 + $0xe8] sm:$0xff]
  %v4659 = vld [vmem:[%s4628 + $0xf0] sm:$0xff]
  %v4660 = vld [vmem:[%s4628 + $0xf8] sm:$0xff]
  %s4661 = scalar_lea.vmem %s1, 1792
  %v4662 = vld [vmem:[%s4661] sm:$0xf]
  %v4663 = vld [vmem:[%s4661 + $0x4] sm:$0xf]
  %v4664 = vld [vmem:[%s4661 + $0x8] sm:$0xf]
  %v4665 = vld [vmem:[%s4661 + $0xc] sm:$0xf]
  %v4666 = vld [vmem:[%s4661 + $0x10] sm:$0xf]
  %v4667 = vld [vmem:[%s4661 + $0x14] sm:$0xf]
  %v4668 = vld [vmem:[%s4661 + $0x18] sm:$0xf]
  %v4669 = vld [vmem:[%s4661 + $0x1c] sm:$0xf]
  %v4670 = vld [vmem:[%s4661 + $0x20] sm:$0xf]
  %v4671 = vld [vmem:[%s4661 + $0x24] sm:$0xf]
  %v4672 = vld [vmem:[%s4661 + $0x28] sm:$0xf]
  %v4673 = vld [vmem:[%s4661 + $0x2c] sm:$0xf]
  %v4674 = vld [vmem:[%s4661 + $0x30] sm:$0xf]
  %v4675 = vld [vmem:[%s4661 + $0x34] sm:$0xf]
  %v4676 = vld [vmem:[%s4661 + $0x38] sm:$0xf]
  %v4677 = vld [vmem:[%s4661 + $0x3c] sm:$0xf]
  %v4678 = vld [vmem:[%s4661 + $0x40] sm:$0xf]
  %v4679 = vld [vmem:[%s4661 + $0x44] sm:$0xf]
  %v4680 = vld [vmem:[%s4661 + $0x48] sm:$0xf]
  %v4681 = vld [vmem:[%s4661 + $0x4c] sm:$0xf]
  %v4682 = vld [vmem:[%s4661 + $0x50] sm:$0xf]
  %v4683 = vld [vmem:[%s4661 + $0x54] sm:$0xf]
  %v4684 = vld [vmem:[%s4661 + $0x58] sm:$0xf]
  %v4685 = vld [vmem:[%s4661 + $0x5c] sm:$0xf]
  %v4686 = vld [vmem:[%s4661 + $0x60] sm:$0xf]
  %v4687 = vld [vmem:[%s4661 + $0x64] sm:$0xf]
  %v4688 = vld [vmem:[%s4661 + $0x68] sm:$0xf]
  %v4689 = vld [vmem:[%s4661 + $0x6c] sm:$0xf]
  %v4690 = vld [vmem:[%s4661 + $0x70] sm:$0xf]
  %v4691 = vld [vmem:[%s4661 + $0x74] sm:$0xf]
  %v4692 = vld [vmem:[%s4661 + $0x78] sm:$0xf]
  %v4693 = vld [vmem:[%s4661 + $0x7c] sm:$0xf]
  %v4694 = vld [vmem:[%s4661 + $0x80] sm:$0xf]
  %v4695 = vld [vmem:[%s4661 + $0x84] sm:$0xf]
  %v4696 = vld [vmem:[%s4661 + $0x88] sm:$0xf]
  %v4697 = vld [vmem:[%s4661 + $0x8c] sm:$0xf]
  %v4698 = vld [vmem:[%s4661 + $0x90] sm:$0xf]
  %v4699 = vld [vmem:[%s4661 + $0x94] sm:$0xf]
  %v4700 = vld [vmem:[%s4661 + $0x98] sm:$0xf]
  %v4701 = vld [vmem:[%s4661 + $0x9c] sm:$0xf]
  %v4702 = vld [vmem:[%s4661 + $0xa0] sm:$0xf]
  %v4703 = vld [vmem:[%s4661 + $0xa4] sm:$0xf]
  %v4704 = vld [vmem:[%s4661 + $0xa8] sm:$0xf]
  %v4705 = vld [vmem:[%s4661 + $0xac] sm:$0xf]
  %v4706 = vld [vmem:[%s4661 + $0xb0] sm:$0xf]
  %v4707 = vld [vmem:[%s4661 + $0xb4] sm:$0xf]
  %v4708 = vld [vmem:[%s4661 + $0xb8] sm:$0xf]
  %v4709 = vld [vmem:[%s4661 + $0xbc] sm:$0xf]
  %v4710 = vld [vmem:[%s4661 + $0xc0] sm:$0xf]
  %v4711 = vld [vmem:[%s4661 + $0xc4] sm:$0xf]
  %v4712 = vld [vmem:[%s4661 + $0xc8] sm:$0xf]
  %v4713 = vld [vmem:[%s4661 + $0xcc] sm:$0xf]
  %v4714 = vld [vmem:[%s4661 + $0xd0] sm:$0xf]
  %v4715 = vld [vmem:[%s4661 + $0xd4] sm:$0xf]
  %v4716 = vld [vmem:[%s4661 + $0xd8] sm:$0xf]
  %v4717 = vld [vmem:[%s4661 + $0xdc] sm:$0xf]
  %v4718 = vld [vmem:[%s4661 + $0xe0] sm:$0xf]
  %v4719 = vld [vmem:[%s4661 + $0xe4] sm:$0xf]
  %v4720 = vld [vmem:[%s4661 + $0xe8] sm:$0xf]
  %v4721 = vld [vmem:[%s4661 + $0xec] sm:$0xf]
  %v4722 = vld [vmem:[%s4661 + $0xf0] sm:$0xf]
  %v4723 = vld [vmem:[%s4661 + $0xf4] sm:$0xf]
  %v4724 = vld [vmem:[%s4661 + $0xf8] sm:$0xf]
  %v4725 = vld [vmem:[%s4661 + $0xfc] sm:$0xf]
  %v4758 = vunpack.c.l.b16 %v4629
  %v4759 = vunpack.c.h.b16 %v4629
  %v4760 = vunpack.c.l.b16 %v4630
  %v4761 = vunpack.c.h.b16 %v4630
  %v4762 = vunpack.c.l.b16 %v4631
  %v4763 = vunpack.c.h.b16 %v4631
  %v4764 = vunpack.c.l.b16 %v4632
  %v4765 = vunpack.c.h.b16 %v4632
  %v4766 = vunpack.c.l.b16 %v4633
  %v4767 = vunpack.c.h.b16 %v4633
  %v4768 = vunpack.c.l.b16 %v4634
  %v4769 = vunpack.c.h.b16 %v4634
  %v4770 = vunpack.c.l.b16 %v4635
  %v4771 = vunpack.c.h.b16 %v4635
  %v4772 = vunpack.c.l.b16 %v4636
  %v4773 = vunpack.c.h.b16 %v4636
  %v4774 = vunpack.c.l.b16 %v4637
  %v4775 = vunpack.c.h.b16 %v4637
  %v4776 = vunpack.c.l.b16 %v4638
  %v4777 = vunpack.c.h.b16 %v4638
  %v4778 = vunpack.c.l.b16 %v4639
  %v4779 = vunpack.c.h.b16 %v4639
  %v4780 = vunpack.c.l.b16 %v4640
  %v4781 = vunpack.c.h.b16 %v4640
  %v4782 = vunpack.c.l.b16 %v4641
  %v4783 = vunpack.c.h.b16 %v4641
  %v4784 = vunpack.c.l.b16 %v4642
  %v4785 = vunpack.c.h.b16 %v4642
  %v4786 = vunpack.c.l.b16 %v4643
  %v4787 = vunpack.c.h.b16 %v4643
  %v4788 = vunpack.c.l.b16 %v4644
  %v4789 = vunpack.c.h.b16 %v4644
  %v4790 = vunpack.c.l.b16 %v4645
  %v4791 = vunpack.c.h.b16 %v4645
  %v4792 = vunpack.c.l.b16 %v4646
  %v4793 = vunpack.c.h.b16 %v4646
  %v4794 = vunpack.c.l.b16 %v4647
  %v4795 = vunpack.c.h.b16 %v4647
  %v4796 = vunpack.c.l.b16 %v4648
  %v4797 = vunpack.c.h.b16 %v4648
  %v4798 = vunpack.c.l.b16 %v4649
  %v4799 = vunpack.c.h.b16 %v4649
  %v4800 = vunpack.c.l.b16 %v4650
  %v4801 = vunpack.c.h.b16 %v4650
  %v4802 = vunpack.c.l.b16 %v4651
  %v4803 = vunpack.c.h.b16 %v4651
  %v4804 = vunpack.c.l.b16 %v4652
  %v4805 = vunpack.c.h.b16 %v4652
  %v4806 = vunpack.c.l.b16 %v4653
  %v4807 = vunpack.c.h.b16 %v4653
  %v4808 = vunpack.c.l.b16 %v4654
  %v4809 = vunpack.c.h.b16 %v4654
  %v4810 = vunpack.c.l.b16 %v4655
  %v4811 = vunpack.c.h.b16 %v4655
  %v4812 = vunpack.c.l.b16 %v4656
  %v4813 = vunpack.c.h.b16 %v4656
  %v4814 = vunpack.c.l.b16 %v4657
  %v4815 = vunpack.c.h.b16 %v4657
  %v4816 = vunpack.c.l.b16 %v4658
  %v4817 = vunpack.c.h.b16 %v4658
  %v4818 = vunpack.c.l.b16 %v4659
  %v4819 = vunpack.c.h.b16 %v4659
  %v4820 = vunpack.c.l.b16 %v4660
  %v4821 = vunpack.c.h.b16 %v4660
  %v4822 = vpack.c.b16 %v4762, %v4758
  %v4823 = vpack.c.b16 %v4763, %v4759
  %v4824 = vpack.c.b16 %v4764, %v4760
  %v4825 = vpack.c.b16 %v4765, %v4761
  %v4826 = vpack.c.b16 %v4770, %v4766
  %v4827 = vpack.c.b16 %v4771, %v4767
  %v4828 = vpack.c.b16 %v4772, %v4768
  %v4829 = vpack.c.b16 %v4773, %v4769
  %v4830 = vpack.c.b16 %v4778, %v4774
  %v4831 = vpack.c.b16 %v4779, %v4775
  %v4832 = vpack.c.b16 %v4780, %v4776
  %v4833 = vpack.c.b16 %v4781, %v4777
  %v4834 = vpack.c.b16 %v4786, %v4782
  %v4835 = vpack.c.b16 %v4787, %v4783
  %v4836 = vpack.c.b16 %v4788, %v4784
  %v4837 = vpack.c.b16 %v4789, %v4785
  %v4838 = vpack.c.b16 %v4794, %v4790
  %v4839 = vpack.c.b16 %v4795, %v4791
  %v4840 = vpack.c.b16 %v4796, %v4792
  %v4841 = vpack.c.b16 %v4797, %v4793
  %v4842 = vpack.c.b16 %v4802, %v4798
  %v4843 = vpack.c.b16 %v4803, %v4799
  %v4844 = vpack.c.b16 %v4804, %v4800
  %v4845 = vpack.c.b16 %v4805, %v4801
  %v4846 = vpack.c.b16 %v4810, %v4806
  %v4847 = vpack.c.b16 %v4811, %v4807
  %v4848 = vpack.c.b16 %v4812, %v4808
  %v4849 = vpack.c.b16 %v4813, %v4809
  %v4850 = vpack.c.b16 %v4818, %v4814
  %v4851 = vpack.c.b16 %v4819, %v4815
  %v4852 = vpack.c.b16 %v4820, %v4816
  %v4853 = vpack.c.b16 %v4821, %v4817
  %v4950 = vunpack.c.l.b16 %v4662
  %v4951 = vunpack.c.l.b16 %v4663
  %v4952 = vunpack.c.l.b16 %v4664
  %v4953 = vunpack.c.l.b16 %v4665
  %v4954 = vunpack.c.l.b16 %v4666
  %v4955 = vunpack.c.l.b16 %v4667
  %v4956 = vunpack.c.l.b16 %v4668
  %v4957 = vunpack.c.l.b16 %v4669
  %v4958 = vunpack.c.l.b16 %v4670
  %v4959 = vunpack.c.l.b16 %v4671
  %v4960 = vunpack.c.l.b16 %v4672
  %v4961 = vunpack.c.l.b16 %v4673
  %v4962 = vunpack.c.l.b16 %v4674
  %v4963 = vunpack.c.l.b16 %v4675
  %v4964 = vunpack.c.l.b16 %v4676
  %v4965 = vunpack.c.l.b16 %v4677
  %v4966 = vunpack.c.l.b16 %v4678
  %v4967 = vunpack.c.l.b16 %v4679
  %v4968 = vunpack.c.l.b16 %v4680
  %v4969 = vunpack.c.l.b16 %v4681
  %v4970 = vunpack.c.l.b16 %v4682
  %v4971 = vunpack.c.l.b16 %v4683
  %v4972 = vunpack.c.l.b16 %v4684
  %v4973 = vunpack.c.l.b16 %v4685
  %v4974 = vunpack.c.l.b16 %v4686
  %v4975 = vunpack.c.l.b16 %v4687
  %v4976 = vunpack.c.l.b16 %v4688
  %v4977 = vunpack.c.l.b16 %v4689
  %v4978 = vunpack.c.l.b16 %v4690
  %v4979 = vunpack.c.l.b16 %v4691
  %v4980 = vunpack.c.l.b16 %v4692
  %v4981 = vunpack.c.l.b16 %v4693
  %v4982 = vunpack.c.l.b16 %v4694
  %v4983 = vunpack.c.l.b16 %v4695
  %v4984 = vunpack.c.l.b16 %v4696
  %v4985 = vunpack.c.l.b16 %v4697
  %v4986 = vunpack.c.l.b16 %v4698
  %v4987 = vunpack.c.l.b16 %v4699
  %v4988 = vunpack.c.l.b16 %v4700
  %v4989 = vunpack.c.l.b16 %v4701
  %v4990 = vunpack.c.l.b16 %v4702
  %v4991 = vunpack.c.l.b16 %v4703
  %v4992 = vunpack.c.l.b16 %v4704
  %v4993 = vunpack.c.l.b16 %v4705
  %v4994 = vunpack.c.l.b16 %v4706
  %v4995 = vunpack.c.l.b16 %v4707
  %v4996 = vunpack.c.l.b16 %v4708
  %v4997 = vunpack.c.l.b16 %v4709
  %v4998 = vunpack.c.l.b16 %v4710
  %v4999 = vunpack.c.l.b16 %v4711
  %v5000 = vunpack.c.l.b16 %v4712
  %v5001 = vunpack.c.l.b16 %v4713
  %v5002 = vunpack.c.l.b16 %v4714
  %v5003 = vunpack.c.l.b16 %v4715
  %v5004 = vunpack.c.l.b16 %v4716
  %v5005 = vunpack.c.l.b16 %v4717
  %v5006 = vunpack.c.l.b16 %v4718
  %v5007 = vunpack.c.l.b16 %v4719
  %v5008 = vunpack.c.l.b16 %v4720
  %v5009 = vunpack.c.l.b16 %v4721
  %v5010 = vunpack.c.l.b16 %v4722
  %v5011 = vunpack.c.l.b16 %v4723
  %v5012 = vunpack.c.l.b16 %v4724
  %v5013 = vunpack.c.l.b16 %v4725
  %v5014 = vpack.c.b16 %v4951, %v4950
  %v5015 = vpack.c.b16 %v4953, %v4952
  %v5016 = vpack.c.b16 %v4955, %v4954
  %v5017 = vpack.c.b16 %v4957, %v4956
  %v5018 = vpack.c.b16 %v4959, %v4958
  %v5019 = vpack.c.b16 %v4961, %v4960
  %v5020 = vpack.c.b16 %v4963, %v4962
  %v5021 = vpack.c.b16 %v4965, %v4964
  %v5022 = vpack.c.b16 %v4967, %v4966
  %v5023 = vpack.c.b16 %v4969, %v4968
  %v5024 = vpack.c.b16 %v4971, %v4970
  %v5025 = vpack.c.b16 %v4973, %v4972
  %v5026 = vpack.c.b16 %v4975, %v4974
  %v5027 = vpack.c.b16 %v4977, %v4976
  %v5028 = vpack.c.b16 %v4979, %v4978
  %v5029 = vpack.c.b16 %v4981, %v4980
  %v5030 = vpack.c.b16 %v4983, %v4982
  %v5031 = vpack.c.b16 %v4985, %v4984
  %v5032 = vpack.c.b16 %v4987, %v4986
  %v5033 = vpack.c.b16 %v4989, %v4988
  %v5034 = vpack.c.b16 %v4991, %v4990
  %v5035 = vpack.c.b16 %v4993, %v4992
  %v5036 = vpack.c.b16 %v4995, %v4994
  %v5037 = vpack.c.b16 %v4997, %v4996
  %v5038 = vpack.c.b16 %v4999, %v4998
  %v5039 = vpack.c.b16 %v5001, %v5000
  %v5040 = vpack.c.b16 %v5003, %v5002
  %v5041 = vpack.c.b16 %v5005, %v5004
  %v5042 = vpack.c.b16 %v5007, %v5006
  %v5043 = vpack.c.b16 %v5009, %v5008
  %v5044 = vpack.c.b16 %v5011, %v5010
  %v5045 = vpack.c.b16 %v5013, %v5012
  %5078 = vmatpush.bf16.msra.mxu0 %v5021
  %5079 = vmatpush.bf16.msra.mxu0 %v5020
  %5080 = vmatpush.bf16.msra.mxu0 %v5019
  %5081 = vmatpush.bf16.msra.mxu0 %v5018
  %5082 = vmatpush.bf16.msra.mxu0 %v5017
  %5083 = vmatpush.bf16.msra.mxu0 %v5016
  %5084 = vmatpush.bf16.msra.mxu0 %v5015
  %5085 = vmatpush.bf16.msra.mxu0 %v5014
  %5086 = vmatmul.bf16.gmra.mxu0 %v4822
  %v5087 = vpop.f32.mrf.mxu0
  %v5088 = vadd.f32 0.0, %v5087
  %v5089 = vpop.f32.mrf.mxu0
  %v5090 = vadd.f32 0.0, %v5089
  %5091 = vmatmul.bf16.gmra.mxu0 %v4826
  %v5092 = vpop.f32.mrf.mxu0
  %v5093 = vadd.f32 0.0, %v5092
  %v5094 = vpop.f32.mrf.mxu0
  %v5095 = vadd.f32 0.0, %v5094
  %5096 = vmatmul.bf16.gmra.mxu0 %v4830
  %v5097 = vpop.f32.mrf.mxu0
  %v5098 = vadd.f32 0.0, %v5097
  %v5099 = vpop.f32.mrf.mxu0
  %v5100 = vadd.f32 0.0, %v5099
  %5101 = vmatmul.bf16.gmra.mxu0 %v4834
  %v5102 = vpop.f32.mrf.mxu0
  %v5103 = vadd.f32 0.0, %v5102
  %v5104 = vpop.f32.mrf.mxu0
  %v5105 = vadd.f32 0.0, %v5104
  %5106 = vmatmul.bf16.gmra.mxu0 %v4838
  %v5107 = vpop.f32.mrf.mxu0
  %v5108 = vadd.f32 0.0, %v5107
  %v5109 = vpop.f32.mrf.mxu0
  %v5110 = vadd.f32 0.0, %v5109
  %5111 = vmatmul.bf16.gmra.mxu0 %v4842
  %v5112 = vpop.f32.mrf.mxu0
  %v5113 = vadd.f32 0.0, %v5112
  %v5114 = vpop.f32.mrf.mxu0
  %v5115 = vadd.f32 0.0, %v5114
  %5116 = vmatmul.bf16.gmra.mxu0 %v4846
  %v5117 = vpop.f32.mrf.mxu0
  %v5118 = vadd.f32 0.0, %v5117
  %v5119 = vpop.f32.mrf.mxu0
  %v5120 = vadd.f32 0.0, %v5119
  %5121 = vmatmul.bf16.gmra.mxu0 %v4850
  %v5122 = vpop.f32.mrf.mxu0
  %v5123 = vadd.f32 0.0, %v5122
  %v5124 = vpop.f32.mrf.mxu0
  %v5125 = vadd.f32 0.0, %v5124
  %5126 = vdwg.mxu0
  %5127 = vmatpush.bf16.msra.mxu0 %v5029
  %5128 = vmatpush.bf16.msra.mxu0 %v5028
  %5129 = vmatpush.bf16.msra.mxu0 %v5027
  %5130 = vmatpush.bf16.msra.mxu0 %v5026
  %5131 = vmatpush.bf16.msra.mxu0 %v5025
  %5132 = vmatpush.bf16.msra.mxu0 %v5024
  %5133 = vmatpush.bf16.msra.mxu0 %v5023
  %5134 = vmatpush.bf16.msra.mxu0 %v5022
  %5135 = vmatmul.bf16.gmra.mxu0 %v4823
  %v5136 = vpop.f32.mrf.mxu0
  %v5137 = vadd.f32 %v5088, %v5136
  %v5138 = vpop.f32.mrf.mxu0
  %v5139 = vadd.f32 %v5090, %v5138
  %5140 = vmatmul.bf16.gmra.mxu0 %v4827
  %v5141 = vpop.f32.mrf.mxu0
  %v5142 = vadd.f32 %v5093, %v5141
  %v5143 = vpop.f32.mrf.mxu0
  %v5144 = vadd.f32 %v5095, %v5143
  %5145 = vmatmul.bf16.gmra.mxu0 %v4831
  %v5146 = vpop.f32.mrf.mxu0
  %v5147 = vadd.f32 %v5098, %v5146
  %v5148 = vpop.f32.mrf.mxu0
  %v5149 = vadd.f32 %v5100, %v5148
  %5150 = vmatmul.bf16.gmra.mxu0 %v4835
  %v5151 = vpop.f32.mrf.mxu0
  %v5152 = vadd.f32 %v5103, %v5151
  %v5153 = vpop.f32.mrf.mxu0
  %v5154 = vadd.f32 %v5105, %v5153
  %5155 = vmatmul.bf16.gmra.mxu0 %v4839
  %v5156 = vpop.f32.mrf.mxu0
  %v5157 = vadd.f32 %v5108, %v5156
  %v5158 = vpop.f32.mrf.mxu0
  %v5159 = vadd.f32 %v5110, %v5158
  %5160 = vmatmul.bf16.gmra.mxu0 %v4843
  %v5161 = vpop.f32.mrf.mxu0
  %v5162 = vadd.f32 %v5113, %v5161
  %v5163 = vpop.f32.mrf.mxu0
  %v5164 = vadd.f32 %v5115, %v5163
  %5165 = vmatmul.bf16.gmra.mxu0 %v4847
  %v5166 = vpop.f32.mrf.mxu0
  %v5167 = vadd.f32 %v5118, %v5166
  %v5168 = vpop.f32.mrf.mxu0
  %v5169 = vadd.f32 %v5120, %v5168
  %5170 = vmatmul.bf16.gmra.mxu0 %v4851
  %v5171 = vpop.f32.mrf.mxu0
  %v5172 = vadd.f32 %v5123, %v5171
  %v5173 = vpop.f32.mrf.mxu0
  %v5174 = vadd.f32 %v5125, %v5173
  %5175 = vdwg.mxu0
  %5176 = vmatpush.bf16.msra.mxu0 %v5037
  %5177 = vmatpush.bf16.msra.mxu0 %v5036
  %5178 = vmatpush.bf16.msra.mxu0 %v5035
  %5179 = vmatpush.bf16.msra.mxu0 %v5034
  %5180 = vmatpush.bf16.msra.mxu0 %v5033
  %5181 = vmatpush.bf16.msra.mxu0 %v5032
  %5182 = vmatpush.bf16.msra.mxu0 %v5031
  %5183 = vmatpush.bf16.msra.mxu0 %v5030
  %5184 = vmatmul.bf16.gmra.mxu0 %v4824
  %v5185 = vpop.f32.mrf.mxu0
  %v5186 = vadd.f32 %v5137, %v5185
  %v5187 = vpop.f32.mrf.mxu0
  %v5188 = vadd.f32 %v5139, %v5187
  %5189 = vmatmul.bf16.gmra.mxu0 %v4828
  %v5190 = vpop.f32.mrf.mxu0
  %v5191 = vadd.f32 %v5142, %v5190
  %v5192 = vpop.f32.mrf.mxu0
  %v5193 = vadd.f32 %v5144, %v5192
  %5194 = vmatmul.bf16.gmra.mxu0 %v4832
  %v5195 = vpop.f32.mrf.mxu0
  %v5196 = vadd.f32 %v5147, %v5195
  %v5197 = vpop.f32.mrf.mxu0
  %v5198 = vadd.f32 %v5149, %v5197
  %5199 = vmatmul.bf16.gmra.mxu0 %v4836
  %v5200 = vpop.f32.mrf.mxu0
  %v5201 = vadd.f32 %v5152, %v5200
  %v5202 = vpop.f32.mrf.mxu0
  %v5203 = vadd.f32 %v5154, %v5202
  %5204 = vmatmul.bf16.gmra.mxu0 %v4840
  %v5205 = vpop.f32.mrf.mxu0
  %v5206 = vadd.f32 %v5157, %v5205
  %v5207 = vpop.f32.mrf.mxu0
  %v5208 = vadd.f32 %v5159, %v5207
  %5209 = vmatmul.bf16.gmra.mxu0 %v4844
  %v5210 = vpop.f32.mrf.mxu0
  %v5211 = vadd.f32 %v5162, %v5210
  %v5212 = vpop.f32.mrf.mxu0
  %v5213 = vadd.f32 %v5164, %v5212
  %5214 = vmatmul.bf16.gmra.mxu0 %v4848
  %v5215 = vpop.f32.mrf.mxu0
  %v5216 = vadd.f32 %v5167, %v5215
  %v5217 = vpop.f32.mrf.mxu0
  %v5218 = vadd.f32 %v5169, %v5217
  %5219 = vmatmul.bf16.gmra.mxu0 %v4852
  %v5220 = vpop.f32.mrf.mxu0
  %v5221 = vadd.f32 %v5172, %v5220
  %v5222 = vpop.f32.mrf.mxu0
  %v5223 = vadd.f32 %v5174, %v5222
  %5224 = vdwg.mxu0
  %5225 = vmatpush.bf16.msra.mxu0 %v5045
  %5226 = vmatpush.bf16.msra.mxu0 %v5044
  %5227 = vmatpush.bf16.msra.mxu0 %v5043
  %5228 = vmatpush.bf16.msra.mxu0 %v5042
  %5229 = vmatpush.bf16.msra.mxu0 %v5041
  %5230 = vmatpush.bf16.msra.mxu0 %v5040
  %5231 = vmatpush.bf16.msra.mxu0 %v5039
  %5232 = vmatpush.bf16.msra.mxu0 %v5038
  %5233 = vmatmul.bf16.gmra.mxu0 %v4825
  %v5234 = vpop.f32.mrf.mxu0
  %v5235 = vadd.f32 %v5186, %v5234
  %v5236 = vpop.f32.mrf.mxu0
  %v5237 = vadd.f32 %v5188, %v5236
  %5238 = vmatmul.bf16.gmra.mxu0 %v4829
  %v5239 = vpop.f32.mrf.mxu0
  %v5240 = vadd.f32 %v5191, %v5239
  %v5241 = vpop.f32.mrf.mxu0
  %v5242 = vadd.f32 %v5193, %v5241
  %5243 = vmatmul.bf16.gmra.mxu0 %v4833
  %v5244 = vpop.f32.mrf.mxu0
  %v5245 = vadd.f32 %v5196, %v5244
  %v5246 = vpop.f32.mrf.mxu0
  %v5247 = vadd.f32 %v5198, %v5246
  %5248 = vmatmul.bf16.gmra.mxu0 %v4837
  %v5249 = vpop.f32.mrf.mxu0
  %v5250 = vadd.f32 %v5201, %v5249
  %v5251 = vpop.f32.mrf.mxu0
  %v5252 = vadd.f32 %v5203, %v5251
  %5253 = vmatmul.bf16.gmra.mxu0 %v4841
  %v5254 = vpop.f32.mrf.mxu0
  %v5255 = vadd.f32 %v5206, %v5254
  %v5256 = vpop.f32.mrf.mxu0
  %v5257 = vadd.f32 %v5208, %v5256
  %5258 = vmatmul.bf16.gmra.mxu0 %v4845
  %v5259 = vpop.f32.mrf.mxu0
  %v5260 = vadd.f32 %v5211, %v5259
  %v5261 = vpop.f32.mrf.mxu0
  %v5262 = vadd.f32 %v5213, %v5261
  %5263 = vmatmul.bf16.gmra.mxu0 %v4849
  %v5264 = vpop.f32.mrf.mxu0
  %v5265 = vadd.f32 %v5216, %v5264
  %v5266 = vpop.f32.mrf.mxu0
  %v5267 = vadd.f32 %v5218, %v5266
  %5268 = vmatmul.bf16.gmra.mxu0 %v4853
  %v5269 = vpop.f32.mrf.mxu0
  %v5270 = vadd.f32 %v5221, %v5269
  %v5271 = vpop.f32.mrf.mxu0
  %v5272 = vadd.f32 %v5223, %v5271
  %5273 = vdwg.mxu0
  %v5274 = vadd.f32 %v4612, %v5235
  %v5275 = vadd.f32 %v4613, %v5237
  %v5276 = vadd.f32 %v4614, %v5240
  %v5277 = vadd.f32 %v4615, %v5242
  %v5278 = vadd.f32 %v4616, %v5245
  %v5279 = vadd.f32 %v4617, %v5247
  %v5280 = vadd.f32 %v4618, %v5250
  %v5281 = vadd.f32 %v4619, %v5252
  %v5282 = vadd.f32 %v4620, %v5255
  %v5283 = vadd.f32 %v4621, %v5257
  %v5284 = vadd.f32 %v4622, %v5260
  %v5285 = vadd.f32 %v4623, %v5262
  %v5286 = vadd.f32 %v4624, %v5265
  %v5287 = vadd.f32 %v4625, %v5267
  %v5288 = vadd.f32 %v4626, %v5270
  %v5289 = vadd.f32 %v4627, %v5272
  %v5290 = vld [vmem:[%s2] sm:$0x1]
  %v5292 = vperm.slane %v5290, 0
  %v5294 = vadd.f32 %v5274, %v5292
  %v5295 = vadd.f32 %v5275, %v5292
  %v5296 = vadd.f32 %v5276, %v5292
  %v5297 = vadd.f32 %v5277, %v5292
  %v5298 = vadd.f32 %v5278, %v5292
  %v5299 = vadd.f32 %v5279, %v5292
  %v5300 = vadd.f32 %v5280, %v5292
  %v5301 = vadd.f32 %v5281, %v5292
  %v5302 = vadd.f32 %v5282, %v5292
  %v5303 = vadd.f32 %v5283, %v5292
  %v5304 = vadd.f32 %v5284, %v5292
  %v5305 = vadd.f32 %v5285, %v5292
  %v5306 = vadd.f32 %v5286, %v5292
  %v5307 = vadd.f32 %v5287, %v5292
  %v5308 = vadd.f32 %v5288, %v5292
  %v5309 = vadd.f32 %v5289, %v5292
  %v5310 = vmax.f32 %v5294, 0.0
  %v5311 = vmax.f32 %v5295, 0.0
  %v5312 = vmax.f32 %v5296, 0.0
  %v5313 = vmax.f32 %v5297, 0.0
  %v5314 = vmax.f32 %v5298, 0.0
  %v5315 = vmax.f32 %v5299, 0.0
  %v5316 = vmax.f32 %v5300, 0.0
  %v5317 = vmax.f32 %v5301, 0.0
  %v5318 = vmax.f32 %v5302, 0.0
  %v5319 = vmax.f32 %v5303, 0.0
  %v5320 = vmax.f32 %v5304, 0.0
  %v5321 = vmax.f32 %v5305, 0.0
  %v5322 = vmax.f32 %v5306, 0.0
  %v5323 = vmax.f32 %v5307, 0.0
  %v5324 = vmax.f32 %v5308, 0.0
  %v5325 = vmax.f32 %v5309, 0.0
  %v5326 = vpack.c.bf16 %v5310, %v5310
  %v5327 = vpack.c.bf16 %v5311, %v5311
  %v5328 = vpack.c.bf16 %v5312, %v5312
  %v5329 = vpack.c.bf16 %v5313, %v5313
  %v5330 = vpack.c.bf16 %v5314, %v5314
  %v5331 = vpack.c.bf16 %v5315, %v5315
  %v5332 = vpack.c.bf16 %v5316, %v5316
  %v5333 = vpack.c.bf16 %v5317, %v5317
  %v5334 = vpack.c.bf16 %v5318, %v5318
  %v5335 = vpack.c.bf16 %v5319, %v5319
  %v5336 = vpack.c.bf16 %v5320, %v5320
  %v5337 = vpack.c.bf16 %v5321, %v5321
  %v5338 = vpack.c.bf16 %v5322, %v5322
  %v5339 = vpack.c.bf16 %v5323, %v5323
  %v5340 = vpack.c.bf16 %v5324, %v5324
  %v5341 = vpack.c.bf16 %v5325, %v5325
  %v5342 = vld [vmem:[%s3] sm:$0xff]
  %v5343 = vld [vmem:[%s3 + $0x8] sm:$0xff]
  %v5344 = vld [vmem:[%s3 + $0x10] sm:$0xff]
  %v5345 = vld [vmem:[%s3 + $0x18] sm:$0xff]
  %v5346 = vld [vmem:[%s3 + $0x20] sm:$0xff]
  %v5347 = vld [vmem:[%s3 + $0x28] sm:$0xff]
  %v5348 = vld [vmem:[%s3 + $0x30] sm:$0xff]
  %v5349 = vld [vmem:[%s3 + $0x38] sm:$0xff]
  %v5350 = vld [vmem:[%s3 + $0x40] sm:$0xff]
  %v5351 = vld [vmem:[%s3 + $0x48] sm:$0xff]
  %v5352 = vld [vmem:[%s3 + $0x50] sm:$0xff]
  %v5353 = vld [vmem:[%s3 + $0x58] sm:$0xff]
  %v5354 = vld [vmem:[%s3 + $0x60] sm:$0xff]
  %v5355 = vld [vmem:[%s3 + $0x68] sm:$0xff]
  %v5356 = vld [vmem:[%s3 + $0x70] sm:$0xff]
  %v5357 = vld [vmem:[%s3 + $0x78] sm:$0xff]
  %s5358 = scalar_lea.vmem %s3, 128
  %v5359 = vld [vmem:[%s5358] sm:$0xff]
  %v5360 = vld [vmem:[%s5358 + $0x8] sm:$0xff]
  %v5361 = vld [vmem:[%s5358 + $0x10] sm:$0xff]
  %v5362 = vld [vmem:[%s5358 + $0x18] sm:$0xff]
  %v5363 = vld [vmem:[%s5358 + $0x20] sm:$0xff]
  %v5364 = vld [vmem:[%s5358 + $0x28] sm:$0xff]
  %v5365 = vld [vmem:[%s5358 + $0x30] sm:$0xff]
  %v5366 = vld [vmem:[%s5358 + $0x38] sm:$0xff]
  %v5367 = vld [vmem:[%s5358 + $0x40] sm:$0xff]
  %v5368 = vld [vmem:[%s5358 + $0x48] sm:$0xff]
  %v5369 = vld [vmem:[%s5358 + $0x50] sm:$0xff]
  %v5370 = vld [vmem:[%s5358 + $0x58] sm:$0xff]
  %v5371 = vld [vmem:[%s5358 + $0x60] sm:$0xff]
  %v5372 = vld [vmem:[%s5358 + $0x68] sm:$0xff]
  %v5373 = vld [vmem:[%s5358 + $0x70] sm:$0xff]
  %v5374 = vld [vmem:[%s5358 + $0x78] sm:$0xff]
  %v5377 = vunpack.c.l.b16 %v5328
  %v5378 = vunpack.c.l.b16 %v5329
  %v5379 = vpack.c.b16 %v5378, %v5377
  %v5397 = vunpack.c.l.b16 %v5359
  %v5398 = vunpack.c.h.b16 %v5359
  %v5399 = vunpack.c.l.b16 %v5360
  %v5400 = vunpack.c.h.b16 %v5360
  %v5401 = vunpack.c.l.b16 %v5361
  %v5402 = vunpack.c.h.b16 %v5361
  %v5403 = vunpack.c.l.b16 %v5362
  %v5404 = vunpack.c.h.b16 %v5362
  %v5405 = vunpack.c.l.b16 %v5363
  %v5406 = vunpack.c.h.b16 %v5363
  %v5407 = vunpack.c.l.b16 %v5364
  %v5408 = vunpack.c.h.b16 %v5364
  %v5409 = vunpack.c.l.b16 %v5365
  %v5410 = vunpack.c.h.b16 %v5365
  %v5411 = vunpack.c.l.b16 %v5366
  %v5412 = vunpack.c.h.b16 %v5366
  %v5413 = vunpack.c.l.b16 %v5367
  %v5414 = vunpack.c.h.b16 %v5367
  %v5415 = vunpack.c.l.b16 %v5368
  %v5416 = vunpack.c.h.b16 %v5368
  %v5417 = vunpack.c.l.b16 %v5369
  %v5418 = vunpack.c.h.b16 %v5369
  %v5419 = vunpack.c.l.b16 %v5370
  %v5420 = vunpack.c.h.b16 %v5370
  %v5421 = vunpack.c.l.b16 %v5371
  %v5422 = vunpack.c.h.b16 %v5371
  %v5423 = vunpack.c.l.b16 %v5372
  %v5424 = vunpack.c.h.b16 %v5372
  %v5425 = vunpack.c.l.b16 %v5373
  %v5426 = vunpack.c.h.b16 %v5373
  %v5427 = vunpack.c.l.b16 %v5374
  %v5428 = vunpack.c.h.b16 %v5374
  %v5429 = vpack.c.b16 %v5399, %v5397
  %v5430 = vpack.c.b16 %v5400, %v5398
  %v5431 = vpack.c.b16 %v5403, %v5401
  %v5432 = vpack.c.b16 %v5404, %v5402
  %v5433 = vpack.c.b16 %v5407, %v5405
  %v5434 = vpack.c.b16 %v5408, %v5406
  %v5435 = vpack.c.b16 %v5411, %v5409
  %v5436 = vpack.c.b16 %v5412, %v5410
  %v5437 = vpack.c.b16 %v5415, %v5413
  %v5438 = vpack.c.b16 %v5416, %v5414
  %v5439 = vpack.c.b16 %v5419, %v5417
  %v5440 = vpack.c.b16 %v5420, %v5418
  %v5441 = vpack.c.b16 %v5423, %v5421
  %v5442 = vpack.c.b16 %v5424, %v5422
  %v5443 = vpack.c.b16 %v5427, %v5425
  %v5444 = vpack.c.b16 %v5428, %v5426
  %5461 = vmatpush.bf16.msra.mxu0 %v5443
  %5462 = vmatpush.bf16.msra.mxu0 %v5441
  %5463 = vmatpush.bf16.msra.mxu0 %v5439
  %5464 = vmatpush.bf16.msra.mxu0 %v5437
  %5465 = vmatpush.bf16.msra.mxu0 %v5435
  %5466 = vmatpush.bf16.msra.mxu0 %v5433
  %5467 = vmatpush.bf16.msra.mxu0 %v5431
  %5468 = vmatpush.bf16.msra.mxu0 %v5429
  %5469 = vmatmul.bf16.gmra.mxu0 %v5379
  %v5470 = vpop.f32.mrf.mxu0
  %v5471 = vadd.f32 0.0, %v5470
  %v5472 = vpop.f32.mrf.mxu0
  %5473 = vdwg.mxu0
  %5474 = vmatpush.bf16.msra.mxu0 %v5444
  %5475 = vmatpush.bf16.msra.mxu0 %v5442
  %5476 = vmatpush.bf16.msra.mxu0 %v5440
  %5477 = vmatpush.bf16.msra.mxu0 %v5438
  %5478 = vmatpush.bf16.msra.mxu0 %v5436
  %5479 = vmatpush.bf16.msra.mxu0 %v5434
  %5480 = vmatpush.bf16.msra.mxu0 %v5432
  %5481 = vmatpush.bf16.msra.mxu0 %v5430
  %5482 = vmatmul.bf16.gmra.mxu0 %v5379
  %v5483 = vpop.f32.mrf.mxu0
  %v5484 = vadd.f32 0.0, %v5483
  %v5485 = vpop.f32.mrf.mxu0
  %5486 = vdwg.mxu0
  %v5489 = vunpack.c.l.b16 %v5326
  %v5490 = vunpack.c.l.b16 %v5327
  %v5491 = vpack.c.b16 %v5490, %v5489
  %v5509 = vunpack.c.l.b16 %v5342
  %v5510 = vunpack.c.h.b16 %v5342
  %v5511 = vunpack.c.l.b16 %v5343
  %v5512 = vunpack.c.h.b16 %v5343
  %v5513 = vunpack.c.l.b16 %v5344
  %v5514 = vunpack.c.h.b16 %v5344
  %v5515 = vunpack.c.l.b16 %v5345
  %v5516 = vunpack.c.h.b16 %v5345
  %v5517 = vunpack.c.l.b16 %v5346
  %v5518 = vunpack.c.h.b16 %v5346
  %v5519 = vunpack.c.l.b16 %v5347
  %v5520 = vunpack.c.h.b16 %v5347
  %v5521 = vunpack.c.l.b16 %v5348
  %v5522 = vunpack.c.h.b16 %v5348
  %v5523 = vunpack.c.l.b16 %v5349
  %v5524 = vunpack.c.h.b16 %v5349
  %v5525 = vunpack.c.l.b16 %v5350
  %v5526 = vunpack.c.h.b16 %v5350
  %v5527 = vunpack.c.l.b16 %v5351
  %v5528 = vunpack.c.h.b16 %v5351
  %v5529 = vunpack.c.l.b16 %v5352
  %v5530 = vunpack.c.h.b16 %v5352
  %v5531 = vunpack.c.l.b16 %v5353
  %v5532 = vunpack.c.h.b16 %v5353
  %v5533 = vunpack.c.l.b16 %v5354
  %v5534 = vunpack.c.h.b16 %v5354
  %v5535 = vunpack.c.l.b16 %v5355
  %v5536 = vunpack.c.h.b16 %v5355
  %v5537 = vunpack.c.l.b16 %v5356
  %v5538 = vunpack.c.h.b16 %v5356
  %v5539 = vunpack.c.l.b16 %v5357
  %v5540 = vunpack.c.h.b16 %v5357
  %v5541 = vpack.c.b16 %v5511, %v5509
  %v5542 = vpack.c.b16 %v5512, %v5510
  %v5543 = vpack.c.b16 %v5515, %v5513
  %v5544 = vpack.c.b16 %v5516, %v5514
  %v5545 = vpack.c.b16 %v5519, %v5517
  %v5546 = vpack.c.b16 %v5520, %v5518
  %v5547 = vpack.c.b16 %v5523, %v5521
  %v5548 = vpack.c.b16 %v5524, %v5522
  %v5549 = vpack.c.b16 %v5527, %v5525
  %v5550 = vpack.c.b16 %v5528, %v5526
  %v5551 = vpack.c.b16 %v5531, %v5529
  %v5552 = vpack.c.b16 %v5532, %v5530
  %v5553 = vpack.c.b16 %v5535, %v5533
  %v5554 = vpack.c.b16 %v5536, %v5534
  %v5555 = vpack.c.b16 %v5539, %v5537
  %v5556 = vpack.c.b16 %v5540, %v5538
  %5573 = vmatpush.bf16.msra.mxu0 %v5555
  %5574 = vmatpush.bf16.msra.mxu0 %v5553
  %5575 = vmatpush.bf16.msra.mxu0 %v5551
  %5576 = vmatpush.bf16.msra.mxu0 %v5549
  %5577 = vmatpush.bf16.msra.mxu0 %v5547
  %5578 = vmatpush.bf16.msra.mxu0 %v5545
  %5579 = vmatpush.bf16.msra.mxu0 %v5543
  %5580 = vmatpush.bf16.msra.mxu0 %v5541
  %5581 = vmatmul.bf16.gmra.mxu0 %v5491
  %v5582 = vpop.f32.mrf.mxu0
  %v5583 = vadd.f32 %v5471, %v5582
  %v5584 = vpop.f32.mrf.mxu0
  %5585 = vdwg.mxu0
  %5586 = vmatpush.bf16.msra.mxu0 %v5556
  %5587 = vmatpush.bf16.msra.mxu0 %v5554
  %5588 = vmatpush.bf16.msra.mxu0 %v5552
  %5589 = vmatpush.bf16.msra.mxu0 %v5550
  %5590 = vmatpush.bf16.msra.mxu0 %v5548
  %5591 = vmatpush.bf16.msra.mxu0 %v5546
  %5592 = vmatpush.bf16.msra.mxu0 %v5544
  %5593 = vmatpush.bf16.msra.mxu0 %v5542
  %5594 = vmatmul.bf16.gmra.mxu0 %v5491
  %v5595 = vpop.f32.mrf.mxu0
  %v5596 = vadd.f32 %v5484, %v5595
  %v5597 = vpop.f32.mrf.mxu0
  %5598 = vdwg.mxu0
  %s5599 = scalar_lea.vmem %s3, 256
  %v5600 = vld [vmem:[%s5599] sm:$0xff]
  %v5601 = vld [vmem:[%s5599 + $0x8] sm:$0xff]
  %v5602 = vld [vmem:[%s5599 + $0x10] sm:$0xff]
  %v5603 = vld [vmem:[%s5599 + $0x18] sm:$0xff]
  %v5604 = vld [vmem:[%s5599 + $0x20] sm:$0xff]
  %v5605 = vld [vmem:[%s5599 + $0x28] sm:$0xff]
  %v5606 = vld [vmem:[%s5599 + $0x30] sm:$0xff]
  %v5607 = vld [vmem:[%s5599 + $0x38] sm:$0xff]
  %v5608 = vld [vmem:[%s5599 + $0x40] sm:$0xff]
  %v5609 = vld [vmem:[%s5599 + $0x48] sm:$0xff]
  %v5610 = vld [vmem:[%s5599 + $0x50] sm:$0xff]
  %v5611 = vld [vmem:[%s5599 + $0x58] sm:$0xff]
  %v5612 = vld [vmem:[%s5599 + $0x60] sm:$0xff]
  %v5613 = vld [vmem:[%s5599 + $0x68] sm:$0xff]
  %v5614 = vld [vmem:[%s5599 + $0x70] sm:$0xff]
  %v5615 = vld [vmem:[%s5599 + $0x78] sm:$0xff]
  %v5618 = vunpack.c.l.b16 %v5330
  %v5619 = vunpack.c.l.b16 %v5331
  %v5620 = vpack.c.b16 %v5619, %v5618
  %v5638 = vunpack.c.l.b16 %v5600
  %v5639 = vunpack.c.h.b16 %v5600
  %v5640 = vunpack.c.l.b16 %v5601
  %v5641 = vunpack.c.h.b16 %v5601
  %v5642 = vunpack.c.l.b16 %v5602
  %v5643 = vunpack.c.h.b16 %v5602
  %v5644 = vunpack.c.l.b16 %v5603
  %v5645 = vunpack.c.h.b16 %v5603
  %v5646 = vunpack.c.l.b16 %v5604
  %v5647 = vunpack.c.h.b16 %v5604
  %v5648 = vunpack.c.l.b16 %v5605
  %v5649 = vunpack.c.h.b16 %v5605
  %v5650 = vunpack.c.l.b16 %v5606
  %v5651 = vunpack.c.h.b16 %v5606
  %v5652 = vunpack.c.l.b16 %v5607
  %v5653 = vunpack.c.h.b16 %v5607
  %v5654 = vunpack.c.l.b16 %v5608
  %v5655 = vunpack.c.h.b16 %v5608
  %v5656 = vunpack.c.l.b16 %v5609
  %v5657 = vunpack.c.h.b16 %v5609
  %v5658 = vunpack.c.l.b16 %v5610
  %v5659 = vunpack.c.h.b16 %v5610
  %v5660 = vunpack.c.l.b16 %v5611
  %v5661 = vunpack.c.h.b16 %v5611
  %v5662 = vunpack.c.l.b16 %v5612
  %v5663 = vunpack.c.h.b16 %v5612
  %v5664 = vunpack.c.l.b16 %v5613
  %v5665 = vunpack.c.h.b16 %v5613
  %v5666 = vunpack.c.l.b16 %v5614
  %v5667 = vunpack.c.h.b16 %v5614
  %v5668 = vunpack.c.l.b16 %v5615
  %v5669 = vunpack.c.h.b16 %v5615
  %v5670 = vpack.c.b16 %v5640, %v5638
  %v5671 = vpack.c.b16 %v5641, %v5639
  %v5672 = vpack.c.b16 %v5644, %v5642
  %v5673 = vpack.c.b16 %v5645, %v5643
  %v5674 = vpack.c.b16 %v5648, %v5646
  %v5675 = vpack.c.b16 %v5649, %v5647
  %v5676 = vpack.c.b16 %v5652, %v5650
  %v5677 = vpack.c.b16 %v5653, %v5651
  %v5678 = vpack.c.b16 %v5656, %v5654
  %v5679 = vpack.c.b16 %v5657, %v5655
  %v5680 = vpack.c.b16 %v5660, %v5658
  %v5681 = vpack.c.b16 %v5661, %v5659
  %v5682 = vpack.c.b16 %v5664, %v5662
  %v5683 = vpack.c.b16 %v5665, %v5663
  %v5684 = vpack.c.b16 %v5668, %v5666
  %v5685 = vpack.c.b16 %v5669, %v5667
  %5702 = vmatpush.bf16.msra.mxu0 %v5684
  %5703 = vmatpush.bf16.msra.mxu0 %v5682
  %5704 = vmatpush.bf16.msra.mxu0 %v5680
  %5705 = vmatpush.bf16.msra.mxu0 %v5678
  %5706 = vmatpush.bf16.msra.mxu0 %v5676
  %5707 = vmatpush.bf16.msra.mxu0 %v5674
  %5708 = vmatpush.bf16.msra.mxu0 %v5672
  %5709 = vmatpush.bf16.msra.mxu0 %v5670
  %5710 = vmatmul.bf16.gmra.mxu0 %v5620
  %v5711 = vpop.f32.mrf.mxu0
  %v5712 = vadd.f32 0.0, %v5711
  %v5713 = vpop.f32.mrf.mxu0
  %5714 = vdwg.mxu0
  %5715 = vmatpush.bf16.msra.mxu0 %v5685
  %5716 = vmatpush.bf16.msra.mxu0 %v5683
  %5717 = vmatpush.bf16.msra.mxu0 %v5681
  %5718 = vmatpush.bf16.msra.mxu0 %v5679
  %5719 = vmatpush.bf16.msra.mxu0 %v5677
  %5720 = vmatpush.bf16.msra.mxu0 %v5675
  %5721 = vmatpush.bf16.msra.mxu0 %v5673
  %5722 = vmatpush.bf16.msra.mxu0 %v5671
  %5723 = vmatmul.bf16.gmra.mxu0 %v5620
  %v5724 = vpop.f32.mrf.mxu0
  %v5725 = vadd.f32 0.0, %v5724
  %v5726 = vpop.f32.mrf.mxu0
  %5727 = vdwg.mxu0
  %v5728 = vadd.f32 %v5583, %v5712
  %v5729 = vadd.f32 %v5596, %v5725
  %s5730 = scalar_lea.vmem %s3, 384
  %v5731 = vld [vmem:[%s5730] sm:$0xff]
  %v5732 = vld [vmem:[%s5730 + $0x8] sm:$0xff]
  %v5733 = vld [vmem:[%s5730 + $0x10] sm:$0xff]
  %v5734 = vld [vmem:[%s5730 + $0x18] sm:$0xff]
  %v5735 = vld [vmem:[%s5730 + $0x20] sm:$0xff]
  %v5736 = vld [vmem:[%s5730 + $0x28] sm:$0xff]
  %v5737 = vld [vmem:[%s5730 + $0x30] sm:$0xff]
  %v5738 = vld [vmem:[%s5730 + $0x38] sm:$0xff]
  %v5739 = vld [vmem:[%s5730 + $0x40] sm:$0xff]
  %v5740 = vld [vmem:[%s5730 + $0x48] sm:$0xff]
  %v5741 = vld [vmem:[%s5730 + $0x50] sm:$0xff]
  %v5742 = vld [vmem:[%s5730 + $0x58] sm:$0xff]
  %v5743 = vld [vmem:[%s5730 + $0x60] sm:$0xff]
  %v5744 = vld [vmem:[%s5730 + $0x68] sm:$0xff]
  %v5745 = vld [vmem:[%s5730 + $0x70] sm:$0xff]
  %v5746 = vld [vmem:[%s5730 + $0x78] sm:$0xff]
  %v5749 = vunpack.c.l.b16 %v5332
  %v5750 = vunpack.c.l.b16 %v5333
  %v5751 = vpack.c.b16 %v5750, %v5749
  %v5769 = vunpack.c.l.b16 %v5731
  %v5770 = vunpack.c.h.b16 %v5731
  %v5771 = vunpack.c.l.b16 %v5732
  %v5772 = vunpack.c.h.b16 %v5732
  %v5773 = vunpack.c.l.b16 %v5733
  %v5774 = vunpack.c.h.b16 %v5733
  %v5775 = vunpack.c.l.b16 %v5734
  %v5776 = vunpack.c.h.b16 %v5734
  %v5777 = vunpack.c.l.b16 %v5735
  %v5778 = vunpack.c.h.b16 %v5735
  %v5779 = vunpack.c.l.b16 %v5736
  %v5780 = vunpack.c.h.b16 %v5736
  %v5781 = vunpack.c.l.b16 %v5737
  %v5782 = vunpack.c.h.b16 %v5737
  %v5783 = vunpack.c.l.b16 %v5738
  %v5784 = vunpack.c.h.b16 %v5738
  %v5785 = vunpack.c.l.b16 %v5739
  %v5786 = vunpack.c.h.b16 %v5739
  %v5787 = vunpack.c.l.b16 %v5740
  %v5788 = vunpack.c.h.b16 %v5740
  %v5789 = vunpack.c.l.b16 %v5741
  %v5790 = vunpack.c.h.b16 %v5741
  %v5791 = vunpack.c.l.b16 %v5742
  %v5792 = vunpack.c.h.b16 %v5742
  %v5793 = vunpack.c.l.b16 %v5743
  %v5794 = vunpack.c.h.b16 %v5743
  %v5795 = vunpack.c.l.b16 %v5744
  %v5796 = vunpack.c.h.b16 %v5744
  %v5797 = vunpack.c.l.b16 %v5745
  %v5798 = vunpack.c.h.b16 %v5745
  %v5799 = vunpack.c.l.b16 %v5746
  %v5800 = vunpack.c.h.b16 %v5746
  %v5801 = vpack.c.b16 %v5771, %v5769
  %v5802 = vpack.c.b16 %v5772, %v5770
  %v5803 = vpack.c.b16 %v5775, %v5773
  %v5804 = vpack.c.b16 %v5776, %v5774
  %v5805 = vpack.c.b16 %v5779, %v5777
  %v5806 = vpack.c.b16 %v5780, %v5778
  %v5807 = vpack.c.b16 %v5783, %v5781
  %v5808 = vpack.c.b16 %v5784, %v5782
  %v5809 = vpack.c.b16 %v5787, %v5785
  %v5810 = vpack.c.b16 %v5788, %v5786
  %v5811 = vpack.c.b16 %v5791, %v5789
  %v5812 = vpack.c.b16 %v5792, %v5790
  %v5813 = vpack.c.b16 %v5795, %v5793
  %v5814 = vpack.c.b16 %v5796, %v5794
  %v5815 = vpack.c.b16 %v5799, %v5797
  %v5816 = vpack.c.b16 %v5800, %v5798
  %5833 = vmatpush.bf16.msra.mxu0 %v5815
  %5834 = vmatpush.bf16.msra.mxu0 %v5813
  %5835 = vmatpush.bf16.msra.mxu0 %v5811
  %5836 = vmatpush.bf16.msra.mxu0 %v5809
  %5837 = vmatpush.bf16.msra.mxu0 %v5807
  %5838 = vmatpush.bf16.msra.mxu0 %v5805
  %5839 = vmatpush.bf16.msra.mxu0 %v5803
  %5840 = vmatpush.bf16.msra.mxu0 %v5801
  %5841 = vmatmul.bf16.gmra.mxu0 %v5751
  %v5842 = vpop.f32.mrf.mxu0
  %v5843 = vadd.f32 0.0, %v5842
  %v5844 = vpop.f32.mrf.mxu0
  %5845 = vdwg.mxu0
  %5846 = vmatpush.bf16.msra.mxu0 %v5816
  %5847 = vmatpush.bf16.msra.mxu0 %v5814
  %5848 = vmatpush.bf16.msra.mxu0 %v5812
  %5849 = vmatpush.bf16.msra.mxu0 %v5810
  %5850 = vmatpush.bf16.msra.mxu0 %v5808
  %5851 = vmatpush.bf16.msra.mxu0 %v5806
  %5852 = vmatpush.bf16.msra.mxu0 %v5804
  %5853 = vmatpush.bf16.msra.mxu0 %v5802
  %5854 = vmatmul.bf16.gmra.mxu0 %v5751
  %v5855 = vpop.f32.mrf.mxu0
  %v5856 = vadd.f32 0.0, %v5855
  %v5857 = vpop.f32.mrf.mxu0
  %5858 = vdwg.mxu0
  %v5859 = vadd.f32 %v5728, %v5843
  %v5860 = vadd.f32 %v5729, %v5856
  %s5861 = scalar_lea.vmem %s3, 512
  %v5862 = vld [vmem:[%s5861] sm:$0xff]
  %v5863 = vld [vmem:[%s5861 + $0x8] sm:$0xff]
  %v5864 = vld [vmem:[%s5861 + $0x10] sm:$0xff]
  %v5865 = vld [vmem:[%s5861 + $0x18] sm:$0xff]
  %v5866 = vld [vmem:[%s5861 + $0x20] sm:$0xff]
  %v5867 = vld [vmem:[%s5861 + $0x28] sm:$0xff]
  %v5868 = vld [vmem:[%s5861 + $0x30] sm:$0xff]
  %v5869 = vld [vmem:[%s5861 + $0x38] sm:$0xff]
  %v5870 = vld [vmem:[%s5861 + $0x40] sm:$0xff]
  %v5871 = vld [vmem:[%s5861 + $0x48] sm:$0xff]
  %v5872 = vld [vmem:[%s5861 + $0x50] sm:$0xff]
  %v5873 = vld [vmem:[%s5861 + $0x58] sm:$0xff]
  %v5874 = vld [vmem:[%s5861 + $0x60] sm:$0xff]
  %v5875 = vld [vmem:[%s5861 + $0x68] sm:$0xff]
  %v5876 = vld [vmem:[%s5861 + $0x70] sm:$0xff]
  %v5877 = vld [vmem:[%s5861 + $0x78] sm:$0xff]
  %v5880 = vunpack.c.l.b16 %v5334
  %v5881 = vunpack.c.l.b16 %v5335
  %v5882 = vpack.c.b16 %v5881, %v5880
  %v5900 = vunpack.c.l.b16 %v5862
  %v5901 = vunpack.c.h.b16 %v5862
  %v5902 = vunpack.c.l.b16 %v5863
  %v5903 = vunpack.c.h.b16 %v5863
  %v5904 = vunpack.c.l.b16 %v5864
  %v5905 = vunpack.c.h.b16 %v5864
  %v5906 = vunpack.c.l.b16 %v5865
  %v5907 = vunpack.c.h.b16 %v5865
  %v5908 = vunpack.c.l.b16 %v5866
  %v5909 = vunpack.c.h.b16 %v5866
  %v5910 = vunpack.c.l.b16 %v5867
  %v5911 = vunpack.c.h.b16 %v5867
  %v5912 = vunpack.c.l.b16 %v5868
  %v5913 = vunpack.c.h.b16 %v5868
  %v5914 = vunpack.c.l.b16 %v5869
  %v5915 = vunpack.c.h.b16 %v5869
  %v5916 = vunpack.c.l.b16 %v5870
  %v5917 = vunpack.c.h.b16 %v5870
  %v5918 = vunpack.c.l.b16 %v5871
  %v5919 = vunpack.c.h.b16 %v5871
  %v5920 = vunpack.c.l.b16 %v5872
  %v5921 = vunpack.c.h.b16 %v5872
  %v5922 = vunpack.c.l.b16 %v5873
  %v5923 = vunpack.c.h.b16 %v5873
  %v5924 = vunpack.c.l.b16 %v5874
  %v5925 = vunpack.c.h.b16 %v5874
  %v5926 = vunpack.c.l.b16 %v5875
  %v5927 = vunpack.c.h.b16 %v5875
  %v5928 = vunpack.c.l.b16 %v5876
  %v5929 = vunpack.c.h.b16 %v5876
  %v5930 = vunpack.c.l.b16 %v5877
  %v5931 = vunpack.c.h.b16 %v5877
  %v5932 = vpack.c.b16 %v5902, %v5900
  %v5933 = vpack.c.b16 %v5903, %v5901
  %v5934 = vpack.c.b16 %v5906, %v5904
  %v5935 = vpack.c.b16 %v5907, %v5905
  %v5936 = vpack.c.b16 %v5910, %v5908
  %v5937 = vpack.c.b16 %v5911, %v5909
  %v5938 = vpack.c.b16 %v5914, %v5912
  %v5939 = vpack.c.b16 %v5915, %v5913
  %v5940 = vpack.c.b16 %v5918, %v5916
  %v5941 = vpack.c.b16 %v5919, %v5917
  %v5942 = vpack.c.b16 %v5922, %v5920
  %v5943 = vpack.c.b16 %v5923, %v5921
  %v5944 = vpack.c.b16 %v5926, %v5924
  %v5945 = vpack.c.b16 %v5927, %v5925
  %v5946 = vpack.c.b16 %v5930, %v5928
  %v5947 = vpack.c.b16 %v5931, %v5929
  %5964 = vmatpush.bf16.msra.mxu0 %v5946
  %5965 = vmatpush.bf16.msra.mxu0 %v5944
  %5966 = vmatpush.bf16.msra.mxu0 %v5942
  %5967 = vmatpush.bf16.msra.mxu0 %v5940
  %5968 = vmatpush.bf16.msra.mxu0 %v5938
  %5969 = vmatpush.bf16.msra.mxu0 %v5936
  %5970 = vmatpush.bf16.msra.mxu0 %v5934
  %5971 = vmatpush.bf16.msra.mxu0 %v5932
  %5972 = vmatmul.bf16.gmra.mxu0 %v5882
  %v5973 = vpop.f32.mrf.mxu0
  %v5974 = vadd.f32 0.0, %v5973
  %v5975 = vpop.f32.mrf.mxu0
  %5976 = vdwg.mxu0
  %5977 = vmatpush.bf16.msra.mxu0 %v5947
  %5978 = vmatpush.bf16.msra.mxu0 %v5945
  %5979 = vmatpush.bf16.msra.mxu0 %v5943
  %5980 = vmatpush.bf16.msra.mxu0 %v5941
  %5981 = vmatpush.bf16.msra.mxu0 %v5939
  %5982 = vmatpush.bf16.msra.mxu0 %v5937
  %5983 = vmatpush.bf16.msra.mxu0 %v5935
  %5984 = vmatpush.bf16.msra.mxu0 %v5933
  %5985 = vmatmul.bf16.gmra.mxu0 %v5882
  %v5986 = vpop.f32.mrf.mxu0
  %v5987 = vadd.f32 0.0, %v5986
  %v5988 = vpop.f32.mrf.mxu0
  %5989 = vdwg.mxu0
  %v5990 = vadd.f32 %v5859, %v5974
  %v5991 = vadd.f32 %v5860, %v5987
  %s5992 = scalar_lea.vmem %s3, 640
  %v5993 = vld [vmem:[%s5992] sm:$0xff]
  %v5994 = vld [vmem:[%s5992 + $0x8] sm:$0xff]
  %v5995 = vld [vmem:[%s5992 + $0x10] sm:$0xff]
  %v5996 = vld [vmem:[%s5992 + $0x18] sm:$0xff]
  %v5997 = vld [vmem:[%s5992 + $0x20] sm:$0xff]
  %v5998 = vld [vmem:[%s5992 + $0x28] sm:$0xff]
  %v5999 = vld [vmem:[%s5992 + $0x30] sm:$0xff]
  %v6000 = vld [vmem:[%s5992 + $0x38] sm:$0xff]
  %v6001 = vld [vmem:[%s5992 + $0x40] sm:$0xff]
  %v6002 = vld [vmem:[%s5992 + $0x48] sm:$0xff]
  %v6003 = vld [vmem:[%s5992 + $0x50] sm:$0xff]
  %v6004 = vld [vmem:[%s5992 + $0x58] sm:$0xff]
  %v6005 = vld [vmem:[%s5992 + $0x60] sm:$0xff]
  %v6006 = vld [vmem:[%s5992 + $0x68] sm:$0xff]
  %v6007 = vld [vmem:[%s5992 + $0x70] sm:$0xff]
  %v6008 = vld [vmem:[%s5992 + $0x78] sm:$0xff]
  %v6011 = vunpack.c.l.b16 %v5336
  %v6012 = vunpack.c.l.b16 %v5337
  %v6013 = vpack.c.b16 %v6012, %v6011
  %v6031 = vunpack.c.l.b16 %v5993
  %v6032 = vunpack.c.h.b16 %v5993
  %v6033 = vunpack.c.l.b16 %v5994
  %v6034 = vunpack.c.h.b16 %v5994
  %v6035 = vunpack.c.l.b16 %v5995
  %v6036 = vunpack.c.h.b16 %v5995
  %v6037 = vunpack.c.l.b16 %v5996
  %v6038 = vunpack.c.h.b16 %v5996
  %v6039 = vunpack.c.l.b16 %v5997
  %v6040 = vunpack.c.h.b16 %v5997
  %v6041 = vunpack.c.l.b16 %v5998
  %v6042 = vunpack.c.h.b16 %v5998
  %v6043 = vunpack.c.l.b16 %v5999
  %v6044 = vunpack.c.h.b16 %v5999
  %v6045 = vunpack.c.l.b16 %v6000
  %v6046 = vunpack.c.h.b16 %v6000
  %v6047 = vunpack.c.l.b16 %v6001
  %v6048 = vunpack.c.h.b16 %v6001
  %v6049 = vunpack.c.l.b16 %v6002
  %v6050 = vunpack.c.h.b16 %v6002
  %v6051 = vunpack.c.l.b16 %v6003
  %v6052 = vunpack.c.h.b16 %v6003
  %v6053 = vunpack.c.l.b16 %v6004
  %v6054 = vunpack.c.h.b16 %v6004
  %v6055 = vunpack.c.l.b16 %v6005
  %v6056 = vunpack.c.h.b16 %v6005
  %v6057 = vunpack.c.l.b16 %v6006
  %v6058 = vunpack.c.h.b16 %v6006
  %v6059 = vunpack.c.l.b16 %v6007
  %v6060 = vunpack.c.h.b16 %v6007
  %v6061 = vunpack.c.l.b16 %v6008
  %v6062 = vunpack.c.h.b16 %v6008
  %v6063 = vpack.c.b16 %v6033, %v6031
  %v6064 = vpack.c.b16 %v6034, %v6032
  %v6065 = vpack.c.b16 %v6037, %v6035
  %v6066 = vpack.c.b16 %v6038, %v6036
  %v6067 = vpack.c.b16 %v6041, %v6039
  %v6068 = vpack.c.b16 %v6042, %v6040
  %v6069 = vpack.c.b16 %v6045, %v6043
  %v6070 = vpack.c.b16 %v6046, %v6044
  %v6071 = vpack.c.b16 %v6049, %v6047
  %v6072 = vpack.c.b16 %v6050, %v6048
  %v6073 = vpack.c.b16 %v6053, %v6051
  %v6074 = vpack.c.b16 %v6054, %v6052
  %v6075 = vpack.c.b16 %v6057, %v6055
  %v6076 = vpack.c.b16 %v6058, %v6056
  %v6077 = vpack.c.b16 %v6061, %v6059
  %v6078 = vpack.c.b16 %v6062, %v6060
  %6095 = vmatpush.bf16.msra.mxu0 %v6077
  %6096 = vmatpush.bf16.msra.mxu0 %v6075
  %6097 = vmatpush.bf16.msra.mxu0 %v6073
  %6098 = vmatpush.bf16.msra.mxu0 %v6071
  %6099 = vmatpush.bf16.msra.mxu0 %v6069
  %6100 = vmatpush.bf16.msra.mxu0 %v6067
  %6101 = vmatpush.bf16.msra.mxu0 %v6065
  %6102 = vmatpush.bf16.msra.mxu0 %v6063
  %6103 = vmatmul.bf16.gmra.mxu0 %v6013
  %v6104 = vpop.f32.mrf.mxu0
  %v6105 = vadd.f32 0.0, %v6104
  %v6106 = vpop.f32.mrf.mxu0
  %6107 = vdwg.mxu0
  %6108 = vmatpush.bf16.msra.mxu0 %v6078
  %6109 = vmatpush.bf16.msra.mxu0 %v6076
  %6110 = vmatpush.bf16.msra.mxu0 %v6074
  %6111 = vmatpush.bf16.msra.mxu0 %v6072
  %6112 = vmatpush.bf16.msra.mxu0 %v6070
  %6113 = vmatpush.bf16.msra.mxu0 %v6068
  %6114 = vmatpush.bf16.msra.mxu0 %v6066
  %6115 = vmatpush.bf16.msra.mxu0 %v6064
  %6116 = vmatmul.bf16.gmra.mxu0 %v6013
  %v6117 = vpop.f32.mrf.mxu0
  %v6118 = vadd.f32 0.0, %v6117
  %v6119 = vpop.f32.mrf.mxu0
  %6120 = vdwg.mxu0
  %v6121 = vadd.f32 %v5990, %v6105
  %v6122 = vadd.f32 %v5991, %v6118
  %s6123 = scalar_lea.vmem %s3, 768
  %v6124 = vld [vmem:[%s6123] sm:$0xff]
  %v6125 = vld [vmem:[%s6123 + $0x8] sm:$0xff]
  %v6126 = vld [vmem:[%s6123 + $0x10] sm:$0xff]
  %v6127 = vld [vmem:[%s6123 + $0x18] sm:$0xff]
  %v6128 = vld [vmem:[%s6123 + $0x20] sm:$0xff]
  %v6129 = vld [vmem:[%s6123 + $0x28] sm:$0xff]
  %v6130 = vld [vmem:[%s6123 + $0x30] sm:$0xff]
  %v6131 = vld [vmem:[%s6123 + $0x38] sm:$0xff]
  %v6132 = vld [vmem:[%s6123 + $0x40] sm:$0xff]
  %v6133 = vld [vmem:[%s6123 + $0x48] sm:$0xff]
  %v6134 = vld [vmem:[%s6123 + $0x50] sm:$0xff]
  %v6135 = vld [vmem:[%s6123 + $0x58] sm:$0xff]
  %v6136 = vld [vmem:[%s6123 + $0x60] sm:$0xff]
  %v6137 = vld [vmem:[%s6123 + $0x68] sm:$0xff]
  %v6138 = vld [vmem:[%s6123 + $0x70] sm:$0xff]
  %v6139 = vld [vmem:[%s6123 + $0x78] sm:$0xff]
  %v6142 = vunpack.c.l.b16 %v5338
  %v6143 = vunpack.c.l.b16 %v5339
  %v6144 = vpack.c.b16 %v6143, %v6142
  %v6162 = vunpack.c.l.b16 %v6124
  %v6163 = vunpack.c.h.b16 %v6124
  %v6164 = vunpack.c.l.b16 %v6125
  %v6165 = vunpack.c.h.b16 %v6125
  %v6166 = vunpack.c.l.b16 %v6126
  %v6167 = vunpack.c.h.b16 %v6126
  %v6168 = vunpack.c.l.b16 %v6127
  %v6169 = vunpack.c.h.b16 %v6127
  %v6170 = vunpack.c.l.b16 %v6128
  %v6171 = vunpack.c.h.b16 %v6128
  %v6172 = vunpack.c.l.b16 %v6129
  %v6173 = vunpack.c.h.b16 %v6129
  %v6174 = vunpack.c.l.b16 %v6130
  %v6175 = vunpack.c.h.b16 %v6130
  %v6176 = vunpack.c.l.b16 %v6131
  %v6177 = vunpack.c.h.b16 %v6131
  %v6178 = vunpack.c.l.b16 %v6132
  %v6179 = vunpack.c.h.b16 %v6132
  %v6180 = vunpack.c.l.b16 %v6133
  %v6181 = vunpack.c.h.b16 %v6133
  %v6182 = vunpack.c.l.b16 %v6134
  %v6183 = vunpack.c.h.b16 %v6134
  %v6184 = vunpack.c.l.b16 %v6135
  %v6185 = vunpack.c.h.b16 %v6135
  %v6186 = vunpack.c.l.b16 %v6136
  %v6187 = vunpack.c.h.b16 %v6136
  %v6188 = vunpack.c.l.b16 %v6137
  %v6189 = vunpack.c.h.b16 %v6137
  %v6190 = vunpack.c.l.b16 %v6138
  %v6191 = vunpack.c.h.b16 %v6138
  %v6192 = vunpack.c.l.b16 %v6139
  %v6193 = vunpack.c.h.b16 %v6139
  %v6194 = vpack.c.b16 %v6164, %v6162
  %v6195 = vpack.c.b16 %v6165, %v6163
  %v6196 = vpack.c.b16 %v6168, %v6166
  %v6197 = vpack.c.b16 %v6169, %v6167
  %v6198 = vpack.c.b16 %v6172, %v6170
  %v6199 = vpack.c.b16 %v6173, %v6171
  %v6200 = vpack.c.b16 %v6176, %v6174
  %v6201 = vpack.c.b16 %v6177, %v6175
  %v6202 = vpack.c.b16 %v6180, %v6178
  %v6203 = vpack.c.b16 %v6181, %v6179
  %v6204 = vpack.c.b16 %v6184, %v6182
  %v6205 = vpack.c.b16 %v6185, %v6183
  %v6206 = vpack.c.b16 %v6188, %v6186
  %v6207 = vpack.c.b16 %v6189, %v6187
  %v6208 = vpack.c.b16 %v6192, %v6190
  %v6209 = vpack.c.b16 %v6193, %v6191
  %6226 = vmatpush.bf16.msra.mxu0 %v6208
  %6227 = vmatpush.bf16.msra.mxu0 %v6206
  %6228 = vmatpush.bf16.msra.mxu0 %v6204
  %6229 = vmatpush.bf16.msra.mxu0 %v6202
  %6230 = vmatpush.bf16.msra.mxu0 %v6200
  %6231 = vmatpush.bf16.msra.mxu0 %v6198
  %6232 = vmatpush.bf16.msra.mxu0 %v6196
  %6233 = vmatpush.bf16.msra.mxu0 %v6194
  %6234 = vmatmul.bf16.gmra.mxu0 %v6144
  %v6235 = vpop.f32.mrf.mxu0
  %v6236 = vadd.f32 0.0, %v6235
  %v6237 = vpop.f32.mrf.mxu0
  %6238 = vdwg.mxu0
  %6239 = vmatpush.bf16.msra.mxu0 %v6209
  %6240 = vmatpush.bf16.msra.mxu0 %v6207
  %6241 = vmatpush.bf16.msra.mxu0 %v6205
  %6242 = vmatpush.bf16.msra.mxu0 %v6203
  %6243 = vmatpush.bf16.msra.mxu0 %v6201
  %6244 = vmatpush.bf16.msra.mxu0 %v6199
  %6245 = vmatpush.bf16.msra.mxu0 %v6197
  %6246 = vmatpush.bf16.msra.mxu0 %v6195
  %6247 = vmatmul.bf16.gmra.mxu0 %v6144
  %v6248 = vpop.f32.mrf.mxu0
  %v6249 = vadd.f32 0.0, %v6248
  %v6250 = vpop.f32.mrf.mxu0
  %6251 = vdwg.mxu0
  %v6252 = vadd.f32 %v6121, %v6236
  %v6253 = vadd.f32 %v6122, %v6249
  %s6254 = scalar_lea.vmem %s3, 896
  %v6255 = vld [vmem:[%s6254] sm:$0xff]
  %v6256 = vld [vmem:[%s6254 + $0x8] sm:$0xff]
  %v6257 = vld [vmem:[%s6254 + $0x10] sm:$0xff]
  %v6258 = vld [vmem:[%s6254 + $0x18] sm:$0xff]
  %v6259 = vld [vmem:[%s6254 + $0x20] sm:$0xff]
  %v6260 = vld [vmem:[%s6254 + $0x28] sm:$0xff]
  %v6261 = vld [vmem:[%s6254 + $0x30] sm:$0xff]
  %v6262 = vld [vmem:[%s6254 + $0x38] sm:$0xff]
  %v6263 = vld [vmem:[%s6254 + $0x40] sm:$0xff]
  %v6264 = vld [vmem:[%s6254 + $0x48] sm:$0xff]
  %v6265 = vld [vmem:[%s6254 + $0x50] sm:$0xff]
  %v6266 = vld [vmem:[%s6254 + $0x58] sm:$0xff]
  %v6267 = vld [vmem:[%s6254 + $0x60] sm:$0xff]
  %v6268 = vld [vmem:[%s6254 + $0x68] sm:$0xff]
  %v6269 = vld [vmem:[%s6254 + $0x70] sm:$0xff]
  %v6270 = vld [vmem:[%s6254 + $0x78] sm:$0xff]
  %v6273 = vunpack.c.l.b16 %v5340
  %v6274 = vunpack.c.l.b16 %v5341
  %v6275 = vpack.c.b16 %v6274, %v6273
  %v6293 = vunpack.c.l.b16 %v6255
  %v6294 = vunpack.c.h.b16 %v6255
  %v6295 = vunpack.c.l.b16 %v6256
  %v6296 = vunpack.c.h.b16 %v6256
  %v6297 = vunpack.c.l.b16 %v6257
  %v6298 = vunpack.c.h.b16 %v6257
  %v6299 = vunpack.c.l.b16 %v6258
  %v6300 = vunpack.c.h.b16 %v6258
  %v6301 = vunpack.c.l.b16 %v6259
  %v6302 = vunpack.c.h.b16 %v6259
  %v6303 = vunpack.c.l.b16 %v6260
  %v6304 = vunpack.c.h.b16 %v6260
  %v6305 = vunpack.c.l.b16 %v6261
  %v6306 = vunpack.c.h.b16 %v6261
  %v6307 = vunpack.c.l.b16 %v6262
  %v6308 = vunpack.c.h.b16 %v6262
  %v6309 = vunpack.c.l.b16 %v6263
  %v6310 = vunpack.c.h.b16 %v6263
  %v6311 = vunpack.c.l.b16 %v6264
  %v6312 = vunpack.c.h.b16 %v6264
  %v6313 = vunpack.c.l.b16 %v6265
  %v6314 = vunpack.c.h.b16 %v6265
  %v6315 = vunpack.c.l.b16 %v6266
  %v6316 = vunpack.c.h.b16 %v6266
  %v6317 = vunpack.c.l.b16 %v6267
  %v6318 = vunpack.c.h.b16 %v6267
  %v6319 = vunpack.c.l.b16 %v6268
  %v6320 = vunpack.c.h.b16 %v6268
  %v6321 = vunpack.c.l.b16 %v6269
  %v6322 = vunpack.c.h.b16 %v6269
  %v6323 = vunpack.c.l.b16 %v6270
  %v6324 = vunpack.c.h.b16 %v6270
  %v6325 = vpack.c.b16 %v6295, %v6293
  %v6326 = vpack.c.b16 %v6296, %v6294
  %v6327 = vpack.c.b16 %v6299, %v6297
  %v6328 = vpack.c.b16 %v6300, %v6298
  %v6329 = vpack.c.b16 %v6303, %v6301
  %v6330 = vpack.c.b16 %v6304, %v6302
  %v6331 = vpack.c.b16 %v6307, %v6305
  %v6332 = vpack.c.b16 %v6308, %v6306
  %v6333 = vpack.c.b16 %v6311, %v6309
  %v6334 = vpack.c.b16 %v6312, %v6310
  %v6335 = vpack.c.b16 %v6315, %v6313
  %v6336 = vpack.c.b16 %v6316, %v6314
  %v6337 = vpack.c.b16 %v6319, %v6317
  %v6338 = vpack.c.b16 %v6320, %v6318
  %v6339 = vpack.c.b16 %v6323, %v6321
  %v6340 = vpack.c.b16 %v6324, %v6322
  %6357 = vmatpush.bf16.msra.mxu0 %v6339
  %6358 = vmatpush.bf16.msra.mxu0 %v6337
  %6359 = vmatpush.bf16.msra.mxu0 %v6335
  %6360 = vmatpush.bf16.msra.mxu0 %v6333
  %6361 = vmatpush.bf16.msra.mxu0 %v6331
  %6362 = vmatpush.bf16.msra.mxu0 %v6329
  %6363 = vmatpush.bf16.msra.mxu0 %v6327
  %6364 = vmatpush.bf16.msra.mxu0 %v6325
  %6365 = vmatmul.bf16.gmra.mxu0 %v6275
  %v6366 = vpop.f32.mrf.mxu0
  %v6367 = vadd.f32 0.0, %v6366
  %v6368 = vpop.f32.mrf.mxu0
  %6369 = vdwg.mxu0
  %6370 = vmatpush.bf16.msra.mxu0 %v6340
  %6371 = vmatpush.bf16.msra.mxu0 %v6338
  %6372 = vmatpush.bf16.msra.mxu0 %v6336
  %6373 = vmatpush.bf16.msra.mxu0 %v6334
  %6374 = vmatpush.bf16.msra.mxu0 %v6332
  %6375 = vmatpush.bf16.msra.mxu0 %v6330
  %6376 = vmatpush.bf16.msra.mxu0 %v6328
  %6377 = vmatpush.bf16.msra.mxu0 %v6326
  %6378 = vmatmul.bf16.gmra.mxu0 %v6275
  %v6379 = vpop.f32.mrf.mxu0
  %v6380 = vadd.f32 0.0, %v6379
  %v6381 = vpop.f32.mrf.mxu0
  %6382 = vdwg.mxu0
  %v6383 = vadd.f32 %v6252, %v6367
  %v6384 = vadd.f32 %v6253, %v6380
  %v6385 = vld [vmem:[%s4] sm:$0x3]
  %v6387 = vperm.slane %v6385, 0
  %v6388 = vperm.slane %v6385, 1
  %v6391 = vadd.f32 %v6383, %v6387
  %v6392 = vadd.f32 %v6384, %v6388
  %v6393 = vmax.f32 %v6391, 0.0
  %v6394 = vmax.f32 %v6392, 0.0
  %v6395 = vld [vmem:[%s5] sm:$0x3]
  %v6397 = vperm.slane %v6395, 0
  %v6398 = vperm.slane %v6395, 1
  %v6401 = vmul.f32 %v6393, %v6397
  %v6402 = vmul.f32 %v6394, %v6398
  %v6403 = vadd.f32 %v6401, %v6402
  %6404 = vadd.xlane.f32.xlu0 %v6403
  %v6405 = vpop.xlane.xlu0 %6404
  %v6406 = vld [vmem:[#allocation2] sm:$0x1]
  %v6408 = vperm.slane %v6406, 0
  %v6410 = vadd.f32 %v6405, %v6408
  %v6411 = vxor.u32 %v6410, 2147483648
  %v6412 = vmul.f32 %v6411, 1.442695
  %v6413 = vpow.pop %v6412
  %v6414 = vadd.f32 %v6413, 1.0
  %v6415 = vrcp.pop %v6414
  %v6416 = vmul.f32 %v6414, %v6415
  %v6417 = vsub.f32 1.0, %v6416
  %v6418 = vmul.f32 %v6415, %v6417
  %v6419 = vadd.f32 %v6415, %v6418
  %vm6420 = vweird.f32 %v6414
  %vm6421 = vweird.f32 %v6415
  %vm6422 = vmor %vm6420, %vm6421
  %v6423 = vsel %vm6422, %v6415, %v6419
  %v6424 = vand.u32 2147483647, %v6414
  %vm6425 = vcmp.eq.f32.partialorder %v6424, 8.507059e+37
  %v6426 = vand.u32 %v6414, 2147483648
  %v6427 = vor.u32 1.1754944e-38, %v6426
  %v6428 = vsel %vm6425, %v6427, %v6423
  %v6429 = vmul.f32 1.0, %v6428
  %vm6430 = vcmask 1024
  %6431 = vst.msk [vmem:[%s7] sm:$0x3] %vm6430, %v6429
  // Predicated region
  $region30: #{discriminator_forward.5} parent=0 // pred_check
    _
  $region31: #{discriminator_forward.5} parent=0 // pred_check_branch
    %6433 = sbr.rel (0) target = $region33
  $region32: #{discriminator_forward.5} parent=0 // pred_region
    _
  $region33: #{discriminator_forward.5} parent=0 // pred_fallthru
    _
  // Predicated region
  $region34: #{discriminator_forward.5} parent=0 // pred_check
    _
  $region35: #{discriminator_forward.5} parent=0 // pred_check_branch
    %6435 = sbr.rel (0) target = $region37
  $region36: #{discriminator_forward.5} parent=0 // pred_region
    _
  $region37: #{discriminator_forward.5} parent=0 // pred_fallthru
    _

</llo_original>
